<compile_context>
chip_gen: v7x
topology: tpu7x:2x2x1
jax: 0.10.0
libtpu: 0.0.40
codegen_flags: <defaults>
</compile_context>

<pallas_src>
import functools

import numpy as np
import jax
import jax.numpy as jnp
from jax.experimental import pallas as pl
from jax.experimental.pallas import tpu as pltpu


# ------------------------------------------------------------------ kernel ---

def _cross_attention_kernel(x1_ref, x2_ref, w1_ref, w2_ref,
                            wp1_ref, wp2_ref, bp1_ref, bp2_ref,
                            o1_ref, o2_ref, *, num_heads):
    """One grid step = TB batch elements, both attention directions fused.

    x1_ref, x2_ref : (TB, N, C)   bf16  token blocks
    w1_ref, w2_ref : (3, H, D, C) bf16  per-head q/k/v weights (scale folded into Wq)
    wp*_ref        : (H, D, C)    bf16  per-head output-projection weights
    bp*_ref        : (1, C)       f32   output-projection bias
    o*_ref         : (TB, N, C)   f32
    """
    TB, N, C = x1_ref.shape
    H = num_heads
    D = C // H
    T = TB * N              # tokens per grid step
    Z = H * TB              # independent attention problems per grid step

    # Flatten tokens and broadcast over heads so every matmul below is a
    # leading-batch-dim batched dot (no lane slicing, no transposes, no concat).
    x1 = jnp.broadcast_to(x1_ref[...].reshape(T, C)[None], (H, T, C))
    x2 = jnp.broadcast_to(x2_ref[...].reshape(T, C)[None], (H, T, C))

    def project(xb, w_ref):
        # (H,T,C) x (H,D,C) contracted over C -> (H,T,D); f32 accumulation on MXU.
        def one(w):
            r = jnp.einsum('htc,hdc->htd', xb, w,
                           preferred_element_type=jnp.float32)
            return r.reshape(Z, N, D).astype(jnp.bfloat16)   # layout-preserving reshape
        return one(w_ref[0]), one(w_ref[1]), one(w_ref[2])   # q, k, v

    q1, k1, v1 = project(x1, w1_ref)
    q2, k2, v2 = project(x2, w2_ref)

    def attend(q, k, v, wp_ref, bp_ref, o_ref):
        # Scores per (head, batch) pair; softmax over keys (scale already in Wq).
        s = jnp.einsum('znd,zmd->znm', q, k,
                       preferred_element_type=jnp.float32)            # (Z, N, N)
        s = s - jnp.max(s, axis=-1, keepdims=True)
        p = jnp.exp(s)
        p = p * pl.reciprocal(jnp.sum(p, axis=-1, keepdims=True), approx=True)
        o = jnp.einsum('znm,zmd->znd', p.astype(jnp.bfloat16), v,
                       preferred_element_type=jnp.float32)            # (Z, N, D)
        # Head concat folded into the projection: out = sum_h o_h @ Wp_h + b.
        oh = o.reshape(H, T, D).astype(jnp.bfloat16)
        out = jnp.einsum('htd,hdc->htc', oh, wp_ref[...],
                         preferred_element_type=jnp.float32).sum(axis=0)  # (T, C)
        out = out + bp_ref[...]
        o_ref[...] = out.reshape(TB, N, C).astype(o_ref.dtype)

    attend(q1, k2, v2, wp1_ref, bp1_ref, o1_ref)   # x1 queries, x2 keys/values
    attend(q2, k1, v1, wp2_ref, bp2_ref, o2_ref)   # x2 queries, x1 keys/values


# ----------------------------------------------------------------- wrapper ---

def cross_attention(x1, x2, packed, num_heads, *, block_b=8):
    """packed = pack_params(...) (one-time, outside the hot path)."""
    B, N, C = x1.shape
    assert x2.shape == (B, N, C)
    assert C % num_heads == 0
    D = C // num_heads

    tb = max(1, min(block_b, B))
    while B % tb:            # largest batch tile <= block_b that divides B
        tb -= 1

    kernel = functools.partial(_cross_attention_kernel, num_heads=num_heads)

    tok_spec = pl.BlockSpec((tb, N, C), lambda i: (i, 0, 0))
    qkv_spec = pl.BlockSpec((3, num_heads, D, C), lambda i: (0, 0, 0, 0))
    wp_spec = pl.BlockSpec((num_heads, D, C), lambda i: (0, 0, 0))
    bp_spec = pl.BlockSpec((1, C), lambda i: (0, 0))
    out_sds = jax.ShapeDtypeStruct((B, N, C), jnp.float32)

    return pl.pallas_call(
        kernel,
        out_shape=(out_sds, out_sds),
        grid_spec=pltpu.PrefetchScalarGridSpec(
            num_scalar_prefetch=0,
            grid=(B // tb,),
            in_specs=[tok_spec, tok_spec,
                      qkv_spec, qkv_spec,
                      wp_spec, wp_spec,
                      bp_spec, bp_spec],
            out_specs=[tok_spec, tok_spec],
        ),
        compiler_params=pltpu.CompilerParams(
            dimension_semantics=("parallel",)),
    )(x1.astype(jnp.bfloat16), x2.astype(jnp.bfloat16),
      packed["w1"], packed["w2"], packed["wp1"], packed["wp2"],
      packed["bp1"], packed["bp2"])


# ----------------------------------------------- one-time parameter packing ---

def pack_params(params, num_heads):
    """One-time weight packing (PyTorch nn.Linear layout in, kernel layout out).

    params:
      wqkv1, wqkv2 : (3C, C)  rows = [q; k; v] output channels, cols = inputs
      wp1, wp2     : (C, C)
      bp1, bp2     : (C,)
    Returns bf16 per-head weights with the softmax scale folded into Wq.
    """
    C = params["wp1"].shape[0]
    H = num_heads
    D = C // H
    scale = D ** (-0.5)

    def qkv(w):
        wq, wk, wv = w[:C], w[C:2 * C], w[2 * C:]
        per_head = lambda m, s=1.0: (m * s).reshape(H, D, C)          # (H, D, Cin)
        return jnp.stack([per_head(wq, scale), per_head(wk), per_head(wv)],
                         axis=0).astype(jnp.bfloat16)                 # (3, H, D, Cin)

    def proj(w):
        # out = o @ W^T ; W^T is (Cin, Cout); group input rows per head.
        return w.T.reshape(H, D, C).astype(jnp.bfloat16)              # (H, D, Cout)

    return dict(
        w1=qkv(params["wqkv1"]), w2=qkv(params["wqkv2"]),
        wp1=proj(params["wp1"]), wp2=proj(params["wp2"]),
        bp1=params["bp1"][None].astype(jnp.float32),
        bp2=params["bp2"][None].astype(jnp.float32),
    )


def init_params(key, dim):
    """Synthetic init matching the module's parameter shapes (qkv_bias=False)."""
    ks = jax.random.split(key, 6)
    bound = 1.0 / np.sqrt(dim)
    u = lambda k, shape: jax.random.uniform(k, shape, jnp.float32, -bound, bound)
    return dict(
        wqkv1=u(ks[0], (3 * dim, dim)),
        wqkv2=u(ks[1], (3 * dim, dim)),
        wp1=u(ks[2], (dim, dim)), bp1=u(ks[3], (dim,)),
        wp2=u(ks[4], (dim, dim)), bp2=u(ks[5], (dim,)),
    )


# --------------------------------------------------------- pure-JAX reference

def reference_forward(x1, x2, params, num_heads):
    B, N, C = x1.shape
    H = num_heads
    D = C // H
    scale = D ** (-0.5)

    def qkv(x, w):
        out = (x @ w.T).reshape(B, N, 3, H, D).transpose(2, 0, 3, 1, 4)
        return out[0], out[1], out[2]                     # each (B, H, N, D)

    q1, k1, v1 = qkv(x1, params["wqkv1"])
    q2, k2, v2 = qkv(x2, params["wqkv2"])

    def attend(q, k, v, wp, bp):
        a = (q @ jnp.swapaxes(k, -2, -1)) * scale
        a = jax.nn.softmax(a, axis=-1)
        o = (a @ v).transpose(0, 2, 1, 3).reshape(B, N, C)
        return o @ wp.T + bp

    return (attend(q1, k2, v2, params["wp1"], params["bp1"]),
            attend(q2, k1, v1, params["wp2"], params["bp2"]))


# -------------------------------------------------------------------- main ---

if __name__ == "__main__":
    # Small, module-consistent shapes; TPU-friendly (N % 8 == 0, C % 128 == 0 so
    # the output stores are lane-dense and all reshapes are layout-preserving).
    B, N, dim, num_heads = 4, 64, 128, 4          # head_dim = 32

    key = jax.random.PRNGKey(0)
    k_p, k_x1, k_x2 = jax.random.split(key, 3)
    params = init_params(k_p, dim)
    packed = pack_params(params, num_heads)       # one-time packing, outside hot path

    x1 = jax.random.normal(k_x1, (B, N, dim), jnp.float32)
    x2 = jax.random.normal(k_x2, (B, N, dim), jnp.float32)

    out1, out2 = cross_attention(x1, x2, packed, num_heads, block_b=2)
    out1, out2 = jax.block_until_ready((out1, out2))

    ref1, ref2 = reference_forward(x1, x2, params, num_heads)
    assert out1.shape == (B, N, dim) and out2.shape == (B, N, dim)
    np.testing.assert_allclose(np.asarray(out1), np.asarray(ref1), atol=3e-2, rtol=3e-2)
    np.testing.assert_allclose(np.asarray(out2), np.asarray(ref2), atol=3e-2, rtol=3e-2)

    print("KERNEL_OK")
</pallas_src>

<mosaic_0001>
module attributes {stable_mosaic.version = 11 : i64} {
  func.func @_cross_attention_kernel(%arg0: i32, %arg1: memref<2x64x128xbf16, #tpu.memory_space<vmem>>, %arg2: memref<2x64x128xbf16, #tpu.memory_space<vmem>>, %arg3: memref<3x4x32x128xbf16, #tpu.memory_space<vmem>>, %arg4: memref<3x4x32x128xbf16, #tpu.memory_space<vmem>>, %arg5: memref<4x32x128xbf16, #tpu.memory_space<vmem>>, %arg6: memref<4x32x128xbf16, #tpu.memory_space<vmem>>, %arg7: memref<1x128xf32, #tpu.memory_space<vmem>>, %arg8: memref<1x128xf32, #tpu.memory_space<vmem>>, %arg9: memref<2x64x128xf32, #tpu.memory_space<vmem>>, %arg10: memref<2x64x128xf32, #tpu.memory_space<vmem>>) attributes {dimension_semantics = [#tpu.dimension_semantics<parallel>], iteration_bounds = array<i64: 2>, scalar_prefetch = 0 : i64, scratch_operands = 0 : i64, tpu.core_type = #tpu.core_type<tc>, window_params = [{transform_indices = @transform_0, window_bounds = array<i64: 2, 64, 128>}, {transform_indices = @transform_1, window_bounds = array<i64: 2, 64, 128>}, {pipeline_mode = #tpu.pipeline_mode<synchronous>, transform_indices = @transform_2, window_bounds = array<i64: 3, 4, 32, 128>}, {pipeline_mode = #tpu.pipeline_mode<synchronous>, transform_indices = @transform_3, window_bounds = array<i64: 3, 4, 32, 128>}, {pipeline_mode = #tpu.pipeline_mode<synchronous>, transform_indices = @transform_4, window_bounds = array<i64: 4, 32, 128>}, {pipeline_mode = #tpu.pipeline_mode<synchronous>, transform_indices = @transform_5, window_bounds = array<i64: 4, 32, 128>}, {pipeline_mode = #tpu.pipeline_mode<synchronous>, transform_indices = @transform_6, window_bounds = array<i64: 1, 128>}, {pipeline_mode = #tpu.pipeline_mode<synchronous>, transform_indices = @transform_7, window_bounds = array<i64: 1, 128>}, {transform_indices = @transform_8, window_bounds = array<i64: 2, 64, 128>}, {transform_indices = @transform_9, window_bounds = array<i64: 2, 64, 128>}]} {
    %c0 = arith.constant 0 : index
    %c0_0 = arith.constant 0 : index
    %c0_1 = arith.constant 0 : index
    %0 = vector.load %arg1[%c0, %c0_0, %c0_1] : memref<2x64x128xbf16, #tpu.memory_space<vmem>>, vector<2x64x128xbf16>
    %1 = vector.shape_cast %0 : vector<2x64x128xbf16> to vector<128x128xbf16>
    %2 = vector.shape_cast %1 : vector<128x128xbf16> to vector<1x128x128xbf16>
    %3 = vector.shape_cast %2 : vector<1x128x128xbf16> to vector<1x128x128xbf16>
    %4 = vector.broadcast %3 : vector<1x128x128xbf16> to vector<4x128x128xbf16>
    %c0_2 = arith.constant 0 : index
    %c0_3 = arith.constant 0 : index
    %c0_4 = arith.constant 0 : index
    %5 = vector.load %arg2[%c0_2, %c0_3, %c0_4] : memref<2x64x128xbf16, #tpu.memory_space<vmem>>, vector<2x64x128xbf16>
    %6 = vector.shape_cast %5 : vector<2x64x128xbf16> to vector<128x128xbf16>
    %7 = vector.shape_cast %6 : vector<128x128xbf16> to vector<1x128x128xbf16>
    %8 = vector.shape_cast %7 : vector<1x128x128xbf16> to vector<1x128x128xbf16>
    %9 = vector.broadcast %8 : vector<1x128x128xbf16> to vector<4x128x128xbf16>
    %c0_5 = arith.constant 0 : index
    %c0_6 = arith.constant 0 : index
    %c0_7 = arith.constant 0 : index
    %c0_8 = arith.constant 0 : index
    %10 = vector.load %arg3[%c0_5, %c0_6, %c0_7, %c0_8] : memref<3x4x32x128xbf16, #tpu.memory_space<vmem>>, vector<1x4x32x128xbf16>
    %11 = vector.shape_cast %10 : vector<1x4x32x128xbf16> to vector<4x32x128xbf16>
    "tpu.trace_start"() <{level = 10 : i32, message = "htc,hdc->htd"}> : () -> ()
    %cst = arith.constant dense<0.000000e+00> : vector<4x128x32xf32>
    %12 = tpu.matmul %4, %11, %cst {dimension_numbers = #tpu.dot_dimension_numbers<[2], [2], [1], [1], [0, 0, 0, 1, 1, 1], [0], [0]>} : vector<4x128x128xbf16>, vector<4x32x128xbf16>, vector<4x128x32xf32> -> vector<4x128x32xf32>
    "tpu.trace_stop"() : () -> ()
    %13 = vector.shape_cast %12 : vector<4x128x32xf32> to vector<8x64x32xf32>
    %14 = arith.truncf %13 : vector<8x64x32xf32> to vector<8x64x32xbf16>
    %c1 = arith.constant 1 : index
    %c0_9 = arith.constant 0 : index
    %c0_10 = arith.constant 0 : index
    %c0_11 = arith.constant 0 : index
    %15 = vector.load %arg3[%c1, %c0_9, %c0_10, %c0_11] : memref<3x4x32x128xbf16, #tpu.memory_space<vmem>>, vector<1x4x32x128xbf16>
    %16 = vector.shape_cast %15 : vector<1x4x32x128xbf16> to vector<4x32x128xbf16>
    "tpu.trace_start"() <{level = 10 : i32, message = "htc,hdc->htd"}> : () -> ()
    %cst_12 = arith.constant dense<0.000000e+00> : vector<4x128x32xf32>
    %17 = tpu.matmul %4, %16, %cst_12 {dimension_numbers = #tpu.dot_dimension_numbers<[2], [2], [1], [1], [0, 0, 0, 1, 1, 1], [0], [0]>} : vector<4x128x128xbf16>, vector<4x32x128xbf16>, vector<4x128x32xf32> -> vector<4x128x32xf32>
    "tpu.trace_stop"() : () -> ()
    %18 = vector.shape_cast %17 : vector<4x128x32xf32> to vector<8x64x32xf32>
    %19 = arith.truncf %18 : vector<8x64x32xf32> to vector<8x64x32xbf16>
    %c2 = arith.constant 2 : index
    %c0_13 = arith.constant 0 : index
    %c0_14 = arith.constant 0 : index
    %c0_15 = arith.constant 0 : index
    %20 = vector.load %arg3[%c2, %c0_13, %c0_14, %c0_15] : memref<3x4x32x128xbf16, #tpu.memory_space<vmem>>, vector<1x4x32x128xbf16>
    %21 = vector.shape_cast %20 : vector<1x4x32x128xbf16> to vector<4x32x128xbf16>
    "tpu.trace_start"() <{level = 10 : i32, message = "htc,hdc->htd"}> : () -> ()
    %cst_16 = arith.constant dense<0.000000e+00> : vector<4x128x32xf32>
    %22 = tpu.matmul %4, %21, %cst_16 {dimension_numbers = #tpu.dot_dimension_numbers<[2], [2], [1], [1], [0, 0, 0, 1, 1, 1], [0], [0]>} : vector<4x128x128xbf16>, vector<4x32x128xbf16>, vector<4x128x32xf32> -> vector<4x128x32xf32>
    "tpu.trace_stop"() : () -> ()
    %23 = vector.shape_cast %22 : vector<4x128x32xf32> to vector<8x64x32xf32>
    %24 = arith.truncf %23 : vector<8x64x32xf32> to vector<8x64x32xbf16>
    %c0_17 = arith.constant 0 : index
    %c0_18 = arith.constant 0 : index
    %c0_19 = arith.constant 0 : index
    %c0_20 = arith.constant 0 : index
    %25 = vector.load %arg4[%c0_17, %c0_18, %c0_19, %c0_20] : memref<3x4x32x128xbf16, #tpu.memory_space<vmem>>, vector<1x4x32x128xbf16>
    %26 = vector.shape_cast %25 : vector<1x4x32x128xbf16> to vector<4x32x128xbf16>
    "tpu.trace_start"() <{level = 10 : i32, message = "htc,hdc->htd"}> : () -> ()
    %cst_21 = arith.constant dense<0.000000e+00> : vector<4x128x32xf32>
    %27 = tpu.matmul %9, %26, %cst_21 {dimension_numbers = #tpu.dot_dimension_numbers<[2], [2], [1], [1], [0, 0, 0, 1, 1, 1], [0], [0]>} : vector<4x128x128xbf16>, vector<4x32x128xbf16>, vector<4x128x32xf32> -> vector<4x128x32xf32>
    "tpu.trace_stop"() : () -> ()
    %28 = vector.shape_cast %27 : vector<4x128x32xf32> to vector<8x64x32xf32>
    %29 = arith.truncf %28 : vector<8x64x32xf32> to vector<8x64x32xbf16>
    %c1_22 = arith.constant 1 : index
    %c0_23 = arith.constant 0 : index
    %c0_24 = arith.constant 0 : index
    %c0_25 = arith.constant 0 : index
    %30 = vector.load %arg4[%c1_22, %c0_23, %c0_24, %c0_25] : memref<3x4x32x128xbf16, #tpu.memory_space<vmem>>, vector<1x4x32x128xbf16>
    %31 = vector.shape_cast %30 : vector<1x4x32x128xbf16> to vector<4x32x128xbf16>
    "tpu.trace_start"() <{level = 10 : i32, message = "htc,hdc->htd"}> : () -> ()
    %cst_26 = arith.constant dense<0.000000e+00> : vector<4x128x32xf32>
    %32 = tpu.matmul %9, %31, %cst_26 {dimension_numbers = #tpu.dot_dimension_numbers<[2], [2], [1], [1], [0, 0, 0, 1, 1, 1], [0], [0]>} : vector<4x128x128xbf16>, vector<4x32x128xbf16>, vector<4x128x32xf32> -> vector<4x128x32xf32>
    "tpu.trace_stop"() : () -> ()
    %33 = vector.shape_cast %32 : vector<4x128x32xf32> to vector<8x64x32xf32>
    %34 = arith.truncf %33 : vector<8x64x32xf32> to vector<8x64x32xbf16>
    %c2_27 = arith.constant 2 : index
    %c0_28 = arith.constant 0 : index
    %c0_29 = arith.constant 0 : index
    %c0_30 = arith.constant 0 : index
    %35 = vector.load %arg4[%c2_27, %c0_28, %c0_29, %c0_30] : memref<3x4x32x128xbf16, #tpu.memory_space<vmem>>, vector<1x4x32x128xbf16>
    %36 = vector.shape_cast %35 : vector<1x4x32x128xbf16> to vector<4x32x128xbf16>
    "tpu.trace_start"() <{level = 10 : i32, message = "htc,hdc->htd"}> : () -> ()
    %cst_31 = arith.constant dense<0.000000e+00> : vector<4x128x32xf32>
    %37 = tpu.matmul %9, %36, %cst_31 {dimension_numbers = #tpu.dot_dimension_numbers<[2], [2], [1], [1], [0, 0, 0, 1, 1, 1], [0], [0]>} : vector<4x128x128xbf16>, vector<4x32x128xbf16>, vector<4x128x32xf32> -> vector<4x128x32xf32>
    "tpu.trace_stop"() : () -> ()
    %38 = vector.shape_cast %37 : vector<4x128x32xf32> to vector<8x64x32xf32>
    %39 = arith.truncf %38 : vector<8x64x32xf32> to vector<8x64x32xbf16>
    "tpu.trace_start"() <{level = 10 : i32, message = "znd,zmd->znm"}> : () -> ()
    %cst_32 = arith.constant dense<0.000000e+00> : vector<8x64x64xf32>
    %40 = tpu.matmul %14, %34, %cst_32 {dimension_numbers = #tpu.dot_dimension_numbers<[2], [2], [1], [1], [0, 0, 0, 1, 1, 1], [0], [0]>} : vector<8x64x32xbf16>, vector<8x64x32xbf16>, vector<8x64x64xf32> -> vector<8x64x64xf32>
    "tpu.trace_stop"() : () -> ()
    %cst_33 = arith.constant dense<0xFF800000> : vector<8x64xf32>
    %41 = vector.multi_reduction <maximumf>, %40, %cst_33 [2] : vector<8x64x64xf32> to vector<8x64xf32>
    %42 = vector.shape_cast %41 : vector<8x64xf32> to vector<8x64x1xf32>
    %43 = vector.broadcast %42 : vector<8x64x1xf32> to vector<8x64x64xf32>
    %44 = arith.subf %40, %43 : vector<8x64x64xf32>
    %45 = math.exp %44 : vector<8x64x64xf32>
    %cst_34 = arith.constant dense<0.000000e+00> : vector<8x64xf32>
    %46 = vector.multi_reduction <add>, %45, %cst_34 [2] : vector<8x64x64xf32> to vector<8x64xf32>
    %47 = vector.shape_cast %46 : vector<8x64xf32> to vector<8x64x1xf32>
    %48 = tpu.reciprocal %47 {approx = true} : vector<8x64x1xf32> -> vector<8x64x1xf32>
    %49 = vector.broadcast %48 : vector<8x64x1xf32> to vector<8x64x64xf32>
    %50 = arith.mulf %45, %49 : vector<8x64x64xf32>
    %51 = arith.truncf %50 : vector<8x64x64xf32> to vector<8x64x64xbf16>
    "tpu.trace_start"() <{level = 10 : i32, message = "znm,zmd->znd"}> : () -> ()
    %cst_35 = arith.constant dense<0.000000e+00> : vector<8x64x32xf32>
    %52 = tpu.matmul %51, %39, %cst_35 {dimension_numbers = #tpu.dot_dimension_numbers<[2], [1], [1], [2], [0, 0, 0, 1, 1, 2], [0], [0]>} : vector<8x64x64xbf16>, vector<8x64x32xbf16>, vector<8x64x32xf32> -> vector<8x64x32xf32>
    "tpu.trace_stop"() : () -> ()
    %53 = vector.shape_cast %52 : vector<8x64x32xf32> to vector<4x128x32xf32>
    %54 = arith.truncf %53 : vector<4x128x32xf32> to vector<4x128x32xbf16>
    %c0_36 = arith.constant 0 : index
    %c0_37 = arith.constant 0 : index
    %c0_38 = arith.constant 0 : index
    %55 = vector.load %arg5[%c0_36, %c0_37, %c0_38] : memref<4x32x128xbf16, #tpu.memory_space<vmem>>, vector<4x32x128xbf16>
    "tpu.trace_start"() <{level = 10 : i32, message = "htd,hdc->htc"}> : () -> ()
    %cst_39 = arith.constant dense<0.000000e+00> : vector<4x128x128xf32>
    %56 = tpu.matmul %54, %55, %cst_39 {dimension_numbers = #tpu.dot_dimension_numbers<[2], [1], [1], [2], [0, 0, 0, 1, 1, 2], [0], [0]>} : vector<4x128x32xbf16>, vector<4x32x128xbf16>, vector<4x128x128xf32> -> vector<4x128x128xf32>
    "tpu.trace_stop"() : () -> ()
    %cst_40 = arith.constant dense<0.000000e+00> : vector<128x128xf32>
    %57 = vector.multi_reduction <add>, %56, %cst_40 [0] : vector<4x128x128xf32> to vector<128x128xf32>
    %c0_41 = arith.constant 0 : index
    %c0_42 = arith.constant 0 : index
    %58 = vector.load %arg7[%c0_41, %c0_42] : memref<1x128xf32, #tpu.memory_space<vmem>>, vector<1x128xf32>
    %59 = vector.broadcast %58 : vector<1x128xf32> to vector<128x128xf32>
    %60 = arith.addf %57, %59 : vector<128x128xf32>
    %61 = vector.shape_cast %60 : vector<128x128xf32> to vector<2x64x128xf32>
    %c0_43 = arith.constant 0 : index
    %c0_44 = arith.constant 0 : index
    %c0_45 = arith.constant 0 : index
    %62 = vector.load %arg9[%c0_43, %c0_44, %c0_45] : memref<2x64x128xf32, #tpu.memory_space<vmem>>, vector<2x64x128xf32>
    tpu.vector_store %arg9[%c0_43, %c0_44, %c0_45], %61 {strides = array<i32>} : memref<2x64x128xf32, #tpu.memory_space<vmem>>, vector<2x64x128xf32>,
    "tpu.trace_start"() <{level = 10 : i32, message = "znd,zmd->znm"}> : () -> ()
    %cst_46 = arith.constant dense<0.000000e+00> : vector<8x64x64xf32>
    %63 = tpu.matmul %29, %19, %cst_46 {dimension_numbers = #tpu.dot_dimension_numbers<[2], [2], [1], [1], [0, 0, 0, 1, 1, 1], [0], [0]>} : vector<8x64x32xbf16>, vector<8x64x32xbf16>, vector<8x64x64xf32> -> vector<8x64x64xf32>
    "tpu.trace_stop"() : () -> ()
    %cst_47 = arith.constant dense<0xFF800000> : vector<8x64xf32>
    %64 = vector.multi_reduction <maximumf>, %63, %cst_47 [2] : vector<8x64x64xf32> to vector<8x64xf32>
    %65 = vector.shape_cast %64 : vector<8x64xf32> to vector<8x64x1xf32>
    %66 = vector.broadcast %65 : vector<8x64x1xf32> to vector<8x64x64xf32>
    %67 = arith.subf %63, %66 : vector<8x64x64xf32>
    %68 = math.exp %67 : vector<8x64x64xf32>
    %cst_48 = arith.constant dense<0.000000e+00> : vector<8x64xf32>
    %69 = vector.multi_reduction <add>, %68, %cst_48 [2] : vector<8x64x64xf32> to vector<8x64xf32>
    %70 = vector.shape_cast %69 : vector<8x64xf32> to vector<8x64x1xf32>
    %71 = tpu.reciprocal %70 {approx = true} : vector<8x64x1xf32> -> vector<8x64x1xf32>
    %72 = vector.broadcast %71 : vector<8x64x1xf32> to vector<8x64x64xf32>
    %73 = arith.mulf %68, %72 : vector<8x64x64xf32>
    %74 = arith.truncf %73 : vector<8x64x64xf32> to vector<8x64x64xbf16>
    "tpu.trace_start"() <{level = 10 : i32, message = "znm,zmd->znd"}> : () -> ()
    %cst_49 = arith.constant dense<0.000000e+00> : vector<8x64x32xf32>
    %75 = tpu.matmul %74, %24, %cst_49 {dimension_numbers = #tpu.dot_dimension_numbers<[2], [1], [1], [2], [0, 0, 0, 1, 1, 2], [0], [0]>} : vector<8x64x64xbf16>, vector<8x64x32xbf16>, vector<8x64x32xf32> -> vector<8x64x32xf32>
    "tpu.trace_stop"() : () -> ()
    %76 = vector.shape_cast %75 : vector<8x64x32xf32> to vector<4x128x32xf32>
    %77 = arith.truncf %76 : vector<4x128x32xf32> to vector<4x128x32xbf16>
    %c0_50 = arith.constant 0 : index
    %c0_51 = arith.constant 0 : index
    %c0_52 = arith.constant 0 : index
    %78 = vector.load %arg6[%c0_50, %c0_51, %c0_52] : memref<4x32x128xbf16, #tpu.memory_space<vmem>>, vector<4x32x128xbf16>
    "tpu.trace_start"() <{level = 10 : i32, message = "htd,hdc->htc"}> : () -> ()
    %cst_53 = arith.constant dense<0.000000e+00> : vector<4x128x128xf32>
    %79 = tpu.matmul %77, %78, %cst_53 {dimension_numbers = #tpu.dot_dimension_numbers<[2], [1], [1], [2], [0, 0, 0, 1, 1, 2], [0], [0]>} : vector<4x128x32xbf16>, vector<4x32x128xbf16>, vector<4x128x128xf32> -> vector<4x128x128xf32>
    "tpu.trace_stop"() : () -> ()
    %cst_54 = arith.constant dense<0.000000e+00> : vector<128x128xf32>
    %80 = vector.multi_reduction <add>, %79, %cst_54 [0] : vector<4x128x128xf32> to vector<128x128xf32>
    %c0_55 = arith.constant 0 : index
    %c0_56 = arith.constant 0 : index
    %81 = vector.load %arg8[%c0_55, %c0_56] : memref<1x128xf32, #tpu.memory_space<vmem>>, vector<1x128xf32>
    %82 = vector.broadcast %81 : vector<1x128xf32> to vector<128x128xf32>
    %83 = arith.addf %80, %82 : vector<128x128xf32>
    %84 = vector.shape_cast %83 : vector<128x128xf32> to vector<2x64x128xf32>
    %c0_57 = arith.constant 0 : index
    %c0_58 = arith.constant 0 : index
    %c0_59 = arith.constant 0 : index
    %85 = vector.load %arg10[%c0_57, %c0_58, %c0_59] : memref<2x64x128xf32, #tpu.memory_space<vmem>>, vector<2x64x128xf32>
    tpu.vector_store %arg10[%c0_57, %c0_58, %c0_59], %84 {strides = array<i32>} : memref<2x64x128xf32, #tpu.memory_space<vmem>>, vector<2x64x128xf32>,
    return
  }
  func.func @transform_0(%arg0: i32) -> (i32, i32, i32) {
    %c0_i32 = arith.constant 0 : i32
    %c0_i32_0 = arith.constant 0 : i32
    %c0_i32_1 = arith.constant 0 : i32
    return %arg0, %c0_i32, %c0_i32_0 : i32, i32, i32
  }
  func.func @transform_1(%arg0: i32) -> (i32, i32, i32) {
    %c0_i32 = arith.constant 0 : i32
    %c0_i32_0 = arith.constant 0 : i32
    %c0_i32_1 = arith.constant 0 : i32
    return %arg0, %c0_i32, %c0_i32_0 : i32, i32, i32
  }
  func.func @transform_2(%arg0: i32) -> (i32, i32, i32, i32) {
    %c0_i32 = arith.constant 0 : i32
    %c0_i32_0 = arith.constant 0 : i32
    %c0_i32_1 = arith.constant 0 : i32
    %c0_i32_2 = arith.constant 0 : i32
    %c0_i32_3 = arith.constant 0 : i32
    return %c0_i32, %c0_i32_0, %c0_i32_1, %c0_i32_2 : i32, i32, i32, i32
  }
  func.func @transform_3(%arg0: i32) -> (i32, i32, i32, i32) {
    %c0_i32 = arith.constant 0 : i32
    %c0_i32_0 = arith.constant 0 : i32
    %c0_i32_1 = arith.constant 0 : i32
    %c0_i32_2 = arith.constant 0 : i32
    %c0_i32_3 = arith.constant 0 : i32
    return %c0_i32, %c0_i32_0, %c0_i32_1, %c0_i32_2 : i32, i32, i32, i32
  }
  func.func @transform_4(%arg0: i32) -> (i32, i32, i32) {
    %c0_i32 = arith.constant 0 : i32
    %c0_i32_0 = arith.constant 0 : i32
    %c0_i32_1 = arith.constant 0 : i32
    %c0_i32_2 = arith.constant 0 : i32
    return %c0_i32, %c0_i32_0, %c0_i32_1 : i32, i32, i32
  }
  func.func @transform_5(%arg0: i32) -> (i32, i32, i32) {
    %c0_i32 = arith.constant 0 : i32
    %c0_i32_0 = arith.constant 0 : i32
    %c0_i32_1 = arith.constant 0 : i32
    %c0_i32_2 = arith.constant 0 : i32
    return %c0_i32, %c0_i32_0, %c0_i32_1 : i32, i32, i32
  }
  func.func @transform_6(%arg0: i32) -> (i32, i32) {
    %c0_i32 = arith.constant 0 : i32
    %c0_i32_0 = arith.constant 0 : i32
    %c0_i32_1 = arith.constant 0 : i32
    return %c0_i32, %c0_i32_0 : i32, i32
  }
  func.func @transform_7(%arg0: i32) -> (i32, i32) {
    %c0_i32 = arith.constant 0 : i32
    %c0_i32_0 = arith.constant 0 : i32
    %c0_i32_1 = arith.constant 0 : i32
    return %c0_i32, %c0_i32_0 : i32, i32
  }
  func.func @transform_8(%arg0: i32) -> (i32, i32, i32) {
    %c0_i32 = arith.constant 0 : i32
    %c0_i32_0 = arith.constant 0 : i32
    %c0_i32_1 = arith.constant 0 : i32
    return %arg0, %c0_i32, %c0_i32_0 : i32, i32, i32
  }
  func.func @transform_9(%arg0: i32) -> (i32, i32, i32) {
    %c0_i32 = arith.constant 0 : i32
    %c0_i32_0 = arith.constant 0 : i32
    %c0_i32_1 = arith.constant 0 : i32
    return %arg0, %c0_i32, %c0_i32_0 : i32, i32, i32
  }
}

</mosaic_0001>

<llo_original>
// kernel: tpu_custom_call.1
$region0: #{tpu_custom_call.1}
  #allocation0 [shape = 'u32[]', space=smem, size = 0x4, offset = 0x4, fixed_abs, tag = 'smem constant byte address 0x4 - core index']
  #allocation1 [shape = 'u32[144,128]{1,0:T(1,128)}', space=vmem, size = 0x12000, scoped, tag = 'internal scratch']
  %s0 = inlined_call_operand.hbm [shape: bf16[4,64,128], index: 0, kind: input, shape index: {}]
  %s1 = inlined_call_operand.hbm [shape: bf16[4,64,128], index: 1, kind: input, shape index: {}]
  %s2 = inlined_call_operand.hbm [shape: bf16[3,4,32,128], index: 2, kind: input, shape index: {}]
  %s3 = inlined_call_operand.hbm [shape: bf16[3,4,32,128], index: 3, kind: input, shape index: {}]
  %s4 = inlined_call_operand.hbm [shape: bf16[4,32,128], index: 4, kind: input, shape index: {}]
  %s5 = inlined_call_operand.hbm [shape: bf16[4,32,128], index: 5, kind: input, shape index: {}]
  %s6 = inlined_call_operand.vmem [shape: f32[1,128], index: 6, kind: input, shape index: {}]
  %s7 = inlined_call_operand.vmem [shape: f32[1,128], index: 7, kind: input, shape index: {}]
  %s8 = inlined_call_operand.hbm [shape: f32[4,64,128], index: 8, kind: output, shape index: {0}]
  %s9 = inlined_call_operand.hbm [shape: f32[4,64,128], index: 9, kind: output, shape index: {1}]
  %10 = xla_tuple %s8, %s9
  %s11 = sld [smem:[#allocation0]]
  $region97: #{tpu_custom_call.1} parent=0
    _
  %s13 = ssub.s32 1, %s11
  %s14 = scalar_select 0, %s13, %s11
  $region1: #{tpu_custom_call.1} parent=0
    #allocation2 [shape = 'u8[65536]{0}', space=vmem, size = 0x10000, scoped, tag = 'input window, operand 0']
    #allocation3 [shape = 's32[2]{0}', space=sflag, size = 0x8, scoped, tag = 'scoped memory for tpu_custom_call.1']
    #allocation4 [shape = 's32[2]{0}', space=sflag, size = 0x8, scoped, tag = 'scoped memory for tpu_custom_call.1']
    #allocation5 [shape = 'u8[65536]{0}', space=vmem, size = 0x10000, scoped, tag = 'input window, operand 1']
    #allocation6 [shape = 's32[2]{0}', space=sflag, size = 0x8, scoped, tag = 'scoped memory for tpu_custom_call.1']
    #allocation7 [shape = 'u8[98304]{0}', space=vmem, size = 0x18000, scoped, tag = 'input window, operand 2, single buffered']
    #allocation8 [shape = 'u8[98304]{0}', space=vmem, size = 0x18000, scoped, tag = 'input window, operand 3, single buffered']
    #allocation9 [shape = 's32[1]{0}', space=sflag, size = 0x4, scoped, tag = 'scoped memory for tpu_custom_call.1']
    #allocation10 [shape = 'u8[32768]{0}', space=vmem, size = 0x8000, scoped, tag = 'input window, operand 4, single buffered']
    #allocation11 [shape = 'u8[32768]{0}', space=vmem, size = 0x8000, scoped, tag = 'input window, operand 5, single buffered']
    #allocation12 [shape = 's32[1]{0}', space=sflag, size = 0x4, scoped, tag = 'scoped memory for tpu_custom_call.1']
    #allocation13 [shape = 'u8[131072]{0}', space=vmem, size = 0x20000, scoped, tag = 'output window, operand 0']
    #allocation14 [shape = 'u8[131072]{0}', space=vmem, size = 0x20000, scoped, tag = 'output window, operand 1']
    #allocation15 [shape = 's32[2]{0}', space=sflag, size = 0x8, scoped, tag = 'scoped memory for tpu_custom_call.1']
    %15 = vsyncpa [#allocation3], 0
    %s16 = scalar_lea.sflag [#allocation3], 1
    %17 = vsyncpa %s16, 0
    %18 = vsyncpa [#allocation6], 0
    %s19 = scalar_lea.sflag [#allocation6], 1
    %20 = vsyncpa %s19, 0
    %21 = vsyncpa [#allocation9], 0
    %22 = vsyncpa [#allocation12], 0
    %23 = vsyncpa [#allocation4], 0
    %s24 = scalar_lea.sflag [#allocation4], 1
    %25 = vsyncpa %s24, 0
    %26 = vsyncpa [#allocation15], 0
    %s27 = scalar_lea.sflag [#allocation15], 1
    %28 = vsyncpa %s27, 0
    loop: start=0, step=1, limit=4
    $region2: #{tpu_custom_call.1} parent=1 // loop_pre_header
      _
    $region3: #{tpu_custom_call.1} parent=1 // loop_header
      %s30 = sphi 0, %s34
      %p31 = scmp.ge.s32.totalorder %s30, 4
      %s40 = sphi 0, %s42
      %s43 = sphi 0, %s40
      %s44 = sphi 0, %s43
      %s60 = sphi 0, %s44
      %s66 = sphi 0, %s68
      %s69 = sphi 0, %s66
      %s70 = sphi 0, %s69
      %s86 = sphi 0, %s70
      %s90 = sphi 0, %s90
      %s92 = sphi 0, %s90
      %s93 = sphi 0, %s92
      %s107 = sphi 0, %s93
      %s111 = sphi 0, %s111
      %s113 = sphi 0, %s111
      %s114 = sphi 0, %s113
      %s128 = sphi 0, %s114
      %s132 = sphi 0, %s132
      %s134 = sphi 0, %s132
      %s135 = sphi 0, %s134
      %s149 = sphi 0, %s135
      %s153 = sphi 0, %s153
      %s155 = sphi 0, %s153
      %s156 = sphi 0, %s155
      %s170 = sphi 0, %s156
      %s174 = sphi 0, %s174
      %s176 = sphi 0, %s174
      %s177 = sphi 0, %s176
      %s191 = sphi 0, %s177
      %s195 = sphi 0, %s195
      %s197 = sphi 0, %s195
      %s198 = sphi 0, %s197
      %s212 = sphi 0, %s198
      %s218 = sphi 0, %s220
      %s221 = sphi 0, %s218
      %s222 = sphi 0, %s221
      %s238 = sphi 0, %s222
      %s244 = sphi 0, %s246
      %s247 = sphi 0, %s244
      %s248 = sphi 0, %s247
      %s264 = sphi 0, %s248
    $region4: #{tpu_custom_call.1} parent=1 // loop_header_branch
      %33 = sbr.rel (%p31) target = $region8
    $region5: #{tpu_custom_call.1} parent=1 // loop_body
      %s35 = ssub.s32 %s30, 1
      %s36 = ssub.s32 %s30, 2
      %s37 = sadd.s32 %s30, 1
      %s38 = ssub.s32 %s30, %s37
      %p39 = scmp.eq.s32.totalorder %s38, 0
      %s41 = sadd.s32 %s40, 1
      %s42 = scalar_select %p39, %s40, %s41
      %p45 = pneg %p39
      %p46 = scmp.eq.s32.totalorder %s30, 1
      %p47 = por %p45, %p46
      %p48 = scmp.ne.s32.totalorder %s40, %s43
      %p49 = scmp.eq.s32.totalorder %s30, 0
      %p50 = por %p48, %p49
      %p51 = scmp.ne.s32.totalorder %s40, %s43
      %p52 = scmp.eq.s32.totalorder %s35, 1
      %p53 = por %p51, %p52
      %p54 = scmp.ne.s32.totalorder %s43, %s44
      %p55 = scmp.eq.s32.totalorder %s35, 0
      %p56 = por %p54, %p55
      %p57 = scmp.ne.s32.totalorder %s43, %s44
      %p58 = scmp.eq.s32.totalorder %s36, 1
      %p59 = por %p57, %p58
      %p61 = scmp.ne.s32.totalorder %s44, %s60
      %p62 = scmp.eq.s32.totalorder %s36, 0
      %p63 = por %p61, %p62
      %s64 = ssub.s32 %s30, %s37
      %p65 = scmp.eq.s32.totalorder %s64, 0
      %s67 = sadd.s32 %s66, 1
      %s68 = scalar_select %p65, %s66, %s67
      %p71 = pneg %p65
      %p72 = scmp.eq.s32.totalorder %s30, 1
      %p73 = por %p71, %p72
      %p74 = scmp.ne.s32.totalorder %s66, %s69
      %p75 = scmp.eq.s32.totalorder %s30, 0
      %p76 = por %p74, %p75
      %p77 = scmp.ne.s32.totalorder %s66, %s69
      %p78 = scmp.eq.s32.totalorder %s35, 1
      %p79 = por %p77, %p78
      %p80 = scmp.ne.s32.totalorder %s69, %s70
      %p81 = scmp.eq.s32.totalorder %s35, 0
      %p82 = por %p80, %p81
      %p83 = scmp.ne.s32.totalorder %s69, %s70
      %p84 = scmp.eq.s32.totalorder %s36, 1
      %p85 = por %p83, %p84
      %p87 = scmp.ne.s32.totalorder %s70, %s86
      %p88 = scmp.eq.s32.totalorder %s36, 0
      %p89 = por %p87, %p88
      %s91 = sadd.s32 %s90, 1
      %p94 = scmp.eq.s32.totalorder %s30, 1
      %p95 = scmp.ne.s32.totalorder %s90, %s92
      %p96 = scmp.eq.s32.totalorder %s30, 0
      %p97 = por %p95, %p96
      %p98 = scmp.ne.s32.totalorder %s90, %s92
      %p99 = scmp.eq.s32.totalorder %s35, 1
      %p100 = por %p98, %p99
      %p101 = scmp.ne.s32.totalorder %s92, %s93
      %p102 = scmp.eq.s32.totalorder %s35, 0
      %p103 = por %p101, %p102
      %p104 = scmp.ne.s32.totalorder %s92, %s93
      %p105 = scmp.eq.s32.totalorder %s36, 1
      %p106 = por %p104, %p105
      %p108 = scmp.ne.s32.totalorder %s93, %s107
      %p109 = scmp.eq.s32.totalorder %s36, 0
      %p110 = por %p108, %p109
      %s112 = sadd.s32 %s111, 1
      %p115 = scmp.eq.s32.totalorder %s30, 1
      %p116 = scmp.ne.s32.totalorder %s111, %s113
      %p117 = scmp.eq.s32.totalorder %s30, 0
      %p118 = por %p116, %p117
      %p119 = scmp.ne.s32.totalorder %s111, %s113
      %p120 = scmp.eq.s32.totalorder %s35, 1
      %p121 = por %p119, %p120
      %p122 = scmp.ne.s32.totalorder %s113, %s114
      %p123 = scmp.eq.s32.totalorder %s35, 0
      %p124 = por %p122, %p123
      %p125 = scmp.ne.s32.totalorder %s113, %s114
      %p126 = scmp.eq.s32.totalorder %s36, 1
      %p127 = por %p125, %p126
      %p129 = scmp.ne.s32.totalorder %s114, %s128
      %p130 = scmp.eq.s32.totalorder %s36, 0
      %p131 = por %p129, %p130
      %s133 = sadd.s32 %s132, 1
      %p136 = scmp.eq.s32.totalorder %s30, 1
      %p137 = scmp.ne.s32.totalorder %s132, %s134
      %p138 = scmp.eq.s32.totalorder %s30, 0
      %p139 = por %p137, %p138
      %p140 = scmp.ne.s32.totalorder %s132, %s134
      %p141 = scmp.eq.s32.totalorder %s35, 1
      %p142 = por %p140, %p141
      %p143 = scmp.ne.s32.totalorder %s134, %s135
      %p144 = scmp.eq.s32.totalorder %s35, 0
      %p145 = por %p143, %p144
      %p146 = scmp.ne.s32.totalorder %s134, %s135
      %p147 = scmp.eq.s32.totalorder %s36, 1
      %p148 = por %p146, %p147
      %p150 = scmp.ne.s32.totalorder %s135, %s149
      %p151 = scmp.eq.s32.totalorder %s36, 0
      %p152 = por %p150, %p151
      %s154 = sadd.s32 %s153, 1
      %p157 = scmp.eq.s32.totalorder %s30, 1
      %p158 = scmp.ne.s32.totalorder %s153, %s155
      %p159 = scmp.eq.s32.totalorder %s30, 0
      %p160 = por %p158, %p159
      %p161 = scmp.ne.s32.totalorder %s153, %s155
      %p162 = scmp.eq.s32.totalorder %s35, 1
      %p163 = por %p161, %p162
      %p164 = scmp.ne.s32.totalorder %s155, %s156
      %p165 = scmp.eq.s32.totalorder %s35, 0
      %p166 = por %p164, %p165
      %p167 = scmp.ne.s32.totalorder %s155, %s156
      %p168 = scmp.eq.s32.totalorder %s36, 1
      %p169 = por %p167, %p168
      %p171 = scmp.ne.s32.totalorder %s156, %s170
      %p172 = scmp.eq.s32.totalorder %s36, 0
      %p173 = por %p171, %p172
      %s175 = sadd.s32 %s174, 1
      %p178 = scmp.eq.s32.totalorder %s30, 1
      %p179 = scmp.ne.s32.totalorder %s174, %s176
      %p180 = scmp.eq.s32.totalorder %s30, 0
      %p181 = por %p179, %p180
      %p182 = scmp.ne.s32.totalorder %s174, %s176
      %p183 = scmp.eq.s32.totalorder %s35, 1
      %p184 = por %p182, %p183
      %p185 = scmp.ne.s32.totalorder %s176, %s177
      %p186 = scmp.eq.s32.totalorder %s35, 0
      %p187 = por %p185, %p186
      %p188 = scmp.ne.s32.totalorder %s176, %s177
      %p189 = scmp.eq.s32.totalorder %s36, 1
      %p190 = por %p188, %p189
      %p192 = scmp.ne.s32.totalorder %s177, %s191
      %p193 = scmp.eq.s32.totalorder %s36, 0
      %p194 = por %p192, %p193
      %s196 = sadd.s32 %s195, 1
      %p199 = scmp.eq.s32.totalorder %s30, 1
      %p200 = scmp.ne.s32.totalorder %s195, %s197
      %p201 = scmp.eq.s32.totalorder %s30, 0
      %p202 = por %p200, %p201
      %p203 = scmp.ne.s32.totalorder %s195, %s197
      %p204 = scmp.eq.s32.totalorder %s35, 1
      %p205 = por %p203, %p204
      %p206 = scmp.ne.s32.totalorder %s197, %s198
      %p207 = scmp.eq.s32.totalorder %s35, 0
      %p208 = por %p206, %p207
      %p209 = scmp.ne.s32.totalorder %s197, %s198
      %p210 = scmp.eq.s32.totalorder %s36, 1
      %p211 = por %p209, %p210
      %p213 = scmp.ne.s32.totalorder %s198, %s212
      %p214 = scmp.eq.s32.totalorder %s36, 0
      %p215 = por %p213, %p214
      %s216 = ssub.s32 %s30, %s37
      %p217 = scmp.eq.s32.totalorder %s216, 0
      %s219 = sadd.s32 %s218, 1
      %s220 = scalar_select %p217, %s218, %s219
      %p223 = pneg %p217
      %p224 = scmp.eq.s32.totalorder %s30, 1
      %p225 = por %p223, %p224
      %p226 = scmp.ne.s32.totalorder %s218, %s221
      %p227 = scmp.eq.s32.totalorder %s30, 0
      %p228 = por %p226, %p227
      %p229 = scmp.ne.s32.totalorder %s218, %s221
      %p230 = scmp.eq.s32.totalorder %s35, 1
      %p231 = por %p229, %p230
      %p232 = scmp.ne.s32.totalorder %s221, %s222
      %p233 = scmp.eq.s32.totalorder %s35, 0
      %p234 = por %p232, %p233
      %p235 = scmp.ne.s32.totalorder %s221, %s222
      %p236 = scmp.eq.s32.totalorder %s36, 1
      %p237 = por %p235, %p236
      %p239 = scmp.ne.s32.totalorder %s222, %s238
      %p240 = scmp.eq.s32.totalorder %s36, 0
      %p241 = por %p239, %p240
      %s242 = ssub.s32 %s30, %s37
      %p243 = scmp.eq.s32.totalorder %s242, 0
      %s245 = sadd.s32 %s244, 1
      %s246 = scalar_select %p243, %s244, %s245
      %p249 = pneg %p243
      %p250 = scmp.eq.s32.totalorder %s30, 1
      %p251 = por %p249, %p250
      %p252 = scmp.ne.s32.totalorder %s244, %s247
      %p253 = scmp.eq.s32.totalorder %s30, 0
      %p254 = por %p252, %p253
      %p255 = scmp.ne.s32.totalorder %s244, %s247
      %p256 = scmp.eq.s32.totalorder %s35, 1
      %p257 = por %p255, %p256
      %p258 = scmp.ne.s32.totalorder %s247, %s248
      %p259 = scmp.eq.s32.totalorder %s35, 0
      %p260 = por %p258, %p259
      %p261 = scmp.ne.s32.totalorder %s247, %s248
      %p262 = scmp.eq.s32.totalorder %s36, 1
      %p263 = por %p261, %p262
      %p265 = scmp.ne.s32.totalorder %s248, %s264
      %p266 = scmp.eq.s32.totalorder %s36, 0
      %p267 = por %p265, %p266
      %p268 = scmp.le.s32.totalorder 1, %s30
      %p269 = scmp.lt.s32.totalorder %s30, 3
      %p270 = pnand %p268, %p269
      %p271 = pneg %p270
      // Predicated region
      $region9: #{tpu_custom_call.1} parent=5 // pred_check
        _
      $region10: #{tpu_custom_call.1} parent=5 // pred_check_branch
        %273 = sbr.rel (%p270) target = $region12
      $region11: #{tpu_custom_call.1} parent=5 // pred_region
        %s274 = ssub.s32 %s30, 1
        // Predicated region
        $region13: #{tpu_custom_call.1} parent=11 // pred_check
          %p275 = pneg %p103
        $region14: #{tpu_custom_call.1} parent=11 // pred_check_branch
          %277 = sbr.rel (%p275) target = $region16
        $region15: #{tpu_custom_call.1} parent=11 // pred_region
          %s279 = ssub.s32 3072, 3072
          %280 = vsyncadd [#allocation6], %s279
          %s281 = sshll.u32 [#allocation7], 4
          %s282 = int_to_ptr.vmem [resolvable:$true] %s281
          %287 = dma.hbm_to_vmem [thread:$0]  %s2, 3072, %s282, [#allocation6], 64, 64, 4
        $region16: #{tpu_custom_call.1} parent=11 // pred_fallthru
          _
        // Predicated region
        $region17: #{tpu_custom_call.1} parent=11 // pred_check
          %p288 = pneg %p124
        $region18: #{tpu_custom_call.1} parent=11 // pred_check_branch
          %290 = sbr.rel (%p288) target = $region20
        $region19: #{tpu_custom_call.1} parent=11 // pred_region
          %s292 = ssub.s32 3072, 3072
          %293 = vsyncadd [#allocation9], %s292
          %s294 = sshll.u32 [#allocation8], 4
          %s295 = int_to_ptr.vmem [resolvable:$true] %s294
          %300 = dma.hbm_to_vmem [thread:$0]  %s3, 3072, %s295, [#allocation9], 64, 64, 4
        $region20: #{tpu_custom_call.1} parent=11 // pred_fallthru
          _
        // Predicated region
        $region21: #{tpu_custom_call.1} parent=11 // pred_check
          %p301 = pneg %p145
        $region22: #{tpu_custom_call.1} parent=11 // pred_check_branch
          %303 = sbr.rel (%p301) target = $region24
        $region23: #{tpu_custom_call.1} parent=11 // pred_region
          %s305 = ssub.s32 1024, 1024
          %306 = vsyncadd [#allocation9], %s305
          %s307 = sshll.u32 [#allocation10], 4
          %s308 = int_to_ptr.vmem [resolvable:$true] %s307
          %313 = dma.hbm_to_vmem [thread:$0]  %s4, 1024, %s308, [#allocation9], 64, 64, 4
        $region24: #{tpu_custom_call.1} parent=11 // pred_fallthru
          _
        // Predicated region
        $region25: #{tpu_custom_call.1} parent=11 // pred_check
          %p314 = pneg %p166
        $region26: #{tpu_custom_call.1} parent=11 // pred_check_branch
          %316 = sbr.rel (%p314) target = $region28
        $region27: #{tpu_custom_call.1} parent=11 // pred_region
          %s318 = ssub.s32 1024, 1024
          %319 = vsyncadd [#allocation12], %s318
          %s320 = sshll.u32 [#allocation11], 4
          %s321 = int_to_ptr.vmem [resolvable:$true] %s320
          %326 = dma.hbm_to_vmem [thread:$0]  %s5, 1024, %s321, [#allocation12], 64, 64, 4
        $region28: #{tpu_custom_call.1} parent=11 // pred_fallthru
          _
        // Predicated region
        $region29: #{tpu_custom_call.1} parent=11 // pred_check
          %p327 = pneg %p187
        $region30: #{tpu_custom_call.1} parent=11 // pred_check_branch
          %329 = sbr.rel (%p327) target = $region32
        $region31: #{tpu_custom_call.1} parent=11 // pred_region
          _
        $region32: #{tpu_custom_call.1} parent=11 // pred_fallthru
          _
        // Predicated region
        $region33: #{tpu_custom_call.1} parent=11 // pred_check
          %p330 = pneg %p208
        $region34: #{tpu_custom_call.1} parent=11 // pred_check_branch
          %332 = sbr.rel (%p330) target = $region36
        $region35: #{tpu_custom_call.1} parent=11 // pred_region
          _
        $region36: #{tpu_custom_call.1} parent=11 // pred_fallthru
          _
      $region12: #{tpu_custom_call.1} parent=5 // pred_fallthru
        _
      %p333 = scmp.lt.s32.totalorder %s30, 2
      // Predicated region
      $region37: #{tpu_custom_call.1} parent=5 // pred_check
        %p334 = pneg %p333
      $region38: #{tpu_custom_call.1} parent=5 // pred_check_branch
        %336 = sbr.rel (%p334) target = $region40
      $region39: #{tpu_custom_call.1} parent=5 // pred_region
        // Predicated region
        $region41: #{tpu_custom_call.1} parent=39 // pred_check
          %p337 = pneg %p50
        $region42: #{tpu_custom_call.1} parent=39 // pred_check_branch
          %339 = sbr.rel (%p337) target = $region44
        $region43: #{tpu_custom_call.1} parent=39 // pred_region
          %s340 = sand.u32 %s40, 1
          %s341 = scalar_lea.sflag [#allocation3], %s340
          %s342 = sand.u32 %s40, 1
          %s343 = smul.addr %s342, 64
          %s344 = scalar_lea.vmem [#allocation2], %s343
          %s345 = smul.u32 2, %s30
          %s347 = ssub.s32 1024, 1024
          %348 = vsyncadd %s341, %s347
          %s349 = smul.addr %s345, 8
          %s350 = smul.addr %s349, 64
          %s351 = scalar_lea.hbm %s0, %s350
          %s352 = sshll.u32 %s344, 4
          %s353 = int_to_ptr.vmem [resolvable:$true] %s352
          %358 = dma.hbm_to_vmem [thread:$0]  %s351, 1024, %s353, %s341, 64, 64, 4
        $region44: #{tpu_custom_call.1} parent=39 // pred_fallthru
          _
        // Predicated region
        $region45: #{tpu_custom_call.1} parent=39 // pred_check
          %p359 = pneg %p76
        $region46: #{tpu_custom_call.1} parent=39 // pred_check_branch
          %361 = sbr.rel (%p359) target = $region48
        $region47: #{tpu_custom_call.1} parent=39 // pred_region
          %s362 = sand.u32 %s30, 1
          %s363 = scalar_lea.sflag [#allocation6], %s362
          %s364 = sand.u32 %s66, 1
          %s365 = smul.addr %s364, 64
          %s366 = scalar_lea.vmem [#allocation5], %s365
          %s367 = smul.u32 2, %s30
          %s369 = ssub.s32 1024, 1024
          %370 = vsyncadd %s363, %s369
          %s371 = smul.addr %s367, 8
          %s372 = smul.addr %s371, 64
          %s373 = scalar_lea.hbm %s1, %s372
          %s374 = sshll.u32 %s366, 4
          %s375 = int_to_ptr.vmem [resolvable:$true] %s374
          %380 = dma.hbm_to_vmem [thread:$0]  %s373, 1024, %s375, %s363, 64, 64, 4
        $region48: #{tpu_custom_call.1} parent=39 // pred_fallthru
          _
      $region40: #{tpu_custom_call.1} parent=5 // pred_fallthru
        _
      %p381 = scmp.le.s32.totalorder 1, %s30
      %p382 = scmp.lt.s32.totalorder %s30, 3
      %p383 = pnand %p381, %p382
      %p384 = pneg %p383
      // Predicated region
      $region49: #{tpu_custom_call.1} parent=5 // pred_check
        _
      $region50: #{tpu_custom_call.1} parent=5 // pred_check_branch
        %386 = sbr.rel (%p383) target = $region52
      $region51: #{tpu_custom_call.1} parent=5 // pred_region
        %s387 = ssub.s32 %s30, 1
        %s388 = sand.u32 %s43, 1
        %s389 = scalar_lea.sflag [#allocation3], %s388
        %s390 = sand.u32 %s43, 1
        %s391 = smul.addr %s390, 64
        %s392 = scalar_lea.vmem [#allocation2], %s391
        // Predicated region
        $region53: #{tpu_custom_call.1} parent=51 // pred_check
          %p393 = pneg %p56
        $region54: #{tpu_custom_call.1} parent=51 // pred_check_branch
          %395 = sbr.rel (%p393) target = $region56
        $region55: #{tpu_custom_call.1} parent=51 // pred_region
          %396 = dma.done %s389, 1024
        $region56: #{tpu_custom_call.1} parent=51 // pred_fallthru
          _
        %s397 = sand.u32 %s35, 1
        %s398 = scalar_lea.sflag [#allocation6], %s397
        %s399 = sand.u32 %s69, 1
        %s400 = smul.addr %s399, 64
        %s401 = scalar_lea.vmem [#allocation5], %s400
        // Predicated region
        $region57: #{tpu_custom_call.1} parent=51 // pred_check
          %p402 = pneg %p82
        $region58: #{tpu_custom_call.1} parent=51 // pred_check_branch
          %404 = sbr.rel (%p402) target = $region60
        $region59: #{tpu_custom_call.1} parent=51 // pred_region
          %405 = dma.done %s398, 1024
        $region60: #{tpu_custom_call.1} parent=51 // pred_fallthru
          _
        // Predicated region
        $region61: #{tpu_custom_call.1} parent=51 // pred_check
          %p406 = pneg %p103
        $region62: #{tpu_custom_call.1} parent=51 // pred_check_branch
          %408 = sbr.rel (%p406) target = $region64
        $region63: #{tpu_custom_call.1} parent=51 // pred_region
          %409 = dma.done [#allocation6], 3072
        $region64: #{tpu_custom_call.1} parent=51 // pred_fallthru
          _
        // Predicated region
        $region65: #{tpu_custom_call.1} parent=51 // pred_check
          %p410 = pneg %p124
        $region66: #{tpu_custom_call.1} parent=51 // pred_check_branch
          %412 = sbr.rel (%p410) target = $region68
        $region67: #{tpu_custom_call.1} parent=51 // pred_region
          %413 = dma.done [#allocation9], 3072
        $region68: #{tpu_custom_call.1} parent=51 // pred_fallthru
          _
        // Predicated region
        $region69: #{tpu_custom_call.1} parent=51 // pred_check
          %p414 = pneg %p145
        $region70: #{tpu_custom_call.1} parent=51 // pred_check_branch
          %416 = sbr.rel (%p414) target = $region72
        $region71: #{tpu_custom_call.1} parent=51 // pred_region
          %417 = dma.done [#allocation9], 1024
        $region72: #{tpu_custom_call.1} parent=51 // pred_fallthru
          _
        // Predicated region
        $region73: #{tpu_custom_call.1} parent=51 // pred_check
          %p418 = pneg %p166
        $region74: #{tpu_custom_call.1} parent=51 // pred_check_branch
          %420 = sbr.rel (%p418) target = $region76
        $region75: #{tpu_custom_call.1} parent=51 // pred_region
          %421 = dma.done [#allocation12], 1024
        $region76: #{tpu_custom_call.1} parent=51 // pred_fallthru
          _
        %s422 = sand.u32 %s43, 1
        %s423 = scalar_lea.sflag [#allocation3], %s422
        %s424 = sand.u32 %s43, 1
        %s425 = smul.addr %s424, 64
        %s426 = scalar_lea.vmem [#allocation2], %s425
        %p427 = pneg %p56
        %p428 = pneg %p53
        %s429 = sand.u32 %s35, 1
        %s430 = scalar_lea.sflag [#allocation6], %s429
        %s431 = sand.u32 %s69, 1
        %s432 = smul.addr %s431, 64
        %s433 = scalar_lea.vmem [#allocation5], %s432
        %p434 = pneg %p82
        %p435 = pneg %p79
        %p436 = pneg %p103
        %p437 = pneg %p100
        %p438 = pneg %p124
        %p439 = pneg %p121
        %p440 = pneg %p145
        %p441 = pneg %p142
        %p442 = pneg %p166
        %p443 = pneg %p163
        %p444 = pneg %p187
        %p445 = pneg %p184
        %p446 = pneg %p208
        %p447 = pneg %p205
        %p448 = pneg %p234
        %p449 = pneg %p231
        %s450 = sand.u32 %s221, 1
        %s451 = scalar_lea.sflag [#allocation4], %s450
        %s452 = sand.u32 %s221, 1
        %s453 = smul.addr %s452, 128
        %s454 = scalar_lea.vmem [#allocation13], %s453
        %p455 = pneg %p260
        %p456 = pneg %p257
        %s457 = sand.u32 %s247, 1
        %s458 = scalar_lea.sflag [#allocation15], %s457
        %s459 = sand.u32 %s247, 1
        %s460 = smul.addr %s459, 128
        %s461 = scalar_lea.vmem [#allocation14], %s460
        %s462 = smul.u32 2, %s35
        %s463 = smul.u32 2, %s35
        %s464 = smul.u32 2, %s35
        %s465 = smul.u32 2, %s35
        %v467 = vld [vmem:[%s392] sm:$0xf]
        %v468 = vld [vmem:[%s392 + $0x4] sm:$0xf]
        %v469 = vld [vmem:[%s392 + $0x8] sm:$0xf]
        %v470 = vld [vmem:[%s392 + $0xc] sm:$0xf]
        %v471 = vld [vmem:[%s392 + $0x10] sm:$0xf]
        %v472 = vld [vmem:[%s392 + $0x14] sm:$0xf]
        %v473 = vld [vmem:[%s392 + $0x18] sm:$0xf]
        %v474 = vld [vmem:[%s392 + $0x1c] sm:$0xf]
        %v475 = vld [vmem:[%s392 + $0x20] sm:$0xf]
        %v476 = vld [vmem:[%s392 + $0x24] sm:$0xf]
        %v477 = vld [vmem:[%s392 + $0x28] sm:$0xf]
        %v478 = vld [vmem:[%s392 + $0x2c] sm:$0xf]
        %v479 = vld [vmem:[%s392 + $0x30] sm:$0xf]
        %v480 = vld [vmem:[%s392 + $0x34] sm:$0xf]
        %v481 = vld [vmem:[%s392 + $0x38] sm:$0xf]
        %v482 = vld [vmem:[%s392 + $0x3c] sm:$0xf]
        %v483 = vld [vmem:[%s401] sm:$0xf]
        %v484 = vld [vmem:[%s401 + $0x4] sm:$0xf]
        %v485 = vld [vmem:[%s401 + $0x8] sm:$0xf]
        %v486 = vld [vmem:[%s401 + $0xc] sm:$0xf]
        %v487 = vld [vmem:[%s401 + $0x10] sm:$0xf]
        %v488 = vld [vmem:[%s401 + $0x14] sm:$0xf]
        %v489 = vld [vmem:[%s401 + $0x18] sm:$0xf]
        %v490 = vld [vmem:[%s401 + $0x1c] sm:$0xf]
        %v491 = vld [vmem:[%s401 + $0x20] sm:$0xf]
        %v492 = vld [vmem:[%s401 + $0x24] sm:$0xf]
        %v493 = vld [vmem:[%s401 + $0x28] sm:$0xf]
        %v494 = vld [vmem:[%s401 + $0x2c] sm:$0xf]
        %v495 = vld [vmem:[%s401 + $0x30] sm:$0xf]
        %v496 = vld [vmem:[%s401 + $0x34] sm:$0xf]
        %v497 = vld [vmem:[%s401 + $0x38] sm:$0xf]
        %v498 = vld [vmem:[%s401 + $0x3c] sm:$0xf]
        %v499 = vld [vmem:[#allocation7] sm:$0xf]
        %v500 = vld [vmem:[#allocation7 + $0x4] sm:$0xf]
        %v501 = vld [vmem:[#allocation7 + $0x8] sm:$0xf]
        %v502 = vld [vmem:[#allocation7 + $0xc] sm:$0xf]
        %v503 = vld [vmem:[#allocation7 + $0x10] sm:$0xf]
        %v504 = vld [vmem:[#allocation7 + $0x14] sm:$0xf]
        %v505 = vld [vmem:[#allocation7 + $0x18] sm:$0xf]
        %v506 = vld [vmem:[#allocation7 + $0x1c] sm:$0xf]
        %v507 = vld [vmem:[#allocation7 + $0x20] sm:$0xf]
        %v508 = vld [vmem:[#allocation7 + $0x24] sm:$0xf]
        %v509 = vld [vmem:[#allocation7 + $0x28] sm:$0xf]
        %v510 = vld [vmem:[#allocation7 + $0x2c] sm:$0xf]
        %v511 = vld [vmem:[#allocation7 + $0x30] sm:$0xf]
        %v512 = vld [vmem:[#allocation7 + $0x34] sm:$0xf]
        %v513 = vld [vmem:[#allocation7 + $0x38] sm:$0xf]
        %v514 = vld [vmem:[#allocation7 + $0x3c] sm:$0xf]
        %v531 = vunpack.c.l.b16 %v467
        %v532 = vunpack.c.l.b16 %v468
        %v533 = vunpack.c.l.b16 %v469
        %v534 = vunpack.c.l.b16 %v470
        %v535 = vunpack.c.l.b16 %v471
        %v536 = vunpack.c.l.b16 %v472
        %v537 = vunpack.c.l.b16 %v473
        %v538 = vunpack.c.l.b16 %v474
        %v539 = vunpack.c.l.b16 %v475
        %v540 = vunpack.c.l.b16 %v476
        %v541 = vunpack.c.l.b16 %v477
        %v542 = vunpack.c.l.b16 %v478
        %v543 = vunpack.c.l.b16 %v479
        %v544 = vunpack.c.l.b16 %v480
        %v545 = vunpack.c.l.b16 %v481
        %v546 = vunpack.c.l.b16 %v482
        %v547 = vpack.c.b16 %v532, %v531
        %v548 = vpack.c.b16 %v534, %v533
        %v549 = vpack.c.b16 %v536, %v535
        %v550 = vpack.c.b16 %v538, %v537
        %v551 = vpack.c.b16 %v540, %v539
        %v552 = vpack.c.b16 %v542, %v541
        %v553 = vpack.c.b16 %v544, %v543
        %v554 = vpack.c.b16 %v546, %v545
        %v567 = vunpack.c.l.b16 %v499
        %v568 = vunpack.c.l.b16 %v500
        %v569 = vunpack.c.l.b16 %v501
        %v570 = vunpack.c.l.b16 %v502
        %v571 = vpack.c.b16 %v568, %v567
        %v572 = vpack.c.b16 %v570, %v569
        %575 = vmatprep.subr.bf16.mxu0 0
        %576 = vmatpush1.bf16.xpose.msra.mxu0 %v571
        %577 = vmatprep.subr.bf16.mxu0 0
        %578 = vmatpush1.bf16.xpose.msra.mxu0 %v572
        %579 = vmatprep.subr.bf16.mxu0 0
        %580 = vmatpush1.bf16.xpose.msra.mxu0 0
        %581 = vmatprep.subr.bf16.mxu0 0
        %582 = vmatpush1.bf16.xpose.msra.mxu0 0
        %583 = vmatprep.subr.bf16.mxu0 0
        %584 = vmatpush1.bf16.xpose.msra.mxu0 0
        %585 = vmatprep.subr.bf16.mxu0 0
        %586 = vmatpush1.bf16.xpose.msra.mxu0 0
        %587 = vmatprep.subr.bf16.mxu0 0
        %588 = vmatpush1.bf16.xpose.msra.mxu0 0
        %589 = vmatprep.subr.bf16.mxu0 0
        %590 = vmatpush1.bf16.xpose.msra.mxu0 0
        %591 = vmatprep.subr.bf16.mxu0 0
        %592 = vmatpush1.bf16.xpose.msra.mxu0 0
        %593 = vmatprep.subr.bf16.mxu0 0
        %594 = vmatpush1.bf16.xpose.msra.mxu0 0
        %595 = vmatprep.subr.bf16.mxu0 0
        %596 = vmatpush1.bf16.xpose.msra.mxu0 0
        %597 = vmatprep.subr.bf16.mxu0 0
        %598 = vmatpush1.bf16.xpose.msra.mxu0 0
        %599 = vmatprep.subr.bf16.mxu0 0
        %600 = vmatpush1.bf16.xpose.msra.mxu0 0
        %601 = vmatprep.subr.bf16.mxu0 0
        %602 = vmatpush1.bf16.xpose.msra.mxu0 0
        %603 = vmatprep.subr.bf16.mxu0 0
        %604 = vmatpush1.bf16.xpose.msra.mxu0 0
        %605 = vmatprep.subr.bf16.mxu0 0
        %606 = vmatpush1.bf16.xpose.msra.mxu0 0
        %607 = vmatprep.mubr.bf16.mxu0 0
        %608 = vmatmul.mubr.bf16.gmra.mrb[0].mxu0 %v547
        %v609 = vpop.f32.mrb[0].mxu0
        %v610 = vadd.f32 0.0, %v609
        %v611 = vpop.f32.mrb[0].mxu0
        %v612 = vpop.f32.mrb[0].mxu0
        %v613 = vadd.f32 0.0, %v612
        %v614 = vpop.f32.mrb[0].mxu0
        %615 = vmatprep.mubr.bf16.mxu0 0
        %616 = vmatmul.mubr.bf16.gmra.mrb[0].mxu0 %v548
        %v617 = vpop.f32.mrb[0].mxu0
        %v618 = vadd.f32 0.0, %v617
        %v619 = vpop.f32.mrb[0].mxu0
        %v620 = vpop.f32.mrb[0].mxu0
        %v621 = vadd.f32 0.0, %v620
        %v622 = vpop.f32.mrb[0].mxu0
        %623 = vmatprep.mubr.bf16.mxu0 0
        %624 = vmatmul.mubr.bf16.gmra.mrb[0].mxu0 %v549
        %v625 = vpop.f32.mrb[0].mxu0
        %v626 = vadd.f32 0.0, %v625
        %v627 = vpop.f32.mrb[0].mxu0
        %v628 = vpop.f32.mrb[0].mxu0
        %v629 = vadd.f32 0.0, %v628
        %v630 = vpop.f32.mrb[0].mxu0
        %631 = vmatprep.mubr.bf16.mxu0 0
        %632 = vmatmul.mubr.bf16.gmra.mrb[0].mxu0 %v550
        %v633 = vpop.f32.mrb[0].mxu0
        %v634 = vadd.f32 0.0, %v633
        %v635 = vpop.f32.mrb[0].mxu0
        %v636 = vpop.f32.mrb[0].mxu0
        %v637 = vadd.f32 0.0, %v636
        %v638 = vpop.f32.mrb[0].mxu0
        %639 = vmatprep.mubr.bf16.mxu0 0
        %640 = vmatmul.mubr.bf16.gmra.mrb[0].mxu0 %v551
        %v641 = vpop.f32.mrb[0].mxu0
        %v642 = vadd.f32 0.0, %v641
        %v643 = vpop.f32.mrb[0].mxu0
        %v644 = vpop.f32.mrb[0].mxu0
        %v645 = vadd.f32 0.0, %v644
        %v646 = vpop.f32.mrb[0].mxu0
        %647 = vmatprep.mubr.bf16.mxu0 0
        %648 = vmatmul.mubr.bf16.gmra.mrb[0].mxu0 %v552
        %v649 = vpop.f32.mrb[0].mxu0
        %v650 = vadd.f32 0.0, %v649
        %v651 = vpop.f32.mrb[0].mxu0
        %v652 = vpop.f32.mrb[0].mxu0
        %v653 = vadd.f32 0.0, %v652
        %v654 = vpop.f32.mrb[0].mxu0
        %655 = vmatprep.mubr.bf16.mxu0 0
        %656 = vmatmul.mubr.bf16.gmra.mrb[0].mxu0 %v553
        %v657 = vpop.f32.mrb[0].mxu0
        %v658 = vadd.f32 0.0, %v657
        %v659 = vpop.f32.mrb[0].mxu0
        %v660 = vpop.f32.mrb[0].mxu0
        %v661 = vadd.f32 0.0, %v660
        %v662 = vpop.f32.mrb[0].mxu0
        %663 = vmatprep.mubr.bf16.mxu0 0
        %664 = vmatmul.mubr.bf16.gmra.mrb[0].mxu0 %v554
        %v665 = vpop.f32.mrb[0].mxu0
        %v666 = vadd.f32 0.0, %v665
        %v667 = vpop.f32.mrb[0].mxu0
        %v668 = vpop.f32.mrb[0].mxu0
        %v669 = vadd.f32 0.0, %v668
        %v670 = vpop.f32.mrb[0].mxu0
        %671 = vdwg.mxu0
        %v676 = vunpack.c.l.b16 %v503
        %v677 = vunpack.c.l.b16 %v504
        %v678 = vunpack.c.l.b16 %v505
        %v679 = vunpack.c.l.b16 %v506
        %v680 = vpack.c.b16 %v677, %v676
        %v681 = vpack.c.b16 %v679, %v678
        %684 = vmatprep.subr.bf16.mxu0 0
        %685 = vmatpush1.bf16.xpose.msra.mxu0 %v680
        %686 = vmatprep.subr.bf16.mxu0 0
        %687 = vmatpush1.bf16.xpose.msra.mxu0 %v681
        %688 = vmatprep.subr.bf16.mxu0 0
        %689 = vmatpush1.bf16.xpose.msra.mxu0 0
        %690 = vmatprep.subr.bf16.mxu0 0
        %691 = vmatpush1.bf16.xpose.msra.mxu0 0
        %692 = vmatprep.subr.bf16.mxu0 0
        %693 = vmatpush1.bf16.xpose.msra.mxu0 0
        %694 = vmatprep.subr.bf16.mxu0 0
        %695 = vmatpush1.bf16.xpose.msra.mxu0 0
        %696 = vmatprep.subr.bf16.mxu0 0
        %697 = vmatpush1.bf16.xpose.msra.mxu0 0
        %698 = vmatprep.subr.bf16.mxu0 0
        %699 = vmatpush1.bf16.xpose.msra.mxu0 0
        %700 = vmatprep.subr.bf16.mxu0 0
        %701 = vmatpush1.bf16.xpose.msra.mxu0 0
        %702 = vmatprep.subr.bf16.mxu0 0
        %703 = vmatpush1.bf16.xpose.msra.mxu0 0
        %704 = vmatprep.subr.bf16.mxu0 0
        %705 = vmatpush1.bf16.xpose.msra.mxu0 0
        %706 = vmatprep.subr.bf16.mxu0 0
        %707 = vmatpush1.bf16.xpose.msra.mxu0 0
        %708 = vmatprep.subr.bf16.mxu0 0
        %709 = vmatpush1.bf16.xpose.msra.mxu0 0
        %710 = vmatprep.subr.bf16.mxu0 0
        %711 = vmatpush1.bf16.xpose.msra.mxu0 0
        %712 = vmatprep.subr.bf16.mxu0 0
        %713 = vmatpush1.bf16.xpose.msra.mxu0 0
        %714 = vmatprep.subr.bf16.mxu0 0
        %715 = vmatpush1.bf16.xpose.msra.mxu0 0
        %716 = vmatprep.mubr.bf16.mxu0 0
        %717 = vmatmul.mubr.bf16.gmra.mrb[0].mxu0 %v547
        %v718 = vpop.f32.mrb[0].mxu0
        %v719 = vadd.f32 0.0, %v718
        %v720 = vpop.f32.mrb[0].mxu0
        %v721 = vpop.f32.mrb[0].mxu0
        %v722 = vadd.f32 0.0, %v721
        %v723 = vpop.f32.mrb[0].mxu0
        %724 = vmatprep.mubr.bf16.mxu0 0
        %725 = vmatmul.mubr.bf16.gmra.mrb[0].mxu0 %v548
        %v726 = vpop.f32.mrb[0].mxu0
        %v727 = vadd.f32 0.0, %v726
        %v728 = vpop.f32.mrb[0].mxu0
        %v729 = vpop.f32.mrb[0].mxu0
        %v730 = vadd.f32 0.0, %v729
        %v731 = vpop.f32.mrb[0].mxu0
        %732 = vmatprep.mubr.bf16.mxu0 0
        %733 = vmatmul.mubr.bf16.gmra.mrb[0].mxu0 %v549
        %v734 = vpop.f32.mrb[0].mxu0
        %v735 = vadd.f32 0.0, %v734
        %v736 = vpop.f32.mrb[0].mxu0
        %v737 = vpop.f32.mrb[0].mxu0
        %v738 = vadd.f32 0.0, %v737
        %v739 = vpop.f32.mrb[0].mxu0
        %740 = vmatprep.mubr.bf16.mxu0 0
        %741 = vmatmul.mubr.bf16.gmra.mrb[0].mxu0 %v550
        %v742 = vpop.f32.mrb[0].mxu0
        %v743 = vadd.f32 0.0, %v742
        %v744 = vpop.f32.mrb[0].mxu0
        %v745 = vpop.f32.mrb[0].mxu0
        %v746 = vadd.f32 0.0, %v745
        %v747 = vpop.f32.mrb[0].mxu0
        %748 = vmatprep.mubr.bf16.mxu0 0
        %749 = vmatmul.mubr.bf16.gmra.mrb[0].mxu0 %v551
        %v750 = vpop.f32.mrb[0].mxu0
        %v751 = vadd.f32 0.0, %v750
        %v752 = vpop.f32.mrb[0].mxu0
        %v753 = vpop.f32.mrb[0].mxu0
        %v754 = vadd.f32 0.0, %v753
        %v755 = vpop.f32.mrb[0].mxu0
        %756 = vmatprep.mubr.bf16.mxu0 0
        %757 = vmatmul.mubr.bf16.gmra.mrb[0].mxu0 %v552
        %v758 = vpop.f32.mrb[0].mxu0
        %v759 = vadd.f32 0.0, %v758
        %v760 = vpop.f32.mrb[0].mxu0
        %v761 = vpop.f32.mrb[0].mxu0
        %v762 = vadd.f32 0.0, %v761
        %v763 = vpop.f32.mrb[0].mxu0
        %764 = vmatprep.mubr.bf16.mxu0 0
        %765 = vmatmul.mubr.bf16.gmra.mrb[0].mxu0 %v553
        %v766 = vpop.f32.mrb[0].mxu0
        %v767 = vadd.f32 0.0, %v766
        %v768 = vpop.f32.mrb[0].mxu0
        %v769 = vpop.f32.mrb[0].mxu0
        %v770 = vadd.f32 0.0, %v769
        %v771 = vpop.f32.mrb[0].mxu0
        %772 = vmatprep.mubr.bf16.mxu0 0
        %773 = vmatmul.mubr.bf16.gmra.mrb[0].mxu0 %v554
        %v774 = vpop.f32.mrb[0].mxu0
        %v775 = vadd.f32 0.0, %v774
        %v776 = vpop.f32.mrb[0].mxu0
        %v777 = vpop.f32.mrb[0].mxu0
        %v778 = vadd.f32 0.0, %v777
        %v779 = vpop.f32.mrb[0].mxu0
        %780 = vdwg.mxu0
        %v785 = vunpack.c.l.b16 %v507
        %v786 = vunpack.c.l.b16 %v508
        %v787 = vunpack.c.l.b16 %v509
        %v788 = vunpack.c.l.b16 %v510
        %v789 = vpack.c.b16 %v786, %v785
        %v790 = vpack.c.b16 %v788, %v787
        %793 = vmatprep.subr.bf16.mxu0 0
        %794 = vmatpush1.bf16.xpose.msra.mxu0 %v789
        %795 = vmatprep.subr.bf16.mxu0 0
        %796 = vmatpush1.bf16.xpose.msra.mxu0 %v790
        %797 = vmatprep.subr.bf16.mxu0 0
        %798 = vmatpush1.bf16.xpose.msra.mxu0 0
        %799 = vmatprep.subr.bf16.mxu0 0
        %800 = vmatpush1.bf16.xpose.msra.mxu0 0
        %801 = vmatprep.subr.bf16.mxu0 0
        %802 = vmatpush1.bf16.xpose.msra.mxu0 0
        %803 = vmatprep.subr.bf16.mxu0 0
        %804 = vmatpush1.bf16.xpose.msra.mxu0 0
        %805 = vmatprep.subr.bf16.mxu0 0
        %806 = vmatpush1.bf16.xpose.msra.mxu0 0
        %807 = vmatprep.subr.bf16.mxu0 0
        %808 = vmatpush1.bf16.xpose.msra.mxu0 0
        %809 = vmatprep.subr.bf16.mxu0 0
        %810 = vmatpush1.bf16.xpose.msra.mxu0 0
        %811 = vmatprep.subr.bf16.mxu0 0
        %812 = vmatpush1.bf16.xpose.msra.mxu0 0
        %813 = vmatprep.subr.bf16.mxu0 0
        %814 = vmatpush1.bf16.xpose.msra.mxu0 0
        %815 = vmatprep.subr.bf16.mxu0 0
        %816 = vmatpush1.bf16.xpose.msra.mxu0 0
        %817 = vmatprep.subr.bf16.mxu0 0
        %818 = vmatpush1.bf16.xpose.msra.mxu0 0
        %819 = vmatprep.subr.bf16.mxu0 0
        %820 = vmatpush1.bf16.xpose.msra.mxu0 0
        %821 = vmatprep.subr.bf16.mxu0 0
        %822 = vmatpush1.bf16.xpose.msra.mxu0 0
        %823 = vmatprep.subr.bf16.mxu0 0
        %824 = vmatpush1.bf16.xpose.msra.mxu0 0
        %825 = vmatprep.mubr.bf16.mxu0 0
        %826 = vmatmul.mubr.bf16.gmra.mrb[0].mxu0 %v547
        %v827 = vpop.f32.mrb[0].mxu0
        %v828 = vadd.f32 0.0, %v827
        %v829 = vpop.f32.mrb[0].mxu0
        %v830 = vpop.f32.mrb[0].mxu0
        %v831 = vadd.f32 0.0, %v830
        %v832 = vpop.f32.mrb[0].mxu0
        %833 = vmatprep.mubr.bf16.mxu0 0
        %834 = vmatmul.mubr.bf16.gmra.mrb[0].mxu0 %v548
        %v835 = vpop.f32.mrb[0].mxu0
        %v836 = vadd.f32 0.0, %v835
        %v837 = vpop.f32.mrb[0].mxu0
        %v838 = vpop.f32.mrb[0].mxu0
        %v839 = vadd.f32 0.0, %v838
        %v840 = vpop.f32.mrb[0].mxu0
        %841 = vmatprep.mubr.bf16.mxu0 0
        %842 = vmatmul.mubr.bf16.gmra.mrb[0].mxu0 %v549
        %v843 = vpop.f32.mrb[0].mxu0
        %v844 = vadd.f32 0.0, %v843
        %v845 = vpop.f32.mrb[0].mxu0
        %v846 = vpop.f32.mrb[0].mxu0
        %v847 = vadd.f32 0.0, %v846
        %v848 = vpop.f32.mrb[0].mxu0
        %849 = vmatprep.mubr.bf16.mxu0 0
        %850 = vmatmul.mubr.bf16.gmra.mrb[0].mxu0 %v550
        %v851 = vpop.f32.mrb[0].mxu0
        %v852 = vadd.f32 0.0, %v851
        %v853 = vpop.f32.mrb[0].mxu0
        %v854 = vpop.f32.mrb[0].mxu0
        %v855 = vadd.f32 0.0, %v854
        %v856 = vpop.f32.mrb[0].mxu0
        %857 = vmatprep.mubr.bf16.mxu0 0
        %858 = vmatmul.mubr.bf16.gmra.mrb[0].mxu0 %v551
        %v859 = vpop.f32.mrb[0].mxu0
        %v860 = vadd.f32 0.0, %v859
        %v861 = vpop.f32.mrb[0].mxu0
        %v862 = vpop.f32.mrb[0].mxu0
        %v863 = vadd.f32 0.0, %v862
        %v864 = vpop.f32.mrb[0].mxu0
        %865 = vmatprep.mubr.bf16.mxu0 0
        %866 = vmatmul.mubr.bf16.gmra.mrb[0].mxu0 %v552
        %v867 = vpop.f32.mrb[0].mxu0
        %v868 = vadd.f32 0.0, %v867
        %v869 = vpop.f32.mrb[0].mxu0
        %v870 = vpop.f32.mrb[0].mxu0
        %v871 = vadd.f32 0.0, %v870
        %v872 = vpop.f32.mrb[0].mxu0
        %873 = vmatprep.mubr.bf16.mxu0 0
        %874 = vmatmul.mubr.bf16.gmra.mrb[0].mxu0 %v553
        %v875 = vpop.f32.mrb[0].mxu0
        %v876 = vadd.f32 0.0, %v875
        %v877 = vpop.f32.mrb[0].mxu0
        %v878 = vpop.f32.mrb[0].mxu0
        %v879 = vadd.f32 0.0, %v878
        %v880 = vpop.f32.mrb[0].mxu0
        %881 = vmatprep.mubr.bf16.mxu0 0
        %882 = vmatmul.mubr.bf16.gmra.mrb[0].mxu0 %v554
        %v883 = vpop.f32.mrb[0].mxu0
        %v884 = vadd.f32 0.0, %v883
        %v885 = vpop.f32.mrb[0].mxu0
        %v886 = vpop.f32.mrb[0].mxu0
        %v887 = vadd.f32 0.0, %v886
        %v888 = vpop.f32.mrb[0].mxu0
        %889 = vdwg.mxu0
        %v894 = vunpack.c.l.b16 %v511
        %v895 = vunpack.c.l.b16 %v512
        %v896 = vunpack.c.l.b16 %v513
        %v897 = vunpack.c.l.b16 %v514
        %v898 = vpack.c.b16 %v895, %v894
        %v899 = vpack.c.b16 %v897, %v896
        %902 = vmatprep.subr.bf16.mxu0 0
        %903 = vmatpush1.bf16.xpose.msra.mxu0 %v898
        %904 = vmatprep.subr.bf16.mxu0 0
        %905 = vmatpush1.bf16.xpose.msra.mxu0 %v899
        %906 = vmatprep.subr.bf16.mxu0 0
        %907 = vmatpush1.bf16.xpose.msra.mxu0 0
        %908 = vmatprep.subr.bf16.mxu0 0
        %909 = vmatpush1.bf16.xpose.msra.mxu0 0
        %910 = vmatprep.subr.bf16.mxu0 0
        %911 = vmatpush1.bf16.xpose.msra.mxu0 0
        %912 = vmatprep.subr.bf16.mxu0 0
        %913 = vmatpush1.bf16.xpose.msra.mxu0 0
        %914 = vmatprep.subr.bf16.mxu0 0
        %915 = vmatpush1.bf16.xpose.msra.mxu0 0
        %916 = vmatprep.subr.bf16.mxu0 0
        %917 = vmatpush1.bf16.xpose.msra.mxu0 0
        %918 = vmatprep.subr.bf16.mxu0 0
        %919 = vmatpush1.bf16.xpose.msra.mxu0 0
        %920 = vmatprep.subr.bf16.mxu0 0
        %921 = vmatpush1.bf16.xpose.msra.mxu0 0
        %922 = vmatprep.subr.bf16.mxu0 0
        %923 = vmatpush1.bf16.xpose.msra.mxu0 0
        %924 = vmatprep.subr.bf16.mxu0 0
        %925 = vmatpush1.bf16.xpose.msra.mxu0 0
        %926 = vmatprep.subr.bf16.mxu0 0
        %927 = vmatpush1.bf16.xpose.msra.mxu0 0
        %928 = vmatprep.subr.bf16.mxu0 0
        %929 = vmatpush1.bf16.xpose.msra.mxu0 0
        %930 = vmatprep.subr.bf16.mxu0 0
        %931 = vmatpush1.bf16.xpose.msra.mxu0 0
        %932 = vmatprep.subr.bf16.mxu0 0
        %933 = vmatpush1.bf16.xpose.msra.mxu0 0
        %934 = vmatprep.mubr.bf16.mxu0 0
        %935 = vmatmul.mubr.bf16.gmra.mrb[0].mxu0 %v547
        %v936 = vpop.f32.mrb[0].mxu0
        %v937 = vadd.f32 0.0, %v936
        %v938 = vpop.f32.mrb[0].mxu0
        %v939 = vpop.f32.mrb[0].mxu0
        %v940 = vadd.f32 0.0, %v939
        %v941 = vpop.f32.mrb[0].mxu0
        %942 = vmatprep.mubr.bf16.mxu0 0
        %943 = vmatmul.mubr.bf16.gmra.mrb[0].mxu0 %v548
        %v944 = vpop.f32.mrb[0].mxu0
        %v945 = vadd.f32 0.0, %v944
        %v946 = vpop.f32.mrb[0].mxu0
        %v947 = vpop.f32.mrb[0].mxu0
        %v948 = vadd.f32 0.0, %v947
        %v949 = vpop.f32.mrb[0].mxu0
        %950 = vmatprep.mubr.bf16.mxu0 0
        %951 = vmatmul.mubr.bf16.gmra.mrb[0].mxu0 %v549
        %v952 = vpop.f32.mrb[0].mxu0
        %v953 = vadd.f32 0.0, %v952
        %v954 = vpop.f32.mrb[0].mxu0
        %v955 = vpop.f32.mrb[0].mxu0
        %v956 = vadd.f32 0.0, %v955
        %v957 = vpop.f32.mrb[0].mxu0
        %958 = vmatprep.mubr.bf16.mxu0 0
        %959 = vmatmul.mubr.bf16.gmra.mrb[0].mxu0 %v550
        %v960 = vpop.f32.mrb[0].mxu0
        %v961 = vadd.f32 0.0, %v960
        %v962 = vpop.f32.mrb[0].mxu0
        %v963 = vpop.f32.mrb[0].mxu0
        %v964 = vadd.f32 0.0, %v963
        %v965 = vpop.f32.mrb[0].mxu0
        %966 = vmatprep.mubr.bf16.mxu0 0
        %967 = vmatmul.mubr.bf16.gmra.mrb[0].mxu0 %v551
        %v968 = vpop.f32.mrb[0].mxu0
        %v969 = vadd.f32 0.0, %v968
        %v970 = vpop.f32.mrb[0].mxu0
        %v971 = vpop.f32.mrb[0].mxu0
        %v972 = vadd.f32 0.0, %v971
        %v973 = vpop.f32.mrb[0].mxu0
        %974 = vmatprep.mubr.bf16.mxu0 0
        %975 = vmatmul.mubr.bf16.gmra.mrb[0].mxu0 %v552
        %v976 = vpop.f32.mrb[0].mxu0
        %v977 = vadd.f32 0.0, %v976
        %v978 = vpop.f32.mrb[0].mxu0
        %v979 = vpop.f32.mrb[0].mxu0
        %v980 = vadd.f32 0.0, %v979
        %v981 = vpop.f32.mrb[0].mxu0
        %982 = vmatprep.mubr.bf16.mxu0 0
        %983 = vmatmul.mubr.bf16.gmra.mrb[0].mxu0 %v553
        %v984 = vpop.f32.mrb[0].mxu0
        %v985 = vadd.f32 0.0, %v984
        %v986 = vpop.f32.mrb[0].mxu0
        %v987 = vpop.f32.mrb[0].mxu0
        %v988 = vadd.f32 0.0, %v987
        %v989 = vpop.f32.mrb[0].mxu0
        %990 = vmatprep.mubr.bf16.mxu0 0
        %991 = vmatmul.mubr.bf16.gmra.mrb[0].mxu0 %v554
        %v992 = vpop.f32.mrb[0].mxu0
        %v993 = vadd.f32 0.0, %v992
        %v994 = vpop.f32.mrb[0].mxu0
        %v995 = vpop.f32.mrb[0].mxu0
        %v996 = vadd.f32 0.0, %v995
        %v997 = vpop.f32.mrb[0].mxu0
        %998 = vdwg.mxu0
        %v999 = vpack.c.bf16 %v613, %v610
        %v1000 = vpack.c.bf16 %v621, %v618
        %v1001 = vpack.c.bf16 %v629, %v626
        %v1002 = vpack.c.bf16 %v637, %v634
        %v1003 = vpack.c.bf16 %v645, %v642
        %v1004 = vpack.c.bf16 %v653, %v650
        %v1005 = vpack.c.bf16 %v661, %v658
        %v1006 = vpack.c.bf16 %v669, %v666
        %v1007 = vpack.c.bf16 %v722, %v719
        %v1008 = vpack.c.bf16 %v730, %v727
        %v1009 = vpack.c.bf16 %v738, %v735
        %v1010 = vpack.c.bf16 %v746, %v743
        %v1011 = vpack.c.bf16 %v754, %v751
        %v1012 = vpack.c.bf16 %v762, %v759
        %v1013 = vpack.c.bf16 %v770, %v767
        %v1014 = vpack.c.bf16 %v778, %v775
        %v1015 = vpack.c.bf16 %v831, %v828
        %v1016 = vpack.c.bf16 %v839, %v836
        %v1017 = vpack.c.bf16 %v847, %v844
        %v1018 = vpack.c.bf16 %v855, %v852
        %v1019 = vpack.c.bf16 %v863, %v860
        %v1020 = vpack.c.bf16 %v871, %v868
        %v1021 = vpack.c.bf16 %v879, %v876
        %v1022 = vpack.c.bf16 %v887, %v884
        %v1023 = vpack.c.bf16 %v940, %v937
        %v1024 = vpack.c.bf16 %v948, %v945
        %v1025 = vpack.c.bf16 %v956, %v953
        %v1026 = vpack.c.bf16 %v964, %v961
        %v1027 = vpack.c.bf16 %v972, %v969
        %v1028 = vpack.c.bf16 %v980, %v977
        %v1029 = vpack.c.bf16 %v988, %v985
        %v1030 = vpack.c.bf16 %v996, %v993
        %s1031 = scalar_lea.vmem [#allocation7], 64
        %v1032 = vld [vmem:[%s1031] sm:$0xf]
        %v1033 = vld [vmem:[%s1031 + $0x4] sm:$0xf]
        %v1034 = vld [vmem:[%s1031 + $0x8] sm:$0xf]
        %v1035 = vld [vmem:[%s1031 + $0xc] sm:$0xf]
        %v1036 = vld [vmem:[%s1031 + $0x10] sm:$0xf]
        %v1037 = vld [vmem:[%s1031 + $0x14] sm:$0xf]
        %v1038 = vld [vmem:[%s1031 + $0x18] sm:$0xf]
        %v1039 = vld [vmem:[%s1031 + $0x1c] sm:$0xf]
        %v1040 = vld [vmem:[%s1031 + $0x20] sm:$0xf]
        %v1041 = vld [vmem:[%s1031 + $0x24] sm:$0xf]
        %v1042 = vld [vmem:[%s1031 + $0x28] sm:$0xf]
        %v1043 = vld [vmem:[%s1031 + $0x2c] sm:$0xf]
        %v1044 = vld [vmem:[%s1031 + $0x30] sm:$0xf]
        %v1045 = vld [vmem:[%s1031 + $0x34] sm:$0xf]
        %v1046 = vld [vmem:[%s1031 + $0x38] sm:$0xf]
        %v1047 = vld [vmem:[%s1031 + $0x3c] sm:$0xf]
        %v1052 = vunpack.c.l.b16 %v1032
        %v1053 = vunpack.c.l.b16 %v1033
        %v1054 = vunpack.c.l.b16 %v1034
        %v1055 = vunpack.c.l.b16 %v1035
        %v1056 = vpack.c.b16 %v1053, %v1052
        %v1057 = vpack.c.b16 %v1055, %v1054
        %1060 = vmatprep.subr.bf16.mxu0 0
        %1061 = vmatpush1.bf16.xpose.msra.mxu0 %v1056
        %1062 = vmatprep.subr.bf16.mxu0 0
        %1063 = vmatpush1.bf16.xpose.msra.mxu0 %v1057
        %1064 = vmatprep.subr.bf16.mxu0 0
        %1065 = vmatpush1.bf16.xpose.msra.mxu0 0
        %1066 = vmatprep.subr.bf16.mxu0 0
        %1067 = vmatpush1.bf16.xpose.msra.mxu0 0
        %1068 = vmatprep.subr.bf16.mxu0 0
        %1069 = vmatpush1.bf16.xpose.msra.mxu0 0
        %1070 = vmatprep.subr.bf16.mxu0 0
        %1071 = vmatpush1.bf16.xpose.msra.mxu0 0
        %1072 = vmatprep.subr.bf16.mxu0 0
        %1073 = vmatpush1.bf16.xpose.msra.mxu0 0
        %1074 = vmatprep.subr.bf16.mxu0 0
        %1075 = vmatpush1.bf16.xpose.msra.mxu0 0
        %1076 = vmatprep.subr.bf16.mxu0 0
        %1077 = vmatpush1.bf16.xpose.msra.mxu0 0
        %1078 = vmatprep.subr.bf16.mxu0 0
        %1079 = vmatpush1.bf16.xpose.msra.mxu0 0
        %1080 = vmatprep.subr.bf16.mxu0 0
        %1081 = vmatpush1.bf16.xpose.msra.mxu0 0
        %1082 = vmatprep.subr.bf16.mxu0 0
        %1083 = vmatpush1.bf16.xpose.msra.mxu0 0
        %1084 = vmatprep.subr.bf16.mxu0 0
        %1085 = vmatpush1.bf16.xpose.msra.mxu0 0
        %1086 = vmatprep.subr.bf16.mxu0 0
        %1087 = vmatpush1.bf16.xpose.msra.mxu0 0
        %1088 = vmatprep.subr.bf16.mxu0 0
        %1089 = vmatpush1.bf16.xpose.msra.mxu0 0
        %1090 = vmatprep.subr.bf16.mxu0 0
        %1091 = vmatpush1.bf16.xpose.msra.mxu0 0
        %1092 = vmatprep.mubr.bf16.mxu0 0
        %1093 = vmatmul.mubr.bf16.gmra.mrb[0].mxu0 %v547
        %v1094 = vpop.f32.mrb[0].mxu0
        %v1095 = vadd.f32 0.0, %v1094
        %v1096 = vpop.f32.mrb[0].mxu0
        %v1097 = vpop.f32.mrb[0].mxu0
        %v1098 = vadd.f32 0.0, %v1097
        %v1099 = vpop.f32.mrb[0].mxu0
        %1100 = vmatprep.mubr.bf16.mxu0 0
        %1101 = vmatmul.mubr.bf16.gmra.mrb[0].mxu0 %v548
        %v1102 = vpop.f32.mrb[0].mxu0
        %v1103 = vadd.f32 0.0, %v1102
        %v1104 = vpop.f32.mrb[0].mxu0
        %v1105 = vpop.f32.mrb[0].mxu0
        %v1106 = vadd.f32 0.0, %v1105
        %v1107 = vpop.f32.mrb[0].mxu0
        %1108 = vmatprep.mubr.bf16.mxu0 0
        %1109 = vmatmul.mubr.bf16.gmra.mrb[0].mxu0 %v549
        %v1110 = vpop.f32.mrb[0].mxu0
        %v1111 = vadd.f32 0.0, %v1110
        %v1112 = vpop.f32.mrb[0].mxu0
        %v1113 = vpop.f32.mrb[0].mxu0
        %v1114 = vadd.f32 0.0, %v1113
        %v1115 = vpop.f32.mrb[0].mxu0
        %1116 = vmatprep.mubr.bf16.mxu0 0
        %1117 = vmatmul.mubr.bf16.gmra.mrb[0].mxu0 %v550
        %v1118 = vpop.f32.mrb[0].mxu0
        %v1119 = vadd.f32 0.0, %v1118
        %v1120 = vpop.f32.mrb[0].mxu0
        %v1121 = vpop.f32.mrb[0].mxu0
        %v1122 = vadd.f32 0.0, %v1121
        %v1123 = vpop.f32.mrb[0].mxu0
        %1124 = vmatprep.mubr.bf16.mxu0 0
        %1125 = vmatmul.mubr.bf16.gmra.mrb[0].mxu0 %v551
        %v1126 = vpop.f32.mrb[0].mxu0
        %v1127 = vadd.f32 0.0, %v1126
        %v1128 = vpop.f32.mrb[0].mxu0
        %v1129 = vpop.f32.mrb[0].mxu0
        %v1130 = vadd.f32 0.0, %v1129
        %v1131 = vpop.f32.mrb[0].mxu0
        %1132 = vmatprep.mubr.bf16.mxu0 0
        %1133 = vmatmul.mubr.bf16.gmra.mrb[0].mxu0 %v552
        %v1134 = vpop.f32.mrb[0].mxu0
        %v1135 = vadd.f32 0.0, %v1134
        %v1136 = vpop.f32.mrb[0].mxu0
        %v1137 = vpop.f32.mrb[0].mxu0
        %v1138 = vadd.f32 0.0, %v1137
        %v1139 = vpop.f32.mrb[0].mxu0
        %1140 = vmatprep.mubr.bf16.mxu0 0
        %1141 = vmatmul.mubr.bf16.gmra.mrb[0].mxu0 %v553
        %v1142 = vpop.f32.mrb[0].mxu0
        %v1143 = vadd.f32 0.0, %v1142
        %v1144 = vpop.f32.mrb[0].mxu0
        %v1145 = vpop.f32.mrb[0].mxu0
        %v1146 = vadd.f32 0.0, %v1145
        %v1147 = vpop.f32.mrb[0].mxu0
        %1148 = vmatprep.mubr.bf16.mxu0 0
        %1149 = vmatmul.mubr.bf16.gmra.mrb[0].mxu0 %v554
        %v1150 = vpop.f32.mrb[0].mxu0
        %v1151 = vadd.f32 0.0, %v1150
        %v1152 = vpop.f32.mrb[0].mxu0
        %v1153 = vpop.f32.mrb[0].mxu0
        %v1154 = vadd.f32 0.0, %v1153
        %v1155 = vpop.f32.mrb[0].mxu0
        %1156 = vdwg.mxu0
        %v1161 = vunpack.c.l.b16 %v1036
        %v1162 = vunpack.c.l.b16 %v1037
        %v1163 = vunpack.c.l.b16 %v1038
        %v1164 = vunpack.c.l.b16 %v1039
        %v1165 = vpack.c.b16 %v1162, %v1161
        %v1166 = vpack.c.b16 %v1164, %v1163
        %1169 = vmatprep.subr.bf16.mxu0 0
        %1170 = vmatpush1.bf16.xpose.msra.mxu0 %v1165
        %1171 = vmatprep.subr.bf16.mxu0 0
        %1172 = vmatpush1.bf16.xpose.msra.mxu0 %v1166
        %1173 = vmatprep.subr.bf16.mxu0 0
        %1174 = vmatpush1.bf16.xpose.msra.mxu0 0
        %1175 = vmatprep.subr.bf16.mxu0 0
        %1176 = vmatpush1.bf16.xpose.msra.mxu0 0
        %1177 = vmatprep.subr.bf16.mxu0 0
        %1178 = vmatpush1.bf16.xpose.msra.mxu0 0
        %1179 = vmatprep.subr.bf16.mxu0 0
        %1180 = vmatpush1.bf16.xpose.msra.mxu0 0
        %1181 = vmatprep.subr.bf16.mxu0 0
        %1182 = vmatpush1.bf16.xpose.msra.mxu0 0
        %1183 = vmatprep.subr.bf16.mxu0 0
        %1184 = vmatpush1.bf16.xpose.msra.mxu0 0
        %1185 = vmatprep.subr.bf16.mxu0 0
        %1186 = vmatpush1.bf16.xpose.msra.mxu0 0
        %1187 = vmatprep.subr.bf16.mxu0 0
        %1188 = vmatpush1.bf16.xpose.msra.mxu0 0
        %1189 = vmatprep.subr.bf16.mxu0 0
        %1190 = vmatpush1.bf16.xpose.msra.mxu0 0
        %1191 = vmatprep.subr.bf16.mxu0 0
        %1192 = vmatpush1.bf16.xpose.msra.mxu0 0
        %1193 = vmatprep.subr.bf16.mxu0 0
        %1194 = vmatpush1.bf16.xpose.msra.mxu0 0
        %1195 = vmatprep.subr.bf16.mxu0 0
        %1196 = vmatpush1.bf16.xpose.msra.mxu0 0
        %1197 = vmatprep.subr.bf16.mxu0 0
        %1198 = vmatpush1.bf16.xpose.msra.mxu0 0
        %1199 = vmatprep.subr.bf16.mxu0 0
        %1200 = vmatpush1.bf16.xpose.msra.mxu0 0
        %1201 = vmatprep.mubr.bf16.mxu0 0
        %1202 = vmatmul.mubr.bf16.gmra.mrb[0].mxu0 %v547
        %v1203 = vpop.f32.mrb[0].mxu0
        %v1204 = vadd.f32 0.0, %v1203
        %v1205 = vpop.f32.mrb[0].mxu0
        %v1206 = vpop.f32.mrb[0].mxu0
        %v1207 = vadd.f32 0.0, %v1206
        %v1208 = vpop.f32.mrb[0].mxu0
        %1209 = vmatprep.mubr.bf16.mxu0 0
        %1210 = vmatmul.mubr.bf16.gmra.mrb[0].mxu0 %v548
        %v1211 = vpop.f32.mrb[0].mxu0
        %v1212 = vadd.f32 0.0, %v1211
        %v1213 = vpop.f32.mrb[0].mxu0
        %v1214 = vpop.f32.mrb[0].mxu0
        %v1215 = vadd.f32 0.0, %v1214
        %v1216 = vpop.f32.mrb[0].mxu0
        %1217 = vmatprep.mubr.bf16.mxu0 0
        %1218 = vmatmul.mubr.bf16.gmra.mrb[0].mxu0 %v549
        %v1219 = vpop.f32.mrb[0].mxu0
        %v1220 = vadd.f32 0.0, %v1219
        %v1221 = vpop.f32.mrb[0].mxu0
        %v1222 = vpop.f32.mrb[0].mxu0
        %v1223 = vadd.f32 0.0, %v1222
        %v1224 = vpop.f32.mrb[0].mxu0
        %1225 = vmatprep.mubr.bf16.mxu0 0
        %1226 = vmatmul.mubr.bf16.gmra.mrb[0].mxu0 %v550
        %v1227 = vpop.f32.mrb[0].mxu0
        %v1228 = vadd.f32 0.0, %v1227
        %v1229 = vpop.f32.mrb[0].mxu0
        %v1230 = vpop.f32.mrb[0].mxu0
        %v1231 = vadd.f32 0.0, %v1230
        %v1232 = vpop.f32.mrb[0].mxu0
        %1233 = vmatprep.mubr.bf16.mxu0 0
        %1234 = vmatmul.mubr.bf16.gmra.mrb[0].mxu0 %v551
        %v1235 = vpop.f32.mrb[0].mxu0
        %v1236 = vadd.f32 0.0, %v1235
        %v1237 = vpop.f32.mrb[0].mxu0
        %v1238 = vpop.f32.mrb[0].mxu0
        %v1239 = vadd.f32 0.0, %v1238
        %v1240 = vpop.f32.mrb[0].mxu0
        %1241 = vmatprep.mubr.bf16.mxu0 0
        %1242 = vmatmul.mubr.bf16.gmra.mrb[0].mxu0 %v552
        %v1243 = vpop.f32.mrb[0].mxu0
        %v1244 = vadd.f32 0.0, %v1243
        %v1245 = vpop.f32.mrb[0].mxu0
        %v1246 = vpop.f32.mrb[0].mxu0
        %v1247 = vadd.f32 0.0, %v1246
        %v1248 = vpop.f32.mrb[0].mxu0
        %1249 = vmatprep.mubr.bf16.mxu0 0
        %1250 = vmatmul.mubr.bf16.gmra.mrb[0].mxu0 %v553
        %v1251 = vpop.f32.mrb[0].mxu0
        %v1252 = vadd.f32 0.0, %v1251
        %v1253 = vpop.f32.mrb[0].mxu0
        %v1254 = vpop.f32.mrb[0].mxu0
        %v1255 = vadd.f32 0.0, %v1254
        %v1256 = vpop.f32.mrb[0].mxu0
        %1257 = vmatprep.mubr.bf16.mxu0 0
        %1258 = vmatmul.mubr.bf16.gmra.mrb[0].mxu0 %v554
        %v1259 = vpop.f32.mrb[0].mxu0
        %v1260 = vadd.f32 0.0, %v1259
        %v1261 = vpop.f32.mrb[0].mxu0
        %v1262 = vpop.f32.mrb[0].mxu0
        %v1263 = vadd.f32 0.0, %v1262
        %v1264 = vpop.f32.mrb[0].mxu0
        %1265 = vdwg.mxu0
        %v1270 = vunpack.c.l.b16 %v1040
        %v1271 = vunpack.c.l.b16 %v1041
        %v1272 = vunpack.c.l.b16 %v1042
        %v1273 = vunpack.c.l.b16 %v1043
        %v1274 = vpack.c.b16 %v1271, %v1270
        %v1275 = vpack.c.b16 %v1273, %v1272
        %1278 = vmatprep.subr.bf16.mxu0 0
        %1279 = vmatpush1.bf16.xpose.msra.mxu0 %v1274
        %1280 = vmatprep.subr.bf16.mxu0 0
        %1281 = vmatpush1.bf16.xpose.msra.mxu0 %v1275
        %1282 = vmatprep.subr.bf16.mxu0 0
        %1283 = vmatpush1.bf16.xpose.msra.mxu0 0
        %1284 = vmatprep.subr.bf16.mxu0 0
        %1285 = vmatpush1.bf16.xpose.msra.mxu0 0
        %1286 = vmatprep.subr.bf16.mxu0 0
        %1287 = vmatpush1.bf16.xpose.msra.mxu0 0
        %1288 = vmatprep.subr.bf16.mxu0 0
        %1289 = vmatpush1.bf16.xpose.msra.mxu0 0
        %1290 = vmatprep.subr.bf16.mxu0 0
        %1291 = vmatpush1.bf16.xpose.msra.mxu0 0
        %1292 = vmatprep.subr.bf16.mxu0 0
        %1293 = vmatpush1.bf16.xpose.msra.mxu0 0
        %1294 = vmatprep.subr.bf16.mxu0 0
        %1295 = vmatpush1.bf16.xpose.msra.mxu0 0
        %1296 = vmatprep.subr.bf16.mxu0 0
        %1297 = vmatpush1.bf16.xpose.msra.mxu0 0
        %1298 = vmatprep.subr.bf16.mxu0 0
        %1299 = vmatpush1.bf16.xpose.msra.mxu0 0
        %1300 = vmatprep.subr.bf16.mxu0 0
        %1301 = vmatpush1.bf16.xpose.msra.mxu0 0
        %1302 = vmatprep.subr.bf16.mxu0 0
        %1303 = vmatpush1.bf16.xpose.msra.mxu0 0
        %1304 = vmatprep.subr.bf16.mxu0 0
        %1305 = vmatpush1.bf16.xpose.msra.mxu0 0
        %1306 = vmatprep.subr.bf16.mxu0 0
        %1307 = vmatpush1.bf16.xpose.msra.mxu0 0
        %1308 = vmatprep.subr.bf16.mxu0 0
        %1309 = vmatpush1.bf16.xpose.msra.mxu0 0
        %1310 = vmatprep.mubr.bf16.mxu0 0
        %1311 = vmatmul.mubr.bf16.gmra.mrb[0].mxu0 %v547
        %v1312 = vpop.f32.mrb[0].mxu0
        %v1313 = vadd.f32 0.0, %v1312
        %v1314 = vpop.f32.mrb[0].mxu0
        %v1315 = vpop.f32.mrb[0].mxu0
        %v1316 = vadd.f32 0.0, %v1315
        %v1317 = vpop.f32.mrb[0].mxu0
        %1318 = vmatprep.mubr.bf16.mxu0 0
        %1319 = vmatmul.mubr.bf16.gmra.mrb[0].mxu0 %v548
        %v1320 = vpop.f32.mrb[0].mxu0
        %v1321 = vadd.f32 0.0, %v1320
        %v1322 = vpop.f32.mrb[0].mxu0
        %v1323 = vpop.f32.mrb[0].mxu0
        %v1324 = vadd.f32 0.0, %v1323
        %v1325 = vpop.f32.mrb[0].mxu0
        %1326 = vmatprep.mubr.bf16.mxu0 0
        %1327 = vmatmul.mubr.bf16.gmra.mrb[0].mxu0 %v549
        %v1328 = vpop.f32.mrb[0].mxu0
        %v1329 = vadd.f32 0.0, %v1328
        %v1330 = vpop.f32.mrb[0].mxu0
        %v1331 = vpop.f32.mrb[0].mxu0
        %v1332 = vadd.f32 0.0, %v1331
        %v1333 = vpop.f32.mrb[0].mxu0
        %1334 = vmatprep.mubr.bf16.mxu0 0
        %1335 = vmatmul.mubr.bf16.gmra.mrb[0].mxu0 %v550
        %v1336 = vpop.f32.mrb[0].mxu0
        %v1337 = vadd.f32 0.0, %v1336
        %v1338 = vpop.f32.mrb[0].mxu0
        %v1339 = vpop.f32.mrb[0].mxu0
        %v1340 = vadd.f32 0.0, %v1339
        %v1341 = vpop.f32.mrb[0].mxu0
        %1342 = vmatprep.mubr.bf16.mxu0 0
        %1343 = vmatmul.mubr.bf16.gmra.mrb[0].mxu0 %v551
        %v1344 = vpop.f32.mrb[0].mxu0
        %v1345 = vadd.f32 0.0, %v1344
        %v1346 = vpop.f32.mrb[0].mxu0
        %v1347 = vpop.f32.mrb[0].mxu0
        %v1348 = vadd.f32 0.0, %v1347
        %v1349 = vpop.f32.mrb[0].mxu0
        %1350 = vmatprep.mubr.bf16.mxu0 0
        %1351 = vmatmul.mubr.bf16.gmra.mrb[0].mxu0 %v552
        %v1352 = vpop.f32.mrb[0].mxu0
        %v1353 = vadd.f32 0.0, %v1352
        %v1354 = vpop.f32.mrb[0].mxu0
        %v1355 = vpop.f32.mrb[0].mxu0
        %v1356 = vadd.f32 0.0, %v1355
        %v1357 = vpop.f32.mrb[0].mxu0
        %1358 = vmatprep.mubr.bf16.mxu0 0
        %1359 = vmatmul.mubr.bf16.gmra.mrb[0].mxu0 %v553
        %v1360 = vpop.f32.mrb[0].mxu0
        %v1361 = vadd.f32 0.0, %v1360
        %v1362 = vpop.f32.mrb[0].mxu0
        %v1363 = vpop.f32.mrb[0].mxu0
        %v1364 = vadd.f32 0.0, %v1363
        %v1365 = vpop.f32.mrb[0].mxu0
        %1366 = vmatprep.mubr.bf16.mxu0 0
        %1367 = vmatmul.mubr.bf16.gmra.mrb[0].mxu0 %v554
        %v1368 = vpop.f32.mrb[0].mxu0
        %v1369 = vadd.f32 0.0, %v1368
        %v1370 = vpop.f32.mrb[0].mxu0
        %v1371 = vpop.f32.mrb[0].mxu0
        %v1372 = vadd.f32 0.0, %v1371
        %v1373 = vpop.f32.mrb[0].mxu0
        %1374 = vdwg.mxu0
        %v1379 = vunpack.c.l.b16 %v1044
        %v1380 = vunpack.c.l.b16 %v1045
        %v1381 = vunpack.c.l.b16 %v1046
        %v1382 = vunpack.c.l.b16 %v1047
        %v1383 = vpack.c.b16 %v1380, %v1379
        %v1384 = vpack.c.b16 %v1382, %v1381
        %1387 = vmatprep.subr.bf16.mxu0 0
        %1388 = vmatpush1.bf16.xpose.msra.mxu0 %v1383
        %1389 = vmatprep.subr.bf16.mxu0 0
        %1390 = vmatpush1.bf16.xpose.msra.mxu0 %v1384
        %1391 = vmatprep.subr.bf16.mxu0 0
        %1392 = vmatpush1.bf16.xpose.msra.mxu0 0
        %1393 = vmatprep.subr.bf16.mxu0 0
        %1394 = vmatpush1.bf16.xpose.msra.mxu0 0
        %1395 = vmatprep.subr.bf16.mxu0 0
        %1396 = vmatpush1.bf16.xpose.msra.mxu0 0
        %1397 = vmatprep.subr.bf16.mxu0 0
        %1398 = vmatpush1.bf16.xpose.msra.mxu0 0
        %1399 = vmatprep.subr.bf16.mxu0 0
        %1400 = vmatpush1.bf16.xpose.msra.mxu0 0
        %1401 = vmatprep.subr.bf16.mxu0 0
        %1402 = vmatpush1.bf16.xpose.msra.mxu0 0
        %1403 = vmatprep.subr.bf16.mxu0 0
        %1404 = vmatpush1.bf16.xpose.msra.mxu0 0
        %1405 = vmatprep.subr.bf16.mxu0 0
        %1406 = vmatpush1.bf16.xpose.msra.mxu0 0
        %1407 = vmatprep.subr.bf16.mxu0 0
        %1408 = vmatpush1.bf16.xpose.msra.mxu0 0
        %1409 = vmatprep.subr.bf16.mxu0 0
        %1410 = vmatpush1.bf16.xpose.msra.mxu0 0
        %1411 = vmatprep.subr.bf16.mxu0 0
        %1412 = vmatpush1.bf16.xpose.msra.mxu0 0
        %1413 = vmatprep.subr.bf16.mxu0 0
        %1414 = vmatpush1.bf16.xpose.msra.mxu0 0
        %1415 = vmatprep.subr.bf16.mxu0 0
        %1416 = vmatpush1.bf16.xpose.msra.mxu0 0
        %1417 = vmatprep.subr.bf16.mxu0 0
        %1418 = vmatpush1.bf16.xpose.msra.mxu0 0
        %1419 = vmatprep.mubr.bf16.mxu0 0
        %1420 = vmatmul.mubr.bf16.gmra.mrb[0].mxu0 %v547
        %v1421 = vpop.f32.mrb[0].mxu0
        %v1422 = vadd.f32 0.0, %v1421
        %v1423 = vpop.f32.mrb[0].mxu0
        %v1424 = vpop.f32.mrb[0].mxu0
        %v1425 = vadd.f32 0.0, %v1424
        %v1426 = vpop.f32.mrb[0].mxu0
        %1427 = vmatprep.mubr.bf16.mxu0 0
        %1428 = vmatmul.mubr.bf16.gmra.mrb[0].mxu0 %v548
        %v1429 = vpop.f32.mrb[0].mxu0
        %v1430 = vadd.f32 0.0, %v1429
        %v1431 = vpop.f32.mrb[0].mxu0
        %v1432 = vpop.f32.mrb[0].mxu0
        %v1433 = vadd.f32 0.0, %v1432
        %v1434 = vpop.f32.mrb[0].mxu0
        %1435 = vmatprep.mubr.bf16.mxu0 0
        %1436 = vmatmul.mubr.bf16.gmra.mrb[0].mxu0 %v549
        %v1437 = vpop.f32.mrb[0].mxu0
        %v1438 = vadd.f32 0.0, %v1437
        %v1439 = vpop.f32.mrb[0].mxu0
        %v1440 = vpop.f32.mrb[0].mxu0
        %v1441 = vadd.f32 0.0, %v1440
        %v1442 = vpop.f32.mrb[0].mxu0
        %1443 = vmatprep.mubr.bf16.mxu0 0
        %1444 = vmatmul.mubr.bf16.gmra.mrb[0].mxu0 %v550
        %v1445 = vpop.f32.mrb[0].mxu0
        %v1446 = vadd.f32 0.0, %v1445
        %v1447 = vpop.f32.mrb[0].mxu0
        %v1448 = vpop.f32.mrb[0].mxu0
        %v1449 = vadd.f32 0.0, %v1448
        %v1450 = vpop.f32.mrb[0].mxu0
        %1451 = vmatprep.mubr.bf16.mxu0 0
        %1452 = vmatmul.mubr.bf16.gmra.mrb[0].mxu0 %v551
        %v1453 = vpop.f32.mrb[0].mxu0
        %v1454 = vadd.f32 0.0, %v1453
        %v1455 = vpop.f32.mrb[0].mxu0
        %v1456 = vpop.f32.mrb[0].mxu0
        %v1457 = vadd.f32 0.0, %v1456
        %v1458 = vpop.f32.mrb[0].mxu0
        %1459 = vmatprep.mubr.bf16.mxu0 0
        %1460 = vmatmul.mubr.bf16.gmra.mrb[0].mxu0 %v552
        %v1461 = vpop.f32.mrb[0].mxu0
        %v1462 = vadd.f32 0.0, %v1461
        %v1463 = vpop.f32.mrb[0].mxu0
        %v1464 = vpop.f32.mrb[0].mxu0
        %v1465 = vadd.f32 0.0, %v1464
        %v1466 = vpop.f32.mrb[0].mxu0
        %1467 = vmatprep.mubr.bf16.mxu0 0
        %1468 = vmatmul.mubr.bf16.gmra.mrb[0].mxu0 %v553
        %v1469 = vpop.f32.mrb[0].mxu0
        %v1470 = vadd.f32 0.0, %v1469
        %v1471 = vpop.f32.mrb[0].mxu0
        %v1472 = vpop.f32.mrb[0].mxu0
        %v1473 = vadd.f32 0.0, %v1472
        %v1474 = vpop.f32.mrb[0].mxu0
        %1475 = vmatprep.mubr.bf16.mxu0 0
        %1476 = vmatmul.mubr.bf16.gmra.mrb[0].mxu0 %v554
        %v1477 = vpop.f32.mrb[0].mxu0
        %v1478 = vadd.f32 0.0, %v1477
        %v1479 = vpop.f32.mrb[0].mxu0
        %v1480 = vpop.f32.mrb[0].mxu0
        %v1481 = vadd.f32 0.0, %v1480
        %v1482 = vpop.f32.mrb[0].mxu0
        %1483 = vdwg.mxu0
        %v1484 = vpack.c.bf16 %v1098, %v1095
        %v1485 = vpack.c.bf16 %v1106, %v1103
        %v1486 = vpack.c.bf16 %v1114, %v1111
        %v1487 = vpack.c.bf16 %v1122, %v1119
        %v1488 = vpack.c.bf16 %v1130, %v1127
        %v1489 = vpack.c.bf16 %v1138, %v1135
        %v1490 = vpack.c.bf16 %v1146, %v1143
        %v1491 = vpack.c.bf16 %v1154, %v1151
        %v1492 = vpack.c.bf16 %v1207, %v1204
        %v1493 = vpack.c.bf16 %v1215, %v1212
        %v1494 = vpack.c.bf16 %v1223, %v1220
        %v1495 = vpack.c.bf16 %v1231, %v1228
        %v1496 = vpack.c.bf16 %v1239, %v1236
        %v1497 = vpack.c.bf16 %v1247, %v1244
        %v1498 = vpack.c.bf16 %v1255, %v1252
        %v1499 = vpack.c.bf16 %v1263, %v1260
        %v1500 = vpack.c.bf16 %v1316, %v1313
        %v1501 = vpack.c.bf16 %v1324, %v1321
        %v1502 = vpack.c.bf16 %v1332, %v1329
        %v1503 = vpack.c.bf16 %v1340, %v1337
        %v1504 = vpack.c.bf16 %v1348, %v1345
        %v1505 = vpack.c.bf16 %v1356, %v1353
        %v1506 = vpack.c.bf16 %v1364, %v1361
        %v1507 = vpack.c.bf16 %v1372, %v1369
        %v1508 = vpack.c.bf16 %v1425, %v1422
        %v1509 = vpack.c.bf16 %v1433, %v1430
        %v1510 = vpack.c.bf16 %v1441, %v1438
        %v1511 = vpack.c.bf16 %v1449, %v1446
        %v1512 = vpack.c.bf16 %v1457, %v1454
        %v1513 = vpack.c.bf16 %v1465, %v1462
        %v1514 = vpack.c.bf16 %v1473, %v1470
        %v1515 = vpack.c.bf16 %v1481, %v1478
        %s1516 = scalar_lea.vmem [#allocation7], 128
        %v1517 = vld [vmem:[%s1516] sm:$0xf]
        %v1518 = vld [vmem:[%s1516 + $0x4] sm:$0xf]
        %v1519 = vld [vmem:[%s1516 + $0x8] sm:$0xf]
        %v1520 = vld [vmem:[%s1516 + $0xc] sm:$0xf]
        %v1521 = vld [vmem:[%s1516 + $0x10] sm:$0xf]
        %v1522 = vld [vmem:[%s1516 + $0x14] sm:$0xf]
        %v1523 = vld [vmem:[%s1516 + $0x18] sm:$0xf]
        %v1524 = vld [vmem:[%s1516 + $0x1c] sm:$0xf]
        %v1525 = vld [vmem:[%s1516 + $0x20] sm:$0xf]
        %v1526 = vld [vmem:[%s1516 + $0x24] sm:$0xf]
        %v1527 = vld [vmem:[%s1516 + $0x28] sm:$0xf]
        %v1528 = vld [vmem:[%s1516 + $0x2c] sm:$0xf]
        %v1529 = vld [vmem:[%s1516 + $0x30] sm:$0xf]
        %v1530 = vld [vmem:[%s1516 + $0x34] sm:$0xf]
        %v1531 = vld [vmem:[%s1516 + $0x38] sm:$0xf]
        %v1532 = vld [vmem:[%s1516 + $0x3c] sm:$0xf]
        %v1537 = vunpack.c.l.b16 %v1517
        %v1538 = vunpack.c.l.b16 %v1518
        %v1539 = vunpack.c.l.b16 %v1519
        %v1540 = vunpack.c.l.b16 %v1520
        %v1541 = vpack.c.b16 %v1538, %v1537
        %v1542 = vpack.c.b16 %v1540, %v1539
        %1545 = vmatprep.subr.bf16.mxu0 0
        %1546 = vmatpush1.bf16.xpose.msra.mxu0 %v1541
        %1547 = vmatprep.subr.bf16.mxu0 0
        %1548 = vmatpush1.bf16.xpose.msra.mxu0 %v1542
        %1549 = vmatprep.subr.bf16.mxu0 0
        %1550 = vmatpush1.bf16.xpose.msra.mxu0 0
        %1551 = vmatprep.subr.bf16.mxu0 0
        %1552 = vmatpush1.bf16.xpose.msra.mxu0 0
        %1553 = vmatprep.subr.bf16.mxu0 0
        %1554 = vmatpush1.bf16.xpose.msra.mxu0 0
        %1555 = vmatprep.subr.bf16.mxu0 0
        %1556 = vmatpush1.bf16.xpose.msra.mxu0 0
        %1557 = vmatprep.subr.bf16.mxu0 0
        %1558 = vmatpush1.bf16.xpose.msra.mxu0 0
        %1559 = vmatprep.subr.bf16.mxu0 0
        %1560 = vmatpush1.bf16.xpose.msra.mxu0 0
        %1561 = vmatprep.subr.bf16.mxu0 0
        %1562 = vmatpush1.bf16.xpose.msra.mxu0 0
        %1563 = vmatprep.subr.bf16.mxu0 0
        %1564 = vmatpush1.bf16.xpose.msra.mxu0 0
        %1565 = vmatprep.subr.bf16.mxu0 0
        %1566 = vmatpush1.bf16.xpose.msra.mxu0 0
        %1567 = vmatprep.subr.bf16.mxu0 0
        %1568 = vmatpush1.bf16.xpose.msra.mxu0 0
        %1569 = vmatprep.subr.bf16.mxu0 0
        %1570 = vmatpush1.bf16.xpose.msra.mxu0 0
        %1571 = vmatprep.subr.bf16.mxu0 0
        %1572 = vmatpush1.bf16.xpose.msra.mxu0 0
        %1573 = vmatprep.subr.bf16.mxu0 0
        %1574 = vmatpush1.bf16.xpose.msra.mxu0 0
        %1575 = vmatprep.subr.bf16.mxu0 0
        %1576 = vmatpush1.bf16.xpose.msra.mxu0 0
        %1577 = vmatprep.mubr.bf16.mxu0 0
        %1578 = vmatmul.mubr.bf16.gmra.mrb[0].mxu0 %v547
        %v1579 = vpop.f32.mrb[0].mxu0
        %v1580 = vadd.f32 0.0, %v1579
        %v1581 = vpop.f32.mrb[0].mxu0
        %v1582 = vpop.f32.mrb[0].mxu0
        %v1583 = vadd.f32 0.0, %v1582
        %v1584 = vpop.f32.mrb[0].mxu0
        %1585 = vmatprep.mubr.bf16.mxu0 0
        %1586 = vmatmul.mubr.bf16.gmra.mrb[0].mxu0 %v548
        %v1587 = vpop.f32.mrb[0].mxu0
        %v1588 = vadd.f32 0.0, %v1587
        %v1589 = vpop.f32.mrb[0].mxu0
        %v1590 = vpop.f32.mrb[0].mxu0
        %v1591 = vadd.f32 0.0, %v1590
        %v1592 = vpop.f32.mrb[0].mxu0
        %1593 = vmatprep.mubr.bf16.mxu0 0
        %1594 = vmatmul.mubr.bf16.gmra.mrb[0].mxu0 %v549
        %v1595 = vpop.f32.mrb[0].mxu0
        %v1596 = vadd.f32 0.0, %v1595
        %v1597 = vpop.f32.mrb[0].mxu0
        %v1598 = vpop.f32.mrb[0].mxu0
        %v1599 = vadd.f32 0.0, %v1598
        %v1600 = vpop.f32.mrb[0].mxu0
        %1601 = vmatprep.mubr.bf16.mxu0 0
        %1602 = vmatmul.mubr.bf16.gmra.mrb[0].mxu0 %v550
        %v1603 = vpop.f32.mrb[0].mxu0
        %v1604 = vadd.f32 0.0, %v1603
        %v1605 = vpop.f32.mrb[0].mxu0
        %v1606 = vpop.f32.mrb[0].mxu0
        %v1607 = vadd.f32 0.0, %v1606
        %v1608 = vpop.f32.mrb[0].mxu0
        %1609 = vmatprep.mubr.bf16.mxu0 0
        %1610 = vmatmul.mubr.bf16.gmra.mrb[0].mxu0 %v551
        %v1611 = vpop.f32.mrb[0].mxu0
        %v1612 = vadd.f32 0.0, %v1611
        %v1613 = vpop.f32.mrb[0].mxu0
        %v1614 = vpop.f32.mrb[0].mxu0
        %v1615 = vadd.f32 0.0, %v1614
        %v1616 = vpop.f32.mrb[0].mxu0
        %1617 = vmatprep.mubr.bf16.mxu0 0
        %1618 = vmatmul.mubr.bf16.gmra.mrb[0].mxu0 %v552
        %v1619 = vpop.f32.mrb[0].mxu0
        %v1620 = vadd.f32 0.0, %v1619
        %v1621 = vpop.f32.mrb[0].mxu0
        %v1622 = vpop.f32.mrb[0].mxu0
        %v1623 = vadd.f32 0.0, %v1622
        %v1624 = vpop.f32.mrb[0].mxu0
        %1625 = vmatprep.mubr.bf16.mxu0 0
        %1626 = vmatmul.mubr.bf16.gmra.mrb[0].mxu0 %v553
        %v1627 = vpop.f32.mrb[0].mxu0
        %v1628 = vadd.f32 0.0, %v1627
        %v1629 = vpop.f32.mrb[0].mxu0
        %v1630 = vpop.f32.mrb[0].mxu0
        %v1631 = vadd.f32 0.0, %v1630
        %v1632 = vpop.f32.mrb[0].mxu0
        %1633 = vmatprep.mubr.bf16.mxu0 0
        %1634 = vmatmul.mubr.bf16.gmra.mrb[0].mxu0 %v554
        %v1635 = vpop.f32.mrb[0].mxu0
        %v1636 = vadd.f32 0.0, %v1635
        %v1637 = vpop.f32.mrb[0].mxu0
        %v1638 = vpop.f32.mrb[0].mxu0
        %v1639 = vadd.f32 0.0, %v1638
        %v1640 = vpop.f32.mrb[0].mxu0
        %1641 = vdwg.mxu0
        %v1646 = vunpack.c.l.b16 %v1521
        %v1647 = vunpack.c.l.b16 %v1522
        %v1648 = vunpack.c.l.b16 %v1523
        %v1649 = vunpack.c.l.b16 %v1524
        %v1650 = vpack.c.b16 %v1647, %v1646
        %v1651 = vpack.c.b16 %v1649, %v1648
        %1654 = vmatprep.subr.bf16.mxu0 0
        %1655 = vmatpush1.bf16.xpose.msra.mxu0 %v1650
        %1656 = vmatprep.subr.bf16.mxu0 0
        %1657 = vmatpush1.bf16.xpose.msra.mxu0 %v1651
        %1658 = vmatprep.subr.bf16.mxu0 0
        %1659 = vmatpush1.bf16.xpose.msra.mxu0 0
        %1660 = vmatprep.subr.bf16.mxu0 0
        %1661 = vmatpush1.bf16.xpose.msra.mxu0 0
        %1662 = vmatprep.subr.bf16.mxu0 0
        %1663 = vmatpush1.bf16.xpose.msra.mxu0 0
        %1664 = vmatprep.subr.bf16.mxu0 0
        %1665 = vmatpush1.bf16.xpose.msra.mxu0 0
        %1666 = vmatprep.subr.bf16.mxu0 0
        %1667 = vmatpush1.bf16.xpose.msra.mxu0 0
        %1668 = vmatprep.subr.bf16.mxu0 0
        %1669 = vmatpush1.bf16.xpose.msra.mxu0 0
        %1670 = vmatprep.subr.bf16.mxu0 0
        %1671 = vmatpush1.bf16.xpose.msra.mxu0 0
        %1672 = vmatprep.subr.bf16.mxu0 0
        %1673 = vmatpush1.bf16.xpose.msra.mxu0 0
        %1674 = vmatprep.subr.bf16.mxu0 0
        %1675 = vmatpush1.bf16.xpose.msra.mxu0 0
        %1676 = vmatprep.subr.bf16.mxu0 0
        %1677 = vmatpush1.bf16.xpose.msra.mxu0 0
        %1678 = vmatprep.subr.bf16.mxu0 0
        %1679 = vmatpush1.bf16.xpose.msra.mxu0 0
        %1680 = vmatprep.subr.bf16.mxu0 0
        %1681 = vmatpush1.bf16.xpose.msra.mxu0 0
        %1682 = vmatprep.subr.bf16.mxu0 0
        %1683 = vmatpush1.bf16.xpose.msra.mxu0 0
        %1684 = vmatprep.subr.bf16.mxu0 0
        %1685 = vmatpush1.bf16.xpose.msra.mxu0 0
        %1686 = vmatprep.mubr.bf16.mxu0 0
        %1687 = vmatmul.mubr.bf16.gmra.mrb[0].mxu0 %v547
        %v1688 = vpop.f32.mrb[0].mxu0
        %v1689 = vadd.f32 0.0, %v1688
        %v1690 = vpop.f32.mrb[0].mxu0
        %v1691 = vpop.f32.mrb[0].mxu0
        %v1692 = vadd.f32 0.0, %v1691
        %v1693 = vpop.f32.mrb[0].mxu0
        %1694 = vmatprep.mubr.bf16.mxu0 0
        %1695 = vmatmul.mubr.bf16.gmra.mrb[0].mxu0 %v548
        %v1696 = vpop.f32.mrb[0].mxu0
        %v1697 = vadd.f32 0.0, %v1696
        %v1698 = vpop.f32.mrb[0].mxu0
        %v1699 = vpop.f32.mrb[0].mxu0
        %v1700 = vadd.f32 0.0, %v1699
        %v1701 = vpop.f32.mrb[0].mxu0
        %1702 = vmatprep.mubr.bf16.mxu0 0
        %1703 = vmatmul.mubr.bf16.gmra.mrb[0].mxu0 %v549
        %v1704 = vpop.f32.mrb[0].mxu0
        %v1705 = vadd.f32 0.0, %v1704
        %v1706 = vpop.f32.mrb[0].mxu0
        %v1707 = vpop.f32.mrb[0].mxu0
        %v1708 = vadd.f32 0.0, %v1707
        %v1709 = vpop.f32.mrb[0].mxu0
        %1710 = vmatprep.mubr.bf16.mxu0 0
        %1711 = vmatmul.mubr.bf16.gmra.mrb[0].mxu0 %v550
        %v1712 = vpop.f32.mrb[0].mxu0
        %v1713 = vadd.f32 0.0, %v1712
        %v1714 = vpop.f32.mrb[0].mxu0
        %v1715 = vpop.f32.mrb[0].mxu0
        %v1716 = vadd.f32 0.0, %v1715
        %v1717 = vpop.f32.mrb[0].mxu0
        %1718 = vmatprep.mubr.bf16.mxu0 0
        %1719 = vmatmul.mubr.bf16.gmra.mrb[0].mxu0 %v551
        %v1720 = vpop.f32.mrb[0].mxu0
        %v1721 = vadd.f32 0.0, %v1720
        %v1722 = vpop.f32.mrb[0].mxu0
        %v1723 = vpop.f32.mrb[0].mxu0
        %v1724 = vadd.f32 0.0, %v1723
        %v1725 = vpop.f32.mrb[0].mxu0
        %1726 = vmatprep.mubr.bf16.mxu0 0
        %1727 = vmatmul.mubr.bf16.gmra.mrb[0].mxu0 %v552
        %v1728 = vpop.f32.mrb[0].mxu0
        %v1729 = vadd.f32 0.0, %v1728
        %v1730 = vpop.f32.mrb[0].mxu0
        %v1731 = vpop.f32.mrb[0].mxu0
        %v1732 = vadd.f32 0.0, %v1731
        %v1733 = vpop.f32.mrb[0].mxu0
        %1734 = vmatprep.mubr.bf16.mxu0 0
        %1735 = vmatmul.mubr.bf16.gmra.mrb[0].mxu0 %v553
        %v1736 = vpop.f32.mrb[0].mxu0
        %v1737 = vadd.f32 0.0, %v1736
        %v1738 = vpop.f32.mrb[0].mxu0
        %v1739 = vpop.f32.mrb[0].mxu0
        %v1740 = vadd.f32 0.0, %v1739
        %v1741 = vpop.f32.mrb[0].mxu0
        %1742 = vmatprep.mubr.bf16.mxu0 0
        %1743 = vmatmul.mubr.bf16.gmra.mrb[0].mxu0 %v554
        %v1744 = vpop.f32.mrb[0].mxu0
        %v1745 = vadd.f32 0.0, %v1744
        %v1746 = vpop.f32.mrb[0].mxu0
        %v1747 = vpop.f32.mrb[0].mxu0
        %v1748 = vadd.f32 0.0, %v1747
        %v1749 = vpop.f32.mrb[0].mxu0
        %1750 = vdwg.mxu0
        %v1755 = vunpack.c.l.b16 %v1525
        %v1756 = vunpack.c.l.b16 %v1526
        %v1757 = vunpack.c.l.b16 %v1527
        %v1758 = vunpack.c.l.b16 %v1528
        %v1759 = vpack.c.b16 %v1756, %v1755
        %v1760 = vpack.c.b16 %v1758, %v1757
        %1763 = vmatprep.subr.bf16.mxu0 0
        %1764 = vmatpush1.bf16.xpose.msra.mxu0 %v1759
        %1765 = vmatprep.subr.bf16.mxu0 0
        %1766 = vmatpush1.bf16.xpose.msra.mxu0 %v1760
        %1767 = vmatprep.subr.bf16.mxu0 0
        %1768 = vmatpush1.bf16.xpose.msra.mxu0 0
        %1769 = vmatprep.subr.bf16.mxu0 0
        %1770 = vmatpush1.bf16.xpose.msra.mxu0 0
        %1771 = vmatprep.subr.bf16.mxu0 0
        %1772 = vmatpush1.bf16.xpose.msra.mxu0 0
        %1773 = vmatprep.subr.bf16.mxu0 0
        %1774 = vmatpush1.bf16.xpose.msra.mxu0 0
        %1775 = vmatprep.subr.bf16.mxu0 0
        %1776 = vmatpush1.bf16.xpose.msra.mxu0 0
        %1777 = vmatprep.subr.bf16.mxu0 0
        %1778 = vmatpush1.bf16.xpose.msra.mxu0 0
        %1779 = vmatprep.subr.bf16.mxu0 0
        %1780 = vmatpush1.bf16.xpose.msra.mxu0 0
        %1781 = vmatprep.subr.bf16.mxu0 0
        %1782 = vmatpush1.bf16.xpose.msra.mxu0 0
        %1783 = vmatprep.subr.bf16.mxu0 0
        %1784 = vmatpush1.bf16.xpose.msra.mxu0 0
        %1785 = vmatprep.subr.bf16.mxu0 0
        %1786 = vmatpush1.bf16.xpose.msra.mxu0 0
        %1787 = vmatprep.subr.bf16.mxu0 0
        %1788 = vmatpush1.bf16.xpose.msra.mxu0 0
        %1789 = vmatprep.subr.bf16.mxu0 0
        %1790 = vmatpush1.bf16.xpose.msra.mxu0 0
        %1791 = vmatprep.subr.bf16.mxu0 0
        %1792 = vmatpush1.bf16.xpose.msra.mxu0 0
        %1793 = vmatprep.subr.bf16.mxu0 0
        %1794 = vmatpush1.bf16.xpose.msra.mxu0 0
        %1795 = vmatprep.mubr.bf16.mxu0 0
        %1796 = vmatmul.mubr.bf16.gmra.mrb[0].mxu0 %v547
        %v1797 = vpop.f32.mrb[0].mxu0
        %v1798 = vadd.f32 0.0, %v1797
        %v1799 = vpop.f32.mrb[0].mxu0
        %v1800 = vpop.f32.mrb[0].mxu0
        %v1801 = vadd.f32 0.0, %v1800
        %v1802 = vpop.f32.mrb[0].mxu0
        %1803 = vmatprep.mubr.bf16.mxu0 0
        %1804 = vmatmul.mubr.bf16.gmra.mrb[0].mxu0 %v548
        %v1805 = vpop.f32.mrb[0].mxu0
        %v1806 = vadd.f32 0.0, %v1805
        %v1807 = vpop.f32.mrb[0].mxu0
        %v1808 = vpop.f32.mrb[0].mxu0
        %v1809 = vadd.f32 0.0, %v1808
        %v1810 = vpop.f32.mrb[0].mxu0
        %1811 = vmatprep.mubr.bf16.mxu0 0
        %1812 = vmatmul.mubr.bf16.gmra.mrb[0].mxu0 %v549
        %v1813 = vpop.f32.mrb[0].mxu0
        %v1814 = vadd.f32 0.0, %v1813
        %v1815 = vpop.f32.mrb[0].mxu0
        %v1816 = vpop.f32.mrb[0].mxu0
        %v1817 = vadd.f32 0.0, %v1816
        %v1818 = vpop.f32.mrb[0].mxu0
        %1819 = vmatprep.mubr.bf16.mxu0 0
        %1820 = vmatmul.mubr.bf16.gmra.mrb[0].mxu0 %v550
        %v1821 = vpop.f32.mrb[0].mxu0
        %v1822 = vadd.f32 0.0, %v1821
        %v1823 = vpop.f32.mrb[0].mxu0
        %v1824 = vpop.f32.mrb[0].mxu0
        %v1825 = vadd.f32 0.0, %v1824
        %v1826 = vpop.f32.mrb[0].mxu0
        %1827 = vmatprep.mubr.bf16.mxu0 0
        %1828 = vmatmul.mubr.bf16.gmra.mrb[0].mxu0 %v551
        %v1829 = vpop.f32.mrb[0].mxu0
        %v1830 = vadd.f32 0.0, %v1829
        %v1831 = vpop.f32.mrb[0].mxu0
        %v1832 = vpop.f32.mrb[0].mxu0
        %v1833 = vadd.f32 0.0, %v1832
        %v1834 = vpop.f32.mrb[0].mxu0
        %1835 = vmatprep.mubr.bf16.mxu0 0
        %1836 = vmatmul.mubr.bf16.gmra.mrb[0].mxu0 %v552
        %v1837 = vpop.f32.mrb[0].mxu0
        %v1838 = vadd.f32 0.0, %v1837
        %v1839 = vpop.f32.mrb[0].mxu0
        %v1840 = vpop.f32.mrb[0].mxu0
        %v1841 = vadd.f32 0.0, %v1840
        %v1842 = vpop.f32.mrb[0].mxu0
        %1843 = vmatprep.mubr.bf16.mxu0 0
        %1844 = vmatmul.mubr.bf16.gmra.mrb[0].mxu0 %v553
        %v1845 = vpop.f32.mrb[0].mxu0
        %v1846 = vadd.f32 0.0, %v1845
        %v1847 = vpop.f32.mrb[0].mxu0
        %v1848 = vpop.f32.mrb[0].mxu0
        %v1849 = vadd.f32 0.0, %v1848
        %v1850 = vpop.f32.mrb[0].mxu0
        %1851 = vmatprep.mubr.bf16.mxu0 0
        %1852 = vmatmul.mubr.bf16.gmra.mrb[0].mxu0 %v554
        %v1853 = vpop.f32.mrb[0].mxu0
        %v1854 = vadd.f32 0.0, %v1853
        %v1855 = vpop.f32.mrb[0].mxu0
        %v1856 = vpop.f32.mrb[0].mxu0
        %v1857 = vadd.f32 0.0, %v1856
        %v1858 = vpop.f32.mrb[0].mxu0
        %1859 = vdwg.mxu0
        %v1864 = vunpack.c.l.b16 %v1529
        %v1865 = vunpack.c.l.b16 %v1530
        %v1866 = vunpack.c.l.b16 %v1531
        %v1867 = vunpack.c.l.b16 %v1532
        %v1868 = vpack.c.b16 %v1865, %v1864
        %v1869 = vpack.c.b16 %v1867, %v1866
        %1872 = vmatprep.subr.bf16.mxu0 0
        %1873 = vmatpush1.bf16.xpose.msra.mxu0 %v1868
        %1874 = vmatprep.subr.bf16.mxu0 0
        %1875 = vmatpush1.bf16.xpose.msra.mxu0 %v1869
        %1876 = vmatprep.subr.bf16.mxu0 0
        %1877 = vmatpush1.bf16.xpose.msra.mxu0 0
        %1878 = vmatprep.subr.bf16.mxu0 0
        %1879 = vmatpush1.bf16.xpose.msra.mxu0 0
        %1880 = vmatprep.subr.bf16.mxu0 0
        %1881 = vmatpush1.bf16.xpose.msra.mxu0 0
        %1882 = vmatprep.subr.bf16.mxu0 0
        %1883 = vmatpush1.bf16.xpose.msra.mxu0 0
        %1884 = vmatprep.subr.bf16.mxu0 0
        %1885 = vmatpush1.bf16.xpose.msra.mxu0 0
        %1886 = vmatprep.subr.bf16.mxu0 0
        %1887 = vmatpush1.bf16.xpose.msra.mxu0 0
        %1888 = vmatprep.subr.bf16.mxu0 0
        %1889 = vmatpush1.bf16.xpose.msra.mxu0 0
        %1890 = vmatprep.subr.bf16.mxu0 0
        %1891 = vmatpush1.bf16.xpose.msra.mxu0 0
        %1892 = vmatprep.subr.bf16.mxu0 0
        %1893 = vmatpush1.bf16.xpose.msra.mxu0 0
        %1894 = vmatprep.subr.bf16.mxu0 0
        %1895 = vmatpush1.bf16.xpose.msra.mxu0 0
        %1896 = vmatprep.subr.bf16.mxu0 0
        %1897 = vmatpush1.bf16.xpose.msra.mxu0 0
        %1898 = vmatprep.subr.bf16.mxu0 0
        %1899 = vmatpush1.bf16.xpose.msra.mxu0 0
        %1900 = vmatprep.subr.bf16.mxu0 0
        %1901 = vmatpush1.bf16.xpose.msra.mxu0 0
        %1902 = vmatprep.subr.bf16.mxu0 0
        %1903 = vmatpush1.bf16.xpose.msra.mxu0 0
        %1904 = vmatprep.mubr.bf16.mxu0 0
        %1905 = vmatmul.mubr.bf16.gmra.mrb[0].mxu0 %v547
        %v1906 = vpop.f32.mrb[0].mxu0
        %v1907 = vadd.f32 0.0, %v1906
        %v1908 = vpop.f32.mrb[0].mxu0
        %v1909 = vpop.f32.mrb[0].mxu0
        %v1910 = vadd.f32 0.0, %v1909
        %v1911 = vpop.f32.mrb[0].mxu0
        %1912 = vmatprep.mubr.bf16.mxu0 0
        %1913 = vmatmul.mubr.bf16.gmra.mrb[0].mxu0 %v548
        %v1914 = vpop.f32.mrb[0].mxu0
        %v1915 = vadd.f32 0.0, %v1914
        %v1916 = vpop.f32.mrb[0].mxu0
        %v1917 = vpop.f32.mrb[0].mxu0
        %v1918 = vadd.f32 0.0, %v1917
        %v1919 = vpop.f32.mrb[0].mxu0
        %1920 = vmatprep.mubr.bf16.mxu0 0
        %1921 = vmatmul.mubr.bf16.gmra.mrb[0].mxu0 %v549
        %v1922 = vpop.f32.mrb[0].mxu0
        %v1923 = vadd.f32 0.0, %v1922
        %v1924 = vpop.f32.mrb[0].mxu0
        %v1925 = vpop.f32.mrb[0].mxu0
        %v1926 = vadd.f32 0.0, %v1925
        %v1927 = vpop.f32.mrb[0].mxu0
        %1928 = vmatprep.mubr.bf16.mxu0 0
        %1929 = vmatmul.mubr.bf16.gmra.mrb[0].mxu0 %v550
        %v1930 = vpop.f32.mrb[0].mxu0
        %v1931 = vadd.f32 0.0, %v1930
        %v1932 = vpop.f32.mrb[0].mxu0
        %v1933 = vpop.f32.mrb[0].mxu0
        %v1934 = vadd.f32 0.0, %v1933
        %v1935 = vpop.f32.mrb[0].mxu0
        %1936 = vmatprep.mubr.bf16.mxu0 0
        %1937 = vmatmul.mubr.bf16.gmra.mrb[0].mxu0 %v551
        %v1938 = vpop.f32.mrb[0].mxu0
        %v1939 = vadd.f32 0.0, %v1938
        %v1940 = vpop.f32.mrb[0].mxu0
        %v1941 = vpop.f32.mrb[0].mxu0
        %v1942 = vadd.f32 0.0, %v1941
        %v1943 = vpop.f32.mrb[0].mxu0
        %1944 = vmatprep.mubr.bf16.mxu0 0
        %1945 = vmatmul.mubr.bf16.gmra.mrb[0].mxu0 %v552
        %v1946 = vpop.f32.mrb[0].mxu0
        %v1947 = vadd.f32 0.0, %v1946
        %v1948 = vpop.f32.mrb[0].mxu0
        %v1949 = vpop.f32.mrb[0].mxu0
        %v1950 = vadd.f32 0.0, %v1949
        %v1951 = vpop.f32.mrb[0].mxu0
        %1952 = vmatprep.mubr.bf16.mxu0 0
        %1953 = vmatmul.mubr.bf16.gmra.mrb[0].mxu0 %v553
        %v1954 = vpop.f32.mrb[0].mxu0
        %v1955 = vadd.f32 0.0, %v1954
        %v1956 = vpop.f32.mrb[0].mxu0
        %v1957 = vpop.f32.mrb[0].mxu0
        %v1958 = vadd.f32 0.0, %v1957
        %v1959 = vpop.f32.mrb[0].mxu0
        %1960 = vmatprep.mubr.bf16.mxu0 0
        %1961 = vmatmul.mubr.bf16.gmra.mrb[0].mxu0 %v554
        %v1962 = vpop.f32.mrb[0].mxu0
        %v1963 = vadd.f32 0.0, %v1962
        %v1964 = vpop.f32.mrb[0].mxu0
        %v1965 = vpop.f32.mrb[0].mxu0
        %v1966 = vadd.f32 0.0, %v1965
        %v1967 = vpop.f32.mrb[0].mxu0
        %1968 = vdwg.mxu0
        %v1969 = vpack.c.bf16 %v1583, %v1580
        %v1970 = vpack.c.bf16 %v1591, %v1588
        %v1971 = vpack.c.bf16 %v1599, %v1596
        %v1972 = vpack.c.bf16 %v1607, %v1604
        %v1973 = vpack.c.bf16 %v1615, %v1612
        %v1974 = vpack.c.bf16 %v1623, %v1620
        %v1975 = vpack.c.bf16 %v1631, %v1628
        %v1976 = vpack.c.bf16 %v1639, %v1636
        %v1977 = vpack.c.bf16 %v1692, %v1689
        %v1978 = vpack.c.bf16 %v1700, %v1697
        %v1979 = vpack.c.bf16 %v1708, %v1705
        %v1980 = vpack.c.bf16 %v1716, %v1713
        %v1981 = vpack.c.bf16 %v1724, %v1721
        %v1982 = vpack.c.bf16 %v1732, %v1729
        %v1983 = vpack.c.bf16 %v1740, %v1737
        %v1984 = vpack.c.bf16 %v1748, %v1745
        %v1985 = vpack.c.bf16 %v1801, %v1798
        %v1986 = vpack.c.bf16 %v1809, %v1806
        %v1987 = vpack.c.bf16 %v1817, %v1814
        %v1988 = vpack.c.bf16 %v1825, %v1822
        %v1989 = vpack.c.bf16 %v1833, %v1830
        %v1990 = vpack.c.bf16 %v1841, %v1838
        %v1991 = vpack.c.bf16 %v1849, %v1846
        %v1992 = vpack.c.bf16 %v1857, %v1854
        %v1993 = vpack.c.bf16 %v1910, %v1907
        %v1994 = vpack.c.bf16 %v1918, %v1915
        %v1995 = vpack.c.bf16 %v1926, %v1923
        %v1996 = vpack.c.bf16 %v1934, %v1931
        %v1997 = vpack.c.bf16 %v1942, %v1939
        %v1998 = vpack.c.bf16 %v1950, %v1947
        %v1999 = vpack.c.bf16 %v1958, %v1955
        %v2000 = vpack.c.bf16 %v1966, %v1963
        %v2001 = vld [vmem:[#allocation8] sm:$0xf]
        %v2002 = vld [vmem:[#allocation8 + $0x4] sm:$0xf]
        %v2003 = vld [vmem:[#allocation8 + $0x8] sm:$0xf]
        %v2004 = vld [vmem:[#allocation8 + $0xc] sm:$0xf]
        %v2005 = vld [vmem:[#allocation8 + $0x10] sm:$0xf]
        %v2006 = vld [vmem:[#allocation8 + $0x14] sm:$0xf]
        %v2007 = vld [vmem:[#allocation8 + $0x18] sm:$0xf]
        %v2008 = vld [vmem:[#allocation8 + $0x1c] sm:$0xf]
        %v2009 = vld [vmem:[#allocation8 + $0x20] sm:$0xf]
        %v2010 = vld [vmem:[#allocation8 + $0x24] sm:$0xf]
        %v2011 = vld [vmem:[#allocation8 + $0x28] sm:$0xf]
        %v2012 = vld [vmem:[#allocation8 + $0x2c] sm:$0xf]
        %v2013 = vld [vmem:[#allocation8 + $0x30] sm:$0xf]
        %v2014 = vld [vmem:[#allocation8 + $0x34] sm:$0xf]
        %v2015 = vld [vmem:[#allocation8 + $0x38] sm:$0xf]
        %v2016 = vld [vmem:[#allocation8 + $0x3c] sm:$0xf]
        %v2033 = vunpack.c.l.b16 %v483
        %v2034 = vunpack.c.l.b16 %v484
        %v2035 = vunpack.c.l.b16 %v485
        %v2036 = vunpack.c.l.b16 %v486
        %v2037 = vunpack.c.l.b16 %v487
        %v2038 = vunpack.c.l.b16 %v488
        %v2039 = vunpack.c.l.b16 %v489
        %v2040 = vunpack.c.l.b16 %v490
        %v2041 = vunpack.c.l.b16 %v491
        %v2042 = vunpack.c.l.b16 %v492
        %v2043 = vunpack.c.l.b16 %v493
        %v2044 = vunpack.c.l.b16 %v494
        %v2045 = vunpack.c.l.b16 %v495
        %v2046 = vunpack.c.l.b16 %v496
        %v2047 = vunpack.c.l.b16 %v497
        %v2048 = vunpack.c.l.b16 %v498
        %v2049 = vpack.c.b16 %v2034, %v2033
        %v2050 = vpack.c.b16 %v2036, %v2035
        %v2051 = vpack.c.b16 %v2038, %v2037
        %v2052 = vpack.c.b16 %v2040, %v2039
        %v2053 = vpack.c.b16 %v2042, %v2041
        %v2054 = vpack.c.b16 %v2044, %v2043
        %v2055 = vpack.c.b16 %v2046, %v2045
        %v2056 = vpack.c.b16 %v2048, %v2047
        %v2069 = vunpack.c.l.b16 %v2001
        %v2070 = vunpack.c.l.b16 %v2002
        %v2071 = vunpack.c.l.b16 %v2003
        %v2072 = vunpack.c.l.b16 %v2004
        %v2073 = vpack.c.b16 %v2070, %v2069
        %v2074 = vpack.c.b16 %v2072, %v2071
        %2077 = vmatprep.subr.bf16.mxu0 0
        %2078 = vmatpush1.bf16.xpose.msra.mxu0 %v2073
        %2079 = vmatprep.subr.bf16.mxu0 0
        %2080 = vmatpush1.bf16.xpose.msra.mxu0 %v2074
        %2081 = vmatprep.subr.bf16.mxu0 0
        %2082 = vmatpush1.bf16.xpose.msra.mxu0 0
        %2083 = vmatprep.subr.bf16.mxu0 0
        %2084 = vmatpush1.bf16.xpose.msra.mxu0 0
        %2085 = vmatprep.subr.bf16.mxu0 0
        %2086 = vmatpush1.bf16.xpose.msra.mxu0 0
        %2087 = vmatprep.subr.bf16.mxu0 0
        %2088 = vmatpush1.bf16.xpose.msra.mxu0 0
        %2089 = vmatprep.subr.bf16.mxu0 0
        %2090 = vmatpush1.bf16.xpose.msra.mxu0 0
        %2091 = vmatprep.subr.bf16.mxu0 0
        %2092 = vmatpush1.bf16.xpose.msra.mxu0 0
        %2093 = vmatprep.subr.bf16.mxu0 0
        %2094 = vmatpush1.bf16.xpose.msra.mxu0 0
        %2095 = vmatprep.subr.bf16.mxu0 0
        %2096 = vmatpush1.bf16.xpose.msra.mxu0 0
        %2097 = vmatprep.subr.bf16.mxu0 0
        %2098 = vmatpush1.bf16.xpose.msra.mxu0 0
        %2099 = vmatprep.subr.bf16.mxu0 0
        %2100 = vmatpush1.bf16.xpose.msra.mxu0 0
        %2101 = vmatprep.subr.bf16.mxu0 0
        %2102 = vmatpush1.bf16.xpose.msra.mxu0 0
        %2103 = vmatprep.subr.bf16.mxu0 0
        %2104 = vmatpush1.bf16.xpose.msra.mxu0 0
        %2105 = vmatprep.subr.bf16.mxu0 0
        %2106 = vmatpush1.bf16.xpose.msra.mxu0 0
        %2107 = vmatprep.subr.bf16.mxu0 0
        %2108 = vmatpush1.bf16.xpose.msra.mxu0 0
        %2109 = vmatprep.mubr.bf16.mxu0 0
        %2110 = vmatmul.mubr.bf16.gmra.mrb[0].mxu0 %v2049
        %v2111 = vpop.f32.mrb[0].mxu0
        %v2112 = vadd.f32 0.0, %v2111
        %v2113 = vpop.f32.mrb[0].mxu0
        %v2114 = vpop.f32.mrb[0].mxu0
        %v2115 = vadd.f32 0.0, %v2114
        %v2116 = vpop.f32.mrb[0].mxu0
        %2117 = vmatprep.mubr.bf16.mxu0 0
        %2118 = vmatmul.mubr.bf16.gmra.mrb[0].mxu0 %v2050
        %v2119 = vpop.f32.mrb[0].mxu0
        %v2120 = vadd.f32 0.0, %v2119
        %v2121 = vpop.f32.mrb[0].mxu0
        %v2122 = vpop.f32.mrb[0].mxu0
        %v2123 = vadd.f32 0.0, %v2122
        %v2124 = vpop.f32.mrb[0].mxu0
        %2125 = vmatprep.mubr.bf16.mxu0 0
        %2126 = vmatmul.mubr.bf16.gmra.mrb[0].mxu0 %v2051
        %v2127 = vpop.f32.mrb[0].mxu0
        %v2128 = vadd.f32 0.0, %v2127
        %v2129 = vpop.f32.mrb[0].mxu0
        %v2130 = vpop.f32.mrb[0].mxu0
        %v2131 = vadd.f32 0.0, %v2130
        %v2132 = vpop.f32.mrb[0].mxu0
        %2133 = vmatprep.mubr.bf16.mxu0 0
        %2134 = vmatmul.mubr.bf16.gmra.mrb[0].mxu0 %v2052
        %v2135 = vpop.f32.mrb[0].mxu0
        %v2136 = vadd.f32 0.0, %v2135
        %v2137 = vpop.f32.mrb[0].mxu0
        %v2138 = vpop.f32.mrb[0].mxu0
        %v2139 = vadd.f32 0.0, %v2138
        %v2140 = vpop.f32.mrb[0].mxu0
        %2141 = vmatprep.mubr.bf16.mxu0 0
        %2142 = vmatmul.mubr.bf16.gmra.mrb[0].mxu0 %v2053
        %v2143 = vpop.f32.mrb[0].mxu0
        %v2144 = vadd.f32 0.0, %v2143
        %v2145 = vpop.f32.mrb[0].mxu0
        %v2146 = vpop.f32.mrb[0].mxu0
        %v2147 = vadd.f32 0.0, %v2146
        %v2148 = vpop.f32.mrb[0].mxu0
        %2149 = vmatprep.mubr.bf16.mxu0 0
        %2150 = vmatmul.mubr.bf16.gmra.mrb[0].mxu0 %v2054
        %v2151 = vpop.f32.mrb[0].mxu0
        %v2152 = vadd.f32 0.0, %v2151
        %v2153 = vpop.f32.mrb[0].mxu0
        %v2154 = vpop.f32.mrb[0].mxu0
        %v2155 = vadd.f32 0.0, %v2154
        %v2156 = vpop.f32.mrb[0].mxu0
        %2157 = vmatprep.mubr.bf16.mxu0 0
        %2158 = vmatmul.mubr.bf16.gmra.mrb[0].mxu0 %v2055
        %v2159 = vpop.f32.mrb[0].mxu0
        %v2160 = vadd.f32 0.0, %v2159
        %v2161 = vpop.f32.mrb[0].mxu0
        %v2162 = vpop.f32.mrb[0].mxu0
        %v2163 = vadd.f32 0.0, %v2162
        %v2164 = vpop.f32.mrb[0].mxu0
        %2165 = vmatprep.mubr.bf16.mxu0 0
        %2166 = vmatmul.mubr.bf16.gmra.mrb[0].mxu0 %v2056
        %v2167 = vpop.f32.mrb[0].mxu0
        %v2168 = vadd.f32 0.0, %v2167
        %v2169 = vpop.f32.mrb[0].mxu0
        %v2170 = vpop.f32.mrb[0].mxu0
        %v2171 = vadd.f32 0.0, %v2170
        %v2172 = vpop.f32.mrb[0].mxu0
        %2173 = vdwg.mxu0
        %v2178 = vunpack.c.l.b16 %v2005
        %v2179 = vunpack.c.l.b16 %v2006
        %v2180 = vunpack.c.l.b16 %v2007
        %v2181 = vunpack.c.l.b16 %v2008
        %v2182 = vpack.c.b16 %v2179, %v2178
        %v2183 = vpack.c.b16 %v2181, %v2180
        %2186 = vmatprep.subr.bf16.mxu0 0
        %2187 = vmatpush1.bf16.xpose.msra.mxu0 %v2182
        %2188 = vmatprep.subr.bf16.mxu0 0
        %2189 = vmatpush1.bf16.xpose.msra.mxu0 %v2183
        %2190 = vmatprep.subr.bf16.mxu0 0
        %2191 = vmatpush1.bf16.xpose.msra.mxu0 0
        %2192 = vmatprep.subr.bf16.mxu0 0
        %2193 = vmatpush1.bf16.xpose.msra.mxu0 0
        %2194 = vmatprep.subr.bf16.mxu0 0
        %2195 = vmatpush1.bf16.xpose.msra.mxu0 0
        %2196 = vmatprep.subr.bf16.mxu0 0
        %2197 = vmatpush1.bf16.xpose.msra.mxu0 0
        %2198 = vmatprep.subr.bf16.mxu0 0
        %2199 = vmatpush1.bf16.xpose.msra.mxu0 0
        %2200 = vmatprep.subr.bf16.mxu0 0
        %2201 = vmatpush1.bf16.xpose.msra.mxu0 0
        %2202 = vmatprep.subr.bf16.mxu0 0
        %2203 = vmatpush1.bf16.xpose.msra.mxu0 0
        %2204 = vmatprep.subr.bf16.mxu0 0
        %2205 = vmatpush1.bf16.xpose.msra.mxu0 0
        %2206 = vmatprep.subr.bf16.mxu0 0
        %2207 = vmatpush1.bf16.xpose.msra.mxu0 0
        %2208 = vmatprep.subr.bf16.mxu0 0
        %2209 = vmatpush1.bf16.xpose.msra.mxu0 0
        %2210 = vmatprep.subr.bf16.mxu0 0
        %2211 = vmatpush1.bf16.xpose.msra.mxu0 0
        %2212 = vmatprep.subr.bf16.mxu0 0
        %2213 = vmatpush1.bf16.xpose.msra.mxu0 0
        %2214 = vmatprep.subr.bf16.mxu0 0
        %2215 = vmatpush1.bf16.xpose.msra.mxu0 0
        %2216 = vmatprep.subr.bf16.mxu0 0
        %2217 = vmatpush1.bf16.xpose.msra.mxu0 0
        %2218 = vmatprep.mubr.bf16.mxu0 0
        %2219 = vmatmul.mubr.bf16.gmra.mrb[0].mxu0 %v2049
        %v2220 = vpop.f32.mrb[0].mxu0
        %v2221 = vadd.f32 0.0, %v2220
        %v2222 = vpop.f32.mrb[0].mxu0
        %v2223 = vpop.f32.mrb[0].mxu0
        %v2224 = vadd.f32 0.0, %v2223
        %v2225 = vpop.f32.mrb[0].mxu0
        %2226 = vmatprep.mubr.bf16.mxu0 0
        %2227 = vmatmul.mubr.bf16.gmra.mrb[0].mxu0 %v2050
        %v2228 = vpop.f32.mrb[0].mxu0
        %v2229 = vadd.f32 0.0, %v2228
        %v2230 = vpop.f32.mrb[0].mxu0
        %v2231 = vpop.f32.mrb[0].mxu0
        %v2232 = vadd.f32 0.0, %v2231
        %v2233 = vpop.f32.mrb[0].mxu0
        %2234 = vmatprep.mubr.bf16.mxu0 0
        %2235 = vmatmul.mubr.bf16.gmra.mrb[0].mxu0 %v2051
        %v2236 = vpop.f32.mrb[0].mxu0
        %v2237 = vadd.f32 0.0, %v2236
        %v2238 = vpop.f32.mrb[0].mxu0
        %v2239 = vpop.f32.mrb[0].mxu0
        %v2240 = vadd.f32 0.0, %v2239
        %v2241 = vpop.f32.mrb[0].mxu0
        %2242 = vmatprep.mubr.bf16.mxu0 0
        %2243 = vmatmul.mubr.bf16.gmra.mrb[0].mxu0 %v2052
        %v2244 = vpop.f32.mrb[0].mxu0
        %v2245 = vadd.f32 0.0, %v2244
        %v2246 = vpop.f32.mrb[0].mxu0
        %v2247 = vpop.f32.mrb[0].mxu0
        %v2248 = vadd.f32 0.0, %v2247
        %v2249 = vpop.f32.mrb[0].mxu0
        %2250 = vmatprep.mubr.bf16.mxu0 0
        %2251 = vmatmul.mubr.bf16.gmra.mrb[0].mxu0 %v2053
        %v2252 = vpop.f32.mrb[0].mxu0
        %v2253 = vadd.f32 0.0, %v2252
        %v2254 = vpop.f32.mrb[0].mxu0
        %v2255 = vpop.f32.mrb[0].mxu0
        %v2256 = vadd.f32 0.0, %v2255
        %v2257 = vpop.f32.mrb[0].mxu0
        %2258 = vmatprep.mubr.bf16.mxu0 0
        %2259 = vmatmul.mubr.bf16.gmra.mrb[0].mxu0 %v2054
        %v2260 = vpop.f32.mrb[0].mxu0
        %v2261 = vadd.f32 0.0, %v2260
        %v2262 = vpop.f32.mrb[0].mxu0
        %v2263 = vpop.f32.mrb[0].mxu0
        %v2264 = vadd.f32 0.0, %v2263
        %v2265 = vpop.f32.mrb[0].mxu0
        %2266 = vmatprep.mubr.bf16.mxu0 0
        %2267 = vmatmul.mubr.bf16.gmra.mrb[0].mxu0 %v2055
        %v2268 = vpop.f32.mrb[0].mxu0
        %v2269 = vadd.f32 0.0, %v2268
        %v2270 = vpop.f32.mrb[0].mxu0
        %v2271 = vpop.f32.mrb[0].mxu0
        %v2272 = vadd.f32 0.0, %v2271
        %v2273 = vpop.f32.mrb[0].mxu0
        %2274 = vmatprep.mubr.bf16.mxu0 0
        %2275 = vmatmul.mubr.bf16.gmra.mrb[0].mxu0 %v2056
        %v2276 = vpop.f32.mrb[0].mxu0
        %v2277 = vadd.f32 0.0, %v2276
        %v2278 = vpop.f32.mrb[0].mxu0
        %v2279 = vpop.f32.mrb[0].mxu0
        %v2280 = vadd.f32 0.0, %v2279
        %v2281 = vpop.f32.mrb[0].mxu0
        %2282 = vdwg.mxu0
        %v2287 = vunpack.c.l.b16 %v2009
        %v2288 = vunpack.c.l.b16 %v2010
        %v2289 = vunpack.c.l.b16 %v2011
        %v2290 = vunpack.c.l.b16 %v2012
        %v2291 = vpack.c.b16 %v2288, %v2287
        %v2292 = vpack.c.b16 %v2290, %v2289
        %2295 = vmatprep.subr.bf16.mxu0 0
        %2296 = vmatpush1.bf16.xpose.msra.mxu0 %v2291
        %2297 = vmatprep.subr.bf16.mxu0 0
        %2298 = vmatpush1.bf16.xpose.msra.mxu0 %v2292
        %2299 = vmatprep.subr.bf16.mxu0 0
        %2300 = vmatpush1.bf16.xpose.msra.mxu0 0
        %2301 = vmatprep.subr.bf16.mxu0 0
        %2302 = vmatpush1.bf16.xpose.msra.mxu0 0
        %2303 = vmatprep.subr.bf16.mxu0 0
        %2304 = vmatpush1.bf16.xpose.msra.mxu0 0
        %2305 = vmatprep.subr.bf16.mxu0 0
        %2306 = vmatpush1.bf16.xpose.msra.mxu0 0
        %2307 = vmatprep.subr.bf16.mxu0 0
        %2308 = vmatpush1.bf16.xpose.msra.mxu0 0
        %2309 = vmatprep.subr.bf16.mxu0 0
        %2310 = vmatpush1.bf16.xpose.msra.mxu0 0
        %2311 = vmatprep.subr.bf16.mxu0 0
        %2312 = vmatpush1.bf16.xpose.msra.mxu0 0
        %2313 = vmatprep.subr.bf16.mxu0 0
        %2314 = vmatpush1.bf16.xpose.msra.mxu0 0
        %2315 = vmatprep.subr.bf16.mxu0 0
        %2316 = vmatpush1.bf16.xpose.msra.mxu0 0
        %2317 = vmatprep.subr.bf16.mxu0 0
        %2318 = vmatpush1.bf16.xpose.msra.mxu0 0
        %2319 = vmatprep.subr.bf16.mxu0 0
        %2320 = vmatpush1.bf16.xpose.msra.mxu0 0
        %2321 = vmatprep.subr.bf16.mxu0 0
        %2322 = vmatpush1.bf16.xpose.msra.mxu0 0
        %2323 = vmatprep.subr.bf16.mxu0 0
        %2324 = vmatpush1.bf16.xpose.msra.mxu0 0
        %2325 = vmatprep.subr.bf16.mxu0 0
        %2326 = vmatpush1.bf16.xpose.msra.mxu0 0
        %2327 = vmatprep.mubr.bf16.mxu0 0
        %2328 = vmatmul.mubr.bf16.gmra.mrb[0].mxu0 %v2049
        %v2329 = vpop.f32.mrb[0].mxu0
        %v2330 = vadd.f32 0.0, %v2329
        %v2331 = vpop.f32.mrb[0].mxu0
        %v2332 = vpop.f32.mrb[0].mxu0
        %v2333 = vadd.f32 0.0, %v2332
        %v2334 = vpop.f32.mrb[0].mxu0
        %2335 = vmatprep.mubr.bf16.mxu0 0
        %2336 = vmatmul.mubr.bf16.gmra.mrb[0].mxu0 %v2050
        %v2337 = vpop.f32.mrb[0].mxu0
        %v2338 = vadd.f32 0.0, %v2337
        %v2339 = vpop.f32.mrb[0].mxu0
        %v2340 = vpop.f32.mrb[0].mxu0
        %v2341 = vadd.f32 0.0, %v2340
        %v2342 = vpop.f32.mrb[0].mxu0
        %2343 = vmatprep.mubr.bf16.mxu0 0
        %2344 = vmatmul.mubr.bf16.gmra.mrb[0].mxu0 %v2051
        %v2345 = vpop.f32.mrb[0].mxu0
        %v2346 = vadd.f32 0.0, %v2345
        %v2347 = vpop.f32.mrb[0].mxu0
        %v2348 = vpop.f32.mrb[0].mxu0
        %v2349 = vadd.f32 0.0, %v2348
        %v2350 = vpop.f32.mrb[0].mxu0
        %2351 = vmatprep.mubr.bf16.mxu0 0
        %2352 = vmatmul.mubr.bf16.gmra.mrb[0].mxu0 %v2052
        %v2353 = vpop.f32.mrb[0].mxu0
        %v2354 = vadd.f32 0.0, %v2353
        %v2355 = vpop.f32.mrb[0].mxu0
        %v2356 = vpop.f32.mrb[0].mxu0
        %v2357 = vadd.f32 0.0, %v2356
        %v2358 = vpop.f32.mrb[0].mxu0
        %2359 = vmatprep.mubr.bf16.mxu0 0
        %2360 = vmatmul.mubr.bf16.gmra.mrb[0].mxu0 %v2053
        %v2361 = vpop.f32.mrb[0].mxu0
        %v2362 = vadd.f32 0.0, %v2361
        %v2363 = vpop.f32.mrb[0].mxu0
        %v2364 = vpop.f32.mrb[0].mxu0
        %v2365 = vadd.f32 0.0, %v2364
        %v2366 = vpop.f32.mrb[0].mxu0
        %2367 = vmatprep.mubr.bf16.mxu0 0
        %2368 = vmatmul.mubr.bf16.gmra.mrb[0].mxu0 %v2054
        %v2369 = vpop.f32.mrb[0].mxu0
        %v2370 = vadd.f32 0.0, %v2369
        %v2371 = vpop.f32.mrb[0].mxu0
        %v2372 = vpop.f32.mrb[0].mxu0
        %v2373 = vadd.f32 0.0, %v2372
        %v2374 = vpop.f32.mrb[0].mxu0
        %2375 = vmatprep.mubr.bf16.mxu0 0
        %2376 = vmatmul.mubr.bf16.gmra.mrb[0].mxu0 %v2055
        %v2377 = vpop.f32.mrb[0].mxu0
        %v2378 = vadd.f32 0.0, %v2377
        %v2379 = vpop.f32.mrb[0].mxu0
        %v2380 = vpop.f32.mrb[0].mxu0
        %v2381 = vadd.f32 0.0, %v2380
        %v2382 = vpop.f32.mrb[0].mxu0
        %2383 = vmatprep.mubr.bf16.mxu0 0
        %2384 = vmatmul.mubr.bf16.gmra.mrb[0].mxu0 %v2056
        %v2385 = vpop.f32.mrb[0].mxu0
        %v2386 = vadd.f32 0.0, %v2385
        %v2387 = vpop.f32.mrb[0].mxu0
        %v2388 = vpop.f32.mrb[0].mxu0
        %v2389 = vadd.f32 0.0, %v2388
        %v2390 = vpop.f32.mrb[0].mxu0
        %2391 = vdwg.mxu0
        %v2396 = vunpack.c.l.b16 %v2013
        %v2397 = vunpack.c.l.b16 %v2014
        %v2398 = vunpack.c.l.b16 %v2015
        %v2399 = vunpack.c.l.b16 %v2016
        %v2400 = vpack.c.b16 %v2397, %v2396
        %v2401 = vpack.c.b16 %v2399, %v2398
        %2404 = vmatprep.subr.bf16.mxu0 0
        %2405 = vmatpush1.bf16.xpose.msra.mxu0 %v2400
        %2406 = vmatprep.subr.bf16.mxu0 0
        %2407 = vmatpush1.bf16.xpose.msra.mxu0 %v2401
        %2408 = vmatprep.subr.bf16.mxu0 0
        %2409 = vmatpush1.bf16.xpose.msra.mxu0 0
        %2410 = vmatprep.subr.bf16.mxu0 0
        %2411 = vmatpush1.bf16.xpose.msra.mxu0 0
        %2412 = vmatprep.subr.bf16.mxu0 0
        %2413 = vmatpush1.bf16.xpose.msra.mxu0 0
        %2414 = vmatprep.subr.bf16.mxu0 0
        %2415 = vmatpush1.bf16.xpose.msra.mxu0 0
        %2416 = vmatprep.subr.bf16.mxu0 0
        %2417 = vmatpush1.bf16.xpose.msra.mxu0 0
        %2418 = vmatprep.subr.bf16.mxu0 0
        %2419 = vmatpush1.bf16.xpose.msra.mxu0 0
        %2420 = vmatprep.subr.bf16.mxu0 0
        %2421 = vmatpush1.bf16.xpose.msra.mxu0 0
        %2422 = vmatprep.subr.bf16.mxu0 0
        %2423 = vmatpush1.bf16.xpose.msra.mxu0 0
        %2424 = vmatprep.subr.bf16.mxu0 0
        %2425 = vmatpush1.bf16.xpose.msra.mxu0 0
        %2426 = vmatprep.subr.bf16.mxu0 0
        %2427 = vmatpush1.bf16.xpose.msra.mxu0 0
        %2428 = vmatprep.subr.bf16.mxu0 0
        %2429 = vmatpush1.bf16.xpose.msra.mxu0 0
        %2430 = vmatprep.subr.bf16.mxu0 0
        %2431 = vmatpush1.bf16.xpose.msra.mxu0 0
        %2432 = vmatprep.subr.bf16.mxu0 0
        %2433 = vmatpush1.bf16.xpose.msra.mxu0 0
        %2434 = vmatprep.subr.bf16.mxu0 0
        %2435 = vmatpush1.bf16.xpose.msra.mxu0 0
        %2436 = vmatprep.mubr.bf16.mxu0 0
        %2437 = vmatmul.mubr.bf16.gmra.mrb[0].mxu0 %v2049
        %v2438 = vpop.f32.mrb[0].mxu0
        %v2439 = vadd.f32 0.0, %v2438
        %v2440 = vpop.f32.mrb[0].mxu0
        %v2441 = vpop.f32.mrb[0].mxu0
        %v2442 = vadd.f32 0.0, %v2441
        %v2443 = vpop.f32.mrb[0].mxu0
        %2444 = vmatprep.mubr.bf16.mxu0 0
        %2445 = vmatmul.mubr.bf16.gmra.mrb[0].mxu0 %v2050
        %v2446 = vpop.f32.mrb[0].mxu0
        %v2447 = vadd.f32 0.0, %v2446
        %v2448 = vpop.f32.mrb[0].mxu0
        %v2449 = vpop.f32.mrb[0].mxu0
        %v2450 = vadd.f32 0.0, %v2449
        %v2451 = vpop.f32.mrb[0].mxu0
        %2452 = vmatprep.mubr.bf16.mxu0 0
        %2453 = vmatmul.mubr.bf16.gmra.mrb[0].mxu0 %v2051
        %v2454 = vpop.f32.mrb[0].mxu0
        %v2455 = vadd.f32 0.0, %v2454
        %v2456 = vpop.f32.mrb[0].mxu0
        %v2457 = vpop.f32.mrb[0].mxu0
        %v2458 = vadd.f32 0.0, %v2457
        %v2459 = vpop.f32.mrb[0].mxu0
        %2460 = vmatprep.mubr.bf16.mxu0 0
        %2461 = vmatmul.mubr.bf16.gmra.mrb[0].mxu0 %v2052
        %v2462 = vpop.f32.mrb[0].mxu0
        %v2463 = vadd.f32 0.0, %v2462
        %v2464 = vpop.f32.mrb[0].mxu0
        %v2465 = vpop.f32.mrb[0].mxu0
        %v2466 = vadd.f32 0.0, %v2465
        %v2467 = vpop.f32.mrb[0].mxu0
        %2468 = vmatprep.mubr.bf16.mxu0 0
        %2469 = vmatmul.mubr.bf16.gmra.mrb[0].mxu0 %v2053
        %v2470 = vpop.f32.mrb[0].mxu0
        %v2471 = vadd.f32 0.0, %v2470
        %v2472 = vpop.f32.mrb[0].mxu0
        %v2473 = vpop.f32.mrb[0].mxu0
        %v2474 = vadd.f32 0.0, %v2473
        %v2475 = vpop.f32.mrb[0].mxu0
        %2476 = vmatprep.mubr.bf16.mxu0 0
        %2477 = vmatmul.mubr.bf16.gmra.mrb[0].mxu0 %v2054
        %v2478 = vpop.f32.mrb[0].mxu0
        %v2479 = vadd.f32 0.0, %v2478
        %v2480 = vpop.f32.mrb[0].mxu0
        %v2481 = vpop.f32.mrb[0].mxu0
        %v2482 = vadd.f32 0.0, %v2481
        %v2483 = vpop.f32.mrb[0].mxu0
        %2484 = vmatprep.mubr.bf16.mxu0 0
        %2485 = vmatmul.mubr.bf16.gmra.mrb[0].mxu0 %v2055
        %v2486 = vpop.f32.mrb[0].mxu0
        %v2487 = vadd.f32 0.0, %v2486
        %v2488 = vpop.f32.mrb[0].mxu0
        %v2489 = vpop.f32.mrb[0].mxu0
        %v2490 = vadd.f32 0.0, %v2489
        %v2491 = vpop.f32.mrb[0].mxu0
        %2492 = vmatprep.mubr.bf16.mxu0 0
        %2493 = vmatmul.mubr.bf16.gmra.mrb[0].mxu0 %v2056
        %v2494 = vpop.f32.mrb[0].mxu0
        %v2495 = vadd.f32 0.0, %v2494
        %v2496 = vpop.f32.mrb[0].mxu0
        %v2497 = vpop.f32.mrb[0].mxu0
        %v2498 = vadd.f32 0.0, %v2497
        %v2499 = vpop.f32.mrb[0].mxu0
        %2500 = vdwg.mxu0
        %v2501 = vpack.c.bf16 %v2115, %v2112
        %v2502 = vpack.c.bf16 %v2123, %v2120
        %v2503 = vpack.c.bf16 %v2131, %v2128
        %v2504 = vpack.c.bf16 %v2139, %v2136
        %v2505 = vpack.c.bf16 %v2147, %v2144
        %v2506 = vpack.c.bf16 %v2155, %v2152
        %v2507 = vpack.c.bf16 %v2163, %v2160
        %v2508 = vpack.c.bf16 %v2171, %v2168
        %v2509 = vpack.c.bf16 %v2224, %v2221
        %v2510 = vpack.c.bf16 %v2232, %v2229
        %v2511 = vpack.c.bf16 %v2240, %v2237
        %v2512 = vpack.c.bf16 %v2248, %v2245
        %v2513 = vpack.c.bf16 %v2256, %v2253
        %v2514 = vpack.c.bf16 %v2264, %v2261
        %v2515 = vpack.c.bf16 %v2272, %v2269
        %v2516 = vpack.c.bf16 %v2280, %v2277
        %v2517 = vpack.c.bf16 %v2333, %v2330
        %v2518 = vpack.c.bf16 %v2341, %v2338
        %v2519 = vpack.c.bf16 %v2349, %v2346
        %v2520 = vpack.c.bf16 %v2357, %v2354
        %v2521 = vpack.c.bf16 %v2365, %v2362
        %v2522 = vpack.c.bf16 %v2373, %v2370
        %v2523 = vpack.c.bf16 %v2381, %v2378
        %v2524 = vpack.c.bf16 %v2389, %v2386
        %v2525 = vpack.c.bf16 %v2442, %v2439
        %v2526 = vpack.c.bf16 %v2450, %v2447
        %v2527 = vpack.c.bf16 %v2458, %v2455
        %v2528 = vpack.c.bf16 %v2466, %v2463
        %v2529 = vpack.c.bf16 %v2474, %v2471
        %v2530 = vpack.c.bf16 %v2482, %v2479
        %v2531 = vpack.c.bf16 %v2490, %v2487
        %v2532 = vpack.c.bf16 %v2498, %v2495
        %s2533 = scalar_lea.vmem [#allocation8], 64
        %v2534 = vld [vmem:[%s2533] sm:$0xf]
        %v2535 = vld [vmem:[%s2533 + $0x4] sm:$0xf]
        %v2536 = vld [vmem:[%s2533 + $0x8] sm:$0xf]
        %v2537 = vld [vmem:[%s2533 + $0xc] sm:$0xf]
        %v2538 = vld [vmem:[%s2533 + $0x10] sm:$0xf]
        %v2539 = vld [vmem:[%s2533 + $0x14] sm:$0xf]
        %v2540 = vld [vmem:[%s2533 + $0x18] sm:$0xf]
        %v2541 = vld [vmem:[%s2533 + $0x1c] sm:$0xf]
        %v2542 = vld [vmem:[%s2533 + $0x20] sm:$0xf]
        %v2543 = vld [vmem:[%s2533 + $0x24] sm:$0xf]
        %v2544 = vld [vmem:[%s2533 + $0x28] sm:$0xf]
        %v2545 = vld [vmem:[%s2533 + $0x2c] sm:$0xf]
        %v2546 = vld [vmem:[%s2533 + $0x30] sm:$0xf]
        %v2547 = vld [vmem:[%s2533 + $0x34] sm:$0xf]
        %v2548 = vld [vmem:[%s2533 + $0x38] sm:$0xf]
        %v2549 = vld [vmem:[%s2533 + $0x3c] sm:$0xf]
        %v2554 = vunpack.c.l.b16 %v2534
        %v2555 = vunpack.c.l.b16 %v2535
        %v2556 = vunpack.c.l.b16 %v2536
        %v2557 = vunpack.c.l.b16 %v2537
        %v2558 = vpack.c.b16 %v2555, %v2554
        %v2559 = vpack.c.b16 %v2557, %v2556
        %2562 = vmatprep.subr.bf16.mxu0 0
        %2563 = vmatpush1.bf16.xpose.msra.mxu0 %v2558
        %2564 = vmatprep.subr.bf16.mxu0 0
        %2565 = vmatpush1.bf16.xpose.msra.mxu0 %v2559
        %2566 = vmatprep.subr.bf16.mxu0 0
        %2567 = vmatpush1.bf16.xpose.msra.mxu0 0
        %2568 = vmatprep.subr.bf16.mxu0 0
        %2569 = vmatpush1.bf16.xpose.msra.mxu0 0
        %2570 = vmatprep.subr.bf16.mxu0 0
        %2571 = vmatpush1.bf16.xpose.msra.mxu0 0
        %2572 = vmatprep.subr.bf16.mxu0 0
        %2573 = vmatpush1.bf16.xpose.msra.mxu0 0
        %2574 = vmatprep.subr.bf16.mxu0 0
        %2575 = vmatpush1.bf16.xpose.msra.mxu0 0
        %2576 = vmatprep.subr.bf16.mxu0 0
        %2577 = vmatpush1.bf16.xpose.msra.mxu0 0
        %2578 = vmatprep.subr.bf16.mxu0 0
        %2579 = vmatpush1.bf16.xpose.msra.mxu0 0
        %2580 = vmatprep.subr.bf16.mxu0 0
        %2581 = vmatpush1.bf16.xpose.msra.mxu0 0
        %2582 = vmatprep.subr.bf16.mxu0 0
        %2583 = vmatpush1.bf16.xpose.msra.mxu0 0
        %2584 = vmatprep.subr.bf16.mxu0 0
        %2585 = vmatpush1.bf16.xpose.msra.mxu0 0
        %2586 = vmatprep.subr.bf16.mxu0 0
        %2587 = vmatpush1.bf16.xpose.msra.mxu0 0
        %2588 = vmatprep.subr.bf16.mxu0 0
        %2589 = vmatpush1.bf16.xpose.msra.mxu0 0
        %2590 = vmatprep.subr.bf16.mxu0 0
        %2591 = vmatpush1.bf16.xpose.msra.mxu0 0
        %2592 = vmatprep.subr.bf16.mxu0 0
        %2593 = vmatpush1.bf16.xpose.msra.mxu0 0
        %2594 = vmatprep.mubr.bf16.mxu0 0
        %2595 = vmatmul.mubr.bf16.gmra.mrb[0].mxu0 %v2049
        %v2596 = vpop.f32.mrb[0].mxu0
        %v2597 = vadd.f32 0.0, %v2596
        %v2598 = vpop.f32.mrb[0].mxu0
        %v2599 = vpop.f32.mrb[0].mxu0
        %v2600 = vadd.f32 0.0, %v2599
        %v2601 = vpop.f32.mrb[0].mxu0
        %2602 = vmatprep.mubr.bf16.mxu0 0
        %2603 = vmatmul.mubr.bf16.gmra.mrb[0].mxu0 %v2050
        %v2604 = vpop.f32.mrb[0].mxu0
        %v2605 = vadd.f32 0.0, %v2604
        %v2606 = vpop.f32.mrb[0].mxu0
        %v2607 = vpop.f32.mrb[0].mxu0
        %v2608 = vadd.f32 0.0, %v2607
        %v2609 = vpop.f32.mrb[0].mxu0
        %2610 = vmatprep.mubr.bf16.mxu0 0
        %2611 = vmatmul.mubr.bf16.gmra.mrb[0].mxu0 %v2051
        %v2612 = vpop.f32.mrb[0].mxu0
        %v2613 = vadd.f32 0.0, %v2612
        %v2614 = vpop.f32.mrb[0].mxu0
        %v2615 = vpop.f32.mrb[0].mxu0
        %v2616 = vadd.f32 0.0, %v2615
        %v2617 = vpop.f32.mrb[0].mxu0
        %2618 = vmatprep.mubr.bf16.mxu0 0
        %2619 = vmatmul.mubr.bf16.gmra.mrb[0].mxu0 %v2052
        %v2620 = vpop.f32.mrb[0].mxu0
        %v2621 = vadd.f32 0.0, %v2620
        %v2622 = vpop.f32.mrb[0].mxu0
        %v2623 = vpop.f32.mrb[0].mxu0
        %v2624 = vadd.f32 0.0, %v2623
        %v2625 = vpop.f32.mrb[0].mxu0
        %2626 = vmatprep.mubr.bf16.mxu0 0
        %2627 = vmatmul.mubr.bf16.gmra.mrb[0].mxu0 %v2053
        %v2628 = vpop.f32.mrb[0].mxu0
        %v2629 = vadd.f32 0.0, %v2628
        %v2630 = vpop.f32.mrb[0].mxu0
        %v2631 = vpop.f32.mrb[0].mxu0
        %v2632 = vadd.f32 0.0, %v2631
        %v2633 = vpop.f32.mrb[0].mxu0
        %2634 = vmatprep.mubr.bf16.mxu0 0
        %2635 = vmatmul.mubr.bf16.gmra.mrb[0].mxu0 %v2054
        %v2636 = vpop.f32.mrb[0].mxu0
        %v2637 = vadd.f32 0.0, %v2636
        %v2638 = vpop.f32.mrb[0].mxu0
        %v2639 = vpop.f32.mrb[0].mxu0
        %v2640 = vadd.f32 0.0, %v2639
        %v2641 = vpop.f32.mrb[0].mxu0
        %2642 = vmatprep.mubr.bf16.mxu0 0
        %2643 = vmatmul.mubr.bf16.gmra.mrb[0].mxu0 %v2055
        %v2644 = vpop.f32.mrb[0].mxu0
        %v2645 = vadd.f32 0.0, %v2644
        %v2646 = vpop.f32.mrb[0].mxu0
        %v2647 = vpop.f32.mrb[0].mxu0
        %v2648 = vadd.f32 0.0, %v2647
        %v2649 = vpop.f32.mrb[0].mxu0
        %2650 = vmatprep.mubr.bf16.mxu0 0
        %2651 = vmatmul.mubr.bf16.gmra.mrb[0].mxu0 %v2056
        %v2652 = vpop.f32.mrb[0].mxu0
        %v2653 = vadd.f32 0.0, %v2652
        %v2654 = vpop.f32.mrb[0].mxu0
        %v2655 = vpop.f32.mrb[0].mxu0
        %v2656 = vadd.f32 0.0, %v2655
        %v2657 = vpop.f32.mrb[0].mxu0
        %2658 = vdwg.mxu0
        %v2663 = vunpack.c.l.b16 %v2538
        %v2664 = vunpack.c.l.b16 %v2539
        %v2665 = vunpack.c.l.b16 %v2540
        %v2666 = vunpack.c.l.b16 %v2541
        %v2667 = vpack.c.b16 %v2664, %v2663
        %v2668 = vpack.c.b16 %v2666, %v2665
        %2671 = vmatprep.subr.bf16.mxu0 0
        %2672 = vmatpush1.bf16.xpose.msra.mxu0 %v2667
        %2673 = vmatprep.subr.bf16.mxu0 0
        %2674 = vmatpush1.bf16.xpose.msra.mxu0 %v2668
        %2675 = vmatprep.subr.bf16.mxu0 0
        %2676 = vmatpush1.bf16.xpose.msra.mxu0 0
        %2677 = vmatprep.subr.bf16.mxu0 0
        %2678 = vmatpush1.bf16.xpose.msra.mxu0 0
        %2679 = vmatprep.subr.bf16.mxu0 0
        %2680 = vmatpush1.bf16.xpose.msra.mxu0 0
        %2681 = vmatprep.subr.bf16.mxu0 0
        %2682 = vmatpush1.bf16.xpose.msra.mxu0 0
        %2683 = vmatprep.subr.bf16.mxu0 0
        %2684 = vmatpush1.bf16.xpose.msra.mxu0 0
        %2685 = vmatprep.subr.bf16.mxu0 0
        %2686 = vmatpush1.bf16.xpose.msra.mxu0 0
        %2687 = vmatprep.subr.bf16.mxu0 0
        %2688 = vmatpush1.bf16.xpose.msra.mxu0 0
        %2689 = vmatprep.subr.bf16.mxu0 0
        %2690 = vmatpush1.bf16.xpose.msra.mxu0 0
        %2691 = vmatprep.subr.bf16.mxu0 0
        %2692 = vmatpush1.bf16.xpose.msra.mxu0 0
        %2693 = vmatprep.subr.bf16.mxu0 0
        %2694 = vmatpush1.bf16.xpose.msra.mxu0 0
        %2695 = vmatprep.subr.bf16.mxu0 0
        %2696 = vmatpush1.bf16.xpose.msra.mxu0 0
        %2697 = vmatprep.subr.bf16.mxu0 0
        %2698 = vmatpush1.bf16.xpose.msra.mxu0 0
        %2699 = vmatprep.subr.bf16.mxu0 0
        %2700 = vmatpush1.bf16.xpose.msra.mxu0 0
        %2701 = vmatprep.subr.bf16.mxu0 0
        %2702 = vmatpush1.bf16.xpose.msra.mxu0 0
        %2703 = vmatprep.mubr.bf16.mxu0 0
        %2704 = vmatmul.mubr.bf16.gmra.mrb[0].mxu0 %v2049
        %v2705 = vpop.f32.mrb[0].mxu0
        %v2706 = vadd.f32 0.0, %v2705
        %v2707 = vpop.f32.mrb[0].mxu0
        %v2708 = vpop.f32.mrb[0].mxu0
        %v2709 = vadd.f32 0.0, %v2708
        %v2710 = vpop.f32.mrb[0].mxu0
        %2711 = vmatprep.mubr.bf16.mxu0 0
        %2712 = vmatmul.mubr.bf16.gmra.mrb[0].mxu0 %v2050
        %v2713 = vpop.f32.mrb[0].mxu0
        %v2714 = vadd.f32 0.0, %v2713
        %v2715 = vpop.f32.mrb[0].mxu0
        %v2716 = vpop.f32.mrb[0].mxu0
        %v2717 = vadd.f32 0.0, %v2716
        %v2718 = vpop.f32.mrb[0].mxu0
        %2719 = vmatprep.mubr.bf16.mxu0 0
        %2720 = vmatmul.mubr.bf16.gmra.mrb[0].mxu0 %v2051
        %v2721 = vpop.f32.mrb[0].mxu0
        %v2722 = vadd.f32 0.0, %v2721
        %v2723 = vpop.f32.mrb[0].mxu0
        %v2724 = vpop.f32.mrb[0].mxu0
        %v2725 = vadd.f32 0.0, %v2724
        %v2726 = vpop.f32.mrb[0].mxu0
        %2727 = vmatprep.mubr.bf16.mxu0 0
        %2728 = vmatmul.mubr.bf16.gmra.mrb[0].mxu0 %v2052
        %v2729 = vpop.f32.mrb[0].mxu0
        %v2730 = vadd.f32 0.0, %v2729
        %v2731 = vpop.f32.mrb[0].mxu0
        %v2732 = vpop.f32.mrb[0].mxu0
        %v2733 = vadd.f32 0.0, %v2732
        %v2734 = vpop.f32.mrb[0].mxu0
        %2735 = vmatprep.mubr.bf16.mxu0 0
        %2736 = vmatmul.mubr.bf16.gmra.mrb[0].mxu0 %v2053
        %v2737 = vpop.f32.mrb[0].mxu0
        %v2738 = vadd.f32 0.0, %v2737
        %v2739 = vpop.f32.mrb[0].mxu0
        %v2740 = vpop.f32.mrb[0].mxu0
        %v2741 = vadd.f32 0.0, %v2740
        %v2742 = vpop.f32.mrb[0].mxu0
        %2743 = vmatprep.mubr.bf16.mxu0 0
        %2744 = vmatmul.mubr.bf16.gmra.mrb[0].mxu0 %v2054
        %v2745 = vpop.f32.mrb[0].mxu0
        %v2746 = vadd.f32 0.0, %v2745
        %v2747 = vpop.f32.mrb[0].mxu0
        %v2748 = vpop.f32.mrb[0].mxu0
        %v2749 = vadd.f32 0.0, %v2748
        %v2750 = vpop.f32.mrb[0].mxu0
        %2751 = vmatprep.mubr.bf16.mxu0 0
        %2752 = vmatmul.mubr.bf16.gmra.mrb[0].mxu0 %v2055
        %v2753 = vpop.f32.mrb[0].mxu0
        %v2754 = vadd.f32 0.0, %v2753
        %v2755 = vpop.f32.mrb[0].mxu0
        %v2756 = vpop.f32.mrb[0].mxu0
        %v2757 = vadd.f32 0.0, %v2756
        %v2758 = vpop.f32.mrb[0].mxu0
        %2759 = vmatprep.mubr.bf16.mxu0 0
        %2760 = vmatmul.mubr.bf16.gmra.mrb[0].mxu0 %v2056
        %v2761 = vpop.f32.mrb[0].mxu0
        %v2762 = vadd.f32 0.0, %v2761
        %v2763 = vpop.f32.mrb[0].mxu0
        %v2764 = vpop.f32.mrb[0].mxu0
        %v2765 = vadd.f32 0.0, %v2764
        %v2766 = vpop.f32.mrb[0].mxu0
        %2767 = vdwg.mxu0
        %v2772 = vunpack.c.l.b16 %v2542
        %v2773 = vunpack.c.l.b16 %v2543
        %v2774 = vunpack.c.l.b16 %v2544
        %v2775 = vunpack.c.l.b16 %v2545
        %v2776 = vpack.c.b16 %v2773, %v2772
        %v2777 = vpack.c.b16 %v2775, %v2774
        %2780 = vmatprep.subr.bf16.mxu0 0
        %2781 = vmatpush1.bf16.xpose.msra.mxu0 %v2776
        %2782 = vmatprep.subr.bf16.mxu0 0
        %2783 = vmatpush1.bf16.xpose.msra.mxu0 %v2777
        %2784 = vmatprep.subr.bf16.mxu0 0
        %2785 = vmatpush1.bf16.xpose.msra.mxu0 0
        %2786 = vmatprep.subr.bf16.mxu0 0
        %2787 = vmatpush1.bf16.xpose.msra.mxu0 0
        %2788 = vmatprep.subr.bf16.mxu0 0
        %2789 = vmatpush1.bf16.xpose.msra.mxu0 0
        %2790 = vmatprep.subr.bf16.mxu0 0
        %2791 = vmatpush1.bf16.xpose.msra.mxu0 0
        %2792 = vmatprep.subr.bf16.mxu0 0
        %2793 = vmatpush1.bf16.xpose.msra.mxu0 0
        %2794 = vmatprep.subr.bf16.mxu0 0
        %2795 = vmatpush1.bf16.xpose.msra.mxu0 0
        %2796 = vmatprep.subr.bf16.mxu0 0
        %2797 = vmatpush1.bf16.xpose.msra.mxu0 0
        %2798 = vmatprep.subr.bf16.mxu0 0
        %2799 = vmatpush1.bf16.xpose.msra.mxu0 0
        %2800 = vmatprep.subr.bf16.mxu0 0
        %2801 = vmatpush1.bf16.xpose.msra.mxu0 0
        %2802 = vmatprep.subr.bf16.mxu0 0
        %2803 = vmatpush1.bf16.xpose.msra.mxu0 0
        %2804 = vmatprep.subr.bf16.mxu0 0
        %2805 = vmatpush1.bf16.xpose.msra.mxu0 0
        %2806 = vmatprep.subr.bf16.mxu0 0
        %2807 = vmatpush1.bf16.xpose.msra.mxu0 0
        %2808 = vmatprep.subr.bf16.mxu0 0
        %2809 = vmatpush1.bf16.xpose.msra.mxu0 0
        %2810 = vmatprep.subr.bf16.mxu0 0
        %2811 = vmatpush1.bf16.xpose.msra.mxu0 0
        %2812 = vmatprep.mubr.bf16.mxu0 0
        %2813 = vmatmul.mubr.bf16.gmra.mrb[0].mxu0 %v2049
        %v2814 = vpop.f32.mrb[0].mxu0
        %v2815 = vadd.f32 0.0, %v2814
        %v2816 = vpop.f32.mrb[0].mxu0
        %v2817 = vpop.f32.mrb[0].mxu0
        %v2818 = vadd.f32 0.0, %v2817
        %v2819 = vpop.f32.mrb[0].mxu0
        %2820 = vmatprep.mubr.bf16.mxu0 0
        %2821 = vmatmul.mubr.bf16.gmra.mrb[0].mxu0 %v2050
        %v2822 = vpop.f32.mrb[0].mxu0
        %v2823 = vadd.f32 0.0, %v2822
        %v2824 = vpop.f32.mrb[0].mxu0
        %v2825 = vpop.f32.mrb[0].mxu0
        %v2826 = vadd.f32 0.0, %v2825
        %v2827 = vpop.f32.mrb[0].mxu0
        %2828 = vmatprep.mubr.bf16.mxu0 0
        %2829 = vmatmul.mubr.bf16.gmra.mrb[0].mxu0 %v2051
        %v2830 = vpop.f32.mrb[0].mxu0
        %v2831 = vadd.f32 0.0, %v2830
        %v2832 = vpop.f32.mrb[0].mxu0
        %v2833 = vpop.f32.mrb[0].mxu0
        %v2834 = vadd.f32 0.0, %v2833
        %v2835 = vpop.f32.mrb[0].mxu0
        %2836 = vmatprep.mubr.bf16.mxu0 0
        %2837 = vmatmul.mubr.bf16.gmra.mrb[0].mxu0 %v2052
        %v2838 = vpop.f32.mrb[0].mxu0
        %v2839 = vadd.f32 0.0, %v2838
        %v2840 = vpop.f32.mrb[0].mxu0
        %v2841 = vpop.f32.mrb[0].mxu0
        %v2842 = vadd.f32 0.0, %v2841
        %v2843 = vpop.f32.mrb[0].mxu0
        %2844 = vmatprep.mubr.bf16.mxu0 0
        %2845 = vmatmul.mubr.bf16.gmra.mrb[0].mxu0 %v2053
        %v2846 = vpop.f32.mrb[0].mxu0
        %v2847 = vadd.f32 0.0, %v2846
        %v2848 = vpop.f32.mrb[0].mxu0
        %v2849 = vpop.f32.mrb[0].mxu0
        %v2850 = vadd.f32 0.0, %v2849
        %v2851 = vpop.f32.mrb[0].mxu0
        %2852 = vmatprep.mubr.bf16.mxu0 0
        %2853 = vmatmul.mubr.bf16.gmra.mrb[0].mxu0 %v2054
        %v2854 = vpop.f32.mrb[0].mxu0
        %v2855 = vadd.f32 0.0, %v2854
        %v2856 = vpop.f32.mrb[0].mxu0
        %v2857 = vpop.f32.mrb[0].mxu0
        %v2858 = vadd.f32 0.0, %v2857
        %v2859 = vpop.f32.mrb[0].mxu0
        %2860 = vmatprep.mubr.bf16.mxu0 0
        %2861 = vmatmul.mubr.bf16.gmra.mrb[0].mxu0 %v2055
        %v2862 = vpop.f32.mrb[0].mxu0
        %v2863 = vadd.f32 0.0, %v2862
        %v2864 = vpop.f32.mrb[0].mxu0
        %v2865 = vpop.f32.mrb[0].mxu0
        %v2866 = vadd.f32 0.0, %v2865
        %v2867 = vpop.f32.mrb[0].mxu0
        %2868 = vmatprep.mubr.bf16.mxu0 0
        %2869 = vmatmul.mubr.bf16.gmra.mrb[0].mxu0 %v2056
        %v2870 = vpop.f32.mrb[0].mxu0
        %v2871 = vadd.f32 0.0, %v2870
        %v2872 = vpop.f32.mrb[0].mxu0
        %v2873 = vpop.f32.mrb[0].mxu0
        %v2874 = vadd.f32 0.0, %v2873
        %v2875 = vpop.f32.mrb[0].mxu0
        %2876 = vdwg.mxu0
        %v2881 = vunpack.c.l.b16 %v2546
        %v2882 = vunpack.c.l.b16 %v2547
        %v2883 = vunpack.c.l.b16 %v2548
        %v2884 = vunpack.c.l.b16 %v2549
        %v2885 = vpack.c.b16 %v2882, %v2881
        %v2886 = vpack.c.b16 %v2884, %v2883
        %2889 = vmatprep.subr.bf16.mxu0 0
        %2890 = vmatpush1.bf16.xpose.msra.mxu0 %v2885
        %2891 = vmatprep.subr.bf16.mxu0 0
        %2892 = vmatpush1.bf16.xpose.msra.mxu0 %v2886
        %2893 = vmatprep.subr.bf16.mxu0 0
        %2894 = vmatpush1.bf16.xpose.msra.mxu0 0
        %2895 = vmatprep.subr.bf16.mxu0 0
        %2896 = vmatpush1.bf16.xpose.msra.mxu0 0
        %2897 = vmatprep.subr.bf16.mxu0 0
        %2898 = vmatpush1.bf16.xpose.msra.mxu0 0
        %2899 = vmatprep.subr.bf16.mxu0 0
        %2900 = vmatpush1.bf16.xpose.msra.mxu0 0
        %2901 = vmatprep.subr.bf16.mxu0 0
        %2902 = vmatpush1.bf16.xpose.msra.mxu0 0
        %2903 = vmatprep.subr.bf16.mxu0 0
        %2904 = vmatpush1.bf16.xpose.msra.mxu0 0
        %2905 = vmatprep.subr.bf16.mxu0 0
        %2906 = vmatpush1.bf16.xpose.msra.mxu0 0
        %2907 = vmatprep.subr.bf16.mxu0 0
        %2908 = vmatpush1.bf16.xpose.msra.mxu0 0
        %2909 = vmatprep.subr.bf16.mxu0 0
        %2910 = vmatpush1.bf16.xpose.msra.mxu0 0
        %2911 = vmatprep.subr.bf16.mxu0 0
        %2912 = vmatpush1.bf16.xpose.msra.mxu0 0
        %2913 = vmatprep.subr.bf16.mxu0 0
        %2914 = vmatpush1.bf16.xpose.msra.mxu0 0
        %2915 = vmatprep.subr.bf16.mxu0 0
        %2916 = vmatpush1.bf16.xpose.msra.mxu0 0
        %2917 = vmatprep.subr.bf16.mxu0 0
        %2918 = vmatpush1.bf16.xpose.msra.mxu0 0
        %2919 = vmatprep.subr.bf16.mxu0 0
        %2920 = vmatpush1.bf16.xpose.msra.mxu0 0
        %2921 = vmatprep.mubr.bf16.mxu0 0
        %2922 = vmatmul.mubr.bf16.gmra.mrb[0].mxu0 %v2049
        %v2923 = vpop.f32.mrb[0].mxu0
        %v2924 = vadd.f32 0.0, %v2923
        %v2925 = vpop.f32.mrb[0].mxu0
        %v2926 = vpop.f32.mrb[0].mxu0
        %v2927 = vadd.f32 0.0, %v2926
        %v2928 = vpop.f32.mrb[0].mxu0
        %2929 = vmatprep.mubr.bf16.mxu0 0
        %2930 = vmatmul.mubr.bf16.gmra.mrb[0].mxu0 %v2050
        %v2931 = vpop.f32.mrb[0].mxu0
        %v2932 = vadd.f32 0.0, %v2931
        %v2933 = vpop.f32.mrb[0].mxu0
        %v2934 = vpop.f32.mrb[0].mxu0
        %v2935 = vadd.f32 0.0, %v2934
        %v2936 = vpop.f32.mrb[0].mxu0
        %2937 = vmatprep.mubr.bf16.mxu0 0
        %2938 = vmatmul.mubr.bf16.gmra.mrb[0].mxu0 %v2051
        %v2939 = vpop.f32.mrb[0].mxu0
        %v2940 = vadd.f32 0.0, %v2939
        %v2941 = vpop.f32.mrb[0].mxu0
        %v2942 = vpop.f32.mrb[0].mxu0
        %v2943 = vadd.f32 0.0, %v2942
        %v2944 = vpop.f32.mrb[0].mxu0
        %2945 = vmatprep.mubr.bf16.mxu0 0
        %2946 = vmatmul.mubr.bf16.gmra.mrb[0].mxu0 %v2052
        %v2947 = vpop.f32.mrb[0].mxu0
        %v2948 = vadd.f32 0.0, %v2947
        %v2949 = vpop.f32.mrb[0].mxu0
        %v2950 = vpop.f32.mrb[0].mxu0
        %v2951 = vadd.f32 0.0, %v2950
        %v2952 = vpop.f32.mrb[0].mxu0
        %2953 = vmatprep.mubr.bf16.mxu0 0
        %2954 = vmatmul.mubr.bf16.gmra.mrb[0].mxu0 %v2053
        %v2955 = vpop.f32.mrb[0].mxu0
        %v2956 = vadd.f32 0.0, %v2955
        %v2957 = vpop.f32.mrb[0].mxu0
        %v2958 = vpop.f32.mrb[0].mxu0
        %v2959 = vadd.f32 0.0, %v2958
        %v2960 = vpop.f32.mrb[0].mxu0
        %2961 = vmatprep.mubr.bf16.mxu0 0
        %2962 = vmatmul.mubr.bf16.gmra.mrb[0].mxu0 %v2054
        %v2963 = vpop.f32.mrb[0].mxu0
        %v2964 = vadd.f32 0.0, %v2963
        %v2965 = vpop.f32.mrb[0].mxu0
        %v2966 = vpop.f32.mrb[0].mxu0
        %v2967 = vadd.f32 0.0, %v2966
        %v2968 = vpop.f32.mrb[0].mxu0
        %2969 = vmatprep.mubr.bf16.mxu0 0
        %2970 = vmatmul.mubr.bf16.gmra.mrb[0].mxu0 %v2055
        %v2971 = vpop.f32.mrb[0].mxu0
        %v2972 = vadd.f32 0.0, %v2971
        %v2973 = vpop.f32.mrb[0].mxu0
        %v2974 = vpop.f32.mrb[0].mxu0
        %v2975 = vadd.f32 0.0, %v2974
        %v2976 = vpop.f32.mrb[0].mxu0
        %2977 = vmatprep.mubr.bf16.mxu0 0
        %2978 = vmatmul.mubr.bf16.gmra.mrb[0].mxu0 %v2056
        %v2979 = vpop.f32.mrb[0].mxu0
        %v2980 = vadd.f32 0.0, %v2979
        %v2981 = vpop.f32.mrb[0].mxu0
        %v2982 = vpop.f32.mrb[0].mxu0
        %v2983 = vadd.f32 0.0, %v2982
        %v2984 = vpop.f32.mrb[0].mxu0
        %2985 = vdwg.mxu0
        %v2986 = vpack.c.bf16 %v2600, %v2597
        %v2987 = vpack.c.bf16 %v2608, %v2605
        %v2988 = vpack.c.bf16 %v2616, %v2613
        %v2989 = vpack.c.bf16 %v2624, %v2621
        %v2990 = vpack.c.bf16 %v2632, %v2629
        %v2991 = vpack.c.bf16 %v2640, %v2637
        %v2992 = vpack.c.bf16 %v2648, %v2645
        %v2993 = vpack.c.bf16 %v2656, %v2653
        %v2994 = vpack.c.bf16 %v2709, %v2706
        %v2995 = vpack.c.bf16 %v2717, %v2714
        %v2996 = vpack.c.bf16 %v2725, %v2722
        %v2997 = vpack.c.bf16 %v2733, %v2730
        %v2998 = vpack.c.bf16 %v2741, %v2738
        %v2999 = vpack.c.bf16 %v2749, %v2746
        %v3000 = vpack.c.bf16 %v2757, %v2754
        %v3001 = vpack.c.bf16 %v2765, %v2762
        %v3002 = vpack.c.bf16 %v2818, %v2815
        %v3003 = vpack.c.bf16 %v2826, %v2823
        %v3004 = vpack.c.bf16 %v2834, %v2831
        %v3005 = vpack.c.bf16 %v2842, %v2839
        %v3006 = vpack.c.bf16 %v2850, %v2847
        %v3007 = vpack.c.bf16 %v2858, %v2855
        %v3008 = vpack.c.bf16 %v2866, %v2863
        %v3009 = vpack.c.bf16 %v2874, %v2871
        %v3010 = vpack.c.bf16 %v2927, %v2924
        %v3011 = vpack.c.bf16 %v2935, %v2932
        %v3012 = vpack.c.bf16 %v2943, %v2940
        %v3013 = vpack.c.bf16 %v2951, %v2948
        %v3014 = vpack.c.bf16 %v2959, %v2956
        %v3015 = vpack.c.bf16 %v2967, %v2964
        %v3016 = vpack.c.bf16 %v2975, %v2972
        %v3017 = vpack.c.bf16 %v2983, %v2980
        %s3018 = scalar_lea.vmem [#allocation8], 128
        %v3019 = vld [vmem:[%s3018] sm:$0xf]
        %v3020 = vld [vmem:[%s3018 + $0x4] sm:$0xf]
        %v3021 = vld [vmem:[%s3018 + $0x8] sm:$0xf]
        %v3022 = vld [vmem:[%s3018 + $0xc] sm:$0xf]
        %v3023 = vld [vmem:[%s3018 + $0x10] sm:$0xf]
        %v3024 = vld [vmem:[%s3018 + $0x14] sm:$0xf]
        %v3025 = vld [vmem:[%s3018 + $0x18] sm:$0xf]
        %v3026 = vld [vmem:[%s3018 + $0x1c] sm:$0xf]
        %v3027 = vld [vmem:[%s3018 + $0x20] sm:$0xf]
        %v3028 = vld [vmem:[%s3018 + $0x24] sm:$0xf]
        %v3029 = vld [vmem:[%s3018 + $0x28] sm:$0xf]
        %v3030 = vld [vmem:[%s3018 + $0x2c] sm:$0xf]
        %v3031 = vld [vmem:[%s3018 + $0x30] sm:$0xf]
        %v3032 = vld [vmem:[%s3018 + $0x34] sm:$0xf]
        %v3033 = vld [vmem:[%s3018 + $0x38] sm:$0xf]
        %v3034 = vld [vmem:[%s3018 + $0x3c] sm:$0xf]
        %v3039 = vunpack.c.l.b16 %v3019
        %v3040 = vunpack.c.l.b16 %v3020
        %v3041 = vunpack.c.l.b16 %v3021
        %v3042 = vunpack.c.l.b16 %v3022
        %v3043 = vpack.c.b16 %v3040, %v3039
        %v3044 = vpack.c.b16 %v3042, %v3041
        %3047 = vmatprep.subr.bf16.mxu0 0
        %3048 = vmatpush1.bf16.xpose.msra.mxu0 %v3043
        %3049 = vmatprep.subr.bf16.mxu0 0
        %3050 = vmatpush1.bf16.xpose.msra.mxu0 %v3044
        %3051 = vmatprep.subr.bf16.mxu0 0
        %3052 = vmatpush1.bf16.xpose.msra.mxu0 0
        %3053 = vmatprep.subr.bf16.mxu0 0
        %3054 = vmatpush1.bf16.xpose.msra.mxu0 0
        %3055 = vmatprep.subr.bf16.mxu0 0
        %3056 = vmatpush1.bf16.xpose.msra.mxu0 0
        %3057 = vmatprep.subr.bf16.mxu0 0
        %3058 = vmatpush1.bf16.xpose.msra.mxu0 0
        %3059 = vmatprep.subr.bf16.mxu0 0
        %3060 = vmatpush1.bf16.xpose.msra.mxu0 0
        %3061 = vmatprep.subr.bf16.mxu0 0
        %3062 = vmatpush1.bf16.xpose.msra.mxu0 0
        %3063 = vmatprep.subr.bf16.mxu0 0
        %3064 = vmatpush1.bf16.xpose.msra.mxu0 0
        %3065 = vmatprep.subr.bf16.mxu0 0
        %3066 = vmatpush1.bf16.xpose.msra.mxu0 0
        %3067 = vmatprep.subr.bf16.mxu0 0
        %3068 = vmatpush1.bf16.xpose.msra.mxu0 0
        %3069 = vmatprep.subr.bf16.mxu0 0
        %3070 = vmatpush1.bf16.xpose.msra.mxu0 0
        %3071 = vmatprep.subr.bf16.mxu0 0
        %3072 = vmatpush1.bf16.xpose.msra.mxu0 0
        %3073 = vmatprep.subr.bf16.mxu0 0
        %3074 = vmatpush1.bf16.xpose.msra.mxu0 0
        %3075 = vmatprep.subr.bf16.mxu0 0
        %3076 = vmatpush1.bf16.xpose.msra.mxu0 0
        %3077 = vmatprep.subr.bf16.mxu0 0
        %3078 = vmatpush1.bf16.xpose.msra.mxu0 0
        %3079 = vmatprep.mubr.bf16.mxu0 0
        %3080 = vmatmul.mubr.bf16.gmra.mrb[0].mxu0 %v2049
        %v3081 = vpop.f32.mrb[0].mxu0
        %v3082 = vadd.f32 0.0, %v3081
        %v3083 = vpop.f32.mrb[0].mxu0
        %v3084 = vpop.f32.mrb[0].mxu0
        %v3085 = vadd.f32 0.0, %v3084
        %v3086 = vpop.f32.mrb[0].mxu0
        %3087 = vmatprep.mubr.bf16.mxu0 0
        %3088 = vmatmul.mubr.bf16.gmra.mrb[0].mxu0 %v2050
        %v3089 = vpop.f32.mrb[0].mxu0
        %v3090 = vadd.f32 0.0, %v3089
        %v3091 = vpop.f32.mrb[0].mxu0
        %v3092 = vpop.f32.mrb[0].mxu0
        %v3093 = vadd.f32 0.0, %v3092
        %v3094 = vpop.f32.mrb[0].mxu0
        %3095 = vmatprep.mubr.bf16.mxu0 0
        %3096 = vmatmul.mubr.bf16.gmra.mrb[0].mxu0 %v2051
        %v3097 = vpop.f32.mrb[0].mxu0
        %v3098 = vadd.f32 0.0, %v3097
        %v3099 = vpop.f32.mrb[0].mxu0
        %v3100 = vpop.f32.mrb[0].mxu0
        %v3101 = vadd.f32 0.0, %v3100
        %v3102 = vpop.f32.mrb[0].mxu0
        %3103 = vmatprep.mubr.bf16.mxu0 0
        %3104 = vmatmul.mubr.bf16.gmra.mrb[0].mxu0 %v2052
        %v3105 = vpop.f32.mrb[0].mxu0
        %v3106 = vadd.f32 0.0, %v3105
        %v3107 = vpop.f32.mrb[0].mxu0
        %v3108 = vpop.f32.mrb[0].mxu0
        %v3109 = vadd.f32 0.0, %v3108
        %v3110 = vpop.f32.mrb[0].mxu0
        %3111 = vmatprep.mubr.bf16.mxu0 0
        %3112 = vmatmul.mubr.bf16.gmra.mrb[0].mxu0 %v2053
        %v3113 = vpop.f32.mrb[0].mxu0
        %v3114 = vadd.f32 0.0, %v3113
        %v3115 = vpop.f32.mrb[0].mxu0
        %v3116 = vpop.f32.mrb[0].mxu0
        %v3117 = vadd.f32 0.0, %v3116
        %v3118 = vpop.f32.mrb[0].mxu0
        %3119 = vmatprep.mubr.bf16.mxu0 0
        %3120 = vmatmul.mubr.bf16.gmra.mrb[0].mxu0 %v2054
        %v3121 = vpop.f32.mrb[0].mxu0
        %v3122 = vadd.f32 0.0, %v3121
        %v3123 = vpop.f32.mrb[0].mxu0
        %v3124 = vpop.f32.mrb[0].mxu0
        %v3125 = vadd.f32 0.0, %v3124
        %v3126 = vpop.f32.mrb[0].mxu0
        %3127 = vmatprep.mubr.bf16.mxu0 0
        %3128 = vmatmul.mubr.bf16.gmra.mrb[0].mxu0 %v2055
        %v3129 = vpop.f32.mrb[0].mxu0
        %v3130 = vadd.f32 0.0, %v3129
        %v3131 = vpop.f32.mrb[0].mxu0
        %v3132 = vpop.f32.mrb[0].mxu0
        %v3133 = vadd.f32 0.0, %v3132
        %v3134 = vpop.f32.mrb[0].mxu0
        %3135 = vmatprep.mubr.bf16.mxu0 0
        %3136 = vmatmul.mubr.bf16.gmra.mrb[0].mxu0 %v2056
        %v3137 = vpop.f32.mrb[0].mxu0
        %v3138 = vadd.f32 0.0, %v3137
        %v3139 = vpop.f32.mrb[0].mxu0
        %v3140 = vpop.f32.mrb[0].mxu0
        %v3141 = vadd.f32 0.0, %v3140
        %v3142 = vpop.f32.mrb[0].mxu0
        %3143 = vdwg.mxu0
        %v3148 = vunpack.c.l.b16 %v3023
        %v3149 = vunpack.c.l.b16 %v3024
        %v3150 = vunpack.c.l.b16 %v3025
        %v3151 = vunpack.c.l.b16 %v3026
        %v3152 = vpack.c.b16 %v3149, %v3148
        %v3153 = vpack.c.b16 %v3151, %v3150
        %3156 = vmatprep.subr.bf16.mxu0 0
        %3157 = vmatpush1.bf16.xpose.msra.mxu0 %v3152
        %3158 = vmatprep.subr.bf16.mxu0 0
        %3159 = vmatpush1.bf16.xpose.msra.mxu0 %v3153
        %3160 = vmatprep.subr.bf16.mxu0 0
        %3161 = vmatpush1.bf16.xpose.msra.mxu0 0
        %3162 = vmatprep.subr.bf16.mxu0 0
        %3163 = vmatpush1.bf16.xpose.msra.mxu0 0
        %3164 = vmatprep.subr.bf16.mxu0 0
        %3165 = vmatpush1.bf16.xpose.msra.mxu0 0
        %3166 = vmatprep.subr.bf16.mxu0 0
        %3167 = vmatpush1.bf16.xpose.msra.mxu0 0
        %3168 = vmatprep.subr.bf16.mxu0 0
        %3169 = vmatpush1.bf16.xpose.msra.mxu0 0
        %3170 = vmatprep.subr.bf16.mxu0 0
        %3171 = vmatpush1.bf16.xpose.msra.mxu0 0
        %3172 = vmatprep.subr.bf16.mxu0 0
        %3173 = vmatpush1.bf16.xpose.msra.mxu0 0
        %3174 = vmatprep.subr.bf16.mxu0 0
        %3175 = vmatpush1.bf16.xpose.msra.mxu0 0
        %3176 = vmatprep.subr.bf16.mxu0 0
        %3177 = vmatpush1.bf16.xpose.msra.mxu0 0
        %3178 = vmatprep.subr.bf16.mxu0 0
        %3179 = vmatpush1.bf16.xpose.msra.mxu0 0
        %3180 = vmatprep.subr.bf16.mxu0 0
        %3181 = vmatpush1.bf16.xpose.msra.mxu0 0
        %3182 = vmatprep.subr.bf16.mxu0 0
        %3183 = vmatpush1.bf16.xpose.msra.mxu0 0
        %3184 = vmatprep.subr.bf16.mxu0 0
        %3185 = vmatpush1.bf16.xpose.msra.mxu0 0
        %3186 = vmatprep.subr.bf16.mxu0 0
        %3187 = vmatpush1.bf16.xpose.msra.mxu0 0
        %3188 = vmatprep.mubr.bf16.mxu0 0
        %3189 = vmatmul.mubr.bf16.gmra.mrb[0].mxu0 %v2049
        %v3190 = vpop.f32.mrb[0].mxu0
        %v3191 = vadd.f32 0.0, %v3190
        %v3192 = vpop.f32.mrb[0].mxu0
        %v3193 = vpop.f32.mrb[0].mxu0
        %v3194 = vadd.f32 0.0, %v3193
        %v3195 = vpop.f32.mrb[0].mxu0
        %3196 = vmatprep.mubr.bf16.mxu0 0
        %3197 = vmatmul.mubr.bf16.gmra.mrb[0].mxu0 %v2050
        %v3198 = vpop.f32.mrb[0].mxu0
        %v3199 = vadd.f32 0.0, %v3198
        %v3200 = vpop.f32.mrb[0].mxu0
        %v3201 = vpop.f32.mrb[0].mxu0
        %v3202 = vadd.f32 0.0, %v3201
        %v3203 = vpop.f32.mrb[0].mxu0
        %3204 = vmatprep.mubr.bf16.mxu0 0
        %3205 = vmatmul.mubr.bf16.gmra.mrb[0].mxu0 %v2051
        %v3206 = vpop.f32.mrb[0].mxu0
        %v3207 = vadd.f32 0.0, %v3206
        %v3208 = vpop.f32.mrb[0].mxu0
        %v3209 = vpop.f32.mrb[0].mxu0
        %v3210 = vadd.f32 0.0, %v3209
        %v3211 = vpop.f32.mrb[0].mxu0
        %3212 = vmatprep.mubr.bf16.mxu0 0
        %3213 = vmatmul.mubr.bf16.gmra.mrb[0].mxu0 %v2052
        %v3214 = vpop.f32.mrb[0].mxu0
        %v3215 = vadd.f32 0.0, %v3214
        %v3216 = vpop.f32.mrb[0].mxu0
        %v3217 = vpop.f32.mrb[0].mxu0
        %v3218 = vadd.f32 0.0, %v3217
        %v3219 = vpop.f32.mrb[0].mxu0
        %3220 = vmatprep.mubr.bf16.mxu0 0
        %3221 = vmatmul.mubr.bf16.gmra.mrb[0].mxu0 %v2053
        %v3222 = vpop.f32.mrb[0].mxu0
        %v3223 = vadd.f32 0.0, %v3222
        %v3224 = vpop.f32.mrb[0].mxu0
        %v3225 = vpop.f32.mrb[0].mxu0
        %v3226 = vadd.f32 0.0, %v3225
        %v3227 = vpop.f32.mrb[0].mxu0
        %3228 = vmatprep.mubr.bf16.mxu0 0
        %3229 = vmatmul.mubr.bf16.gmra.mrb[0].mxu0 %v2054
        %v3230 = vpop.f32.mrb[0].mxu0
        %v3231 = vadd.f32 0.0, %v3230
        %v3232 = vpop.f32.mrb[0].mxu0
        %v3233 = vpop.f32.mrb[0].mxu0
        %v3234 = vadd.f32 0.0, %v3233
        %v3235 = vpop.f32.mrb[0].mxu0
        %3236 = vmatprep.mubr.bf16.mxu0 0
        %3237 = vmatmul.mubr.bf16.gmra.mrb[0].mxu0 %v2055
        %v3238 = vpop.f32.mrb[0].mxu0
        %v3239 = vadd.f32 0.0, %v3238
        %v3240 = vpop.f32.mrb[0].mxu0
        %v3241 = vpop.f32.mrb[0].mxu0
        %v3242 = vadd.f32 0.0, %v3241
        %v3243 = vpop.f32.mrb[0].mxu0
        %3244 = vmatprep.mubr.bf16.mxu0 0
        %3245 = vmatmul.mubr.bf16.gmra.mrb[0].mxu0 %v2056
        %v3246 = vpop.f32.mrb[0].mxu0
        %v3247 = vadd.f32 0.0, %v3246
        %v3248 = vpop.f32.mrb[0].mxu0
        %v3249 = vpop.f32.mrb[0].mxu0
        %v3250 = vadd.f32 0.0, %v3249
        %v3251 = vpop.f32.mrb[0].mxu0
        %3252 = vdwg.mxu0
        %v3257 = vunpack.c.l.b16 %v3027
        %v3258 = vunpack.c.l.b16 %v3028
        %v3259 = vunpack.c.l.b16 %v3029
        %v3260 = vunpack.c.l.b16 %v3030
        %v3261 = vpack.c.b16 %v3258, %v3257
        %v3262 = vpack.c.b16 %v3260, %v3259
        %3265 = vmatprep.subr.bf16.mxu0 0
        %3266 = vmatpush1.bf16.xpose.msra.mxu0 %v3261
        %3267 = vmatprep.subr.bf16.mxu0 0
        %3268 = vmatpush1.bf16.xpose.msra.mxu0 %v3262
        %3269 = vmatprep.subr.bf16.mxu0 0
        %3270 = vmatpush1.bf16.xpose.msra.mxu0 0
        %3271 = vmatprep.subr.bf16.mxu0 0
        %3272 = vmatpush1.bf16.xpose.msra.mxu0 0
        %3273 = vmatprep.subr.bf16.mxu0 0
        %3274 = vmatpush1.bf16.xpose.msra.mxu0 0
        %3275 = vmatprep.subr.bf16.mxu0 0
        %3276 = vmatpush1.bf16.xpose.msra.mxu0 0
        %3277 = vmatprep.subr.bf16.mxu0 0
        %3278 = vmatpush1.bf16.xpose.msra.mxu0 0
        %3279 = vmatprep.subr.bf16.mxu0 0
        %3280 = vmatpush1.bf16.xpose.msra.mxu0 0
        %3281 = vmatprep.subr.bf16.mxu0 0
        %3282 = vmatpush1.bf16.xpose.msra.mxu0 0
        %3283 = vmatprep.subr.bf16.mxu0 0
        %3284 = vmatpush1.bf16.xpose.msra.mxu0 0
        %3285 = vmatprep.subr.bf16.mxu0 0
        %3286 = vmatpush1.bf16.xpose.msra.mxu0 0
        %3287 = vmatprep.subr.bf16.mxu0 0
        %3288 = vmatpush1.bf16.xpose.msra.mxu0 0
        %3289 = vmatprep.subr.bf16.mxu0 0
        %3290 = vmatpush1.bf16.xpose.msra.mxu0 0
        %3291 = vmatprep.subr.bf16.mxu0 0
        %3292 = vmatpush1.bf16.xpose.msra.mxu0 0
        %3293 = vmatprep.subr.bf16.mxu0 0
        %3294 = vmatpush1.bf16.xpose.msra.mxu0 0
        %3295 = vmatprep.subr.bf16.mxu0 0
        %3296 = vmatpush1.bf16.xpose.msra.mxu0 0
        %3297 = vmatprep.mubr.bf16.mxu0 0
        %3298 = vmatmul.mubr.bf16.gmra.mrb[0].mxu0 %v2049
        %v3299 = vpop.f32.mrb[0].mxu0
        %v3300 = vadd.f32 0.0, %v3299
        %v3301 = vpop.f32.mrb[0].mxu0
        %v3302 = vpop.f32.mrb[0].mxu0
        %v3303 = vadd.f32 0.0, %v3302
        %v3304 = vpop.f32.mrb[0].mxu0
        %3305 = vmatprep.mubr.bf16.mxu0 0
        %3306 = vmatmul.mubr.bf16.gmra.mrb[0].mxu0 %v2050
        %v3307 = vpop.f32.mrb[0].mxu0
        %v3308 = vadd.f32 0.0, %v3307
        %v3309 = vpop.f32.mrb[0].mxu0
        %v3310 = vpop.f32.mrb[0].mxu0
        %v3311 = vadd.f32 0.0, %v3310
        %v3312 = vpop.f32.mrb[0].mxu0
        %3313 = vmatprep.mubr.bf16.mxu0 0
        %3314 = vmatmul.mubr.bf16.gmra.mrb[0].mxu0 %v2051
        %v3315 = vpop.f32.mrb[0].mxu0
        %v3316 = vadd.f32 0.0, %v3315
        %v3317 = vpop.f32.mrb[0].mxu0
        %v3318 = vpop.f32.mrb[0].mxu0
        %v3319 = vadd.f32 0.0, %v3318
        %v3320 = vpop.f32.mrb[0].mxu0
        %3321 = vmatprep.mubr.bf16.mxu0 0
        %3322 = vmatmul.mubr.bf16.gmra.mrb[0].mxu0 %v2052
        %v3323 = vpop.f32.mrb[0].mxu0
        %v3324 = vadd.f32 0.0, %v3323
        %v3325 = vpop.f32.mrb[0].mxu0
        %v3326 = vpop.f32.mrb[0].mxu0
        %v3327 = vadd.f32 0.0, %v3326
        %v3328 = vpop.f32.mrb[0].mxu0
        %3329 = vmatprep.mubr.bf16.mxu0 0
        %3330 = vmatmul.mubr.bf16.gmra.mrb[0].mxu0 %v2053
        %v3331 = vpop.f32.mrb[0].mxu0
        %v3332 = vadd.f32 0.0, %v3331
        %v3333 = vpop.f32.mrb[0].mxu0
        %v3334 = vpop.f32.mrb[0].mxu0
        %v3335 = vadd.f32 0.0, %v3334
        %v3336 = vpop.f32.mrb[0].mxu0
        %3337 = vmatprep.mubr.bf16.mxu0 0
        %3338 = vmatmul.mubr.bf16.gmra.mrb[0].mxu0 %v2054
        %v3339 = vpop.f32.mrb[0].mxu0
        %v3340 = vadd.f32 0.0, %v3339
        %v3341 = vpop.f32.mrb[0].mxu0
        %v3342 = vpop.f32.mrb[0].mxu0
        %v3343 = vadd.f32 0.0, %v3342
        %v3344 = vpop.f32.mrb[0].mxu0
        %3345 = vmatprep.mubr.bf16.mxu0 0
        %3346 = vmatmul.mubr.bf16.gmra.mrb[0].mxu0 %v2055
        %v3347 = vpop.f32.mrb[0].mxu0
        %v3348 = vadd.f32 0.0, %v3347
        %v3349 = vpop.f32.mrb[0].mxu0
        %v3350 = vpop.f32.mrb[0].mxu0
        %v3351 = vadd.f32 0.0, %v3350
        %v3352 = vpop.f32.mrb[0].mxu0
        %3353 = vmatprep.mubr.bf16.mxu0 0
        %3354 = vmatmul.mubr.bf16.gmra.mrb[0].mxu0 %v2056
        %v3355 = vpop.f32.mrb[0].mxu0
        %v3356 = vadd.f32 0.0, %v3355
        %v3357 = vpop.f32.mrb[0].mxu0
        %v3358 = vpop.f32.mrb[0].mxu0
        %v3359 = vadd.f32 0.0, %v3358
        %v3360 = vpop.f32.mrb[0].mxu0
        %3361 = vdwg.mxu0
        %v3366 = vunpack.c.l.b16 %v3031
        %v3367 = vunpack.c.l.b16 %v3032
        %v3368 = vunpack.c.l.b16 %v3033
        %v3369 = vunpack.c.l.b16 %v3034
        %v3370 = vpack.c.b16 %v3367, %v3366
        %v3371 = vpack.c.b16 %v3369, %v3368
        %3374 = vmatprep.subr.bf16.mxu0 0
        %3375 = vmatpush1.bf16.xpose.msra.mxu0 %v3370
        %3376 = vmatprep.subr.bf16.mxu0 0
        %3377 = vmatpush1.bf16.xpose.msra.mxu0 %v3371
        %3378 = vmatprep.subr.bf16.mxu0 0
        %3379 = vmatpush1.bf16.xpose.msra.mxu0 0
        %3380 = vmatprep.subr.bf16.mxu0 0
        %3381 = vmatpush1.bf16.xpose.msra.mxu0 0
        %3382 = vmatprep.subr.bf16.mxu0 0
        %3383 = vmatpush1.bf16.xpose.msra.mxu0 0
        %3384 = vmatprep.subr.bf16.mxu0 0
        %3385 = vmatpush1.bf16.xpose.msra.mxu0 0
        %3386 = vmatprep.subr.bf16.mxu0 0
        %3387 = vmatpush1.bf16.xpose.msra.mxu0 0
        %3388 = vmatprep.subr.bf16.mxu0 0
        %3389 = vmatpush1.bf16.xpose.msra.mxu0 0
        %3390 = vmatprep.subr.bf16.mxu0 0
        %3391 = vmatpush1.bf16.xpose.msra.mxu0 0
        %3392 = vmatprep.subr.bf16.mxu0 0
        %3393 = vmatpush1.bf16.xpose.msra.mxu0 0
        %3394 = vmatprep.subr.bf16.mxu0 0
        %3395 = vmatpush1.bf16.xpose.msra.mxu0 0
        %3396 = vmatprep.subr.bf16.mxu0 0
        %3397 = vmatpush1.bf16.xpose.msra.mxu0 0
        %3398 = vmatprep.subr.bf16.mxu0 0
        %3399 = vmatpush1.bf16.xpose.msra.mxu0 0
        %3400 = vmatprep.subr.bf16.mxu0 0
        %3401 = vmatpush1.bf16.xpose.msra.mxu0 0
        %3402 = vmatprep.subr.bf16.mxu0 0
        %3403 = vmatpush1.bf16.xpose.msra.mxu0 0
        %3404 = vmatprep.subr.bf16.mxu0 0
        %3405 = vmatpush1.bf16.xpose.msra.mxu0 0
        %3406 = vmatprep.mubr.bf16.mxu0 0
        %3407 = vmatmul.mubr.bf16.gmra.mrb[0].mxu0 %v2049
        %v3408 = vpop.f32.mrb[0].mxu0
        %v3409 = vadd.f32 0.0, %v3408
        %v3410 = vpop.f32.mrb[0].mxu0
        %v3411 = vpop.f32.mrb[0].mxu0
        %v3412 = vadd.f32 0.0, %v3411
        %v3413 = vpop.f32.mrb[0].mxu0
        %3414 = vmatprep.mubr.bf16.mxu0 0
        %3415 = vmatmul.mubr.bf16.gmra.mrb[0].mxu0 %v2050
        %v3416 = vpop.f32.mrb[0].mxu0
        %v3417 = vadd.f32 0.0, %v3416
        %v3418 = vpop.f32.mrb[0].mxu0
        %v3419 = vpop.f32.mrb[0].mxu0
        %v3420 = vadd.f32 0.0, %v3419
        %v3421 = vpop.f32.mrb[0].mxu0
        %3422 = vmatprep.mubr.bf16.mxu0 0
        %3423 = vmatmul.mubr.bf16.gmra.mrb[0].mxu0 %v2051
        %v3424 = vpop.f32.mrb[0].mxu0
        %v3425 = vadd.f32 0.0, %v3424
        %v3426 = vpop.f32.mrb[0].mxu0
        %v3427 = vpop.f32.mrb[0].mxu0
        %v3428 = vadd.f32 0.0, %v3427
        %v3429 = vpop.f32.mrb[0].mxu0
        %3430 = vmatprep.mubr.bf16.mxu0 0
        %3431 = vmatmul.mubr.bf16.gmra.mrb[0].mxu0 %v2052
        %v3432 = vpop.f32.mrb[0].mxu0
        %v3433 = vadd.f32 0.0, %v3432
        %v3434 = vpop.f32.mrb[0].mxu0
        %v3435 = vpop.f32.mrb[0].mxu0
        %v3436 = vadd.f32 0.0, %v3435
        %v3437 = vpop.f32.mrb[0].mxu0
        %3438 = vmatprep.mubr.bf16.mxu0 0
        %3439 = vmatmul.mubr.bf16.gmra.mrb[0].mxu0 %v2053
        %v3440 = vpop.f32.mrb[0].mxu0
        %v3441 = vadd.f32 0.0, %v3440
        %v3442 = vpop.f32.mrb[0].mxu0
        %v3443 = vpop.f32.mrb[0].mxu0
        %v3444 = vadd.f32 0.0, %v3443
        %v3445 = vpop.f32.mrb[0].mxu0
        %3446 = vmatprep.mubr.bf16.mxu0 0
        %3447 = vmatmul.mubr.bf16.gmra.mrb[0].mxu0 %v2054
        %v3448 = vpop.f32.mrb[0].mxu0
        %v3449 = vadd.f32 0.0, %v3448
        %v3450 = vpop.f32.mrb[0].mxu0
        %v3451 = vpop.f32.mrb[0].mxu0
        %v3452 = vadd.f32 0.0, %v3451
        %v3453 = vpop.f32.mrb[0].mxu0
        %3454 = vmatprep.mubr.bf16.mxu0 0
        %3455 = vmatmul.mubr.bf16.gmra.mrb[0].mxu0 %v2055
        %v3456 = vpop.f32.mrb[0].mxu0
        %v3457 = vadd.f32 0.0, %v3456
        %v3458 = vpop.f32.mrb[0].mxu0
        %v3459 = vpop.f32.mrb[0].mxu0
        %v3460 = vadd.f32 0.0, %v3459
        %v3461 = vpop.f32.mrb[0].mxu0
        %3462 = vmatprep.mubr.bf16.mxu0 0
        %3463 = vmatmul.mubr.bf16.gmra.mrb[0].mxu0 %v2056
        %v3464 = vpop.f32.mrb[0].mxu0
        %v3465 = vadd.f32 0.0, %v3464
        %v3466 = vpop.f32.mrb[0].mxu0
        %v3467 = vpop.f32.mrb[0].mxu0
        %v3468 = vadd.f32 0.0, %v3467
        %v3469 = vpop.f32.mrb[0].mxu0
        %3470 = vdwg.mxu0
        %v3471 = vpack.c.bf16 %v3085, %v3082
        %v3472 = vpack.c.bf16 %v3093, %v3090
        %v3473 = vpack.c.bf16 %v3101, %v3098
        %v3474 = vpack.c.bf16 %v3109, %v3106
        %v3475 = vpack.c.bf16 %v3117, %v3114
        %v3476 = vpack.c.bf16 %v3125, %v3122
        %v3477 = vpack.c.bf16 %v3133, %v3130
        %v3478 = vpack.c.bf16 %v3141, %v3138
        %v3479 = vpack.c.bf16 %v3194, %v3191
        %v3480 = vpack.c.bf16 %v3202, %v3199
        %v3481 = vpack.c.bf16 %v3210, %v3207
        %v3482 = vpack.c.bf16 %v3218, %v3215
        %v3483 = vpack.c.bf16 %v3226, %v3223
        %v3484 = vpack.c.bf16 %v3234, %v3231
        %v3485 = vpack.c.bf16 %v3242, %v3239
        %v3486 = vpack.c.bf16 %v3250, %v3247
        %v3487 = vpack.c.bf16 %v3303, %v3300
        %v3488 = vpack.c.bf16 %v3311, %v3308
        %v3489 = vpack.c.bf16 %v3319, %v3316
        %v3490 = vpack.c.bf16 %v3327, %v3324
        %v3491 = vpack.c.bf16 %v3335, %v3332
        %v3492 = vpack.c.bf16 %v3343, %v3340
        %v3493 = vpack.c.bf16 %v3351, %v3348
        %v3494 = vpack.c.bf16 %v3359, %v3356
        %v3495 = vpack.c.bf16 %v3412, %v3409
        %v3496 = vpack.c.bf16 %v3420, %v3417
        %v3497 = vpack.c.bf16 %v3428, %v3425
        %v3498 = vpack.c.bf16 %v3436, %v3433
        %v3499 = vpack.c.bf16 %v3444, %v3441
        %v3500 = vpack.c.bf16 %v3452, %v3449
        %v3501 = vpack.c.bf16 %v3460, %v3457
        %v3502 = vpack.c.bf16 %v3468, %v3465
        %vm3503 = vcmask 261120
        %v3505 = vsel %vm3503, %v999, 0
        %v3508 = vsel %vm3503, %v1000, 0
        %v3511 = vsel %vm3503, %v1001, 0
        %v3514 = vsel %vm3503, %v1002, 0
        %v3517 = vsel %vm3503, %v2986, 0
        %v3520 = vsel %vm3503, %v2987, 0
        %v3523 = vsel %vm3503, %v2988, 0
        %v3526 = vsel %vm3503, %v2989, 0
        %3528 = vmatprep.subr.bf16.mxu0 0
        %3529 = vmatpush1.bf16.xpose.msra.mxu0 %v3517
        %3530 = vmatprep.subr.bf16.mxu0 0
        %3531 = vmatpush1.bf16.xpose.msra.mxu0 %v3520
        %3532 = vmatprep.subr.bf16.mxu0 0
        %3533 = vmatpush1.bf16.xpose.msra.mxu0 %v3523
        %3534 = vmatprep.subr.bf16.mxu0 0
        %3535 = vmatpush1.bf16.xpose.msra.mxu0 %v3526
        %3536 = vmatprep.subr.bf16.mxu0 0
        %3537 = vmatpush1.bf16.xpose.msra.mxu0 0
        %3538 = vmatprep.subr.bf16.mxu0 0
        %3539 = vmatpush1.bf16.xpose.msra.mxu0 0
        %3540 = vmatprep.subr.bf16.mxu0 0
        %3541 = vmatpush1.bf16.xpose.msra.mxu0 0
        %3542 = vmatprep.subr.bf16.mxu0 0
        %3543 = vmatpush1.bf16.xpose.msra.mxu0 0
        %3544 = vmatprep.subr.bf16.mxu0 0
        %3545 = vmatpush1.bf16.xpose.msra.mxu0 0
        %3546 = vmatprep.subr.bf16.mxu0 0
        %3547 = vmatpush1.bf16.xpose.msra.mxu0 0
        %3548 = vmatprep.subr.bf16.mxu0 0
        %3549 = vmatpush1.bf16.xpose.msra.mxu0 0
        %3550 = vmatprep.subr.bf16.mxu0 0
        %3551 = vmatpush1.bf16.xpose.msra.mxu0 0
        %3552 = vmatprep.subr.bf16.mxu0 0
        %3553 = vmatpush1.bf16.xpose.msra.mxu0 0
        %3554 = vmatprep.subr.bf16.mxu0 0
        %3555 = vmatpush1.bf16.xpose.msra.mxu0 0
        %3556 = vmatprep.subr.bf16.mxu0 0
        %3557 = vmatpush1.bf16.xpose.msra.mxu0 0
        %3558 = vmatprep.subr.bf16.mxu0 0
        %3559 = vmatpush1.bf16.xpose.msra.mxu0 0
        %3560 = vmatprep.mubr.bf16.mxu0 0
        %3561 = vmatmul.mubr.bf16.gmra.mrb[0].mxu0 %v3505
        %v3562 = vpop.f32.mrb[0].mxu0
        %v3563 = vadd.f32 0.0, %v3562
        %v3564 = vpop.f32.mrb[0].mxu0
        %v3565 = vpop.f32.mrb[0].mxu0
        %v3566 = vadd.f32 0.0, %v3565
        %v3567 = vpop.f32.mrb[0].mxu0
        %3568 = vmatprep.mubr.bf16.mxu0 0
        %3569 = vmatmul.mubr.bf16.gmra.mrb[0].mxu0 %v3508
        %v3570 = vpop.f32.mrb[0].mxu0
        %v3571 = vadd.f32 0.0, %v3570
        %v3572 = vpop.f32.mrb[0].mxu0
        %v3573 = vpop.f32.mrb[0].mxu0
        %v3574 = vadd.f32 0.0, %v3573
        %v3575 = vpop.f32.mrb[0].mxu0
        %3576 = vmatprep.mubr.bf16.mxu0 0
        %3577 = vmatmul.mubr.bf16.gmra.mrb[0].mxu0 %v3511
        %v3578 = vpop.f32.mrb[0].mxu0
        %v3579 = vadd.f32 0.0, %v3578
        %v3580 = vpop.f32.mrb[0].mxu0
        %v3581 = vpop.f32.mrb[0].mxu0
        %v3582 = vadd.f32 0.0, %v3581
        %v3583 = vpop.f32.mrb[0].mxu0
        %3584 = vmatprep.mubr.bf16.mxu0 0
        %3585 = vmatmul.mubr.bf16.gmra.mrb[0].mxu0 %v3514
        %v3586 = vpop.f32.mrb[0].mxu0
        %v3587 = vadd.f32 0.0, %v3586
        %v3588 = vpop.f32.mrb[0].mxu0
        %v3589 = vpop.f32.mrb[0].mxu0
        %v3590 = vadd.f32 0.0, %v3589
        %v3591 = vpop.f32.mrb[0].mxu0
        %3592 = vdwg.mxu0
        %v3594 = vsel %vm3503, %v1003, 0
        %v3597 = vsel %vm3503, %v1004, 0
        %v3600 = vsel %vm3503, %v1005, 0
        %v3603 = vsel %vm3503, %v1006, 0
        %v3606 = vsel %vm3503, %v2990, 0
        %v3609 = vsel %vm3503, %v2991, 0
        %v3612 = vsel %vm3503, %v2992, 0
        %v3615 = vsel %vm3503, %v2993, 0
        %3617 = vmatprep.subr.bf16.mxu0 0
        %3618 = vmatpush1.bf16.xpose.msra.mxu0 %v3606
        %3619 = vmatprep.subr.bf16.mxu0 0
        %3620 = vmatpush1.bf16.xpose.msra.mxu0 %v3609
        %3621 = vmatprep.subr.bf16.mxu0 0
        %3622 = vmatpush1.bf16.xpose.msra.mxu0 %v3612
        %3623 = vmatprep.subr.bf16.mxu0 0
        %3624 = vmatpush1.bf16.xpose.msra.mxu0 %v3615
        %3625 = vmatprep.subr.bf16.mxu0 0
        %3626 = vmatpush1.bf16.xpose.msra.mxu0 0
        %3627 = vmatprep.subr.bf16.mxu0 0
        %3628 = vmatpush1.bf16.xpose.msra.mxu0 0
        %3629 = vmatprep.subr.bf16.mxu0 0
        %3630 = vmatpush1.bf16.xpose.msra.mxu0 0
        %3631 = vmatprep.subr.bf16.mxu0 0
        %3632 = vmatpush1.bf16.xpose.msra.mxu0 0
        %3633 = vmatprep.subr.bf16.mxu0 0
        %3634 = vmatpush1.bf16.xpose.msra.mxu0 0
        %3635 = vmatprep.subr.bf16.mxu0 0
        %3636 = vmatpush1.bf16.xpose.msra.mxu0 0
        %3637 = vmatprep.subr.bf16.mxu0 0
        %3638 = vmatpush1.bf16.xpose.msra.mxu0 0
        %3639 = vmatprep.subr.bf16.mxu0 0
        %3640 = vmatpush1.bf16.xpose.msra.mxu0 0
        %3641 = vmatprep.subr.bf16.mxu0 0
        %3642 = vmatpush1.bf16.xpose.msra.mxu0 0
        %3643 = vmatprep.subr.bf16.mxu0 0
        %3644 = vmatpush1.bf16.xpose.msra.mxu0 0
        %3645 = vmatprep.subr.bf16.mxu0 0
        %3646 = vmatpush1.bf16.xpose.msra.mxu0 0
        %3647 = vmatprep.subr.bf16.mxu0 0
        %3648 = vmatpush1.bf16.xpose.msra.mxu0 0
        %3649 = vmatprep.mubr.bf16.mxu0 0
        %3650 = vmatmul.mubr.bf16.gmra.mrb[0].mxu0 %v3594
        %v3651 = vpop.f32.mrb[0].mxu0
        %v3652 = vadd.f32 0.0, %v3651
        %v3653 = vpop.f32.mrb[0].mxu0
        %v3654 = vpop.f32.mrb[0].mxu0
        %v3655 = vadd.f32 0.0, %v3654
        %v3656 = vpop.f32.mrb[0].mxu0
        %3657 = vmatprep.mubr.bf16.mxu0 0
        %3658 = vmatmul.mubr.bf16.gmra.mrb[0].mxu0 %v3597
        %v3659 = vpop.f32.mrb[0].mxu0
        %v3660 = vadd.f32 0.0, %v3659
        %v3661 = vpop.f32.mrb[0].mxu0
        %v3662 = vpop.f32.mrb[0].mxu0
        %v3663 = vadd.f32 0.0, %v3662
        %v3664 = vpop.f32.mrb[0].mxu0
        %3665 = vmatprep.mubr.bf16.mxu0 0
        %3666 = vmatmul.mubr.bf16.gmra.mrb[0].mxu0 %v3600
        %v3667 = vpop.f32.mrb[0].mxu0
        %v3668 = vadd.f32 0.0, %v3667
        %v3669 = vpop.f32.mrb[0].mxu0
        %v3670 = vpop.f32.mrb[0].mxu0
        %v3671 = vadd.f32 0.0, %v3670
        %v3672 = vpop.f32.mrb[0].mxu0
        %3673 = vmatprep.mubr.bf16.mxu0 0
        %3674 = vmatmul.mubr.bf16.gmra.mrb[0].mxu0 %v3603
        %v3675 = vpop.f32.mrb[0].mxu0
        %v3676 = vadd.f32 0.0, %v3675
        %v3677 = vpop.f32.mrb[0].mxu0
        %v3678 = vpop.f32.mrb[0].mxu0
        %v3679 = vadd.f32 0.0, %v3678
        %v3680 = vpop.f32.mrb[0].mxu0
        %3681 = vdwg.mxu0
        %v3683 = vsel %vm3503, %v1007, 0
        %v3686 = vsel %vm3503, %v1008, 0
        %v3689 = vsel %vm3503, %v1009, 0
        %v3692 = vsel %vm3503, %v1010, 0
        %v3695 = vsel %vm3503, %v2994, 0
        %v3698 = vsel %vm3503, %v2995, 0
        %v3701 = vsel %vm3503, %v2996, 0
        %v3704 = vsel %vm3503, %v2997, 0
        %3706 = vmatprep.subr.bf16.mxu0 0
        %3707 = vmatpush1.bf16.xpose.msra.mxu0 %v3695
        %3708 = vmatprep.subr.bf16.mxu0 0
        %3709 = vmatpush1.bf16.xpose.msra.mxu0 %v3698
        %3710 = vmatprep.subr.bf16.mxu0 0
        %3711 = vmatpush1.bf16.xpose.msra.mxu0 %v3701
        %3712 = vmatprep.subr.bf16.mxu0 0
        %3713 = vmatpush1.bf16.xpose.msra.mxu0 %v3704
        %3714 = vmatprep.subr.bf16.mxu0 0
        %3715 = vmatpush1.bf16.xpose.msra.mxu0 0
        %3716 = vmatprep.subr.bf16.mxu0 0
        %3717 = vmatpush1.bf16.xpose.msra.mxu0 0
        %3718 = vmatprep.subr.bf16.mxu0 0
        %3719 = vmatpush1.bf16.xpose.msra.mxu0 0
        %3720 = vmatprep.subr.bf16.mxu0 0
        %3721 = vmatpush1.bf16.xpose.msra.mxu0 0
        %3722 = vmatprep.subr.bf16.mxu0 0
        %3723 = vmatpush1.bf16.xpose.msra.mxu0 0
        %3724 = vmatprep.subr.bf16.mxu0 0
        %3725 = vmatpush1.bf16.xpose.msra.mxu0 0
        %3726 = vmatprep.subr.bf16.mxu0 0
        %3727 = vmatpush1.bf16.xpose.msra.mxu0 0
        %3728 = vmatprep.subr.bf16.mxu0 0
        %3729 = vmatpush1.bf16.xpose.msra.mxu0 0
        %3730 = vmatprep.subr.bf16.mxu0 0
        %3731 = vmatpush1.bf16.xpose.msra.mxu0 0
        %3732 = vmatprep.subr.bf16.mxu0 0
        %3733 = vmatpush1.bf16.xpose.msra.mxu0 0
        %3734 = vmatprep.subr.bf16.mxu0 0
        %3735 = vmatpush1.bf16.xpose.msra.mxu0 0
        %3736 = vmatprep.subr.bf16.mxu0 0
        %3737 = vmatpush1.bf16.xpose.msra.mxu0 0
        %3738 = vmatprep.mubr.bf16.mxu0 0
        %3739 = vmatmul.mubr.bf16.gmra.mrb[0].mxu0 %v3683
        %v3740 = vpop.f32.mrb[0].mxu0
        %v3741 = vadd.f32 0.0, %v3740
        %v3742 = vpop.f32.mrb[0].mxu0
        %v3743 = vpop.f32.mrb[0].mxu0
        %v3744 = vadd.f32 0.0, %v3743
        %v3745 = vpop.f32.mrb[0].mxu0
        %3746 = vmatprep.mubr.bf16.mxu0 0
        %3747 = vmatmul.mubr.bf16.gmra.mrb[0].mxu0 %v3686
        %v3748 = vpop.f32.mrb[0].mxu0
        %v3749 = vadd.f32 0.0, %v3748
        %v3750 = vpop.f32.mrb[0].mxu0
        %v3751 = vpop.f32.mrb[0].mxu0
        %v3752 = vadd.f32 0.0, %v3751
        %v3753 = vpop.f32.mrb[0].mxu0
        %3754 = vmatprep.mubr.bf16.mxu0 0
        %3755 = vmatmul.mubr.bf16.gmra.mrb[0].mxu0 %v3689
        %v3756 = vpop.f32.mrb[0].mxu0
        %v3757 = vadd.f32 0.0, %v3756
        %v3758 = vpop.f32.mrb[0].mxu0
        %v3759 = vpop.f32.mrb[0].mxu0
        %v3760 = vadd.f32 0.0, %v3759
        %v3761 = vpop.f32.mrb[0].mxu0
        %3762 = vmatprep.mubr.bf16.mxu0 0
        %3763 = vmatmul.mubr.bf16.gmra.mrb[0].mxu0 %v3692
        %v3764 = vpop.f32.mrb[0].mxu0
        %v3765 = vadd.f32 0.0, %v3764
        %v3766 = vpop.f32.mrb[0].mxu0
        %v3767 = vpop.f32.mrb[0].mxu0
        %v3768 = vadd.f32 0.0, %v3767
        %v3769 = vpop.f32.mrb[0].mxu0
        %3770 = vdwg.mxu0
        %v3772 = vsel %vm3503, %v1011, 0
        %v3775 = vsel %vm3503, %v1012, 0
        %v3778 = vsel %vm3503, %v1013, 0
        %v3781 = vsel %vm3503, %v1014, 0
        %v3784 = vsel %vm3503, %v2998, 0
        %v3787 = vsel %vm3503, %v2999, 0
        %v3790 = vsel %vm3503, %v3000, 0
        %v3793 = vsel %vm3503, %v3001, 0
        %3795 = vmatprep.subr.bf16.mxu0 0
        %3796 = vmatpush1.bf16.xpose.msra.mxu0 %v3784
        %3797 = vmatprep.subr.bf16.mxu0 0
        %3798 = vmatpush1.bf16.xpose.msra.mxu0 %v3787
        %3799 = vmatprep.subr.bf16.mxu0 0
        %3800 = vmatpush1.bf16.xpose.msra.mxu0 %v3790
        %3801 = vmatprep.subr.bf16.mxu0 0
        %3802 = vmatpush1.bf16.xpose.msra.mxu0 %v3793
        %3803 = vmatprep.subr.bf16.mxu0 0
        %3804 = vmatpush1.bf16.xpose.msra.mxu0 0
        %3805 = vmatprep.subr.bf16.mxu0 0
        %3806 = vmatpush1.bf16.xpose.msra.mxu0 0
        %3807 = vmatprep.subr.bf16.mxu0 0
        %3808 = vmatpush1.bf16.xpose.msra.mxu0 0
        %3809 = vmatprep.subr.bf16.mxu0 0
        %3810 = vmatpush1.bf16.xpose.msra.mxu0 0
        %3811 = vmatprep.subr.bf16.mxu0 0
        %3812 = vmatpush1.bf16.xpose.msra.mxu0 0
        %3813 = vmatprep.subr.bf16.mxu0 0
        %3814 = vmatpush1.bf16.xpose.msra.mxu0 0
        %3815 = vmatprep.subr.bf16.mxu0 0
        %3816 = vmatpush1.bf16.xpose.msra.mxu0 0
        %3817 = vmatprep.subr.bf16.mxu0 0
        %3818 = vmatpush1.bf16.xpose.msra.mxu0 0
        %3819 = vmatprep.subr.bf16.mxu0 0
        %3820 = vmatpush1.bf16.xpose.msra.mxu0 0
        %3821 = vmatprep.subr.bf16.mxu0 0
        %3822 = vmatpush1.bf16.xpose.msra.mxu0 0
        %3823 = vmatprep.subr.bf16.mxu0 0
        %3824 = vmatpush1.bf16.xpose.msra.mxu0 0
        %3825 = vmatprep.subr.bf16.mxu0 0
        %3826 = vmatpush1.bf16.xpose.msra.mxu0 0
        %3827 = vmatprep.mubr.bf16.mxu0 0
        %3828 = vmatmul.mubr.bf16.gmra.mrb[0].mxu0 %v3772
        %v3829 = vpop.f32.mrb[0].mxu0
        %v3830 = vadd.f32 0.0, %v3829
        %v3831 = vpop.f32.mrb[0].mxu0
        %v3832 = vpop.f32.mrb[0].mxu0
        %v3833 = vadd.f32 0.0, %v3832
        %v3834 = vpop.f32.mrb[0].mxu0
        %3835 = vmatprep.mubr.bf16.mxu0 0
        %3836 = vmatmul.mubr.bf16.gmra.mrb[0].mxu0 %v3775
        %v3837 = vpop.f32.mrb[0].mxu0
        %v3838 = vadd.f32 0.0, %v3837
        %v3839 = vpop.f32.mrb[0].mxu0
        %v3840 = vpop.f32.mrb[0].mxu0
        %v3841 = vadd.f32 0.0, %v3840
        %v3842 = vpop.f32.mrb[0].mxu0
        %3843 = vmatprep.mubr.bf16.mxu0 0
        %3844 = vmatmul.mubr.bf16.gmra.mrb[0].mxu0 %v3778
        %v3845 = vpop.f32.mrb[0].mxu0
        %v3846 = vadd.f32 0.0, %v3845
        %v3847 = vpop.f32.mrb[0].mxu0
        %v3848 = vpop.f32.mrb[0].mxu0
        %v3849 = vadd.f32 0.0, %v3848
        %v3850 = vpop.f32.mrb[0].mxu0
        %3851 = vmatprep.mubr.bf16.mxu0 0
        %3852 = vmatmul.mubr.bf16.gmra.mrb[0].mxu0 %v3781
        %v3853 = vpop.f32.mrb[0].mxu0
        %v3854 = vadd.f32 0.0, %v3853
        %v3855 = vpop.f32.mrb[0].mxu0
        %v3856 = vpop.f32.mrb[0].mxu0
        %v3857 = vadd.f32 0.0, %v3856
        %v3858 = vpop.f32.mrb[0].mxu0
        %3859 = vdwg.mxu0
        %v3861 = vsel %vm3503, %v1015, 0
        %v3864 = vsel %vm3503, %v1016, 0
        %v3867 = vsel %vm3503, %v1017, 0
        %v3870 = vsel %vm3503, %v1018, 0
        %v3873 = vsel %vm3503, %v3002, 0
        %v3876 = vsel %vm3503, %v3003, 0
        %v3879 = vsel %vm3503, %v3004, 0
        %v3882 = vsel %vm3503, %v3005, 0
        %3884 = vmatprep.subr.bf16.mxu0 0
        %3885 = vmatpush1.bf16.xpose.msra.mxu0 %v3873
        %3886 = vmatprep.subr.bf16.mxu0 0
        %3887 = vmatpush1.bf16.xpose.msra.mxu0 %v3876
        %3888 = vmatprep.subr.bf16.mxu0 0
        %3889 = vmatpush1.bf16.xpose.msra.mxu0 %v3879
        %3890 = vmatprep.subr.bf16.mxu0 0
        %3891 = vmatpush1.bf16.xpose.msra.mxu0 %v3882
        %3892 = vmatprep.subr.bf16.mxu0 0
        %3893 = vmatpush1.bf16.xpose.msra.mxu0 0
        %3894 = vmatprep.subr.bf16.mxu0 0
        %3895 = vmatpush1.bf16.xpose.msra.mxu0 0
        %3896 = vmatprep.subr.bf16.mxu0 0
        %3897 = vmatpush1.bf16.xpose.msra.mxu0 0
        %3898 = vmatprep.subr.bf16.mxu0 0
        %3899 = vmatpush1.bf16.xpose.msra.mxu0 0
        %3900 = vmatprep.subr.bf16.mxu0 0
        %3901 = vmatpush1.bf16.xpose.msra.mxu0 0
        %3902 = vmatprep.subr.bf16.mxu0 0
        %3903 = vmatpush1.bf16.xpose.msra.mxu0 0
        %3904 = vmatprep.subr.bf16.mxu0 0
        %3905 = vmatpush1.bf16.xpose.msra.mxu0 0
        %3906 = vmatprep.subr.bf16.mxu0 0
        %3907 = vmatpush1.bf16.xpose.msra.mxu0 0
        %3908 = vmatprep.subr.bf16.mxu0 0
        %3909 = vmatpush1.bf16.xpose.msra.mxu0 0
        %3910 = vmatprep.subr.bf16.mxu0 0
        %3911 = vmatpush1.bf16.xpose.msra.mxu0 0
        %3912 = vmatprep.subr.bf16.mxu0 0
        %3913 = vmatpush1.bf16.xpose.msra.mxu0 0
        %3914 = vmatprep.subr.bf16.mxu0 0
        %3915 = vmatpush1.bf16.xpose.msra.mxu0 0
        %3916 = vmatprep.mubr.bf16.mxu0 0
        %3917 = vmatmul.mubr.bf16.gmra.mrb[0].mxu0 %v3861
        %v3918 = vpop.f32.mrb[0].mxu0
        %v3919 = vadd.f32 0.0, %v3918
        %v3920 = vpop.f32.mrb[0].mxu0
        %v3921 = vpop.f32.mrb[0].mxu0
        %v3922 = vadd.f32 0.0, %v3921
        %v3923 = vpop.f32.mrb[0].mxu0
        %3924 = vmatprep.mubr.bf16.mxu0 0
        %3925 = vmatmul.mubr.bf16.gmra.mrb[0].mxu0 %v3864
        %v3926 = vpop.f32.mrb[0].mxu0
        %v3927 = vadd.f32 0.0, %v3926
        %v3928 = vpop.f32.mrb[0].mxu0
        %v3929 = vpop.f32.mrb[0].mxu0
        %v3930 = vadd.f32 0.0, %v3929
        %v3931 = vpop.f32.mrb[0].mxu0
        %3932 = vmatprep.mubr.bf16.mxu0 0
        %3933 = vmatmul.mubr.bf16.gmra.mrb[0].mxu0 %v3867
        %v3934 = vpop.f32.mrb[0].mxu0
        %v3935 = vadd.f32 0.0, %v3934
        %v3936 = vpop.f32.mrb[0].mxu0
        %v3937 = vpop.f32.mrb[0].mxu0
        %v3938 = vadd.f32 0.0, %v3937
        %v3939 = vpop.f32.mrb[0].mxu0
        %3940 = vmatprep.mubr.bf16.mxu0 0
        %3941 = vmatmul.mubr.bf16.gmra.mrb[0].mxu0 %v3870
        %v3942 = vpop.f32.mrb[0].mxu0
        %v3943 = vadd.f32 0.0, %v3942
        %v3944 = vpop.f32.mrb[0].mxu0
        %v3945 = vpop.f32.mrb[0].mxu0
        %v3946 = vadd.f32 0.0, %v3945
        %v3947 = vpop.f32.mrb[0].mxu0
        %3948 = vdwg.mxu0
        %v3950 = vsel %vm3503, %v1019, 0
        %v3953 = vsel %vm3503, %v1020, 0
        %v3956 = vsel %vm3503, %v1021, 0
        %v3959 = vsel %vm3503, %v1022, 0
        %v3962 = vsel %vm3503, %v3006, 0
        %v3965 = vsel %vm3503, %v3007, 0
        %v3968 = vsel %vm3503, %v3008, 0
        %v3971 = vsel %vm3503, %v3009, 0
        %3973 = vmatprep.subr.bf16.mxu0 0
        %3974 = vmatpush1.bf16.xpose.msra.mxu0 %v3962
        %3975 = vmatprep.subr.bf16.mxu0 0
        %3976 = vmatpush1.bf16.xpose.msra.mxu0 %v3965
        %3977 = vmatprep.subr.bf16.mxu0 0
        %3978 = vmatpush1.bf16.xpose.msra.mxu0 %v3968
        %3979 = vmatprep.subr.bf16.mxu0 0
        %3980 = vmatpush1.bf16.xpose.msra.mxu0 %v3971
        %3981 = vmatprep.subr.bf16.mxu0 0
        %3982 = vmatpush1.bf16.xpose.msra.mxu0 0
        %3983 = vmatprep.subr.bf16.mxu0 0
        %3984 = vmatpush1.bf16.xpose.msra.mxu0 0
        %3985 = vmatprep.subr.bf16.mxu0 0
        %3986 = vmatpush1.bf16.xpose.msra.mxu0 0
        %3987 = vmatprep.subr.bf16.mxu0 0
        %3988 = vmatpush1.bf16.xpose.msra.mxu0 0
        %3989 = vmatprep.subr.bf16.mxu0 0
        %3990 = vmatpush1.bf16.xpose.msra.mxu0 0
        %3991 = vmatprep.subr.bf16.mxu0 0
        %3992 = vmatpush1.bf16.xpose.msra.mxu0 0
        %3993 = vmatprep.subr.bf16.mxu0 0
        %3994 = vmatpush1.bf16.xpose.msra.mxu0 0
        %3995 = vmatprep.subr.bf16.mxu0 0
        %3996 = vmatpush1.bf16.xpose.msra.mxu0 0
        %3997 = vmatprep.subr.bf16.mxu0 0
        %3998 = vmatpush1.bf16.xpose.msra.mxu0 0
        %3999 = vmatprep.subr.bf16.mxu0 0
        %4000 = vmatpush1.bf16.xpose.msra.mxu0 0
        %4001 = vmatprep.subr.bf16.mxu0 0
        %4002 = vmatpush1.bf16.xpose.msra.mxu0 0
        %4003 = vmatprep.subr.bf16.mxu0 0
        %4004 = vmatpush1.bf16.xpose.msra.mxu0 0
        %4005 = vmatprep.mubr.bf16.mxu0 0
        %4006 = vmatmul.mubr.bf16.gmra.mrb[0].mxu0 %v3950
        %v4007 = vpop.f32.mrb[0].mxu0
        %v4008 = vadd.f32 0.0, %v4007
        %v4009 = vpop.f32.mrb[0].mxu0
        %v4010 = vpop.f32.mrb[0].mxu0
        %v4011 = vadd.f32 0.0, %v4010
        %v4012 = vpop.f32.mrb[0].mxu0
        %4013 = vmatprep.mubr.bf16.mxu0 0
        %4014 = vmatmul.mubr.bf16.gmra.mrb[0].mxu0 %v3953
        %v4015 = vpop.f32.mrb[0].mxu0
        %v4016 = vadd.f32 0.0, %v4015
        %v4017 = vpop.f32.mrb[0].mxu0
        %v4018 = vpop.f32.mrb[0].mxu0
        %v4019 = vadd.f32 0.0, %v4018
        %v4020 = vpop.f32.mrb[0].mxu0
        %4021 = vmatprep.mubr.bf16.mxu0 0
        %4022 = vmatmul.mubr.bf16.gmra.mrb[0].mxu0 %v3956
        %v4023 = vpop.f32.mrb[0].mxu0
        %v4024 = vadd.f32 0.0, %v4023
        %v4025 = vpop.f32.mrb[0].mxu0
        %v4026 = vpop.f32.mrb[0].mxu0
        %v4027 = vadd.f32 0.0, %v4026
        %v4028 = vpop.f32.mrb[0].mxu0
        %4029 = vmatprep.mubr.bf16.mxu0 0
        %4030 = vmatmul.mubr.bf16.gmra.mrb[0].mxu0 %v3959
        %v4031 = vpop.f32.mrb[0].mxu0
        %v4032 = vadd.f32 0.0, %v4031
        %v4033 = vpop.f32.mrb[0].mxu0
        %v4034 = vpop.f32.mrb[0].mxu0
        %v4035 = vadd.f32 0.0, %v4034
        %v4036 = vpop.f32.mrb[0].mxu0
        %4037 = vdwg.mxu0
        %v4039 = vsel %vm3503, %v1023, 0
        %v4042 = vsel %vm3503, %v1024, 0
        %v4045 = vsel %vm3503, %v1025, 0
        %v4048 = vsel %vm3503, %v1026, 0
        %v4051 = vsel %vm3503, %v3010, 0
        %v4054 = vsel %vm3503, %v3011, 0
        %v4057 = vsel %vm3503, %v3012, 0
        %v4060 = vsel %vm3503, %v3013, 0
        %4062 = vmatprep.subr.bf16.mxu0 0
        %4063 = vmatpush1.bf16.xpose.msra.mxu0 %v4051
        %4064 = vmatprep.subr.bf16.mxu0 0
        %4065 = vmatpush1.bf16.xpose.msra.mxu0 %v4054
        %4066 = vmatprep.subr.bf16.mxu0 0
        %4067 = vmatpush1.bf16.xpose.msra.mxu0 %v4057
        %4068 = vmatprep.subr.bf16.mxu0 0
        %4069 = vmatpush1.bf16.xpose.msra.mxu0 %v4060
        %4070 = vmatprep.subr.bf16.mxu0 0
        %4071 = vmatpush1.bf16.xpose.msra.mxu0 0
        %4072 = vmatprep.subr.bf16.mxu0 0
        %4073 = vmatpush1.bf16.xpose.msra.mxu0 0
        %4074 = vmatprep.subr.bf16.mxu0 0
        %4075 = vmatpush1.bf16.xpose.msra.mxu0 0
        %4076 = vmatprep.subr.bf16.mxu0 0
        %4077 = vmatpush1.bf16.xpose.msra.mxu0 0
        %4078 = vmatprep.subr.bf16.mxu0 0
        %4079 = vmatpush1.bf16.xpose.msra.mxu0 0
        %4080 = vmatprep.subr.bf16.mxu0 0
        %4081 = vmatpush1.bf16.xpose.msra.mxu0 0
        %4082 = vmatprep.subr.bf16.mxu0 0
        %4083 = vmatpush1.bf16.xpose.msra.mxu0 0
        %4084 = vmatprep.subr.bf16.mxu0 0
        %4085 = vmatpush1.bf16.xpose.msra.mxu0 0
        %4086 = vmatprep.subr.bf16.mxu0 0
        %4087 = vmatpush1.bf16.xpose.msra.mxu0 0
        %4088 = vmatprep.subr.bf16.mxu0 0
        %4089 = vmatpush1.bf16.xpose.msra.mxu0 0
        %4090 = vmatprep.subr.bf16.mxu0 0
        %4091 = vmatpush1.bf16.xpose.msra.mxu0 0
        %4092 = vmatprep.subr.bf16.mxu0 0
        %4093 = vmatpush1.bf16.xpose.msra.mxu0 0
        %4094 = vmatprep.mubr.bf16.mxu0 0
        %4095 = vmatmul.mubr.bf16.gmra.mrb[0].mxu0 %v4039
        %v4096 = vpop.f32.mrb[0].mxu0
        %v4097 = vadd.f32 0.0, %v4096
        %v4098 = vpop.f32.mrb[0].mxu0
        %v4099 = vpop.f32.mrb[0].mxu0
        %v4100 = vadd.f32 0.0, %v4099
        %v4101 = vpop.f32.mrb[0].mxu0
        %4102 = vmatprep.mubr.bf16.mxu0 0
        %4103 = vmatmul.mubr.bf16.gmra.mrb[0].mxu0 %v4042
        %v4104 = vpop.f32.mrb[0].mxu0
        %v4105 = vadd.f32 0.0, %v4104
        %v4106 = vpop.f32.mrb[0].mxu0
        %v4107 = vpop.f32.mrb[0].mxu0
        %v4108 = vadd.f32 0.0, %v4107
        %v4109 = vpop.f32.mrb[0].mxu0
        %4110 = vmatprep.mubr.bf16.mxu0 0
        %4111 = vmatmul.mubr.bf16.gmra.mrb[0].mxu0 %v4045
        %v4112 = vpop.f32.mrb[0].mxu0
        %v4113 = vadd.f32 0.0, %v4112
        %v4114 = vpop.f32.mrb[0].mxu0
        %v4115 = vpop.f32.mrb[0].mxu0
        %v4116 = vadd.f32 0.0, %v4115
        %v4117 = vpop.f32.mrb[0].mxu0
        %4118 = vmatprep.mubr.bf16.mxu0 0
        %4119 = vmatmul.mubr.bf16.gmra.mrb[0].mxu0 %v4048
        %v4120 = vpop.f32.mrb[0].mxu0
        %v4121 = vadd.f32 0.0, %v4120
        %v4122 = vpop.f32.mrb[0].mxu0
        %v4123 = vpop.f32.mrb[0].mxu0
        %v4124 = vadd.f32 0.0, %v4123
        %v4125 = vpop.f32.mrb[0].mxu0
        %4126 = vdwg.mxu0
        %v4128 = vsel %vm3503, %v1027, 0
        %v4131 = vsel %vm3503, %v1028, 0
        %v4134 = vsel %vm3503, %v1029, 0
        %v4137 = vsel %vm3503, %v1030, 0
        %v4140 = vsel %vm3503, %v3014, 0
        %v4143 = vsel %vm3503, %v3015, 0
        %v4146 = vsel %vm3503, %v3016, 0
        %v4149 = vsel %vm3503, %v3017, 0
        %4151 = vmatprep.subr.bf16.mxu0 0
        %4152 = vmatpush1.bf16.xpose.msra.mxu0 %v4140
        %4153 = vmatprep.subr.bf16.mxu0 0
        %4154 = vmatpush1.bf16.xpose.msra.mxu0 %v4143
        %4155 = vmatprep.subr.bf16.mxu0 0
        %4156 = vmatpush1.bf16.xpose.msra.mxu0 %v4146
        %4157 = vmatprep.subr.bf16.mxu0 0
        %4158 = vmatpush1.bf16.xpose.msra.mxu0 %v4149
        %4159 = vmatprep.subr.bf16.mxu0 0
        %4160 = vmatpush1.bf16.xpose.msra.mxu0 0
        %4161 = vmatprep.subr.bf16.mxu0 0
        %4162 = vmatpush1.bf16.xpose.msra.mxu0 0
        %4163 = vmatprep.subr.bf16.mxu0 0
        %4164 = vmatpush1.bf16.xpose.msra.mxu0 0
        %4165 = vmatprep.subr.bf16.mxu0 0
        %4166 = vmatpush1.bf16.xpose.msra.mxu0 0
        %4167 = vmatprep.subr.bf16.mxu0 0
        %4168 = vmatpush1.bf16.xpose.msra.mxu0 0
        %4169 = vmatprep.subr.bf16.mxu0 0
        %4170 = vmatpush1.bf16.xpose.msra.mxu0 0
        %4171 = vmatprep.subr.bf16.mxu0 0
        %4172 = vmatpush1.bf16.xpose.msra.mxu0 0
        %4173 = vmatprep.subr.bf16.mxu0 0
        %4174 = vmatpush1.bf16.xpose.msra.mxu0 0
        %4175 = vmatprep.subr.bf16.mxu0 0
        %4176 = vmatpush1.bf16.xpose.msra.mxu0 0
        %4177 = vmatprep.subr.bf16.mxu0 0
        %4178 = vmatpush1.bf16.xpose.msra.mxu0 0
        %4179 = vmatprep.subr.bf16.mxu0 0
        %4180 = vmatpush1.bf16.xpose.msra.mxu0 0
        %4181 = vmatprep.subr.bf16.mxu0 0
        %4182 = vmatpush1.bf16.xpose.msra.mxu0 0
        %4183 = vmatprep.mubr.bf16.mxu0 0
        %4184 = vmatmul.mubr.bf16.gmra.mrb[0].mxu0 %v4128
        %v4185 = vpop.f32.mrb[0].mxu0
        %v4186 = vadd.f32 0.0, %v4185
        %v4187 = vpop.f32.mrb[0].mxu0
        %v4188 = vpop.f32.mrb[0].mxu0
        %v4189 = vadd.f32 0.0, %v4188
        %v4190 = vpop.f32.mrb[0].mxu0
        %4191 = vmatprep.mubr.bf16.mxu0 0
        %4192 = vmatmul.mubr.bf16.gmra.mrb[0].mxu0 %v4131
        %v4193 = vpop.f32.mrb[0].mxu0
        %v4194 = vadd.f32 0.0, %v4193
        %v4195 = vpop.f32.mrb[0].mxu0
        %v4196 = vpop.f32.mrb[0].mxu0
        %v4197 = vadd.f32 0.0, %v4196
        %v4198 = vpop.f32.mrb[0].mxu0
        %4199 = vmatprep.mubr.bf16.mxu0 0
        %4200 = vmatmul.mubr.bf16.gmra.mrb[0].mxu0 %v4134
        %v4201 = vpop.f32.mrb[0].mxu0
        %v4202 = vadd.f32 0.0, %v4201
        %v4203 = vpop.f32.mrb[0].mxu0
        %v4204 = vpop.f32.mrb[0].mxu0
        %v4205 = vadd.f32 0.0, %v4204
        %v4206 = vpop.f32.mrb[0].mxu0
        %4207 = vmatprep.mubr.bf16.mxu0 0
        %4208 = vmatmul.mubr.bf16.gmra.mrb[0].mxu0 %v4137
        %v4209 = vpop.f32.mrb[0].mxu0
        %v4210 = vadd.f32 0.0, %v4209
        %v4211 = vpop.f32.mrb[0].mxu0
        %v4212 = vpop.f32.mrb[0].mxu0
        %v4213 = vadd.f32 0.0, %v4212
        %v4214 = vpop.f32.mrb[0].mxu0
        %4215 = vdwg.mxu0
        %vm4216 = vcmask 523264
        %v4217 = vsel %vm4216, %v3563, -inf
        %4218 = vmax.xlane.f32.xlu0 %v4217
        %v4219 = vpop.xlane.xlu0 %4218
        %v4220 = vsel %vm4216, %v3566, -inf
        %4221 = vmax.xlane.f32.xlu0 %v4220
        %v4222 = vpop.xlane.xlu0 %4221
        %v4223 = vsel %vm4216, %v3571, -inf
        %4224 = vmax.xlane.f32.xlu0 %v4223
        %v4225 = vpop.xlane.xlu0 %4224
        %v4226 = vsel %vm4216, %v3574, -inf
        %4227 = vmax.xlane.f32.xlu0 %v4226
        %v4228 = vpop.xlane.xlu0 %4227
        %v4229 = vsel %vm4216, %v3579, -inf
        %4230 = vmax.xlane.f32.xlu0 %v4229
        %v4231 = vpop.xlane.xlu0 %4230
        %v4232 = vsel %vm4216, %v3582, -inf
        %4233 = vmax.xlane.f32.xlu0 %v4232
        %v4234 = vpop.xlane.xlu0 %4233
        %v4235 = vsel %vm4216, %v3587, -inf
        %4236 = vmax.xlane.f32.xlu0 %v4235
        %v4237 = vpop.xlane.xlu0 %4236
        %v4238 = vsel %vm4216, %v3590, -inf
        %4239 = vmax.xlane.f32.xlu0 %v4238
        %v4240 = vpop.xlane.xlu0 %4239
        %v4241 = vsel %vm4216, %v3652, -inf
        %4242 = vmax.xlane.f32.xlu0 %v4241
        %v4243 = vpop.xlane.xlu0 %4242
        %v4244 = vsel %vm4216, %v3655, -inf
        %4245 = vmax.xlane.f32.xlu0 %v4244
        %v4246 = vpop.xlane.xlu0 %4245
        %v4247 = vsel %vm4216, %v3660, -inf
        %4248 = vmax.xlane.f32.xlu0 %v4247
        %v4249 = vpop.xlane.xlu0 %4248
        %v4250 = vsel %vm4216, %v3663, -inf
        %4251 = vmax.xlane.f32.xlu0 %v4250
        %v4252 = vpop.xlane.xlu0 %4251
        %v4253 = vsel %vm4216, %v3668, -inf
        %4254 = vmax.xlane.f32.xlu0 %v4253
        %v4255 = vpop.xlane.xlu0 %4254
        %v4256 = vsel %vm4216, %v3671, -inf
        %4257 = vmax.xlane.f32.xlu0 %v4256
        %v4258 = vpop.xlane.xlu0 %4257
        %v4259 = vsel %vm4216, %v3676, -inf
        %4260 = vmax.xlane.f32.xlu0 %v4259
        %v4261 = vpop.xlane.xlu0 %4260
        %v4262 = vsel %vm4216, %v3679, -inf
        %4263 = vmax.xlane.f32.xlu0 %v4262
        %v4264 = vpop.xlane.xlu0 %4263
        %v4265 = vsel %vm4216, %v3741, -inf
        %4266 = vmax.xlane.f32.xlu0 %v4265
        %v4267 = vpop.xlane.xlu0 %4266
        %v4268 = vsel %vm4216, %v3744, -inf
        %4269 = vmax.xlane.f32.xlu0 %v4268
        %v4270 = vpop.xlane.xlu0 %4269
        %v4271 = vsel %vm4216, %v3749, -inf
        %4272 = vmax.xlane.f32.xlu0 %v4271
        %v4273 = vpop.xlane.xlu0 %4272
        %v4274 = vsel %vm4216, %v3752, -inf
        %4275 = vmax.xlane.f32.xlu0 %v4274
        %v4276 = vpop.xlane.xlu0 %4275
        %v4277 = vsel %vm4216, %v3757, -inf
        %4278 = vmax.xlane.f32.xlu0 %v4277
        %v4279 = vpop.xlane.xlu0 %4278
        %v4280 = vsel %vm4216, %v3760, -inf
        %4281 = vmax.xlane.f32.xlu0 %v4280
        %v4282 = vpop.xlane.xlu0 %4281
        %v4283 = vsel %vm4216, %v3765, -inf
        %4284 = vmax.xlane.f32.xlu0 %v4283
        %v4285 = vpop.xlane.xlu0 %4284
        %v4286 = vsel %vm4216, %v3768, -inf
        %4287 = vmax.xlane.f32.xlu0 %v4286
        %v4288 = vpop.xlane.xlu0 %4287
        %v4289 = vsel %vm4216, %v3830, -inf
        %4290 = vmax.xlane.f32.xlu0 %v4289
        %v4291 = vpop.xlane.xlu0 %4290
        %v4292 = vsel %vm4216, %v3833, -inf
        %4293 = vmax.xlane.f32.xlu0 %v4292
        %v4294 = vpop.xlane.xlu0 %4293
        %v4295 = vsel %vm4216, %v3838, -inf
        %4296 = vmax.xlane.f32.xlu0 %v4295
        %v4297 = vpop.xlane.xlu0 %4296
        %v4298 = vsel %vm4216, %v3841, -inf
        %4299 = vmax.xlane.f32.xlu0 %v4298
        %v4300 = vpop.xlane.xlu0 %4299
        %v4301 = vsel %vm4216, %v3846, -inf
        %4302 = vmax.xlane.f32.xlu0 %v4301
        %v4303 = vpop.xlane.xlu0 %4302
        %v4304 = vsel %vm4216, %v3849, -inf
        %4305 = vmax.xlane.f32.xlu0 %v4304
        %v4306 = vpop.xlane.xlu0 %4305
        %v4307 = vsel %vm4216, %v3854, -inf
        %4308 = vmax.xlane.f32.xlu0 %v4307
        %v4309 = vpop.xlane.xlu0 %4308
        %v4310 = vsel %vm4216, %v3857, -inf
        %4311 = vmax.xlane.f32.xlu0 %v4310
        %v4312 = vpop.xlane.xlu0 %4311
        %v4313 = vsel %vm4216, %v3919, -inf
        %4314 = vmax.xlane.f32.xlu0 %v4313
        %v4315 = vpop.xlane.xlu0 %4314
        %v4316 = vsel %vm4216, %v3922, -inf
        %4317 = vmax.xlane.f32.xlu0 %v4316
        %v4318 = vpop.xlane.xlu0 %4317
        %v4319 = vsel %vm4216, %v3927, -inf
        %4320 = vmax.xlane.f32.xlu0 %v4319
        %v4321 = vpop.xlane.xlu0 %4320
        %v4322 = vsel %vm4216, %v3930, -inf
        %4323 = vmax.xlane.f32.xlu0 %v4322
        %v4324 = vpop.xlane.xlu0 %4323
        %v4325 = vsel %vm4216, %v3935, -inf
        %4326 = vmax.xlane.f32.xlu0 %v4325
        %v4327 = vpop.xlane.xlu0 %4326
        %v4328 = vsel %vm4216, %v3938, -inf
        %4329 = vmax.xlane.f32.xlu0 %v4328
        %v4330 = vpop.xlane.xlu0 %4329
        %v4331 = vsel %vm4216, %v3943, -inf
        %4332 = vmax.xlane.f32.xlu0 %v4331
        %v4333 = vpop.xlane.xlu0 %4332
        %v4334 = vsel %vm4216, %v3946, -inf
        %4335 = vmax.xlane.f32.xlu0 %v4334
        %v4336 = vpop.xlane.xlu0 %4335
        %v4337 = vsel %vm4216, %v4008, -inf
        %4338 = vmax.xlane.f32.xlu0 %v4337
        %v4339 = vpop.xlane.xlu0 %4338
        %v4340 = vsel %vm4216, %v4011, -inf
        %4341 = vmax.xlane.f32.xlu0 %v4340
        %v4342 = vpop.xlane.xlu0 %4341
        %v4343 = vsel %vm4216, %v4016, -inf
        %4344 = vmax.xlane.f32.xlu0 %v4343
        %v4345 = vpop.xlane.xlu0 %4344
        %v4346 = vsel %vm4216, %v4019, -inf
        %4347 = vmax.xlane.f32.xlu0 %v4346
        %v4348 = vpop.xlane.xlu0 %4347
        %v4349 = vsel %vm4216, %v4024, -inf
        %4350 = vmax.xlane.f32.xlu0 %v4349
        %v4351 = vpop.xlane.xlu0 %4350
        %v4352 = vsel %vm4216, %v4027, -inf
        %4353 = vmax.xlane.f32.xlu0 %v4352
        %v4354 = vpop.xlane.xlu0 %4353
        %v4355 = vsel %vm4216, %v4032, -inf
        %4356 = vmax.xlane.f32.xlu0 %v4355
        %v4357 = vpop.xlane.xlu0 %4356
        %v4358 = vsel %vm4216, %v4035, -inf
        %4359 = vmax.xlane.f32.xlu0 %v4358
        %v4360 = vpop.xlane.xlu0 %4359
        %v4361 = vsel %vm4216, %v4097, -inf
        %4362 = vmax.xlane.f32.xlu0 %v4361
        %v4363 = vpop.xlane.xlu0 %4362
        %v4364 = vsel %vm4216, %v4100, -inf
        %4365 = vmax.xlane.f32.xlu0 %v4364
        %v4366 = vpop.xlane.xlu0 %4365
        %v4367 = vsel %vm4216, %v4105, -inf
        %4368 = vmax.xlane.f32.xlu0 %v4367
        %v4369 = vpop.xlane.xlu0 %4368
        %v4370 = vsel %vm4216, %v4108, -inf
        %4371 = vmax.xlane.f32.xlu0 %v4370
        %v4372 = vpop.xlane.xlu0 %4371
        %v4373 = vsel %vm4216, %v4113, -inf
        %4374 = vmax.xlane.f32.xlu0 %v4373
        %v4375 = vpop.xlane.xlu0 %4374
        %v4376 = vsel %vm4216, %v4116, -inf
        %4377 = vmax.xlane.f32.xlu0 %v4376
        %v4378 = vpop.xlane.xlu0 %4377
        %v4379 = vsel %vm4216, %v4121, -inf
        %4380 = vmax.xlane.f32.xlu0 %v4379
        %v4381 = vpop.xlane.xlu0 %4380
        %v4382 = vsel %vm4216, %v4124, -inf
        %4383 = vmax.xlane.f32.xlu0 %v4382
        %v4384 = vpop.xlane.xlu0 %4383
        %v4385 = vsel %vm4216, %v4186, -inf
        %4386 = vmax.xlane.f32.xlu0 %v4385
        %v4387 = vpop.xlane.xlu0 %4386
        %v4388 = vsel %vm4216, %v4189, -inf
        %4389 = vmax.xlane.f32.xlu0 %v4388
        %v4390 = vpop.xlane.xlu0 %4389
        %v4391 = vsel %vm4216, %v4194, -inf
        %4392 = vmax.xlane.f32.xlu0 %v4391
        %v4393 = vpop.xlane.xlu0 %4392
        %v4394 = vsel %vm4216, %v4197, -inf
        %4395 = vmax.xlane.f32.xlu0 %v4394
        %v4396 = vpop.xlane.xlu0 %4395
        %v4397 = vsel %vm4216, %v4202, -inf
        %4398 = vmax.xlane.f32.xlu0 %v4397
        %v4399 = vpop.xlane.xlu0 %4398
        %v4400 = vsel %vm4216, %v4205, -inf
        %4401 = vmax.xlane.f32.xlu0 %v4400
        %v4402 = vpop.xlane.xlu0 %4401
        %v4403 = vsel %vm4216, %v4210, -inf
        %4404 = vmax.xlane.f32.xlu0 %v4403
        %v4405 = vpop.xlane.xlu0 %4404
        %v4406 = vsel %vm4216, %v4213, -inf
        %4407 = vmax.xlane.f32.xlu0 %v4406
        %v4408 = vpop.xlane.xlu0 %4407
        %v4409 = vsub.f32 %v3563, %v4219
        %v4410 = vsub.f32 %v3566, %v4222
        %v4411 = vsub.f32 %v3571, %v4225
        %v4412 = vsub.f32 %v3574, %v4228
        %v4413 = vsub.f32 %v3579, %v4231
        %v4414 = vsub.f32 %v3582, %v4234
        %v4415 = vsub.f32 %v3587, %v4237
        %v4416 = vsub.f32 %v3590, %v4240
        %v4417 = vsub.f32 %v3652, %v4243
        %v4418 = vsub.f32 %v3655, %v4246
        %v4419 = vsub.f32 %v3660, %v4249
        %v4420 = vsub.f32 %v3663, %v4252
        %v4421 = vsub.f32 %v3668, %v4255
        %v4422 = vsub.f32 %v3671, %v4258
        %v4423 = vsub.f32 %v3676, %v4261
        %v4424 = vsub.f32 %v3679, %v4264
        %v4425 = vsub.f32 %v3741, %v4267
        %v4426 = vsub.f32 %v3744, %v4270
        %v4427 = vsub.f32 %v3749, %v4273
        %v4428 = vsub.f32 %v3752, %v4276
        %v4429 = vsub.f32 %v3757, %v4279
        %v4430 = vsub.f32 %v3760, %v4282
        %v4431 = vsub.f32 %v3765, %v4285
        %v4432 = vsub.f32 %v3768, %v4288
        %v4433 = vsub.f32 %v3830, %v4291
        %v4434 = vsub.f32 %v3833, %v4294
        %v4435 = vsub.f32 %v3838, %v4297
        %v4436 = vsub.f32 %v3841, %v4300
        %v4437 = vsub.f32 %v3846, %v4303
        %v4438 = vsub.f32 %v3849, %v4306
        %v4439 = vsub.f32 %v3854, %v4309
        %v4440 = vsub.f32 %v3857, %v4312
        %v4441 = vsub.f32 %v3919, %v4315
        %v4442 = vsub.f32 %v3922, %v4318
        %v4443 = vsub.f32 %v3927, %v4321
        %v4444 = vsub.f32 %v3930, %v4324
        %v4445 = vsub.f32 %v3935, %v4327
        %v4446 = vsub.f32 %v3938, %v4330
        %v4447 = vsub.f32 %v3943, %v4333
        %v4448 = vsub.f32 %v3946, %v4336
        %v4449 = vsub.f32 %v4008, %v4339
        %v4450 = vsub.f32 %v4011, %v4342
        %v4451 = vsub.f32 %v4016, %v4345
        %v4452 = vsub.f32 %v4019, %v4348
        %v4453 = vsub.f32 %v4024, %v4351
        %v4454 = vsub.f32 %v4027, %v4354
        %v4455 = vsub.f32 %v4032, %v4357
        %v4456 = vsub.f32 %v4035, %v4360
        %v4457 = vsub.f32 %v4097, %v4363
        %v4458 = vsub.f32 %v4100, %v4366
        %v4459 = vsub.f32 %v4105, %v4369
        %v4460 = vsub.f32 %v4108, %v4372
        %v4461 = vsub.f32 %v4113, %v4375
        %v4462 = vsub.f32 %v4116, %v4378
        %v4463 = vsub.f32 %v4121, %v4381
        %v4464 = vsub.f32 %v4124, %v4384
        %v4465 = vsub.f32 %v4186, %v4387
        %v4466 = vsub.f32 %v4189, %v4390
        %v4467 = vsub.f32 %v4194, %v4393
        %v4468 = vsub.f32 %v4197, %v4396
        %v4469 = vsub.f32 %v4202, %v4399
        %v4470 = vsub.f32 %v4205, %v4402
        %v4471 = vsub.f32 %v4210, %v4405
        %v4472 = vsub.f32 %v4213, %v4408
        %v4473 = vmul.f32 %v4409, 1.442695
        %v4474 = vpow.pop %v4473
        %v4475 = vmul.f32 %v4410, 1.442695
        %v4476 = vpow.pop %v4475
        %v4477 = vmul.f32 %v4411, 1.442695
        %v4478 = vpow.pop %v4477
        %v4479 = vmul.f32 %v4412, 1.442695
        %v4480 = vpow.pop %v4479
        %v4481 = vmul.f32 %v4413, 1.442695
        %v4482 = vpow.pop %v4481
        %v4483 = vmul.f32 %v4414, 1.442695
        %v4484 = vpow.pop %v4483
        %v4485 = vmul.f32 %v4415, 1.442695
        %v4486 = vpow.pop %v4485
        %v4487 = vmul.f32 %v4416, 1.442695
        %v4488 = vpow.pop %v4487
        %v4489 = vmul.f32 %v4417, 1.442695
        %v4490 = vpow.pop %v4489
        %v4491 = vmul.f32 %v4418, 1.442695
        %v4492 = vpow.pop %v4491
        %v4493 = vmul.f32 %v4419, 1.442695
        %v4494 = vpow.pop %v4493
        %v4495 = vmul.f32 %v4420, 1.442695
        %v4496 = vpow.pop %v4495
        %v4497 = vmul.f32 %v4421, 1.442695
        %v4498 = vpow.pop %v4497
        %v4499 = vmul.f32 %v4422, 1.442695
        %v4500 = vpow.pop %v4499
        %v4501 = vmul.f32 %v4423, 1.442695
        %v4502 = vpow.pop %v4501
        %v4503 = vmul.f32 %v4424, 1.442695
        %v4504 = vpow.pop %v4503
        %v4505 = vmul.f32 %v4425, 1.442695
        %v4506 = vpow.pop %v4505
        %v4507 = vmul.f32 %v4426, 1.442695
        %v4508 = vpow.pop %v4507
        %v4509 = vmul.f32 %v4427, 1.442695
        %v4510 = vpow.pop %v4509
        %v4511 = vmul.f32 %v4428, 1.442695
        %v4512 = vpow.pop %v4511
        %v4513 = vmul.f32 %v4429, 1.442695
        %v4514 = vpow.pop %v4513
        %v4515 = vmul.f32 %v4430, 1.442695
        %v4516 = vpow.pop %v4515
        %v4517 = vmul.f32 %v4431, 1.442695
        %v4518 = vpow.pop %v4517
        %v4519 = vmul.f32 %v4432, 1.442695
        %v4520 = vpow.pop %v4519
        %v4521 = vmul.f32 %v4433, 1.442695
        %v4522 = vpow.pop %v4521
        %v4523 = vmul.f32 %v4434, 1.442695
        %v4524 = vpow.pop %v4523
        %v4525 = vmul.f32 %v4435, 1.442695
        %v4526 = vpow.pop %v4525
        %v4527 = vmul.f32 %v4436, 1.442695
        %v4528 = vpow.pop %v4527
        %v4529 = vmul.f32 %v4437, 1.442695
        %v4530 = vpow.pop %v4529
        %v4531 = vmul.f32 %v4438, 1.442695
        %v4532 = vpow.pop %v4531
        %v4533 = vmul.f32 %v4439, 1.442695
        %v4534 = vpow.pop %v4533
        %v4535 = vmul.f32 %v4440, 1.442695
        %v4536 = vpow.pop %v4535
        %v4537 = vmul.f32 %v4441, 1.442695
        %v4538 = vpow.pop %v4537
        %v4539 = vmul.f32 %v4442, 1.442695
        %v4540 = vpow.pop %v4539
        %v4541 = vmul.f32 %v4443, 1.442695
        %v4542 = vpow.pop %v4541
        %v4543 = vmul.f32 %v4444, 1.442695
        %v4544 = vpow.pop %v4543
        %v4545 = vmul.f32 %v4445, 1.442695
        %v4546 = vpow.pop %v4545
        %v4547 = vmul.f32 %v4446, 1.442695
        %v4548 = vpow.pop %v4547
        %v4549 = vmul.f32 %v4447, 1.442695
        %v4550 = vpow.pop %v4549
        %v4551 = vmul.f32 %v4448, 1.442695
        %v4552 = vpow.pop %v4551
        %v4553 = vmul.f32 %v4449, 1.442695
        %v4554 = vpow.pop %v4553
        %v4555 = vmul.f32 %v4450, 1.442695
        %v4556 = vpow.pop %v4555
        %v4557 = vmul.f32 %v4451, 1.442695
        %v4558 = vpow.pop %v4557
        %v4559 = vmul.f32 %v4452, 1.442695
        %v4560 = vpow.pop %v4559
        %v4561 = vmul.f32 %v4453, 1.442695
        %v4562 = vpow.pop %v4561
        %v4563 = vmul.f32 %v4454, 1.442695
        %v4564 = vpow.pop %v4563
        %v4565 = vmul.f32 %v4455, 1.442695
        %v4566 = vpow.pop %v4565
        %v4567 = vmul.f32 %v4456, 1.442695
        %v4568 = vpow.pop %v4567
        %v4569 = vmul.f32 %v4457, 1.442695
        %v4570 = vpow.pop %v4569
        %v4571 = vmul.f32 %v4458, 1.442695
        %v4572 = vpow.pop %v4571
        %v4573 = vmul.f32 %v4459, 1.442695
        %v4574 = vpow.pop %v4573
        %v4575 = vmul.f32 %v4460, 1.442695
        %v4576 = vpow.pop %v4575
        %v4577 = vmul.f32 %v4461, 1.442695
        %v4578 = vpow.pop %v4577
        %v4579 = vmul.f32 %v4462, 1.442695
        %v4580 = vpow.pop %v4579
        %v4581 = vmul.f32 %v4463, 1.442695
        %v4582 = vpow.pop %v4581
        %v4583 = vmul.f32 %v4464, 1.442695
        %v4584 = vpow.pop %v4583
        %v4585 = vmul.f32 %v4465, 1.442695
        %v4586 = vpow.pop %v4585
        %v4587 = vmul.f32 %v4466, 1.442695
        %v4588 = vpow.pop %v4587
        %v4589 = vmul.f32 %v4467, 1.442695
        %v4590 = vpow.pop %v4589
        %v4591 = vmul.f32 %v4468, 1.442695
        %v4592 = vpow.pop %v4591
        %v4593 = vmul.f32 %v4469, 1.442695
        %v4594 = vpow.pop %v4593
        %v4595 = vmul.f32 %v4470, 1.442695
        %v4596 = vpow.pop %v4595
        %v4597 = vmul.f32 %v4471, 1.442695
        %v4598 = vpow.pop %v4597
        %v4599 = vmul.f32 %v4472, 1.442695
        %v4600 = vpow.pop %v4599
        %v4601 = vsel %vm4216, %v4474, 0.0
        %4602 = vadd.xlane.f32.xlu0 %v4601
        %v4603 = vpop.xlane.xlu0 %4602
        %v4604 = vsel %vm4216, %v4476, 0.0
        %4605 = vadd.xlane.f32.xlu0 %v4604
        %v4606 = vpop.xlane.xlu0 %4605
        %v4607 = vsel %vm4216, %v4478, 0.0
        %4608 = vadd.xlane.f32.xlu0 %v4607
        %v4609 = vpop.xlane.xlu0 %4608
        %v4610 = vsel %vm4216, %v4480, 0.0
        %4611 = vadd.xlane.f32.xlu0 %v4610
        %v4612 = vpop.xlane.xlu0 %4611
        %v4613 = vsel %vm4216, %v4482, 0.0
        %4614 = vadd.xlane.f32.xlu0 %v4613
        %v4615 = vpop.xlane.xlu0 %4614
        %v4616 = vsel %vm4216, %v4484, 0.0
        %4617 = vadd.xlane.f32.xlu0 %v4616
        %v4618 = vpop.xlane.xlu0 %4617
        %v4619 = vsel %vm4216, %v4486, 0.0
        %4620 = vadd.xlane.f32.xlu0 %v4619
        %v4621 = vpop.xlane.xlu0 %4620
        %v4622 = vsel %vm4216, %v4488, 0.0
        %4623 = vadd.xlane.f32.xlu0 %v4622
        %v4624 = vpop.xlane.xlu0 %4623
        %v4625 = vsel %vm4216, %v4490, 0.0
        %4626 = vadd.xlane.f32.xlu0 %v4625
        %v4627 = vpop.xlane.xlu0 %4626
        %v4628 = vsel %vm4216, %v4492, 0.0
        %4629 = vadd.xlane.f32.xlu0 %v4628
        %v4630 = vpop.xlane.xlu0 %4629
        %v4631 = vsel %vm4216, %v4494, 0.0
        %4632 = vadd.xlane.f32.xlu0 %v4631
        %v4633 = vpop.xlane.xlu0 %4632
        %v4634 = vsel %vm4216, %v4496, 0.0
        %4635 = vadd.xlane.f32.xlu0 %v4634
        %v4636 = vpop.xlane.xlu0 %4635
        %v4637 = vsel %vm4216, %v4498, 0.0
        %4638 = vadd.xlane.f32.xlu0 %v4637
        %v4639 = vpop.xlane.xlu0 %4638
        %v4640 = vsel %vm4216, %v4500, 0.0
        %4641 = vadd.xlane.f32.xlu0 %v4640
        %v4642 = vpop.xlane.xlu0 %4641
        %v4643 = vsel %vm4216, %v4502, 0.0
        %4644 = vadd.xlane.f32.xlu0 %v4643
        %v4645 = vpop.xlane.xlu0 %4644
        %v4646 = vsel %vm4216, %v4504, 0.0
        %4647 = vadd.xlane.f32.xlu0 %v4646
        %v4648 = vpop.xlane.xlu0 %4647
        %v4649 = vsel %vm4216, %v4506, 0.0
        %4650 = vadd.xlane.f32.xlu0 %v4649
        %v4651 = vpop.xlane.xlu0 %4650
        %v4652 = vsel %vm4216, %v4508, 0.0
        %4653 = vadd.xlane.f32.xlu0 %v4652
        %v4654 = vpop.xlane.xlu0 %4653
        %v4655 = vsel %vm4216, %v4510, 0.0
        %4656 = vadd.xlane.f32.xlu0 %v4655
        %v4657 = vpop.xlane.xlu0 %4656
        %v4658 = vsel %vm4216, %v4512, 0.0
        %4659 = vadd.xlane.f32.xlu0 %v4658
        %v4660 = vpop.xlane.xlu0 %4659
        %v4661 = vsel %vm4216, %v4514, 0.0
        %4662 = vadd.xlane.f32.xlu0 %v4661
        %v4663 = vpop.xlane.xlu0 %4662
        %v4664 = vsel %vm4216, %v4516, 0.0
        %4665 = vadd.xlane.f32.xlu0 %v4664
        %v4666 = vpop.xlane.xlu0 %4665
        %v4667 = vsel %vm4216, %v4518, 0.0
        %4668 = vadd.xlane.f32.xlu0 %v4667
        %v4669 = vpop.xlane.xlu0 %4668
        %v4670 = vsel %vm4216, %v4520, 0.0
        %4671 = vadd.xlane.f32.xlu0 %v4670
        %v4672 = vpop.xlane.xlu0 %4671
        %v4673 = vsel %vm4216, %v4522, 0.0
        %4674 = vadd.xlane.f32.xlu0 %v4673
        %v4675 = vpop.xlane.xlu0 %4674
        %v4676 = vsel %vm4216, %v4524, 0.0
        %4677 = vadd.xlane.f32.xlu0 %v4676
        %v4678 = vpop.xlane.xlu0 %4677
        %v4679 = vsel %vm4216, %v4526, 0.0
        %4680 = vadd.xlane.f32.xlu0 %v4679
        %v4681 = vpop.xlane.xlu0 %4680
        %v4682 = vsel %vm4216, %v4528, 0.0
        %4683 = vadd.xlane.f32.xlu0 %v4682
        %v4684 = vpop.xlane.xlu0 %4683
        %v4685 = vsel %vm4216, %v4530, 0.0
        %4686 = vadd.xlane.f32.xlu0 %v4685
        %v4687 = vpop.xlane.xlu0 %4686
        %v4688 = vsel %vm4216, %v4532, 0.0
        %4689 = vadd.xlane.f32.xlu0 %v4688
        %v4690 = vpop.xlane.xlu0 %4689
        %v4691 = vsel %vm4216, %v4534, 0.0
        %4692 = vadd.xlane.f32.xlu0 %v4691
        %v4693 = vpop.xlane.xlu0 %4692
        %v4694 = vsel %vm4216, %v4536, 0.0
        %4695 = vadd.xlane.f32.xlu0 %v4694
        %v4696 = vpop.xlane.xlu0 %4695
        %v4697 = vsel %vm4216, %v4538, 0.0
        %4698 = vadd.xlane.f32.xlu0 %v4697
        %v4699 = vpop.xlane.xlu0 %4698
        %v4700 = vsel %vm4216, %v4540, 0.0
        %4701 = vadd.xlane.f32.xlu0 %v4700
        %v4702 = vpop.xlane.xlu0 %4701
        %v4703 = vsel %vm4216, %v4542, 0.0
        %4704 = vadd.xlane.f32.xlu0 %v4703
        %v4705 = vpop.xlane.xlu0 %4704
        %v4706 = vsel %vm4216, %v4544, 0.0
        %4707 = vadd.xlane.f32.xlu0 %v4706
        %v4708 = vpop.xlane.xlu0 %4707
        %v4709 = vsel %vm4216, %v4546, 0.0
        %4710 = vadd.xlane.f32.xlu0 %v4709
        %v4711 = vpop.xlane.xlu0 %4710
        %v4712 = vsel %vm4216, %v4548, 0.0
        %4713 = vadd.xlane.f32.xlu0 %v4712
        %v4714 = vpop.xlane.xlu0 %4713
        %v4715 = vsel %vm4216, %v4550, 0.0
        %4716 = vadd.xlane.f32.xlu0 %v4715
        %v4717 = vpop.xlane.xlu0 %4716
        %v4718 = vsel %vm4216, %v4552, 0.0
        %4719 = vadd.xlane.f32.xlu0 %v4718
        %v4720 = vpop.xlane.xlu0 %4719
        %v4721 = vsel %vm4216, %v4554, 0.0
        %4722 = vadd.xlane.f32.xlu0 %v4721
        %v4723 = vpop.xlane.xlu0 %4722
        %v4724 = vsel %vm4216, %v4556, 0.0
        %4725 = vadd.xlane.f32.xlu0 %v4724
        %v4726 = vpop.xlane.xlu0 %4725
        %v4727 = vsel %vm4216, %v4558, 0.0
        %4728 = vadd.xlane.f32.xlu0 %v4727
        %v4729 = vpop.xlane.xlu0 %4728
        %v4730 = vsel %vm4216, %v4560, 0.0
        %4731 = vadd.xlane.f32.xlu0 %v4730
        %v4732 = vpop.xlane.xlu0 %4731
        %v4733 = vsel %vm4216, %v4562, 0.0
        %4734 = vadd.xlane.f32.xlu0 %v4733
        %v4735 = vpop.xlane.xlu0 %4734
        %v4736 = vsel %vm4216, %v4564, 0.0
        %4737 = vadd.xlane.f32.xlu0 %v4736
        %v4738 = vpop.xlane.xlu0 %4737
        %v4739 = vsel %vm4216, %v4566, 0.0
        %4740 = vadd.xlane.f32.xlu0 %v4739
        %v4741 = vpop.xlane.xlu0 %4740
        %v4742 = vsel %vm4216, %v4568, 0.0
        %4743 = vadd.xlane.f32.xlu0 %v4742
        %v4744 = vpop.xlane.xlu0 %4743
        %v4745 = vsel %vm4216, %v4570, 0.0
        %4746 = vadd.xlane.f32.xlu0 %v4745
        %v4747 = vpop.xlane.xlu0 %4746
        %v4748 = vsel %vm4216, %v4572, 0.0
        %4749 = vadd.xlane.f32.xlu0 %v4748
        %v4750 = vpop.xlane.xlu0 %4749
        %v4751 = vsel %vm4216, %v4574, 0.0
        %4752 = vadd.xlane.f32.xlu0 %v4751
        %v4753 = vpop.xlane.xlu0 %4752
        %v4754 = vsel %vm4216, %v4576, 0.0
        %4755 = vadd.xlane.f32.xlu0 %v4754
        %v4756 = vpop.xlane.xlu0 %4755
        %v4757 = vsel %vm4216, %v4578, 0.0
        %4758 = vadd.xlane.f32.xlu0 %v4757
        %v4759 = vpop.xlane.xlu0 %4758
        %v4760 = vsel %vm4216, %v4580, 0.0
        %4761 = vadd.xlane.f32.xlu0 %v4760
        %v4762 = vpop.xlane.xlu0 %4761
        %v4763 = vsel %vm4216, %v4582, 0.0
        %4764 = vadd.xlane.f32.xlu0 %v4763
        %v4765 = vpop.xlane.xlu0 %4764
        %v4766 = vsel %vm4216, %v4584, 0.0
        %4767 = vadd.xlane.f32.xlu0 %v4766
        %v4768 = vpop.xlane.xlu0 %4767
        %v4769 = vsel %vm4216, %v4586, 0.0
        %4770 = vadd.xlane.f32.xlu0 %v4769
        %v4771 = vpop.xlane.xlu0 %4770
        %v4772 = vsel %vm4216, %v4588, 0.0
        %4773 = vadd.xlane.f32.xlu0 %v4772
        %v4774 = vpop.xlane.xlu0 %4773
        %v4775 = vsel %vm4216, %v4590, 0.0
        %4776 = vadd.xlane.f32.xlu0 %v4775
        %v4777 = vpop.xlane.xlu0 %4776
        %v4778 = vsel %vm4216, %v4592, 0.0
        %4779 = vadd.xlane.f32.xlu0 %v4778
        %v4780 = vpop.xlane.xlu0 %4779
        %v4781 = vsel %vm4216, %v4594, 0.0
        %4782 = vadd.xlane.f32.xlu0 %v4781
        %v4783 = vpop.xlane.xlu0 %4782
        %v4784 = vsel %vm4216, %v4596, 0.0
        %4785 = vadd.xlane.f32.xlu0 %v4784
        %v4786 = vpop.xlane.xlu0 %4785
        %v4787 = vsel %vm4216, %v4598, 0.0
        %4788 = vadd.xlane.f32.xlu0 %v4787
        %v4789 = vpop.xlane.xlu0 %4788
        %v4790 = vsel %vm4216, %v4600, 0.0
        %4791 = vadd.xlane.f32.xlu0 %v4790
        %v4792 = vpop.xlane.xlu0 %4791
        %v4793 = vrcp.pop %v4603
        %v4794 = vrcp.pop %v4606
        %v4795 = vrcp.pop %v4609
        %v4796 = vrcp.pop %v4612
        %v4797 = vrcp.pop %v4615
        %v4798 = vrcp.pop %v4618
        %v4799 = vrcp.pop %v4621
        %v4800 = vrcp.pop %v4624
        %v4801 = vrcp.pop %v4627
        %v4802 = vrcp.pop %v4630
        %v4803 = vrcp.pop %v4633
        %v4804 = vrcp.pop %v4636
        %v4805 = vrcp.pop %v4639
        %v4806 = vrcp.pop %v4642
        %v4807 = vrcp.pop %v4645
        %v4808 = vrcp.pop %v4648
        %v4809 = vrcp.pop %v4651
        %v4810 = vrcp.pop %v4654
        %v4811 = vrcp.pop %v4657
        %v4812 = vrcp.pop %v4660
        %v4813 = vrcp.pop %v4663
        %v4814 = vrcp.pop %v4666
        %v4815 = vrcp.pop %v4669
        %v4816 = vrcp.pop %v4672
        %v4817 = vrcp.pop %v4675
        %v4818 = vrcp.pop %v4678
        %v4819 = vrcp.pop %v4681
        %v4820 = vrcp.pop %v4684
        %v4821 = vrcp.pop %v4687
        %v4822 = vrcp.pop %v4690
        %v4823 = vrcp.pop %v4693
        %v4824 = vrcp.pop %v4696
        %v4825 = vrcp.pop %v4699
        %v4826 = vrcp.pop %v4702
        %v4827 = vrcp.pop %v4705
        %v4828 = vrcp.pop %v4708
        %v4829 = vrcp.pop %v4711
        %v4830 = vrcp.pop %v4714
        %v4831 = vrcp.pop %v4717
        %v4832 = vrcp.pop %v4720
        %v4833 = vrcp.pop %v4723
        %v4834 = vrcp.pop %v4726
        %v4835 = vrcp.pop %v4729
        %v4836 = vrcp.pop %v4732
        %v4837 = vrcp.pop %v4735
        %v4838 = vrcp.pop %v4738
        %v4839 = vrcp.pop %v4741
        %v4840 = vrcp.pop %v4744
        %v4841 = vrcp.pop %v4747
        %v4842 = vrcp.pop %v4750
        %v4843 = vrcp.pop %v4753
        %v4844 = vrcp.pop %v4756
        %v4845 = vrcp.pop %v4759
        %v4846 = vrcp.pop %v4762
        %v4847 = vrcp.pop %v4765
        %v4848 = vrcp.pop %v4768
        %v4849 = vrcp.pop %v4771
        %v4850 = vrcp.pop %v4774
        %v4851 = vrcp.pop %v4777
        %v4852 = vrcp.pop %v4780
        %v4853 = vrcp.pop %v4783
        %v4854 = vrcp.pop %v4786
        %v4855 = vrcp.pop %v4789
        %v4856 = vrcp.pop %v4792
        %v4857 = vmul.f32 %v4474, %v4793
        %v4858 = vmul.f32 %v4476, %v4794
        %v4859 = vmul.f32 %v4478, %v4795
        %v4860 = vmul.f32 %v4480, %v4796
        %v4861 = vmul.f32 %v4482, %v4797
        %v4862 = vmul.f32 %v4484, %v4798
        %v4863 = vmul.f32 %v4486, %v4799
        %v4864 = vmul.f32 %v4488, %v4800
        %v4865 = vmul.f32 %v4490, %v4801
        %v4866 = vmul.f32 %v4492, %v4802
        %v4867 = vmul.f32 %v4494, %v4803
        %v4868 = vmul.f32 %v4496, %v4804
        %v4869 = vmul.f32 %v4498, %v4805
        %v4870 = vmul.f32 %v4500, %v4806
        %v4871 = vmul.f32 %v4502, %v4807
        %v4872 = vmul.f32 %v4504, %v4808
        %v4873 = vmul.f32 %v4506, %v4809
        %v4874 = vmul.f32 %v4508, %v4810
        %v4875 = vmul.f32 %v4510, %v4811
        %v4876 = vmul.f32 %v4512, %v4812
        %v4877 = vmul.f32 %v4514, %v4813
        %v4878 = vmul.f32 %v4516, %v4814
        %v4879 = vmul.f32 %v4518, %v4815
        %v4880 = vmul.f32 %v4520, %v4816
        %v4881 = vmul.f32 %v4522, %v4817
        %v4882 = vmul.f32 %v4524, %v4818
        %v4883 = vmul.f32 %v4526, %v4819
        %v4884 = vmul.f32 %v4528, %v4820
        %v4885 = vmul.f32 %v4530, %v4821
        %v4886 = vmul.f32 %v4532, %v4822
        %v4887 = vmul.f32 %v4534, %v4823
        %v4888 = vmul.f32 %v4536, %v4824
        %v4889 = vmul.f32 %v4538, %v4825
        %v4890 = vmul.f32 %v4540, %v4826
        %v4891 = vmul.f32 %v4542, %v4827
        %v4892 = vmul.f32 %v4544, %v4828
        %v4893 = vmul.f32 %v4546, %v4829
        %v4894 = vmul.f32 %v4548, %v4830
        %v4895 = vmul.f32 %v4550, %v4831
        %v4896 = vmul.f32 %v4552, %v4832
        %v4897 = vmul.f32 %v4554, %v4833
        %v4898 = vmul.f32 %v4556, %v4834
        %v4899 = vmul.f32 %v4558, %v4835
        %v4900 = vmul.f32 %v4560, %v4836
        %v4901 = vmul.f32 %v4562, %v4837
        %v4902 = vmul.f32 %v4564, %v4838
        %v4903 = vmul.f32 %v4566, %v4839
        %v4904 = vmul.f32 %v4568, %v4840
        %v4905 = vmul.f32 %v4570, %v4841
        %v4906 = vmul.f32 %v4572, %v4842
        %v4907 = vmul.f32 %v4574, %v4843
        %v4908 = vmul.f32 %v4576, %v4844
        %v4909 = vmul.f32 %v4578, %v4845
        %v4910 = vmul.f32 %v4580, %v4846
        %v4911 = vmul.f32 %v4582, %v4847
        %v4912 = vmul.f32 %v4584, %v4848
        %v4913 = vmul.f32 %v4586, %v4849
        %v4914 = vmul.f32 %v4588, %v4850
        %v4915 = vmul.f32 %v4590, %v4851
        %v4916 = vmul.f32 %v4592, %v4852
        %v4917 = vmul.f32 %v4594, %v4853
        %v4918 = vmul.f32 %v4596, %v4854
        %v4919 = vmul.f32 %v4598, %v4855
        %v4920 = vmul.f32 %v4600, %v4856
        %v4921 = vpack.c.bf16 %v4858, %v4857
        %v4922 = vpack.c.bf16 %v4860, %v4859
        %v4923 = vpack.c.bf16 %v4862, %v4861
        %v4924 = vpack.c.bf16 %v4864, %v4863
        %v4925 = vpack.c.bf16 %v4866, %v4865
        %v4926 = vpack.c.bf16 %v4868, %v4867
        %v4927 = vpack.c.bf16 %v4870, %v4869
        %v4928 = vpack.c.bf16 %v4872, %v4871
        %v4929 = vpack.c.bf16 %v4874, %v4873
        %v4930 = vpack.c.bf16 %v4876, %v4875
        %v4931 = vpack.c.bf16 %v4878, %v4877
        %v4932 = vpack.c.bf16 %v4880, %v4879
        %v4933 = vpack.c.bf16 %v4882, %v4881
        %v4934 = vpack.c.bf16 %v4884, %v4883
        %v4935 = vpack.c.bf16 %v4886, %v4885
        %v4936 = vpack.c.bf16 %v4888, %v4887
        %v4937 = vpack.c.bf16 %v4890, %v4889
        %v4938 = vpack.c.bf16 %v4892, %v4891
        %v4939 = vpack.c.bf16 %v4894, %v4893
        %v4940 = vpack.c.bf16 %v4896, %v4895
        %v4941 = vpack.c.bf16 %v4898, %v4897
        %v4942 = vpack.c.bf16 %v4900, %v4899
        %v4943 = vpack.c.bf16 %v4902, %v4901
        %v4944 = vpack.c.bf16 %v4904, %v4903
        %v4945 = vpack.c.bf16 %v4906, %v4905
        %v4946 = vpack.c.bf16 %v4908, %v4907
        %v4947 = vpack.c.bf16 %v4910, %v4909
        %v4948 = vpack.c.bf16 %v4912, %v4911
        %v4949 = vpack.c.bf16 %v4914, %v4913
        %v4950 = vpack.c.bf16 %v4916, %v4915
        %v4951 = vpack.c.bf16 %v4918, %v4917
        %v4952 = vpack.c.bf16 %v4920, %v4919
        %v4954 = vsel %vm4216, %v4921, 0
        %v4957 = vsel %vm4216, %v4922, 0
        %v4960 = vsel %vm4216, %v4923, 0
        %v4963 = vsel %vm4216, %v4924, 0
        %4965 = vmatprep.subr.bf16.mxu0 0
        %4966 = vmatpush1.bf16.msra.mxu0 %v3471
        %4967 = vmatprep.subr.bf16.mxu0 0
        %4968 = vmatpush1.bf16.msra.mxu0 %v3472
        %4969 = vmatprep.subr.bf16.mxu0 0
        %4970 = vmatpush1.bf16.msra.mxu0 %v3473
        %4971 = vmatprep.subr.bf16.mxu0 0
        %4972 = vmatpush1.bf16.msra.mxu0 %v3474
        %4973 = vmatprep.subr.bf16.mxu0 0
        %4974 = vmatpush1.bf16.msra.mxu0 0
        %4975 = vmatprep.subr.bf16.mxu0 0
        %4976 = vmatpush1.bf16.msra.mxu0 0
        %4977 = vmatprep.subr.bf16.mxu0 0
        %4978 = vmatpush1.bf16.msra.mxu0 0
        %4979 = vmatprep.subr.bf16.mxu0 0
        %4980 = vmatpush1.bf16.msra.mxu0 0
        %4981 = vmatprep.subr.bf16.mxu0 0
        %4982 = vmatpush1.bf16.msra.mxu0 0
        %4983 = vmatprep.subr.bf16.mxu0 0
        %4984 = vmatpush1.bf16.msra.mxu0 0
        %4985 = vmatprep.subr.bf16.mxu0 0
        %4986 = vmatpush1.bf16.msra.mxu0 0
        %4987 = vmatprep.subr.bf16.mxu0 0
        %4988 = vmatpush1.bf16.msra.mxu0 0
        %4989 = vmatprep.subr.bf16.mxu0 0
        %4990 = vmatpush1.bf16.msra.mxu0 0
        %4991 = vmatprep.subr.bf16.mxu0 0
        %4992 = vmatpush1.bf16.msra.mxu0 0
        %4993 = vmatprep.subr.bf16.mxu0 0
        %4994 = vmatpush1.bf16.msra.mxu0 0
        %4995 = vmatprep.subr.bf16.mxu0 0
        %4996 = vmatpush1.bf16.msra.mxu0 0
        %4997 = vmatprep.mubr.bf16.mxu0 0
        %4998 = vmatmul.mubr.bf16.gmra.mrb[0].mxu0 %v4954
        %v4999 = vpop.f32.mrb[0].mxu0
        %v5000 = vadd.f32 0.0, %v4999
        %v5001 = vpop.f32.mrb[0].mxu0
        %v5002 = vpop.f32.mrb[0].mxu0
        %v5003 = vadd.f32 0.0, %v5002
        %v5004 = vpop.f32.mrb[0].mxu0
        %5005 = vmatprep.mubr.bf16.mxu0 0
        %5006 = vmatmul.mubr.bf16.gmra.mrb[0].mxu0 %v4957
        %v5007 = vpop.f32.mrb[0].mxu0
        %v5008 = vadd.f32 0.0, %v5007
        %v5009 = vpop.f32.mrb[0].mxu0
        %v5010 = vpop.f32.mrb[0].mxu0
        %v5011 = vadd.f32 0.0, %v5010
        %v5012 = vpop.f32.mrb[0].mxu0
        %5013 = vmatprep.mubr.bf16.mxu0 0
        %5014 = vmatmul.mubr.bf16.gmra.mrb[0].mxu0 %v4960
        %v5015 = vpop.f32.mrb[0].mxu0
        %v5016 = vadd.f32 0.0, %v5015
        %v5017 = vpop.f32.mrb[0].mxu0
        %v5018 = vpop.f32.mrb[0].mxu0
        %v5019 = vadd.f32 0.0, %v5018
        %v5020 = vpop.f32.mrb[0].mxu0
        %5021 = vmatprep.mubr.bf16.mxu0 0
        %5022 = vmatmul.mubr.bf16.gmra.mrb[0].mxu0 %v4963
        %v5023 = vpop.f32.mrb[0].mxu0
        %v5024 = vadd.f32 0.0, %v5023
        %v5025 = vpop.f32.mrb[0].mxu0
        %v5026 = vpop.f32.mrb[0].mxu0
        %v5027 = vadd.f32 0.0, %v5026
        %v5028 = vpop.f32.mrb[0].mxu0
        %5029 = vdwg.mxu0
        %v5031 = vsel %vm4216, %v4925, 0
        %v5034 = vsel %vm4216, %v4926, 0
        %v5037 = vsel %vm4216, %v4927, 0
        %v5040 = vsel %vm4216, %v4928, 0
        %5042 = vmatprep.subr.bf16.mxu0 0
        %5043 = vmatpush1.bf16.msra.mxu0 %v3475
        %5044 = vmatprep.subr.bf16.mxu0 0
        %5045 = vmatpush1.bf16.msra.mxu0 %v3476
        %5046 = vmatprep.subr.bf16.mxu0 0
        %5047 = vmatpush1.bf16.msra.mxu0 %v3477
        %5048 = vmatprep.subr.bf16.mxu0 0
        %5049 = vmatpush1.bf16.msra.mxu0 %v3478
        %5050 = vmatprep.subr.bf16.mxu0 0
        %5051 = vmatpush1.bf16.msra.mxu0 0
        %5052 = vmatprep.subr.bf16.mxu0 0
        %5053 = vmatpush1.bf16.msra.mxu0 0
        %5054 = vmatprep.subr.bf16.mxu0 0
        %5055 = vmatpush1.bf16.msra.mxu0 0
        %5056 = vmatprep.subr.bf16.mxu0 0
        %5057 = vmatpush1.bf16.msra.mxu0 0
        %5058 = vmatprep.subr.bf16.mxu0 0
        %5059 = vmatpush1.bf16.msra.mxu0 0
        %5060 = vmatprep.subr.bf16.mxu0 0
        %5061 = vmatpush1.bf16.msra.mxu0 0
        %5062 = vmatprep.subr.bf16.mxu0 0
        %5063 = vmatpush1.bf16.msra.mxu0 0
        %5064 = vmatprep.subr.bf16.mxu0 0
        %5065 = vmatpush1.bf16.msra.mxu0 0
        %5066 = vmatprep.subr.bf16.mxu0 0
        %5067 = vmatpush1.bf16.msra.mxu0 0
        %5068 = vmatprep.subr.bf16.mxu0 0
        %5069 = vmatpush1.bf16.msra.mxu0 0
        %5070 = vmatprep.subr.bf16.mxu0 0
        %5071 = vmatpush1.bf16.msra.mxu0 0
        %5072 = vmatprep.subr.bf16.mxu0 0
        %5073 = vmatpush1.bf16.msra.mxu0 0
        %5074 = vmatprep.mubr.bf16.mxu0 0
        %5075 = vmatmul.mubr.bf16.gmra.mrb[0].mxu0 %v5031
        %v5076 = vpop.f32.mrb[0].mxu0
        %v5077 = vadd.f32 0.0, %v5076
        %v5078 = vpop.f32.mrb[0].mxu0
        %v5079 = vpop.f32.mrb[0].mxu0
        %v5080 = vadd.f32 0.0, %v5079
        %v5081 = vpop.f32.mrb[0].mxu0
        %5082 = vmatprep.mubr.bf16.mxu0 0
        %5083 = vmatmul.mubr.bf16.gmra.mrb[0].mxu0 %v5034
        %v5084 = vpop.f32.mrb[0].mxu0
        %v5085 = vadd.f32 0.0, %v5084
        %v5086 = vpop.f32.mrb[0].mxu0
        %v5087 = vpop.f32.mrb[0].mxu0
        %v5088 = vadd.f32 0.0, %v5087
        %v5089 = vpop.f32.mrb[0].mxu0
        %5090 = vmatprep.mubr.bf16.mxu0 0
        %5091 = vmatmul.mubr.bf16.gmra.mrb[0].mxu0 %v5037
        %v5092 = vpop.f32.mrb[0].mxu0
        %v5093 = vadd.f32 0.0, %v5092
        %v5094 = vpop.f32.mrb[0].mxu0
        %v5095 = vpop.f32.mrb[0].mxu0
        %v5096 = vadd.f32 0.0, %v5095
        %v5097 = vpop.f32.mrb[0].mxu0
        %5098 = vmatprep.mubr.bf16.mxu0 0
        %5099 = vmatmul.mubr.bf16.gmra.mrb[0].mxu0 %v5040
        %v5100 = vpop.f32.mrb[0].mxu0
        %v5101 = vadd.f32 0.0, %v5100
        %v5102 = vpop.f32.mrb[0].mxu0
        %v5103 = vpop.f32.mrb[0].mxu0
        %v5104 = vadd.f32 0.0, %v5103
        %v5105 = vpop.f32.mrb[0].mxu0
        %5106 = vdwg.mxu0
        %v5108 = vsel %vm4216, %v4929, 0
        %v5111 = vsel %vm4216, %v4930, 0
        %v5114 = vsel %vm4216, %v4931, 0
        %v5117 = vsel %vm4216, %v4932, 0
        %5119 = vmatprep.subr.bf16.mxu0 0
        %5120 = vmatpush1.bf16.msra.mxu0 %v3479
        %5121 = vmatprep.subr.bf16.mxu0 0
        %5122 = vmatpush1.bf16.msra.mxu0 %v3480
        %5123 = vmatprep.subr.bf16.mxu0 0
        %5124 = vmatpush1.bf16.msra.mxu0 %v3481
        %5125 = vmatprep.subr.bf16.mxu0 0
        %5126 = vmatpush1.bf16.msra.mxu0 %v3482
        %5127 = vmatprep.subr.bf16.mxu0 0
        %5128 = vmatpush1.bf16.msra.mxu0 0
        %5129 = vmatprep.subr.bf16.mxu0 0
        %5130 = vmatpush1.bf16.msra.mxu0 0
        %5131 = vmatprep.subr.bf16.mxu0 0
        %5132 = vmatpush1.bf16.msra.mxu0 0
        %5133 = vmatprep.subr.bf16.mxu0 0
        %5134 = vmatpush1.bf16.msra.mxu0 0
        %5135 = vmatprep.subr.bf16.mxu0 0
        %5136 = vmatpush1.bf16.msra.mxu0 0
        %5137 = vmatprep.subr.bf16.mxu0 0
        %5138 = vmatpush1.bf16.msra.mxu0 0
        %5139 = vmatprep.subr.bf16.mxu0 0
        %5140 = vmatpush1.bf16.msra.mxu0 0
        %5141 = vmatprep.subr.bf16.mxu0 0
        %5142 = vmatpush1.bf16.msra.mxu0 0
        %5143 = vmatprep.subr.bf16.mxu0 0
        %5144 = vmatpush1.bf16.msra.mxu0 0
        %5145 = vmatprep.subr.bf16.mxu0 0
        %5146 = vmatpush1.bf16.msra.mxu0 0
        %5147 = vmatprep.subr.bf16.mxu0 0
        %5148 = vmatpush1.bf16.msra.mxu0 0
        %5149 = vmatprep.subr.bf16.mxu0 0
        %5150 = vmatpush1.bf16.msra.mxu0 0
        %5151 = vmatprep.mubr.bf16.mxu0 0
        %5152 = vmatmul.mubr.bf16.gmra.mrb[0].mxu0 %v5108
        %v5153 = vpop.f32.mrb[0].mxu0
        %v5154 = vadd.f32 0.0, %v5153
        %v5155 = vpop.f32.mrb[0].mxu0
        %v5156 = vpop.f32.mrb[0].mxu0
        %v5157 = vadd.f32 0.0, %v5156
        %v5158 = vpop.f32.mrb[0].mxu0
        %5159 = vmatprep.mubr.bf16.mxu0 0
        %5160 = vmatmul.mubr.bf16.gmra.mrb[0].mxu0 %v5111
        %v5161 = vpop.f32.mrb[0].mxu0
        %v5162 = vadd.f32 0.0, %v5161
        %v5163 = vpop.f32.mrb[0].mxu0
        %v5164 = vpop.f32.mrb[0].mxu0
        %v5165 = vadd.f32 0.0, %v5164
        %v5166 = vpop.f32.mrb[0].mxu0
        %5167 = vmatprep.mubr.bf16.mxu0 0
        %5168 = vmatmul.mubr.bf16.gmra.mrb[0].mxu0 %v5114
        %v5169 = vpop.f32.mrb[0].mxu0
        %v5170 = vadd.f32 0.0, %v5169
        %v5171 = vpop.f32.mrb[0].mxu0
        %v5172 = vpop.f32.mrb[0].mxu0
        %v5173 = vadd.f32 0.0, %v5172
        %v5174 = vpop.f32.mrb[0].mxu0
        %5175 = vmatprep.mubr.bf16.mxu0 0
        %5176 = vmatmul.mubr.bf16.gmra.mrb[0].mxu0 %v5117
        %v5177 = vpop.f32.mrb[0].mxu0
        %v5178 = vadd.f32 0.0, %v5177
        %v5179 = vpop.f32.mrb[0].mxu0
        %v5180 = vpop.f32.mrb[0].mxu0
        %v5181 = vadd.f32 0.0, %v5180
        %v5182 = vpop.f32.mrb[0].mxu0
        %5183 = vdwg.mxu0
        %v5185 = vsel %vm4216, %v4933, 0
        %v5188 = vsel %vm4216, %v4934, 0
        %v5191 = vsel %vm4216, %v4935, 0
        %v5194 = vsel %vm4216, %v4936, 0
        %5196 = vmatprep.subr.bf16.mxu0 0
        %5197 = vmatpush1.bf16.msra.mxu0 %v3483
        %5198 = vmatprep.subr.bf16.mxu0 0
        %5199 = vmatpush1.bf16.msra.mxu0 %v3484
        %5200 = vmatprep.subr.bf16.mxu0 0
        %5201 = vmatpush1.bf16.msra.mxu0 %v3485
        %5202 = vmatprep.subr.bf16.mxu0 0
        %5203 = vmatpush1.bf16.msra.mxu0 %v3486
        %5204 = vmatprep.subr.bf16.mxu0 0
        %5205 = vmatpush1.bf16.msra.mxu0 0
        %5206 = vmatprep.subr.bf16.mxu0 0
        %5207 = vmatpush1.bf16.msra.mxu0 0
        %5208 = vmatprep.subr.bf16.mxu0 0
        %5209 = vmatpush1.bf16.msra.mxu0 0
        %5210 = vmatprep.subr.bf16.mxu0 0
        %5211 = vmatpush1.bf16.msra.mxu0 0
        %5212 = vmatprep.subr.bf16.mxu0 0
        %5213 = vmatpush1.bf16.msra.mxu0 0
        %5214 = vmatprep.subr.bf16.mxu0 0
        %5215 = vmatpush1.bf16.msra.mxu0 0
        %5216 = vmatprep.subr.bf16.mxu0 0
        %5217 = vmatpush1.bf16.msra.mxu0 0
        %5218 = vmatprep.subr.bf16.mxu0 0
        %5219 = vmatpush1.bf16.msra.mxu0 0
        %5220 = vmatprep.subr.bf16.mxu0 0
        %5221 = vmatpush1.bf16.msra.mxu0 0
        %5222 = vmatprep.subr.bf16.mxu0 0
        %5223 = vmatpush1.bf16.msra.mxu0 0
        %5224 = vmatprep.subr.bf16.mxu0 0
        %5225 = vmatpush1.bf16.msra.mxu0 0
        %5226 = vmatprep.subr.bf16.mxu0 0
        %5227 = vmatpush1.bf16.msra.mxu0 0
        %5228 = vmatprep.mubr.bf16.mxu0 0
        %5229 = vmatmul.mubr.bf16.gmra.mrb[0].mxu0 %v5185
        %v5230 = vpop.f32.mrb[0].mxu0
        %v5231 = vadd.f32 0.0, %v5230
        %v5232 = vpop.f32.mrb[0].mxu0
        %v5233 = vpop.f32.mrb[0].mxu0
        %v5234 = vadd.f32 0.0, %v5233
        %v5235 = vpop.f32.mrb[0].mxu0
        %5236 = vmatprep.mubr.bf16.mxu0 0
        %5237 = vmatmul.mubr.bf16.gmra.mrb[0].mxu0 %v5188
        %v5238 = vpop.f32.mrb[0].mxu0
        %v5239 = vadd.f32 0.0, %v5238
        %v5240 = vpop.f32.mrb[0].mxu0
        %v5241 = vpop.f32.mrb[0].mxu0
        %v5242 = vadd.f32 0.0, %v5241
        %v5243 = vpop.f32.mrb[0].mxu0
        %5244 = vmatprep.mubr.bf16.mxu0 0
        %5245 = vmatmul.mubr.bf16.gmra.mrb[0].mxu0 %v5191
        %v5246 = vpop.f32.mrb[0].mxu0
        %v5247 = vadd.f32 0.0, %v5246
        %v5248 = vpop.f32.mrb[0].mxu0
        %v5249 = vpop.f32.mrb[0].mxu0
        %v5250 = vadd.f32 0.0, %v5249
        %v5251 = vpop.f32.mrb[0].mxu0
        %5252 = vmatprep.mubr.bf16.mxu0 0
        %5253 = vmatmul.mubr.bf16.gmra.mrb[0].mxu0 %v5194
        %v5254 = vpop.f32.mrb[0].mxu0
        %v5255 = vadd.f32 0.0, %v5254
        %v5256 = vpop.f32.mrb[0].mxu0
        %v5257 = vpop.f32.mrb[0].mxu0
        %v5258 = vadd.f32 0.0, %v5257
        %v5259 = vpop.f32.mrb[0].mxu0
        %5260 = vdwg.mxu0
        %v5262 = vsel %vm4216, %v4937, 0
        %v5265 = vsel %vm4216, %v4938, 0
        %v5268 = vsel %vm4216, %v4939, 0
        %v5271 = vsel %vm4216, %v4940, 0
        %5273 = vmatprep.subr.bf16.mxu0 0
        %5274 = vmatpush1.bf16.msra.mxu0 %v3487
        %5275 = vmatprep.subr.bf16.mxu0 0
        %5276 = vmatpush1.bf16.msra.mxu0 %v3488
        %5277 = vmatprep.subr.bf16.mxu0 0
        %5278 = vmatpush1.bf16.msra.mxu0 %v3489
        %5279 = vmatprep.subr.bf16.mxu0 0
        %5280 = vmatpush1.bf16.msra.mxu0 %v3490
        %5281 = vmatprep.subr.bf16.mxu0 0
        %5282 = vmatpush1.bf16.msra.mxu0 0
        %5283 = vmatprep.subr.bf16.mxu0 0
        %5284 = vmatpush1.bf16.msra.mxu0 0
        %5285 = vmatprep.subr.bf16.mxu0 0
        %5286 = vmatpush1.bf16.msra.mxu0 0
        %5287 = vmatprep.subr.bf16.mxu0 0
        %5288 = vmatpush1.bf16.msra.mxu0 0
        %5289 = vmatprep.subr.bf16.mxu0 0
        %5290 = vmatpush1.bf16.msra.mxu0 0
        %5291 = vmatprep.subr.bf16.mxu0 0
        %5292 = vmatpush1.bf16.msra.mxu0 0
        %5293 = vmatprep.subr.bf16.mxu0 0
        %5294 = vmatpush1.bf16.msra.mxu0 0
        %5295 = vmatprep.subr.bf16.mxu0 0
        %5296 = vmatpush1.bf16.msra.mxu0 0
        %5297 = vmatprep.subr.bf16.mxu0 0
        %5298 = vmatpush1.bf16.msra.mxu0 0
        %5299 = vmatprep.subr.bf16.mxu0 0
        %5300 = vmatpush1.bf16.msra.mxu0 0
        %5301 = vmatprep.subr.bf16.mxu0 0
        %5302 = vmatpush1.bf16.msra.mxu0 0
        %5303 = vmatprep.subr.bf16.mxu0 0
        %5304 = vmatpush1.bf16.msra.mxu0 0
        %5305 = vmatprep.mubr.bf16.mxu0 0
        %5306 = vmatmul.mubr.bf16.gmra.mrb[0].mxu0 %v5262
        %v5307 = vpop.f32.mrb[0].mxu0
        %v5308 = vadd.f32 0.0, %v5307
        %v5309 = vpop.f32.mrb[0].mxu0
        %v5310 = vpop.f32.mrb[0].mxu0
        %v5311 = vadd.f32 0.0, %v5310
        %v5312 = vpop.f32.mrb[0].mxu0
        %5313 = vmatprep.mubr.bf16.mxu0 0
        %5314 = vmatmul.mubr.bf16.gmra.mrb[0].mxu0 %v5265
        %v5315 = vpop.f32.mrb[0].mxu0
        %v5316 = vadd.f32 0.0, %v5315
        %v5317 = vpop.f32.mrb[0].mxu0
        %v5318 = vpop.f32.mrb[0].mxu0
        %v5319 = vadd.f32 0.0, %v5318
        %v5320 = vpop.f32.mrb[0].mxu0
        %5321 = vmatprep.mubr.bf16.mxu0 0
        %5322 = vmatmul.mubr.bf16.gmra.mrb[0].mxu0 %v5268
        %v5323 = vpop.f32.mrb[0].mxu0
        %v5324 = vadd.f32 0.0, %v5323
        %v5325 = vpop.f32.mrb[0].mxu0
        %v5326 = vpop.f32.mrb[0].mxu0
        %v5327 = vadd.f32 0.0, %v5326
        %v5328 = vpop.f32.mrb[0].mxu0
        %5329 = vmatprep.mubr.bf16.mxu0 0
        %5330 = vmatmul.mubr.bf16.gmra.mrb[0].mxu0 %v5271
        %v5331 = vpop.f32.mrb[0].mxu0
        %v5332 = vadd.f32 0.0, %v5331
        %v5333 = vpop.f32.mrb[0].mxu0
        %v5334 = vpop.f32.mrb[0].mxu0
        %v5335 = vadd.f32 0.0, %v5334
        %v5336 = vpop.f32.mrb[0].mxu0
        %5337 = vdwg.mxu0
        %v5339 = vsel %vm4216, %v4941, 0
        %v5342 = vsel %vm4216, %v4942, 0
        %v5345 = vsel %vm4216, %v4943, 0
        %v5348 = vsel %vm4216, %v4944, 0
        %5350 = vmatprep.subr.bf16.mxu0 0
        %5351 = vmatpush1.bf16.msra.mxu0 %v3491
        %5352 = vmatprep.subr.bf16.mxu0 0
        %5353 = vmatpush1.bf16.msra.mxu0 %v3492
        %5354 = vmatprep.subr.bf16.mxu0 0
        %5355 = vmatpush1.bf16.msra.mxu0 %v3493
        %5356 = vmatprep.subr.bf16.mxu0 0
        %5357 = vmatpush1.bf16.msra.mxu0 %v3494
        %5358 = vmatprep.subr.bf16.mxu0 0
        %5359 = vmatpush1.bf16.msra.mxu0 0
        %5360 = vmatprep.subr.bf16.mxu0 0
        %5361 = vmatpush1.bf16.msra.mxu0 0
        %5362 = vmatprep.subr.bf16.mxu0 0
        %5363 = vmatpush1.bf16.msra.mxu0 0
        %5364 = vmatprep.subr.bf16.mxu0 0
        %5365 = vmatpush1.bf16.msra.mxu0 0
        %5366 = vmatprep.subr.bf16.mxu0 0
        %5367 = vmatpush1.bf16.msra.mxu0 0
        %5368 = vmatprep.subr.bf16.mxu0 0
        %5369 = vmatpush1.bf16.msra.mxu0 0
        %5370 = vmatprep.subr.bf16.mxu0 0
        %5371 = vmatpush1.bf16.msra.mxu0 0
        %5372 = vmatprep.subr.bf16.mxu0 0
        %5373 = vmatpush1.bf16.msra.mxu0 0
        %5374 = vmatprep.subr.bf16.mxu0 0
        %5375 = vmatpush1.bf16.msra.mxu0 0
        %5376 = vmatprep.subr.bf16.mxu0 0
        %5377 = vmatpush1.bf16.msra.mxu0 0
        %5378 = vmatprep.subr.bf16.mxu0 0
        %5379 = vmatpush1.bf16.msra.mxu0 0
        %5380 = vmatprep.subr.bf16.mxu0 0
        %5381 = vmatpush1.bf16.msra.mxu0 0
        %5382 = vmatprep.mubr.bf16.mxu0 0
        %5383 = vmatmul.mubr.bf16.gmra.mrb[0].mxu0 %v5339
        %v5384 = vpop.f32.mrb[0].mxu0
        %v5385 = vadd.f32 0.0, %v5384
        %v5386 = vpop.f32.mrb[0].mxu0
        %v5387 = vpop.f32.mrb[0].mxu0
        %v5388 = vadd.f32 0.0, %v5387
        %v5389 = vpop.f32.mrb[0].mxu0
        %5390 = vmatprep.mubr.bf16.mxu0 0
        %5391 = vmatmul.mubr.bf16.gmra.mrb[0].mxu0 %v5342
        %v5392 = vpop.f32.mrb[0].mxu0
        %v5393 = vadd.f32 0.0, %v5392
        %v5394 = vpop.f32.mrb[0].mxu0
        %v5395 = vpop.f32.mrb[0].mxu0
        %v5396 = vadd.f32 0.0, %v5395
        %v5397 = vpop.f32.mrb[0].mxu0
        %5398 = vmatprep.mubr.bf16.mxu0 0
        %5399 = vmatmul.mubr.bf16.gmra.mrb[0].mxu0 %v5345
        %v5400 = vpop.f32.mrb[0].mxu0
        %v5401 = vadd.f32 0.0, %v5400
        %v5402 = vpop.f32.mrb[0].mxu0
        %v5403 = vpop.f32.mrb[0].mxu0
        %v5404 = vadd.f32 0.0, %v5403
        %v5405 = vpop.f32.mrb[0].mxu0
        %5406 = vmatprep.mubr.bf16.mxu0 0
        %5407 = vmatmul.mubr.bf16.gmra.mrb[0].mxu0 %v5348
        %v5408 = vpop.f32.mrb[0].mxu0
        %v5409 = vadd.f32 0.0, %v5408
        %v5410 = vpop.f32.mrb[0].mxu0
        %v5411 = vpop.f32.mrb[0].mxu0
        %v5412 = vadd.f32 0.0, %v5411
        %v5413 = vpop.f32.mrb[0].mxu0
        %5414 = vdwg.mxu0
        %v5416 = vsel %vm4216, %v4945, 0
        %v5419 = vsel %vm4216, %v4946, 0
        %v5422 = vsel %vm4216, %v4947, 0
        %v5425 = vsel %vm4216, %v4948, 0
        %5427 = vmatprep.subr.bf16.mxu0 0
        %5428 = vmatpush1.bf16.msra.mxu0 %v3495
        %5429 = vmatprep.subr.bf16.mxu0 0
        %5430 = vmatpush1.bf16.msra.mxu0 %v3496
        %5431 = vmatprep.subr.bf16.mxu0 0
        %5432 = vmatpush1.bf16.msra.mxu0 %v3497
        %5433 = vmatprep.subr.bf16.mxu0 0
        %5434 = vmatpush1.bf16.msra.mxu0 %v3498
        %5435 = vmatprep.subr.bf16.mxu0 0
        %5436 = vmatpush1.bf16.msra.mxu0 0
        %5437 = vmatprep.subr.bf16.mxu0 0
        %5438 = vmatpush1.bf16.msra.mxu0 0
        %5439 = vmatprep.subr.bf16.mxu0 0
        %5440 = vmatpush1.bf16.msra.mxu0 0
        %5441 = vmatprep.subr.bf16.mxu0 0
        %5442 = vmatpush1.bf16.msra.mxu0 0
        %5443 = vmatprep.subr.bf16.mxu0 0
        %5444 = vmatpush1.bf16.msra.mxu0 0
        %5445 = vmatprep.subr.bf16.mxu0 0
        %5446 = vmatpush1.bf16.msra.mxu0 0
        %5447 = vmatprep.subr.bf16.mxu0 0
        %5448 = vmatpush1.bf16.msra.mxu0 0
        %5449 = vmatprep.subr.bf16.mxu0 0
        %5450 = vmatpush1.bf16.msra.mxu0 0
        %5451 = vmatprep.subr.bf16.mxu0 0
        %5452 = vmatpush1.bf16.msra.mxu0 0
        %5453 = vmatprep.subr.bf16.mxu0 0
        %5454 = vmatpush1.bf16.msra.mxu0 0
        %5455 = vmatprep.subr.bf16.mxu0 0
        %5456 = vmatpush1.bf16.msra.mxu0 0
        %5457 = vmatprep.subr.bf16.mxu0 0
        %5458 = vmatpush1.bf16.msra.mxu0 0
        %5459 = vmatprep.mubr.bf16.mxu0 0
        %5460 = vmatmul.mubr.bf16.gmra.mrb[0].mxu0 %v5416
        %v5461 = vpop.f32.mrb[0].mxu0
        %v5462 = vadd.f32 0.0, %v5461
        %v5463 = vpop.f32.mrb[0].mxu0
        %v5464 = vpop.f32.mrb[0].mxu0
        %v5465 = vadd.f32 0.0, %v5464
        %v5466 = vpop.f32.mrb[0].mxu0
        %5467 = vmatprep.mubr.bf16.mxu0 0
        %5468 = vmatmul.mubr.bf16.gmra.mrb[0].mxu0 %v5419
        %v5469 = vpop.f32.mrb[0].mxu0
        %v5470 = vadd.f32 0.0, %v5469
        %v5471 = vpop.f32.mrb[0].mxu0
        %v5472 = vpop.f32.mrb[0].mxu0
        %v5473 = vadd.f32 0.0, %v5472
        %v5474 = vpop.f32.mrb[0].mxu0
        %5475 = vmatprep.mubr.bf16.mxu0 0
        %5476 = vmatmul.mubr.bf16.gmra.mrb[0].mxu0 %v5422
        %v5477 = vpop.f32.mrb[0].mxu0
        %v5478 = vadd.f32 0.0, %v5477
        %v5479 = vpop.f32.mrb[0].mxu0
        %v5480 = vpop.f32.mrb[0].mxu0
        %v5481 = vadd.f32 0.0, %v5480
        %v5482 = vpop.f32.mrb[0].mxu0
        %5483 = vmatprep.mubr.bf16.mxu0 0
        %5484 = vmatmul.mubr.bf16.gmra.mrb[0].mxu0 %v5425
        %v5485 = vpop.f32.mrb[0].mxu0
        %v5486 = vadd.f32 0.0, %v5485
        %v5487 = vpop.f32.mrb[0].mxu0
        %v5488 = vpop.f32.mrb[0].mxu0
        %v5489 = vadd.f32 0.0, %v5488
        %v5490 = vpop.f32.mrb[0].mxu0
        %5491 = vdwg.mxu0
        %v5493 = vsel %vm4216, %v4949, 0
        %v5496 = vsel %vm4216, %v4950, 0
        %v5499 = vsel %vm4216, %v4951, 0
        %v5502 = vsel %vm4216, %v4952, 0
        %5504 = vmatprep.subr.bf16.mxu0 0
        %5505 = vmatpush1.bf16.msra.mxu0 %v3499
        %5506 = vmatprep.subr.bf16.mxu0 0
        %5507 = vmatpush1.bf16.msra.mxu0 %v3500
        %5508 = vmatprep.subr.bf16.mxu0 0
        %5509 = vmatpush1.bf16.msra.mxu0 %v3501
        %5510 = vmatprep.subr.bf16.mxu0 0
        %5511 = vmatpush1.bf16.msra.mxu0 %v3502
        %5512 = vmatprep.subr.bf16.mxu0 0
        %5513 = vmatpush1.bf16.msra.mxu0 0
        %5514 = vmatprep.subr.bf16.mxu0 0
        %5515 = vmatpush1.bf16.msra.mxu0 0
        %5516 = vmatprep.subr.bf16.mxu0 0
        %5517 = vmatpush1.bf16.msra.mxu0 0
        %5518 = vmatprep.subr.bf16.mxu0 0
        %5519 = vmatpush1.bf16.msra.mxu0 0
        %5520 = vmatprep.subr.bf16.mxu0 0
        %5521 = vmatpush1.bf16.msra.mxu0 0
        %5522 = vmatprep.subr.bf16.mxu0 0
        %5523 = vmatpush1.bf16.msra.mxu0 0
        %5524 = vmatprep.subr.bf16.mxu0 0
        %5525 = vmatpush1.bf16.msra.mxu0 0
        %5526 = vmatprep.subr.bf16.mxu0 0
        %5527 = vmatpush1.bf16.msra.mxu0 0
        %5528 = vmatprep.subr.bf16.mxu0 0
        %5529 = vmatpush1.bf16.msra.mxu0 0
        %5530 = vmatprep.subr.bf16.mxu0 0
        %5531 = vmatpush1.bf16.msra.mxu0 0
        %5532 = vmatprep.subr.bf16.mxu0 0
        %5533 = vmatpush1.bf16.msra.mxu0 0
        %5534 = vmatprep.subr.bf16.mxu0 0
        %5535 = vmatpush1.bf16.msra.mxu0 0
        %5536 = vmatprep.mubr.bf16.mxu0 0
        %5537 = vmatmul.mubr.bf16.gmra.mrb[0].mxu0 %v5493
        %v5538 = vpop.f32.mrb[0].mxu0
        %v5539 = vadd.f32 0.0, %v5538
        %v5540 = vpop.f32.mrb[0].mxu0
        %v5541 = vpop.f32.mrb[0].mxu0
        %v5542 = vadd.f32 0.0, %v5541
        %v5543 = vpop.f32.mrb[0].mxu0
        %5544 = vmatprep.mubr.bf16.mxu0 0
        %5545 = vmatmul.mubr.bf16.gmra.mrb[0].mxu0 %v5496
        %v5546 = vpop.f32.mrb[0].mxu0
        %v5547 = vadd.f32 0.0, %v5546
        %v5548 = vpop.f32.mrb[0].mxu0
        %v5549 = vpop.f32.mrb[0].mxu0
        %v5550 = vadd.f32 0.0, %v5549
        %v5551 = vpop.f32.mrb[0].mxu0
        %5552 = vmatprep.mubr.bf16.mxu0 0
        %5553 = vmatmul.mubr.bf16.gmra.mrb[0].mxu0 %v5499
        %v5554 = vpop.f32.mrb[0].mxu0
        %v5555 = vadd.f32 0.0, %v5554
        %v5556 = vpop.f32.mrb[0].mxu0
        %v5557 = vpop.f32.mrb[0].mxu0
        %v5558 = vadd.f32 0.0, %v5557
        %v5559 = vpop.f32.mrb[0].mxu0
        %5560 = vmatprep.mubr.bf16.mxu0 0
        %5561 = vmatmul.mubr.bf16.gmra.mrb[0].mxu0 %v5502
        %v5562 = vpop.f32.mrb[0].mxu0
        %v5563 = vadd.f32 0.0, %v5562
        %v5564 = vpop.f32.mrb[0].mxu0
        %v5565 = vpop.f32.mrb[0].mxu0
        %v5566 = vadd.f32 0.0, %v5565
        %v5567 = vpop.f32.mrb[0].mxu0
        %5568 = vdwg.mxu0
        %v5569 = vpack.c.bf16 %v5003, %v5000
        %v5570 = vpack.c.bf16 %v5011, %v5008
        %v5571 = vpack.c.bf16 %v5019, %v5016
        %v5572 = vpack.c.bf16 %v5027, %v5024
        %v5573 = vpack.c.bf16 %v5080, %v5077
        %v5574 = vpack.c.bf16 %v5088, %v5085
        %v5575 = vpack.c.bf16 %v5096, %v5093
        %v5576 = vpack.c.bf16 %v5104, %v5101
        %v5577 = vpack.c.bf16 %v5157, %v5154
        %v5578 = vpack.c.bf16 %v5165, %v5162
        %v5579 = vpack.c.bf16 %v5173, %v5170
        %v5580 = vpack.c.bf16 %v5181, %v5178
        %v5581 = vpack.c.bf16 %v5234, %v5231
        %v5582 = vpack.c.bf16 %v5242, %v5239
        %v5583 = vpack.c.bf16 %v5250, %v5247
        %v5584 = vpack.c.bf16 %v5258, %v5255
        %v5585 = vpack.c.bf16 %v5311, %v5308
        %v5586 = vpack.c.bf16 %v5319, %v5316
        %v5587 = vpack.c.bf16 %v5327, %v5324
        %v5588 = vpack.c.bf16 %v5335, %v5332
        %v5589 = vpack.c.bf16 %v5388, %v5385
        %v5590 = vpack.c.bf16 %v5396, %v5393
        %v5591 = vpack.c.bf16 %v5404, %v5401
        %v5592 = vpack.c.bf16 %v5412, %v5409
        %v5593 = vpack.c.bf16 %v5465, %v5462
        %v5594 = vpack.c.bf16 %v5473, %v5470
        %v5595 = vpack.c.bf16 %v5481, %v5478
        %v5596 = vpack.c.bf16 %v5489, %v5486
        %v5597 = vpack.c.bf16 %v5542, %v5539
        %v5598 = vpack.c.bf16 %v5550, %v5547
        %v5599 = vpack.c.bf16 %v5558, %v5555
        %v5600 = vpack.c.bf16 %v5566, %v5563
        %v5601 = vld [vmem:[#allocation10] sm:$0xf]
        %v5602 = vld [vmem:[#allocation10 + $0x4] sm:$0xf]
        %v5603 = vld [vmem:[#allocation10 + $0x8] sm:$0xf]
        %v5604 = vld [vmem:[#allocation10 + $0xc] sm:$0xf]
        %v5605 = vld [vmem:[#allocation10 + $0x10] sm:$0xf]
        %v5606 = vld [vmem:[#allocation10 + $0x14] sm:$0xf]
        %v5607 = vld [vmem:[#allocation10 + $0x18] sm:$0xf]
        %v5608 = vld [vmem:[#allocation10 + $0x1c] sm:$0xf]
        %v5609 = vld [vmem:[#allocation10 + $0x20] sm:$0xf]
        %v5610 = vld [vmem:[#allocation10 + $0x24] sm:$0xf]
        %v5611 = vld [vmem:[#allocation10 + $0x28] sm:$0xf]
        %v5612 = vld [vmem:[#allocation10 + $0x2c] sm:$0xf]
        %v5613 = vld [vmem:[#allocation10 + $0x30] sm:$0xf]
        %v5614 = vld [vmem:[#allocation10 + $0x34] sm:$0xf]
        %v5615 = vld [vmem:[#allocation10 + $0x38] sm:$0xf]
        %v5616 = vld [vmem:[#allocation10 + $0x3c] sm:$0xf]
        %v5621 = vunpack.c.l.b16 %v5601
        %v5622 = vunpack.c.l.b16 %v5602
        %v5623 = vunpack.c.l.b16 %v5603
        %v5624 = vunpack.c.l.b16 %v5604
        %v5625 = vpack.c.b16 %v5622, %v5621
        %v5626 = vpack.c.b16 %v5624, %v5623
        %v5630 = vsel %vm3503, %v5569, 0
        %v5633 = vsel %vm3503, %v5570, 0
        %v5636 = vsel %vm3503, %v5571, 0
        %v5639 = vsel %vm3503, %v5572, 0
        %v5642 = vsel %vm3503, %v5573, 0
        %v5645 = vsel %vm3503, %v5574, 0
        %v5648 = vsel %vm3503, %v5575, 0
        %v5651 = vsel %vm3503, %v5576, 0
        %5653 = vmatprep.subr.bf16.mxu0 0
        %5654 = vmatpush1.bf16.msra.mxu0 %v5625
        %5655 = vmatprep.subr.bf16.mxu0 0
        %5656 = vmatpush1.bf16.msra.mxu0 %v5626
        %5657 = vmatprep.subr.bf16.mxu0 0
        %5658 = vmatpush1.bf16.msra.mxu0 0
        %5659 = vmatprep.subr.bf16.mxu0 0
        %5660 = vmatpush1.bf16.msra.mxu0 0
        %5661 = vmatprep.subr.bf16.mxu0 0
        %5662 = vmatpush1.bf16.msra.mxu0 0
        %5663 = vmatprep.subr.bf16.mxu0 0
        %5664 = vmatpush1.bf16.msra.mxu0 0
        %5665 = vmatprep.subr.bf16.mxu0 0
        %5666 = vmatpush1.bf16.msra.mxu0 0
        %5667 = vmatprep.subr.bf16.mxu0 0
        %5668 = vmatpush1.bf16.msra.mxu0 0
        %5669 = vmatprep.subr.bf16.mxu0 0
        %5670 = vmatpush1.bf16.msra.mxu0 0
        %5671 = vmatprep.subr.bf16.mxu0 0
        %5672 = vmatpush1.bf16.msra.mxu0 0
        %5673 = vmatprep.subr.bf16.mxu0 0
        %5674 = vmatpush1.bf16.msra.mxu0 0
        %5675 = vmatprep.subr.bf16.mxu0 0
        %5676 = vmatpush1.bf16.msra.mxu0 0
        %5677 = vmatprep.subr.bf16.mxu0 0
        %5678 = vmatpush1.bf16.msra.mxu0 0
        %5679 = vmatprep.subr.bf16.mxu0 0
        %5680 = vmatpush1.bf16.msra.mxu0 0
        %5681 = vmatprep.subr.bf16.mxu0 0
        %5682 = vmatpush1.bf16.msra.mxu0 0
        %5683 = vmatprep.subr.bf16.mxu0 0
        %5684 = vmatpush1.bf16.msra.mxu0 0
        %5685 = vmatprep.mubr.bf16.mxu0 0
        %5686 = vmatmul.mubr.bf16.gmra.mrb[0].mxu0 %v5630
        %v5687 = vpop.f32.mrb[0].mxu0
        %v5688 = vadd.f32 0.0, %v5687
        %v5689 = vpop.f32.mrb[0].mxu0
        %v5690 = vpop.f32.mrb[0].mxu0
        %v5691 = vadd.f32 0.0, %v5690
        %v5692 = vpop.f32.mrb[0].mxu0
        %5693 = vmatprep.mubr.bf16.mxu0 0
        %5694 = vmatmul.mubr.bf16.gmra.mrb[0].mxu0 %v5633
        %v5695 = vpop.f32.mrb[0].mxu0
        %v5696 = vadd.f32 0.0, %v5695
        %v5697 = vpop.f32.mrb[0].mxu0
        %v5698 = vpop.f32.mrb[0].mxu0
        %v5699 = vadd.f32 0.0, %v5698
        %v5700 = vpop.f32.mrb[0].mxu0
        %5701 = vmatprep.mubr.bf16.mxu0 0
        %5702 = vmatmul.mubr.bf16.gmra.mrb[0].mxu0 %v5636
        %v5703 = vpop.f32.mrb[0].mxu0
        %v5704 = vadd.f32 0.0, %v5703
        %v5705 = vpop.f32.mrb[0].mxu0
        %v5706 = vpop.f32.mrb[0].mxu0
        %v5707 = vadd.f32 0.0, %v5706
        %v5708 = vpop.f32.mrb[0].mxu0
        %5709 = vmatprep.mubr.bf16.mxu0 0
        %5710 = vmatmul.mubr.bf16.gmra.mrb[0].mxu0 %v5639
        %v5711 = vpop.f32.mrb[0].mxu0
        %v5712 = vadd.f32 0.0, %v5711
        %v5713 = vpop.f32.mrb[0].mxu0
        %v5714 = vpop.f32.mrb[0].mxu0
        %v5715 = vadd.f32 0.0, %v5714
        %v5716 = vpop.f32.mrb[0].mxu0
        %5717 = vmatprep.mubr.bf16.mxu0 0
        %5718 = vmatmul.mubr.bf16.gmra.mrb[0].mxu0 %v5642
        %v5719 = vpop.f32.mrb[0].mxu0
        %v5720 = vadd.f32 0.0, %v5719
        %v5721 = vpop.f32.mrb[0].mxu0
        %v5722 = vpop.f32.mrb[0].mxu0
        %v5723 = vadd.f32 0.0, %v5722
        %v5724 = vpop.f32.mrb[0].mxu0
        %5725 = vmatprep.mubr.bf16.mxu0 0
        %5726 = vmatmul.mubr.bf16.gmra.mrb[0].mxu0 %v5645
        %v5727 = vpop.f32.mrb[0].mxu0
        %v5728 = vadd.f32 0.0, %v5727
        %v5729 = vpop.f32.mrb[0].mxu0
        %v5730 = vpop.f32.mrb[0].mxu0
        %v5731 = vadd.f32 0.0, %v5730
        %v5732 = vpop.f32.mrb[0].mxu0
        %5733 = vmatprep.mubr.bf16.mxu0 0
        %5734 = vmatmul.mubr.bf16.gmra.mrb[0].mxu0 %v5648
        %v5735 = vpop.f32.mrb[0].mxu0
        %v5736 = vadd.f32 0.0, %v5735
        %v5737 = vpop.f32.mrb[0].mxu0
        %v5738 = vpop.f32.mrb[0].mxu0
        %v5739 = vadd.f32 0.0, %v5738
        %v5740 = vpop.f32.mrb[0].mxu0
        %5741 = vmatprep.mubr.bf16.mxu0 0
        %5742 = vmatmul.mubr.bf16.gmra.mrb[0].mxu0 %v5651
        %v5743 = vpop.f32.mrb[0].mxu0
        %v5744 = vadd.f32 0.0, %v5743
        %v5745 = vpop.f32.mrb[0].mxu0
        %v5746 = vpop.f32.mrb[0].mxu0
        %v5747 = vadd.f32 0.0, %v5746
        %v5748 = vpop.f32.mrb[0].mxu0
        %5749 = vdwg.mxu0
        %v5754 = vunpack.c.l.b16 %v5605
        %v5755 = vunpack.c.l.b16 %v5606
        %v5756 = vunpack.c.l.b16 %v5607
        %v5757 = vunpack.c.l.b16 %v5608
        %v5758 = vpack.c.b16 %v5755, %v5754
        %v5759 = vpack.c.b16 %v5757, %v5756
        %v5763 = vsel %vm3503, %v5577, 0
        %v5766 = vsel %vm3503, %v5578, 0
        %v5769 = vsel %vm3503, %v5579, 0
        %v5772 = vsel %vm3503, %v5580, 0
        %v5775 = vsel %vm3503, %v5581, 0
        %v5778 = vsel %vm3503, %v5582, 0
        %v5781 = vsel %vm3503, %v5583, 0
        %v5784 = vsel %vm3503, %v5584, 0
        %5786 = vmatprep.subr.bf16.mxu0 0
        %5787 = vmatpush1.bf16.msra.mxu0 %v5758
        %5788 = vmatprep.subr.bf16.mxu0 0
        %5789 = vmatpush1.bf16.msra.mxu0 %v5759
        %5790 = vmatprep.subr.bf16.mxu0 0
        %5791 = vmatpush1.bf16.msra.mxu0 0
        %5792 = vmatprep.subr.bf16.mxu0 0
        %5793 = vmatpush1.bf16.msra.mxu0 0
        %5794 = vmatprep.subr.bf16.mxu0 0
        %5795 = vmatpush1.bf16.msra.mxu0 0
        %5796 = vmatprep.subr.bf16.mxu0 0
        %5797 = vmatpush1.bf16.msra.mxu0 0
        %5798 = vmatprep.subr.bf16.mxu0 0
        %5799 = vmatpush1.bf16.msra.mxu0 0
        %5800 = vmatprep.subr.bf16.mxu0 0
        %5801 = vmatpush1.bf16.msra.mxu0 0
        %5802 = vmatprep.subr.bf16.mxu0 0
        %5803 = vmatpush1.bf16.msra.mxu0 0
        %5804 = vmatprep.subr.bf16.mxu0 0
        %5805 = vmatpush1.bf16.msra.mxu0 0
        %5806 = vmatprep.subr.bf16.mxu0 0
        %5807 = vmatpush1.bf16.msra.mxu0 0
        %5808 = vmatprep.subr.bf16.mxu0 0
        %5809 = vmatpush1.bf16.msra.mxu0 0
        %5810 = vmatprep.subr.bf16.mxu0 0
        %5811 = vmatpush1.bf16.msra.mxu0 0
        %5812 = vmatprep.subr.bf16.mxu0 0
        %5813 = vmatpush1.bf16.msra.mxu0 0
        %5814 = vmatprep.subr.bf16.mxu0 0
        %5815 = vmatpush1.bf16.msra.mxu0 0
        %5816 = vmatprep.subr.bf16.mxu0 0
        %5817 = vmatpush1.bf16.msra.mxu0 0
        %5818 = vmatprep.mubr.bf16.mxu0 0
        %5819 = vmatmul.mubr.bf16.gmra.mrb[0].mxu0 %v5763
        %v5820 = vpop.f32.mrb[0].mxu0
        %v5821 = vadd.f32 0.0, %v5820
        %v5822 = vpop.f32.mrb[0].mxu0
        %v5823 = vpop.f32.mrb[0].mxu0
        %v5824 = vadd.f32 0.0, %v5823
        %v5825 = vpop.f32.mrb[0].mxu0
        %5826 = vmatprep.mubr.bf16.mxu0 0
        %5827 = vmatmul.mubr.bf16.gmra.mrb[0].mxu0 %v5766
        %v5828 = vpop.f32.mrb[0].mxu0
        %v5829 = vadd.f32 0.0, %v5828
        %v5830 = vpop.f32.mrb[0].mxu0
        %v5831 = vpop.f32.mrb[0].mxu0
        %v5832 = vadd.f32 0.0, %v5831
        %v5833 = vpop.f32.mrb[0].mxu0
        %5834 = vmatprep.mubr.bf16.mxu0 0
        %5835 = vmatmul.mubr.bf16.gmra.mrb[0].mxu0 %v5769
        %v5836 = vpop.f32.mrb[0].mxu0
        %v5837 = vadd.f32 0.0, %v5836
        %v5838 = vpop.f32.mrb[0].mxu0
        %v5839 = vpop.f32.mrb[0].mxu0
        %v5840 = vadd.f32 0.0, %v5839
        %v5841 = vpop.f32.mrb[0].mxu0
        %5842 = vmatprep.mubr.bf16.mxu0 0
        %5843 = vmatmul.mubr.bf16.gmra.mrb[0].mxu0 %v5772
        %v5844 = vpop.f32.mrb[0].mxu0
        %v5845 = vadd.f32 0.0, %v5844
        %v5846 = vpop.f32.mrb[0].mxu0
        %v5847 = vpop.f32.mrb[0].mxu0
        %v5848 = vadd.f32 0.0, %v5847
        %v5849 = vpop.f32.mrb[0].mxu0
        %5850 = vmatprep.mubr.bf16.mxu0 0
        %5851 = vmatmul.mubr.bf16.gmra.mrb[0].mxu0 %v5775
        %v5852 = vpop.f32.mrb[0].mxu0
        %v5853 = vadd.f32 0.0, %v5852
        %v5854 = vpop.f32.mrb[0].mxu0
        %v5855 = vpop.f32.mrb[0].mxu0
        %v5856 = vadd.f32 0.0, %v5855
        %v5857 = vpop.f32.mrb[0].mxu0
        %5858 = vmatprep.mubr.bf16.mxu0 0
        %5859 = vmatmul.mubr.bf16.gmra.mrb[0].mxu0 %v5778
        %v5860 = vpop.f32.mrb[0].mxu0
        %v5861 = vadd.f32 0.0, %v5860
        %v5862 = vpop.f32.mrb[0].mxu0
        %v5863 = vpop.f32.mrb[0].mxu0
        %v5864 = vadd.f32 0.0, %v5863
        %v5865 = vpop.f32.mrb[0].mxu0
        %5866 = vmatprep.mubr.bf16.mxu0 0
        %5867 = vmatmul.mubr.bf16.gmra.mrb[0].mxu0 %v5781
        %v5868 = vpop.f32.mrb[0].mxu0
        %v5869 = vadd.f32 0.0, %v5868
        %v5870 = vpop.f32.mrb[0].mxu0
        %v5871 = vpop.f32.mrb[0].mxu0
        %v5872 = vadd.f32 0.0, %v5871
        %v5873 = vpop.f32.mrb[0].mxu0
        %5874 = vmatprep.mubr.bf16.mxu0 0
        %5875 = vmatmul.mubr.bf16.gmra.mrb[0].mxu0 %v5784
        %v5876 = vpop.f32.mrb[0].mxu0
        %v5877 = vadd.f32 0.0, %v5876
        %v5878 = vpop.f32.mrb[0].mxu0
        %v5879 = vpop.f32.mrb[0].mxu0
        %v5880 = vadd.f32 0.0, %v5879
        %v5881 = vpop.f32.mrb[0].mxu0
        %5882 = vdwg.mxu0
        %v5887 = vunpack.c.l.b16 %v5609
        %v5888 = vunpack.c.l.b16 %v5610
        %v5889 = vunpack.c.l.b16 %v5611
        %v5890 = vunpack.c.l.b16 %v5612
        %v5891 = vpack.c.b16 %v5888, %v5887
        %v5892 = vpack.c.b16 %v5890, %v5889
        %v5896 = vsel %vm3503, %v5585, 0
        %v5899 = vsel %vm3503, %v5586, 0
        %v5902 = vsel %vm3503, %v5587, 0
        %v5905 = vsel %vm3503, %v5588, 0
        %v5908 = vsel %vm3503, %v5589, 0
        %v5911 = vsel %vm3503, %v5590, 0
        %v5914 = vsel %vm3503, %v5591, 0
        %v5917 = vsel %vm3503, %v5592, 0
        %5919 = vmatprep.subr.bf16.mxu0 0
        %5920 = vmatpush1.bf16.msra.mxu0 %v5891
        %5921 = vmatprep.subr.bf16.mxu0 0
        %5922 = vmatpush1.bf16.msra.mxu0 %v5892
        %5923 = vmatprep.subr.bf16.mxu0 0
        %5924 = vmatpush1.bf16.msra.mxu0 0
        %5925 = vmatprep.subr.bf16.mxu0 0
        %5926 = vmatpush1.bf16.msra.mxu0 0
        %5927 = vmatprep.subr.bf16.mxu0 0
        %5928 = vmatpush1.bf16.msra.mxu0 0
        %5929 = vmatprep.subr.bf16.mxu0 0
        %5930 = vmatpush1.bf16.msra.mxu0 0
        %5931 = vmatprep.subr.bf16.mxu0 0
        %5932 = vmatpush1.bf16.msra.mxu0 0
        %5933 = vmatprep.subr.bf16.mxu0 0
        %5934 = vmatpush1.bf16.msra.mxu0 0
        %5935 = vmatprep.subr.bf16.mxu0 0
        %5936 = vmatpush1.bf16.msra.mxu0 0
        %5937 = vmatprep.subr.bf16.mxu0 0
        %5938 = vmatpush1.bf16.msra.mxu0 0
        %5939 = vmatprep.subr.bf16.mxu0 0
        %5940 = vmatpush1.bf16.msra.mxu0 0
        %5941 = vmatprep.subr.bf16.mxu0 0
        %5942 = vmatpush1.bf16.msra.mxu0 0
        %5943 = vmatprep.subr.bf16.mxu0 0
        %5944 = vmatpush1.bf16.msra.mxu0 0
        %5945 = vmatprep.subr.bf16.mxu0 0
        %5946 = vmatpush1.bf16.msra.mxu0 0
        %5947 = vmatprep.subr.bf16.mxu0 0
        %5948 = vmatpush1.bf16.msra.mxu0 0
        %5949 = vmatprep.subr.bf16.mxu0 0
        %5950 = vmatpush1.bf16.msra.mxu0 0
        %5951 = vmatprep.mubr.bf16.mxu0 0
        %5952 = vmatmul.mubr.bf16.gmra.mrb[0].mxu0 %v5896
        %v5953 = vpop.f32.mrb[0].mxu0
        %v5954 = vadd.f32 0.0, %v5953
        %v5955 = vpop.f32.mrb[0].mxu0
        %v5956 = vpop.f32.mrb[0].mxu0
        %v5957 = vadd.f32 0.0, %v5956
        %v5958 = vpop.f32.mrb[0].mxu0
        %5959 = vmatprep.mubr.bf16.mxu0 0
        %5960 = vmatmul.mubr.bf16.gmra.mrb[0].mxu0 %v5899
        %v5961 = vpop.f32.mrb[0].mxu0
        %v5962 = vadd.f32 0.0, %v5961
        %v5963 = vpop.f32.mrb[0].mxu0
        %v5964 = vpop.f32.mrb[0].mxu0
        %v5965 = vadd.f32 0.0, %v5964
        %v5966 = vpop.f32.mrb[0].mxu0
        %5967 = vmatprep.mubr.bf16.mxu0 0
        %5968 = vmatmul.mubr.bf16.gmra.mrb[0].mxu0 %v5902
        %v5969 = vpop.f32.mrb[0].mxu0
        %v5970 = vadd.f32 0.0, %v5969
        %v5971 = vpop.f32.mrb[0].mxu0
        %v5972 = vpop.f32.mrb[0].mxu0
        %v5973 = vadd.f32 0.0, %v5972
        %v5974 = vpop.f32.mrb[0].mxu0
        %5975 = vmatprep.mubr.bf16.mxu0 0
        %5976 = vmatmul.mubr.bf16.gmra.mrb[0].mxu0 %v5905
        %v5977 = vpop.f32.mrb[0].mxu0
        %v5978 = vadd.f32 0.0, %v5977
        %v5979 = vpop.f32.mrb[0].mxu0
        %v5980 = vpop.f32.mrb[0].mxu0
        %v5981 = vadd.f32 0.0, %v5980
        %v5982 = vpop.f32.mrb[0].mxu0
        %5983 = vmatprep.mubr.bf16.mxu0 0
        %5984 = vmatmul.mubr.bf16.gmra.mrb[0].mxu0 %v5908
        %v5985 = vpop.f32.mrb[0].mxu0
        %v5986 = vadd.f32 0.0, %v5985
        %v5987 = vpop.f32.mrb[0].mxu0
        %v5988 = vpop.f32.mrb[0].mxu0
        %v5989 = vadd.f32 0.0, %v5988
        %v5990 = vpop.f32.mrb[0].mxu0
        %5991 = vmatprep.mubr.bf16.mxu0 0
        %5992 = vmatmul.mubr.bf16.gmra.mrb[0].mxu0 %v5911
        %v5993 = vpop.f32.mrb[0].mxu0
        %v5994 = vadd.f32 0.0, %v5993
        %v5995 = vpop.f32.mrb[0].mxu0
        %v5996 = vpop.f32.mrb[0].mxu0
        %v5997 = vadd.f32 0.0, %v5996
        %v5998 = vpop.f32.mrb[0].mxu0
        %5999 = vmatprep.mubr.bf16.mxu0 0
        %6000 = vmatmul.mubr.bf16.gmra.mrb[0].mxu0 %v5914
        %v6001 = vpop.f32.mrb[0].mxu0
        %v6002 = vadd.f32 0.0, %v6001
        %v6003 = vpop.f32.mrb[0].mxu0
        %v6004 = vpop.f32.mrb[0].mxu0
        %v6005 = vadd.f32 0.0, %v6004
        %v6006 = vpop.f32.mrb[0].mxu0
        %6007 = vmatprep.mubr.bf16.mxu0 0
        %6008 = vmatmul.mubr.bf16.gmra.mrb[0].mxu0 %v5917
        %v6009 = vpop.f32.mrb[0].mxu0
        %v6010 = vadd.f32 0.0, %v6009
        %v6011 = vpop.f32.mrb[0].mxu0
        %v6012 = vpop.f32.mrb[0].mxu0
        %v6013 = vadd.f32 0.0, %v6012
        %v6014 = vpop.f32.mrb[0].mxu0
        %6015 = vdwg.mxu0
        %v6020 = vunpack.c.l.b16 %v5613
        %v6021 = vunpack.c.l.b16 %v5614
        %v6022 = vunpack.c.l.b16 %v5615
        %v6023 = vunpack.c.l.b16 %v5616
        %v6024 = vpack.c.b16 %v6021, %v6020
        %v6025 = vpack.c.b16 %v6023, %v6022
        %v6029 = vsel %vm3503, %v5593, 0
        %v6032 = vsel %vm3503, %v5594, 0
        %v6035 = vsel %vm3503, %v5595, 0
        %v6038 = vsel %vm3503, %v5596, 0
        %v6041 = vsel %vm3503, %v5597, 0
        %v6044 = vsel %vm3503, %v5598, 0
        %v6047 = vsel %vm3503, %v5599, 0
        %v6050 = vsel %vm3503, %v5600, 0
        %6052 = vmatprep.subr.bf16.mxu0 0
        %6053 = vmatpush1.bf16.msra.mxu0 %v6024
        %6054 = vmatprep.subr.bf16.mxu0 0
        %6055 = vmatpush1.bf16.msra.mxu0 %v6025
        %6056 = vmatprep.subr.bf16.mxu0 0
        %6057 = vmatpush1.bf16.msra.mxu0 0
        %6058 = vmatprep.subr.bf16.mxu0 0
        %6059 = vmatpush1.bf16.msra.mxu0 0
        %6060 = vmatprep.subr.bf16.mxu0 0
        %6061 = vmatpush1.bf16.msra.mxu0 0
        %6062 = vmatprep.subr.bf16.mxu0 0
        %6063 = vmatpush1.bf16.msra.mxu0 0
        %6064 = vmatprep.subr.bf16.mxu0 0
        %6065 = vmatpush1.bf16.msra.mxu0 0
        %6066 = vmatprep.subr.bf16.mxu0 0
        %6067 = vmatpush1.bf16.msra.mxu0 0
        %6068 = vmatprep.subr.bf16.mxu0 0
        %6069 = vmatpush1.bf16.msra.mxu0 0
        %6070 = vmatprep.subr.bf16.mxu0 0
        %6071 = vmatpush1.bf16.msra.mxu0 0
        %6072 = vmatprep.subr.bf16.mxu0 0
        %6073 = vmatpush1.bf16.msra.mxu0 0
        %6074 = vmatprep.subr.bf16.mxu0 0
        %6075 = vmatpush1.bf16.msra.mxu0 0
        %6076 = vmatprep.subr.bf16.mxu0 0
        %6077 = vmatpush1.bf16.msra.mxu0 0
        %6078 = vmatprep.subr.bf16.mxu0 0
        %6079 = vmatpush1.bf16.msra.mxu0 0
        %6080 = vmatprep.subr.bf16.mxu0 0
        %6081 = vmatpush1.bf16.msra.mxu0 0
        %6082 = vmatprep.subr.bf16.mxu0 0
        %6083 = vmatpush1.bf16.msra.mxu0 0
        %6084 = vmatprep.mubr.bf16.mxu0 0
        %6085 = vmatmul.mubr.bf16.gmra.mrb[0].mxu0 %v6029
        %v6086 = vpop.f32.mrb[0].mxu0
        %v6087 = vadd.f32 0.0, %v6086
        %v6088 = vpop.f32.mrb[0].mxu0
        %v6089 = vpop.f32.mrb[0].mxu0
        %v6090 = vadd.f32 0.0, %v6089
        %v6091 = vpop.f32.mrb[0].mxu0
        %6092 = vmatprep.mubr.bf16.mxu0 0
        %6093 = vmatmul.mubr.bf16.gmra.mrb[0].mxu0 %v6032
        %v6094 = vpop.f32.mrb[0].mxu0
        %v6095 = vadd.f32 0.0, %v6094
        %v6096 = vpop.f32.mrb[0].mxu0
        %v6097 = vpop.f32.mrb[0].mxu0
        %v6098 = vadd.f32 0.0, %v6097
        %v6099 = vpop.f32.mrb[0].mxu0
        %6100 = vmatprep.mubr.bf16.mxu0 0
        %6101 = vmatmul.mubr.bf16.gmra.mrb[0].mxu0 %v6035
        %v6102 = vpop.f32.mrb[0].mxu0
        %v6103 = vadd.f32 0.0, %v6102
        %v6104 = vpop.f32.mrb[0].mxu0
        %v6105 = vpop.f32.mrb[0].mxu0
        %v6106 = vadd.f32 0.0, %v6105
        %v6107 = vpop.f32.mrb[0].mxu0
        %6108 = vmatprep.mubr.bf16.mxu0 0
        %6109 = vmatmul.mubr.bf16.gmra.mrb[0].mxu0 %v6038
        %v6110 = vpop.f32.mrb[0].mxu0
        %v6111 = vadd.f32 0.0, %v6110
        %v6112 = vpop.f32.mrb[0].mxu0
        %v6113 = vpop.f32.mrb[0].mxu0
        %v6114 = vadd.f32 0.0, %v6113
        %v6115 = vpop.f32.mrb[0].mxu0
        %6116 = vmatprep.mubr.bf16.mxu0 0
        %6117 = vmatmul.mubr.bf16.gmra.mrb[0].mxu0 %v6041
        %v6118 = vpop.f32.mrb[0].mxu0
        %v6119 = vadd.f32 0.0, %v6118
        %v6120 = vpop.f32.mrb[0].mxu0
        %v6121 = vpop.f32.mrb[0].mxu0
        %v6122 = vadd.f32 0.0, %v6121
        %v6123 = vpop.f32.mrb[0].mxu0
        %6124 = vmatprep.mubr.bf16.mxu0 0
        %6125 = vmatmul.mubr.bf16.gmra.mrb[0].mxu0 %v6044
        %v6126 = vpop.f32.mrb[0].mxu0
        %v6127 = vadd.f32 0.0, %v6126
        %v6128 = vpop.f32.mrb[0].mxu0
        %v6129 = vpop.f32.mrb[0].mxu0
        %v6130 = vadd.f32 0.0, %v6129
        %v6131 = vpop.f32.mrb[0].mxu0
        %6132 = vmatprep.mubr.bf16.mxu0 0
        %6133 = vmatmul.mubr.bf16.gmra.mrb[0].mxu0 %v6047
        %v6134 = vpop.f32.mrb[0].mxu0
        %v6135 = vadd.f32 0.0, %v6134
        %v6136 = vpop.f32.mrb[0].mxu0
        %v6137 = vpop.f32.mrb[0].mxu0
        %v6138 = vadd.f32 0.0, %v6137
        %v6139 = vpop.f32.mrb[0].mxu0
        %6140 = vmatprep.mubr.bf16.mxu0 0
        %6141 = vmatmul.mubr.bf16.gmra.mrb[0].mxu0 %v6050
        %v6142 = vpop.f32.mrb[0].mxu0
        %v6143 = vadd.f32 0.0, %v6142
        %v6144 = vpop.f32.mrb[0].mxu0
        %v6145 = vpop.f32.mrb[0].mxu0
        %v6146 = vadd.f32 0.0, %v6145
        %v6147 = vpop.f32.mrb[0].mxu0
        %6148 = vdwg.mxu0
        %v6149 = vadd.f32 %v5688, %v5821
        %v6150 = vadd.f32 %v6149, %v5954
        %v6151 = vadd.f32 %v6150, %v6087
        %v6152 = vadd.f32 %v5691, %v5824
        %v6153 = vadd.f32 %v6152, %v5957
        %v6154 = vadd.f32 %v6153, %v6090
        %v6155 = vadd.f32 %v5696, %v5829
        %v6156 = vadd.f32 %v6155, %v5962
        %v6157 = vadd.f32 %v6156, %v6095
        %v6158 = vadd.f32 %v5699, %v5832
        %v6159 = vadd.f32 %v6158, %v5965
        %v6160 = vadd.f32 %v6159, %v6098
        %v6161 = vadd.f32 %v5704, %v5837
        %v6162 = vadd.f32 %v6161, %v5970
        %v6163 = vadd.f32 %v6162, %v6103
        %v6164 = vadd.f32 %v5707, %v5840
        %v6165 = vadd.f32 %v6164, %v5973
        %v6166 = vadd.f32 %v6165, %v6106
        %v6167 = vadd.f32 %v5712, %v5845
        %v6168 = vadd.f32 %v6167, %v5978
        %v6169 = vadd.f32 %v6168, %v6111
        %v6170 = vadd.f32 %v5715, %v5848
        %v6171 = vadd.f32 %v6170, %v5981
        %v6172 = vadd.f32 %v6171, %v6114
        %v6173 = vadd.f32 %v5720, %v5853
        %v6174 = vadd.f32 %v6173, %v5986
        %v6175 = vadd.f32 %v6174, %v6119
        %v6176 = vadd.f32 %v5723, %v5856
        %v6177 = vadd.f32 %v6176, %v5989
        %v6178 = vadd.f32 %v6177, %v6122
        %v6179 = vadd.f32 %v5728, %v5861
        %v6180 = vadd.f32 %v6179, %v5994
        %v6181 = vadd.f32 %v6180, %v6127
        %v6182 = vadd.f32 %v5731, %v5864
        %v6183 = vadd.f32 %v6182, %v5997
        %v6184 = vadd.f32 %v6183, %v6130
        %v6185 = vadd.f32 %v5736, %v5869
        %v6186 = vadd.f32 %v6185, %v6002
        %v6187 = vadd.f32 %v6186, %v6135
        %v6188 = vadd.f32 %v5739, %v5872
        %v6189 = vadd.f32 %v6188, %v6005
        %v6190 = vadd.f32 %v6189, %v6138
        %v6191 = vadd.f32 %v5744, %v5877
        %v6192 = vadd.f32 %v6191, %v6010
        %v6193 = vadd.f32 %v6192, %v6143
        %v6194 = vadd.f32 %v5747, %v5880
        %v6195 = vadd.f32 %v6194, %v6013
        %v6196 = vadd.f32 %v6195, %v6146
        %v6197 = vld [vmem:[%s6] sm:$0x1]
        %v6199 = vlaneseq
        %v6200 = vshrl.u32 %v6199, 7
        %v6201 = vsub.s32 0, %v6200
        %v6202 = vrot.slane %v6197, %v6201
        %v6204 = vadd.f32 %v6151, %v6202
        %v6205 = vadd.f32 %v6154, %v6202
        %v6206 = vadd.f32 %v6157, %v6202
        %v6207 = vadd.f32 %v6160, %v6202
        %v6208 = vadd.f32 %v6163, %v6202
        %v6209 = vadd.f32 %v6166, %v6202
        %v6210 = vadd.f32 %v6169, %v6202
        %v6211 = vadd.f32 %v6172, %v6202
        %v6212 = vadd.f32 %v6175, %v6202
        %v6213 = vadd.f32 %v6178, %v6202
        %v6214 = vadd.f32 %v6181, %v6202
        %v6215 = vadd.f32 %v6184, %v6202
        %v6216 = vadd.f32 %v6187, %v6202
        %v6217 = vadd.f32 %v6190, %v6202
        %v6218 = vadd.f32 %v6193, %v6202
        %v6219 = vadd.f32 %v6196, %v6202
        %6220 = vst [vmem:[%s454] sm:$0xff] %v6204
        %6221 = vst [vmem:[%s454 + $0x8] sm:$0xff] %v6205
        %6222 = vst [vmem:[%s454 + $0x10] sm:$0xff] %v6206
        %6223 = vst [vmem:[%s454 + $0x18] sm:$0xff] %v6207
        %6224 = vst [vmem:[%s454 + $0x20] sm:$0xff] %v6208
        %6225 = vst [vmem:[%s454 + $0x28] sm:$0xff] %v6209
        %6226 = vst [vmem:[%s454 + $0x30] sm:$0xff] %v6210
        %6227 = vst [vmem:[%s454 + $0x38] sm:$0xff] %v6211
        %6228 = vst [vmem:[%s454 + $0x40] sm:$0xff] %v6212
        %6229 = vst [vmem:[%s454 + $0x48] sm:$0xff] %v6213
        %6230 = vst [vmem:[%s454 + $0x50] sm:$0xff] %v6214
        %6231 = vst [vmem:[%s454 + $0x58] sm:$0xff] %v6215
        %6232 = vst [vmem:[%s454 + $0x60] sm:$0xff] %v6216
        %6233 = vst [vmem:[%s454 + $0x68] sm:$0xff] %v6217
        %6234 = vst [vmem:[%s454 + $0x70] sm:$0xff] %v6218
        %6235 = vst [vmem:[%s454 + $0x78] sm:$0xff] %v6219
        %v6237 = vsel %vm3503, %v2501, 0
        %v6240 = vsel %vm3503, %v2502, 0
        %v6243 = vsel %vm3503, %v2503, 0
        %v6246 = vsel %vm3503, %v2504, 0
        %v6249 = vsel %vm3503, %v1484, 0
        %v6252 = vsel %vm3503, %v1485, 0
        %v6255 = vsel %vm3503, %v1486, 0
        %v6258 = vsel %vm3503, %v1487, 0
        %6260 = vmatprep.subr.bf16.mxu0 0
        %6261 = vmatpush1.bf16.xpose.msra.mxu0 %v6249
        %6262 = vmatprep.subr.bf16.mxu0 0
        %6263 = vmatpush1.bf16.xpose.msra.mxu0 %v6252
        %6264 = vmatprep.subr.bf16.mxu0 0
        %6265 = vmatpush1.bf16.xpose.msra.mxu0 %v6255
        %6266 = vmatprep.subr.bf16.mxu0 0
        %6267 = vmatpush1.bf16.xpose.msra.mxu0 %v6258
        %6268 = vmatprep.subr.bf16.mxu0 0
        %6269 = vmatpush1.bf16.xpose.msra.mxu0 0
        %6270 = vmatprep.subr.bf16.mxu0 0
        %6271 = vmatpush1.bf16.xpose.msra.mxu0 0
        %6272 = vmatprep.subr.bf16.mxu0 0
        %6273 = vmatpush1.bf16.xpose.msra.mxu0 0
        %6274 = vmatprep.subr.bf16.mxu0 0
        %6275 = vmatpush1.bf16.xpose.msra.mxu0 0
        %6276 = vmatprep.subr.bf16.mxu0 0
        %6277 = vmatpush1.bf16.xpose.msra.mxu0 0
        %6278 = vmatprep.subr.bf16.mxu0 0
        %6279 = vmatpush1.bf16.xpose.msra.mxu0 0
        %6280 = vmatprep.subr.bf16.mxu0 0
        %6281 = vmatpush1.bf16.xpose.msra.mxu0 0
        %6282 = vmatprep.subr.bf16.mxu0 0
        %6283 = vmatpush1.bf16.xpose.msra.mxu0 0
        %6284 = vmatprep.subr.bf16.mxu0 0
        %6285 = vmatpush1.bf16.xpose.msra.mxu0 0
        %6286 = vmatprep.subr.bf16.mxu0 0
        %6287 = vmatpush1.bf16.xpose.msra.mxu0 0
        %6288 = vmatprep.subr.bf16.mxu0 0
        %6289 = vmatpush1.bf16.xpose.msra.mxu0 0
        %6290 = vmatprep.subr.bf16.mxu0 0
        %6291 = vmatpush1.bf16.xpose.msra.mxu0 0
        %6292 = vmatprep.mubr.bf16.mxu0 0
        %6293 = vmatmul.mubr.bf16.gmra.mrb[0].mxu0 %v6237
        %v6294 = vpop.f32.mrb[0].mxu0
        %v6295 = vadd.f32 0.0, %v6294
        %v6296 = vpop.f32.mrb[0].mxu0
        %v6297 = vpop.f32.mrb[0].mxu0
        %v6298 = vadd.f32 0.0, %v6297
        %v6299 = vpop.f32.mrb[0].mxu0
        %6300 = vmatprep.mubr.bf16.mxu0 0
        %6301 = vmatmul.mubr.bf16.gmra.mrb[0].mxu0 %v6240
        %v6302 = vpop.f32.mrb[0].mxu0
        %v6303 = vadd.f32 0.0, %v6302
        %v6304 = vpop.f32.mrb[0].mxu0
        %v6305 = vpop.f32.mrb[0].mxu0
        %v6306 = vadd.f32 0.0, %v6305
        %v6307 = vpop.f32.mrb[0].mxu0
        %6308 = vmatprep.mubr.bf16.mxu0 0
        %6309 = vmatmul.mubr.bf16.gmra.mrb[0].mxu0 %v6243
        %v6310 = vpop.f32.mrb[0].mxu0
        %v6311 = vadd.f32 0.0, %v6310
        %v6312 = vpop.f32.mrb[0].mxu0
        %v6313 = vpop.f32.mrb[0].mxu0
        %v6314 = vadd.f32 0.0, %v6313
        %v6315 = vpop.f32.mrb[0].mxu0
        %6316 = vmatprep.mubr.bf16.mxu0 0
        %6317 = vmatmul.mubr.bf16.gmra.mrb[0].mxu0 %v6246
        %v6318 = vpop.f32.mrb[0].mxu0
        %v6319 = vadd.f32 0.0, %v6318
        %v6320 = vpop.f32.mrb[0].mxu0
        %v6321 = vpop.f32.mrb[0].mxu0
        %v6322 = vadd.f32 0.0, %v6321
        %v6323 = vpop.f32.mrb[0].mxu0
        %6324 = vdwg.mxu0
        %v6326 = vsel %vm3503, %v2505, 0
        %v6329 = vsel %vm3503, %v2506, 0
        %v6332 = vsel %vm3503, %v2507, 0
        %v6335 = vsel %vm3503, %v2508, 0
        %v6338 = vsel %vm3503, %v1488, 0
        %v6341 = vsel %vm3503, %v1489, 0
        %v6344 = vsel %vm3503, %v1490, 0
        %v6347 = vsel %vm3503, %v1491, 0
        %6349 = vmatprep.subr.bf16.mxu0 0
        %6350 = vmatpush1.bf16.xpose.msra.mxu0 %v6338
        %6351 = vmatprep.subr.bf16.mxu0 0
        %6352 = vmatpush1.bf16.xpose.msra.mxu0 %v6341
        %6353 = vmatprep.subr.bf16.mxu0 0
        %6354 = vmatpush1.bf16.xpose.msra.mxu0 %v6344
        %6355 = vmatprep.subr.bf16.mxu0 0
        %6356 = vmatpush1.bf16.xpose.msra.mxu0 %v6347
        %6357 = vmatprep.subr.bf16.mxu0 0
        %6358 = vmatpush1.bf16.xpose.msra.mxu0 0
        %6359 = vmatprep.subr.bf16.mxu0 0
        %6360 = vmatpush1.bf16.xpose.msra.mxu0 0
        %6361 = vmatprep.subr.bf16.mxu0 0
        %6362 = vmatpush1.bf16.xpose.msra.mxu0 0
        %6363 = vmatprep.subr.bf16.mxu0 0
        %6364 = vmatpush1.bf16.xpose.msra.mxu0 0
        %6365 = vmatprep.subr.bf16.mxu0 0
        %6366 = vmatpush1.bf16.xpose.msra.mxu0 0
        %6367 = vmatprep.subr.bf16.mxu0 0
        %6368 = vmatpush1.bf16.xpose.msra.mxu0 0
        %6369 = vmatprep.subr.bf16.mxu0 0
        %6370 = vmatpush1.bf16.xpose.msra.mxu0 0
        %6371 = vmatprep.subr.bf16.mxu0 0
        %6372 = vmatpush1.bf16.xpose.msra.mxu0 0
        %6373 = vmatprep.subr.bf16.mxu0 0
        %6374 = vmatpush1.bf16.xpose.msra.mxu0 0
        %6375 = vmatprep.subr.bf16.mxu0 0
        %6376 = vmatpush1.bf16.xpose.msra.mxu0 0
        %6377 = vmatprep.subr.bf16.mxu0 0
        %6378 = vmatpush1.bf16.xpose.msra.mxu0 0
        %6379 = vmatprep.subr.bf16.mxu0 0
        %6380 = vmatpush1.bf16.xpose.msra.mxu0 0
        %6381 = vmatprep.mubr.bf16.mxu0 0
        %6382 = vmatmul.mubr.bf16.gmra.mrb[0].mxu0 %v6326
        %v6383 = vpop.f32.mrb[0].mxu0
        %v6384 = vadd.f32 0.0, %v6383
        %v6385 = vpop.f32.mrb[0].mxu0
        %v6386 = vpop.f32.mrb[0].mxu0
        %v6387 = vadd.f32 0.0, %v6386
        %v6388 = vpop.f32.mrb[0].mxu0
        %6389 = vmatprep.mubr.bf16.mxu0 0
        %6390 = vmatmul.mubr.bf16.gmra.mrb[0].mxu0 %v6329
        %v6391 = vpop.f32.mrb[0].mxu0
        %v6392 = vadd.f32 0.0, %v6391
        %v6393 = vpop.f32.mrb[0].mxu0
        %v6394 = vpop.f32.mrb[0].mxu0
        %v6395 = vadd.f32 0.0, %v6394
        %v6396 = vpop.f32.mrb[0].mxu0
        %6397 = vmatprep.mubr.bf16.mxu0 0
        %6398 = vmatmul.mubr.bf16.gmra.mrb[0].mxu0 %v6332
        %v6399 = vpop.f32.mrb[0].mxu0
        %v6400 = vadd.f32 0.0, %v6399
        %v6401 = vpop.f32.mrb[0].mxu0
        %v6402 = vpop.f32.mrb[0].mxu0
        %v6403 = vadd.f32 0.0, %v6402
        %v6404 = vpop.f32.mrb[0].mxu0
        %6405 = vmatprep.mubr.bf16.mxu0 0
        %6406 = vmatmul.mubr.bf16.gmra.mrb[0].mxu0 %v6335
        %v6407 = vpop.f32.mrb[0].mxu0
        %v6408 = vadd.f32 0.0, %v6407
        %v6409 = vpop.f32.mrb[0].mxu0
        %v6410 = vpop.f32.mrb[0].mxu0
        %v6411 = vadd.f32 0.0, %v6410
        %v6412 = vpop.f32.mrb[0].mxu0
        %6413 = vdwg.mxu0
        %v6415 = vsel %vm3503, %v2509, 0
        %v6418 = vsel %vm3503, %v2510, 0
        %v6421 = vsel %vm3503, %v2511, 0
        %v6424 = vsel %vm3503, %v2512, 0
        %v6427 = vsel %vm3503, %v1492, 0
        %v6430 = vsel %vm3503, %v1493, 0
        %v6433 = vsel %vm3503, %v1494, 0
        %v6436 = vsel %vm3503, %v1495, 0
        %6438 = vmatprep.subr.bf16.mxu0 0
        %6439 = vmatpush1.bf16.xpose.msra.mxu0 %v6427
        %6440 = vmatprep.subr.bf16.mxu0 0
        %6441 = vmatpush1.bf16.xpose.msra.mxu0 %v6430
        %6442 = vmatprep.subr.bf16.mxu0 0
        %6443 = vmatpush1.bf16.xpose.msra.mxu0 %v6433
        %6444 = vmatprep.subr.bf16.mxu0 0
        %6445 = vmatpush1.bf16.xpose.msra.mxu0 %v6436
        %6446 = vmatprep.subr.bf16.mxu0 0
        %6447 = vmatpush1.bf16.xpose.msra.mxu0 0
        %6448 = vmatprep.subr.bf16.mxu0 0
        %6449 = vmatpush1.bf16.xpose.msra.mxu0 0
        %6450 = vmatprep.subr.bf16.mxu0 0
        %6451 = vmatpush1.bf16.xpose.msra.mxu0 0
        %6452 = vmatprep.subr.bf16.mxu0 0
        %6453 = vmatpush1.bf16.xpose.msra.mxu0 0
        %6454 = vmatprep.subr.bf16.mxu0 0
        %6455 = vmatpush1.bf16.xpose.msra.mxu0 0
        %6456 = vmatprep.subr.bf16.mxu0 0
        %6457 = vmatpush1.bf16.xpose.msra.mxu0 0
        %6458 = vmatprep.subr.bf16.mxu0 0
        %6459 = vmatpush1.bf16.xpose.msra.mxu0 0
        %6460 = vmatprep.subr.bf16.mxu0 0
        %6461 = vmatpush1.bf16.xpose.msra.mxu0 0
        %6462 = vmatprep.subr.bf16.mxu0 0
        %6463 = vmatpush1.bf16.xpose.msra.mxu0 0
        %6464 = vmatprep.subr.bf16.mxu0 0
        %6465 = vmatpush1.bf16.xpose.msra.mxu0 0
        %6466 = vmatprep.subr.bf16.mxu0 0
        %6467 = vmatpush1.bf16.xpose.msra.mxu0 0
        %6468 = vmatprep.subr.bf16.mxu0 0
        %6469 = vmatpush1.bf16.xpose.msra.mxu0 0
        %6470 = vmatprep.mubr.bf16.mxu0 0
        %6471 = vmatmul.mubr.bf16.gmra.mrb[0].mxu0 %v6415
        %v6472 = vpop.f32.mrb[0].mxu0
        %v6473 = vadd.f32 0.0, %v6472
        %v6474 = vpop.f32.mrb[0].mxu0
        %v6475 = vpop.f32.mrb[0].mxu0
        %v6476 = vadd.f32 0.0, %v6475
        %v6477 = vpop.f32.mrb[0].mxu0
        %6478 = vmatprep.mubr.bf16.mxu0 0
        %6479 = vmatmul.mubr.bf16.gmra.mrb[0].mxu0 %v6418
        %v6480 = vpop.f32.mrb[0].mxu0
        %v6481 = vadd.f32 0.0, %v6480
        %v6482 = vpop.f32.mrb[0].mxu0
        %v6483 = vpop.f32.mrb[0].mxu0
        %v6484 = vadd.f32 0.0, %v6483
        %v6485 = vpop.f32.mrb[0].mxu0
        %6486 = vmatprep.mubr.bf16.mxu0 0
        %6487 = vmatmul.mubr.bf16.gmra.mrb[0].mxu0 %v6421
        %v6488 = vpop.f32.mrb[0].mxu0
        %v6489 = vadd.f32 0.0, %v6488
        %v6490 = vpop.f32.mrb[0].mxu0
        %v6491 = vpop.f32.mrb[0].mxu0
        %v6492 = vadd.f32 0.0, %v6491
        %v6493 = vpop.f32.mrb[0].mxu0
        %6494 = vmatprep.mubr.bf16.mxu0 0
        %6495 = vmatmul.mubr.bf16.gmra.mrb[0].mxu0 %v6424
        %v6496 = vpop.f32.mrb[0].mxu0
        %v6497 = vadd.f32 0.0, %v6496
        %v6498 = vpop.f32.mrb[0].mxu0
        %v6499 = vpop.f32.mrb[0].mxu0
        %v6500 = vadd.f32 0.0, %v6499
        %v6501 = vpop.f32.mrb[0].mxu0
        %6502 = vdwg.mxu0
        %v6504 = vsel %vm3503, %v2513, 0
        %v6507 = vsel %vm3503, %v2514, 0
        %v6510 = vsel %vm3503, %v2515, 0
        %v6513 = vsel %vm3503, %v2516, 0
        %v6516 = vsel %vm3503, %v1496, 0
        %v6519 = vsel %vm3503, %v1497, 0
        %v6522 = vsel %vm3503, %v1498, 0
        %v6525 = vsel %vm3503, %v1499, 0
        %6527 = vmatprep.subr.bf16.mxu0 0
        %6528 = vmatpush1.bf16.xpose.msra.mxu0 %v6516
        %6529 = vmatprep.subr.bf16.mxu0 0
        %6530 = vmatpush1.bf16.xpose.msra.mxu0 %v6519
        %6531 = vmatprep.subr.bf16.mxu0 0
        %6532 = vmatpush1.bf16.xpose.msra.mxu0 %v6522
        %6533 = vmatprep.subr.bf16.mxu0 0
        %6534 = vmatpush1.bf16.xpose.msra.mxu0 %v6525
        %6535 = vmatprep.subr.bf16.mxu0 0
        %6536 = vmatpush1.bf16.xpose.msra.mxu0 0
        %6537 = vmatprep.subr.bf16.mxu0 0
        %6538 = vmatpush1.bf16.xpose.msra.mxu0 0
        %6539 = vmatprep.subr.bf16.mxu0 0
        %6540 = vmatpush1.bf16.xpose.msra.mxu0 0
        %6541 = vmatprep.subr.bf16.mxu0 0
        %6542 = vmatpush1.bf16.xpose.msra.mxu0 0
        %6543 = vmatprep.subr.bf16.mxu0 0
        %6544 = vmatpush1.bf16.xpose.msra.mxu0 0
        %6545 = vmatprep.subr.bf16.mxu0 0
        %6546 = vmatpush1.bf16.xpose.msra.mxu0 0
        %6547 = vmatprep.subr.bf16.mxu0 0
        %6548 = vmatpush1.bf16.xpose.msra.mxu0 0
        %6549 = vmatprep.subr.bf16.mxu0 0
        %6550 = vmatpush1.bf16.xpose.msra.mxu0 0
        %6551 = vmatprep.subr.bf16.mxu0 0
        %6552 = vmatpush1.bf16.xpose.msra.mxu0 0
        %6553 = vmatprep.subr.bf16.mxu0 0
        %6554 = vmatpush1.bf16.xpose.msra.mxu0 0
        %6555 = vmatprep.subr.bf16.mxu0 0
        %6556 = vmatpush1.bf16.xpose.msra.mxu0 0
        %6557 = vmatprep.subr.bf16.mxu0 0
        %6558 = vmatpush1.bf16.xpose.msra.mxu0 0
        %6559 = vmatprep.mubr.bf16.mxu0 0
        %6560 = vmatmul.mubr.bf16.gmra.mrb[0].mxu0 %v6504
        %v6561 = vpop.f32.mrb[0].mxu0
        %v6562 = vadd.f32 0.0, %v6561
        %v6563 = vpop.f32.mrb[0].mxu0
        %v6564 = vpop.f32.mrb[0].mxu0
        %v6565 = vadd.f32 0.0, %v6564
        %v6566 = vpop.f32.mrb[0].mxu0
        %6567 = vmatprep.mubr.bf16.mxu0 0
        %6568 = vmatmul.mubr.bf16.gmra.mrb[0].mxu0 %v6507
        %v6569 = vpop.f32.mrb[0].mxu0
        %v6570 = vadd.f32 0.0, %v6569
        %v6571 = vpop.f32.mrb[0].mxu0
        %v6572 = vpop.f32.mrb[0].mxu0
        %v6573 = vadd.f32 0.0, %v6572
        %v6574 = vpop.f32.mrb[0].mxu0
        %6575 = vmatprep.mubr.bf16.mxu0 0
        %6576 = vmatmul.mubr.bf16.gmra.mrb[0].mxu0 %v6510
        %v6577 = vpop.f32.mrb[0].mxu0
        %v6578 = vadd.f32 0.0, %v6577
        %v6579 = vpop.f32.mrb[0].mxu0
        %v6580 = vpop.f32.mrb[0].mxu0
        %v6581 = vadd.f32 0.0, %v6580
        %v6582 = vpop.f32.mrb[0].mxu0
        %6583 = vmatprep.mubr.bf16.mxu0 0
        %6584 = vmatmul.mubr.bf16.gmra.mrb[0].mxu0 %v6513
        %v6585 = vpop.f32.mrb[0].mxu0
        %v6586 = vadd.f32 0.0, %v6585
        %v6587 = vpop.f32.mrb[0].mxu0
        %v6588 = vpop.f32.mrb[0].mxu0
        %v6589 = vadd.f32 0.0, %v6588
        %v6590 = vpop.f32.mrb[0].mxu0
        %6591 = vdwg.mxu0
        %v6593 = vsel %vm3503, %v2517, 0
        %v6596 = vsel %vm3503, %v2518, 0
        %v6599 = vsel %vm3503, %v2519, 0
        %v6602 = vsel %vm3503, %v2520, 0
        %v6605 = vsel %vm3503, %v1500, 0
        %v6608 = vsel %vm3503, %v1501, 0
        %v6611 = vsel %vm3503, %v1502, 0
        %v6614 = vsel %vm3503, %v1503, 0
        %6616 = vmatprep.subr.bf16.mxu0 0
        %6617 = vmatpush1.bf16.xpose.msra.mxu0 %v6605
        %6618 = vmatprep.subr.bf16.mxu0 0
        %6619 = vmatpush1.bf16.xpose.msra.mxu0 %v6608
        %6620 = vmatprep.subr.bf16.mxu0 0
        %6621 = vmatpush1.bf16.xpose.msra.mxu0 %v6611
        %6622 = vmatprep.subr.bf16.mxu0 0
        %6623 = vmatpush1.bf16.xpose.msra.mxu0 %v6614
        %6624 = vmatprep.subr.bf16.mxu0 0
        %6625 = vmatpush1.bf16.xpose.msra.mxu0 0
        %6626 = vmatprep.subr.bf16.mxu0 0
        %6627 = vmatpush1.bf16.xpose.msra.mxu0 0
        %6628 = vmatprep.subr.bf16.mxu0 0
        %6629 = vmatpush1.bf16.xpose.msra.mxu0 0
        %6630 = vmatprep.subr.bf16.mxu0 0
        %6631 = vmatpush1.bf16.xpose.msra.mxu0 0
        %6632 = vmatprep.subr.bf16.mxu0 0
        %6633 = vmatpush1.bf16.xpose.msra.mxu0 0
        %6634 = vmatprep.subr.bf16.mxu0 0
        %6635 = vmatpush1.bf16.xpose.msra.mxu0 0
        %6636 = vmatprep.subr.bf16.mxu0 0
        %6637 = vmatpush1.bf16.xpose.msra.mxu0 0
        %6638 = vmatprep.subr.bf16.mxu0 0
        %6639 = vmatpush1.bf16.xpose.msra.mxu0 0
        %6640 = vmatprep.subr.bf16.mxu0 0
        %6641 = vmatpush1.bf16.xpose.msra.mxu0 0
        %6642 = vmatprep.subr.bf16.mxu0 0
        %6643 = vmatpush1.bf16.xpose.msra.mxu0 0
        %6644 = vmatprep.subr.bf16.mxu0 0
        %6645 = vmatpush1.bf16.xpose.msra.mxu0 0
        %6646 = vmatprep.subr.bf16.mxu0 0
        %6647 = vmatpush1.bf16.xpose.msra.mxu0 0
        %6648 = vmatprep.mubr.bf16.mxu0 0
        %6649 = vmatmul.mubr.bf16.gmra.mrb[0].mxu0 %v6593
        %v6650 = vpop.f32.mrb[0].mxu0
        %v6651 = vadd.f32 0.0, %v6650
        %v6652 = vpop.f32.mrb[0].mxu0
        %v6653 = vpop.f32.mrb[0].mxu0
        %v6654 = vadd.f32 0.0, %v6653
        %v6655 = vpop.f32.mrb[0].mxu0
        %6656 = vmatprep.mubr.bf16.mxu0 0
        %6657 = vmatmul.mubr.bf16.gmra.mrb[0].mxu0 %v6596
        %v6658 = vpop.f32.mrb[0].mxu0
        %v6659 = vadd.f32 0.0, %v6658
        %v6660 = vpop.f32.mrb[0].mxu0
        %v6661 = vpop.f32.mrb[0].mxu0
        %v6662 = vadd.f32 0.0, %v6661
        %v6663 = vpop.f32.mrb[0].mxu0
        %6664 = vmatprep.mubr.bf16.mxu0 0
        %6665 = vmatmul.mubr.bf16.gmra.mrb[0].mxu0 %v6599
        %v6666 = vpop.f32.mrb[0].mxu0
        %v6667 = vadd.f32 0.0, %v6666
        %v6668 = vpop.f32.mrb[0].mxu0
        %v6669 = vpop.f32.mrb[0].mxu0
        %v6670 = vadd.f32 0.0, %v6669
        %v6671 = vpop.f32.mrb[0].mxu0
        %6672 = vmatprep.mubr.bf16.mxu0 0
        %6673 = vmatmul.mubr.bf16.gmra.mrb[0].mxu0 %v6602
        %v6674 = vpop.f32.mrb[0].mxu0
        %v6675 = vadd.f32 0.0, %v6674
        %v6676 = vpop.f32.mrb[0].mxu0
        %v6677 = vpop.f32.mrb[0].mxu0
        %v6678 = vadd.f32 0.0, %v6677
        %v6679 = vpop.f32.mrb[0].mxu0
        %6680 = vdwg.mxu0
        %v6682 = vsel %vm3503, %v2521, 0
        %v6685 = vsel %vm3503, %v2522, 0
        %v6688 = vsel %vm3503, %v2523, 0
        %v6691 = vsel %vm3503, %v2524, 0
        %v6694 = vsel %vm3503, %v1504, 0
        %v6697 = vsel %vm3503, %v1505, 0
        %v6700 = vsel %vm3503, %v1506, 0
        %v6703 = vsel %vm3503, %v1507, 0
        %6705 = vmatprep.subr.bf16.mxu0 0
        %6706 = vmatpush1.bf16.xpose.msra.mxu0 %v6694
        %6707 = vmatprep.subr.bf16.mxu0 0
        %6708 = vmatpush1.bf16.xpose.msra.mxu0 %v6697
        %6709 = vmatprep.subr.bf16.mxu0 0
        %6710 = vmatpush1.bf16.xpose.msra.mxu0 %v6700
        %6711 = vmatprep.subr.bf16.mxu0 0
        %6712 = vmatpush1.bf16.xpose.msra.mxu0 %v6703
        %6713 = vmatprep.subr.bf16.mxu0 0
        %6714 = vmatpush1.bf16.xpose.msra.mxu0 0
        %6715 = vmatprep.subr.bf16.mxu0 0
        %6716 = vmatpush1.bf16.xpose.msra.mxu0 0
        %6717 = vmatprep.subr.bf16.mxu0 0
        %6718 = vmatpush1.bf16.xpose.msra.mxu0 0
        %6719 = vmatprep.subr.bf16.mxu0 0
        %6720 = vmatpush1.bf16.xpose.msra.mxu0 0
        %6721 = vmatprep.subr.bf16.mxu0 0
        %6722 = vmatpush1.bf16.xpose.msra.mxu0 0
        %6723 = vmatprep.subr.bf16.mxu0 0
        %6724 = vmatpush1.bf16.xpose.msra.mxu0 0
        %6725 = vmatprep.subr.bf16.mxu0 0
        %6726 = vmatpush1.bf16.xpose.msra.mxu0 0
        %6727 = vmatprep.subr.bf16.mxu0 0
        %6728 = vmatpush1.bf16.xpose.msra.mxu0 0
        %6729 = vmatprep.subr.bf16.mxu0 0
        %6730 = vmatpush1.bf16.xpose.msra.mxu0 0
        %6731 = vmatprep.subr.bf16.mxu0 0
        %6732 = vmatpush1.bf16.xpose.msra.mxu0 0
        %6733 = vmatprep.subr.bf16.mxu0 0
        %6734 = vmatpush1.bf16.xpose.msra.mxu0 0
        %6735 = vmatprep.subr.bf16.mxu0 0
        %6736 = vmatpush1.bf16.xpose.msra.mxu0 0
        %6737 = vmatprep.mubr.bf16.mxu0 0
        %6738 = vmatmul.mubr.bf16.gmra.mrb[0].mxu0 %v6682
        %v6739 = vpop.f32.mrb[0].mxu0
        %v6740 = vadd.f32 0.0, %v6739
        %v6741 = vpop.f32.mrb[0].mxu0
        %v6742 = vpop.f32.mrb[0].mxu0
        %v6743 = vadd.f32 0.0, %v6742
        %v6744 = vpop.f32.mrb[0].mxu0
        %6745 = vmatprep.mubr.bf16.mxu0 0
        %6746 = vmatmul.mubr.bf16.gmra.mrb[0].mxu0 %v6685
        %v6747 = vpop.f32.mrb[0].mxu0
        %v6748 = vadd.f32 0.0, %v6747
        %v6749 = vpop.f32.mrb[0].mxu0
        %v6750 = vpop.f32.mrb[0].mxu0
        %v6751 = vadd.f32 0.0, %v6750
        %v6752 = vpop.f32.mrb[0].mxu0
        %6753 = vmatprep.mubr.bf16.mxu0 0
        %6754 = vmatmul.mubr.bf16.gmra.mrb[0].mxu0 %v6688
        %v6755 = vpop.f32.mrb[0].mxu0
        %v6756 = vadd.f32 0.0, %v6755
        %v6757 = vpop.f32.mrb[0].mxu0
        %v6758 = vpop.f32.mrb[0].mxu0
        %v6759 = vadd.f32 0.0, %v6758
        %v6760 = vpop.f32.mrb[0].mxu0
        %6761 = vmatprep.mubr.bf16.mxu0 0
        %6762 = vmatmul.mubr.bf16.gmra.mrb[0].mxu0 %v6691
        %v6763 = vpop.f32.mrb[0].mxu0
        %v6764 = vadd.f32 0.0, %v6763
        %v6765 = vpop.f32.mrb[0].mxu0
        %v6766 = vpop.f32.mrb[0].mxu0
        %v6767 = vadd.f32 0.0, %v6766
        %v6768 = vpop.f32.mrb[0].mxu0
        %6769 = vdwg.mxu0
        %v6771 = vsel %vm3503, %v2525, 0
        %v6774 = vsel %vm3503, %v2526, 0
        %v6777 = vsel %vm3503, %v2527, 0
        %v6780 = vsel %vm3503, %v2528, 0
        %v6783 = vsel %vm3503, %v1508, 0
        %v6786 = vsel %vm3503, %v1509, 0
        %v6789 = vsel %vm3503, %v1510, 0
        %v6792 = vsel %vm3503, %v1511, 0
        %6794 = vmatprep.subr.bf16.mxu0 0
        %6795 = vmatpush1.bf16.xpose.msra.mxu0 %v6783
        %6796 = vmatprep.subr.bf16.mxu0 0
        %6797 = vmatpush1.bf16.xpose.msra.mxu0 %v6786
        %6798 = vmatprep.subr.bf16.mxu0 0
        %6799 = vmatpush1.bf16.xpose.msra.mxu0 %v6789
        %6800 = vmatprep.subr.bf16.mxu0 0
        %6801 = vmatpush1.bf16.xpose.msra.mxu0 %v6792
        %6802 = vmatprep.subr.bf16.mxu0 0
        %6803 = vmatpush1.bf16.xpose.msra.mxu0 0
        %6804 = vmatprep.subr.bf16.mxu0 0
        %6805 = vmatpush1.bf16.xpose.msra.mxu0 0
        %6806 = vmatprep.subr.bf16.mxu0 0
        %6807 = vmatpush1.bf16.xpose.msra.mxu0 0
        %6808 = vmatprep.subr.bf16.mxu0 0
        %6809 = vmatpush1.bf16.xpose.msra.mxu0 0
        %6810 = vmatprep.subr.bf16.mxu0 0
        %6811 = vmatpush1.bf16.xpose.msra.mxu0 0
        %6812 = vmatprep.subr.bf16.mxu0 0
        %6813 = vmatpush1.bf16.xpose.msra.mxu0 0
        %6814 = vmatprep.subr.bf16.mxu0 0
        %6815 = vmatpush1.bf16.xpose.msra.mxu0 0
        %6816 = vmatprep.subr.bf16.mxu0 0
        %6817 = vmatpush1.bf16.xpose.msra.mxu0 0
        %6818 = vmatprep.subr.bf16.mxu0 0
        %6819 = vmatpush1.bf16.xpose.msra.mxu0 0
        %6820 = vmatprep.subr.bf16.mxu0 0
        %6821 = vmatpush1.bf16.xpose.msra.mxu0 0
        %6822 = vmatprep.subr.bf16.mxu0 0
        %6823 = vmatpush1.bf16.xpose.msra.mxu0 0
        %6824 = vmatprep.subr.bf16.mxu0 0
        %6825 = vmatpush1.bf16.xpose.msra.mxu0 0
        %6826 = vmatprep.mubr.bf16.mxu0 0
        %6827 = vmatmul.mubr.bf16.gmra.mrb[0].mxu0 %v6771
        %v6828 = vpop.f32.mrb[0].mxu0
        %v6829 = vadd.f32 0.0, %v6828
        %v6830 = vpop.f32.mrb[0].mxu0
        %v6831 = vpop.f32.mrb[0].mxu0
        %v6832 = vadd.f32 0.0, %v6831
        %v6833 = vpop.f32.mrb[0].mxu0
        %6834 = vmatprep.mubr.bf16.mxu0 0
        %6835 = vmatmul.mubr.bf16.gmra.mrb[0].mxu0 %v6774
        %v6836 = vpop.f32.mrb[0].mxu0
        %v6837 = vadd.f32 0.0, %v6836
        %v6838 = vpop.f32.mrb[0].mxu0
        %v6839 = vpop.f32.mrb[0].mxu0
        %v6840 = vadd.f32 0.0, %v6839
        %v6841 = vpop.f32.mrb[0].mxu0
        %6842 = vmatprep.mubr.bf16.mxu0 0
        %6843 = vmatmul.mubr.bf16.gmra.mrb[0].mxu0 %v6777
        %v6844 = vpop.f32.mrb[0].mxu0
        %v6845 = vadd.f32 0.0, %v6844
        %v6846 = vpop.f32.mrb[0].mxu0
        %v6847 = vpop.f32.mrb[0].mxu0
        %v6848 = vadd.f32 0.0, %v6847
        %v6849 = vpop.f32.mrb[0].mxu0
        %6850 = vmatprep.mubr.bf16.mxu0 0
        %6851 = vmatmul.mubr.bf16.gmra.mrb[0].mxu0 %v6780
        %v6852 = vpop.f32.mrb[0].mxu0
        %v6853 = vadd.f32 0.0, %v6852
        %v6854 = vpop.f32.mrb[0].mxu0
        %v6855 = vpop.f32.mrb[0].mxu0
        %v6856 = vadd.f32 0.0, %v6855
        %v6857 = vpop.f32.mrb[0].mxu0
        %6858 = vdwg.mxu0
        %v6860 = vsel %vm3503, %v2529, 0
        %v6863 = vsel %vm3503, %v2530, 0
        %v6866 = vsel %vm3503, %v2531, 0
        %v6869 = vsel %vm3503, %v2532, 0
        %v6872 = vsel %vm3503, %v1512, 0
        %v6875 = vsel %vm3503, %v1513, 0
        %v6878 = vsel %vm3503, %v1514, 0
        %v6881 = vsel %vm3503, %v1515, 0
        %6883 = vmatprep.subr.bf16.mxu0 0
        %6884 = vmatpush1.bf16.xpose.msra.mxu0 %v6872
        %6885 = vmatprep.subr.bf16.mxu0 0
        %6886 = vmatpush1.bf16.xpose.msra.mxu0 %v6875
        %6887 = vmatprep.subr.bf16.mxu0 0
        %6888 = vmatpush1.bf16.xpose.msra.mxu0 %v6878
        %6889 = vmatprep.subr.bf16.mxu0 0
        %6890 = vmatpush1.bf16.xpose.msra.mxu0 %v6881
        %6891 = vmatprep.subr.bf16.mxu0 0
        %6892 = vmatpush1.bf16.xpose.msra.mxu0 0
        %6893 = vmatprep.subr.bf16.mxu0 0
        %6894 = vmatpush1.bf16.xpose.msra.mxu0 0
        %6895 = vmatprep.subr.bf16.mxu0 0
        %6896 = vmatpush1.bf16.xpose.msra.mxu0 0
        %6897 = vmatprep.subr.bf16.mxu0 0
        %6898 = vmatpush1.bf16.xpose.msra.mxu0 0
        %6899 = vmatprep.subr.bf16.mxu0 0
        %6900 = vmatpush1.bf16.xpose.msra.mxu0 0
        %6901 = vmatprep.subr.bf16.mxu0 0
        %6902 = vmatpush1.bf16.xpose.msra.mxu0 0
        %6903 = vmatprep.subr.bf16.mxu0 0
        %6904 = vmatpush1.bf16.xpose.msra.mxu0 0
        %6905 = vmatprep.subr.bf16.mxu0 0
        %6906 = vmatpush1.bf16.xpose.msra.mxu0 0
        %6907 = vmatprep.subr.bf16.mxu0 0
        %6908 = vmatpush1.bf16.xpose.msra.mxu0 0
        %6909 = vmatprep.subr.bf16.mxu0 0
        %6910 = vmatpush1.bf16.xpose.msra.mxu0 0
        %6911 = vmatprep.subr.bf16.mxu0 0
        %6912 = vmatpush1.bf16.xpose.msra.mxu0 0
        %6913 = vmatprep.subr.bf16.mxu0 0
        %6914 = vmatpush1.bf16.xpose.msra.mxu0 0
        %6915 = vmatprep.mubr.bf16.mxu0 0
        %6916 = vmatmul.mubr.bf16.gmra.mrb[0].mxu0 %v6860
        %v6917 = vpop.f32.mrb[0].mxu0
        %v6918 = vadd.f32 0.0, %v6917
        %v6919 = vpop.f32.mrb[0].mxu0
        %v6920 = vpop.f32.mrb[0].mxu0
        %v6921 = vadd.f32 0.0, %v6920
        %v6922 = vpop.f32.mrb[0].mxu0
        %6923 = vmatprep.mubr.bf16.mxu0 0
        %6924 = vmatmul.mubr.bf16.gmra.mrb[0].mxu0 %v6863
        %v6925 = vpop.f32.mrb[0].mxu0
        %v6926 = vadd.f32 0.0, %v6925
        %v6927 = vpop.f32.mrb[0].mxu0
        %v6928 = vpop.f32.mrb[0].mxu0
        %v6929 = vadd.f32 0.0, %v6928
        %v6930 = vpop.f32.mrb[0].mxu0
        %6931 = vmatprep.mubr.bf16.mxu0 0
        %6932 = vmatmul.mubr.bf16.gmra.mrb[0].mxu0 %v6866
        %v6933 = vpop.f32.mrb[0].mxu0
        %v6934 = vadd.f32 0.0, %v6933
        %v6935 = vpop.f32.mrb[0].mxu0
        %v6936 = vpop.f32.mrb[0].mxu0
        %v6937 = vadd.f32 0.0, %v6936
        %v6938 = vpop.f32.mrb[0].mxu0
        %6939 = vmatprep.mubr.bf16.mxu0 0
        %6940 = vmatmul.mubr.bf16.gmra.mrb[0].mxu0 %v6869
        %v6941 = vpop.f32.mrb[0].mxu0
        %v6942 = vadd.f32 0.0, %v6941
        %v6943 = vpop.f32.mrb[0].mxu0
        %v6944 = vpop.f32.mrb[0].mxu0
        %v6945 = vadd.f32 0.0, %v6944
        %v6946 = vpop.f32.mrb[0].mxu0
        %6947 = vdwg.mxu0
        %v6948 = vsel %vm4216, %v6295, -inf
        %6949 = vmax.xlane.f32.xlu0 %v6948
        %v6950 = vpop.xlane.xlu0 %6949
        %v6951 = vsel %vm4216, %v6298, -inf
        %6952 = vmax.xlane.f32.xlu0 %v6951
        %v6953 = vpop.xlane.xlu0 %6952
        %v6954 = vsel %vm4216, %v6303, -inf
        %6955 = vmax.xlane.f32.xlu0 %v6954
        %v6956 = vpop.xlane.xlu0 %6955
        %v6957 = vsel %vm4216, %v6306, -inf
        %6958 = vmax.xlane.f32.xlu0 %v6957
        %v6959 = vpop.xlane.xlu0 %6958
        %v6960 = vsel %vm4216, %v6311, -inf
        %6961 = vmax.xlane.f32.xlu0 %v6960
        %v6962 = vpop.xlane.xlu0 %6961
        %v6963 = vsel %vm4216, %v6314, -inf
        %6964 = vmax.xlane.f32.xlu0 %v6963
        %v6965 = vpop.xlane.xlu0 %6964
        %v6966 = vsel %vm4216, %v6319, -inf
        %6967 = vmax.xlane.f32.xlu0 %v6966
        %v6968 = vpop.xlane.xlu0 %6967
        %v6969 = vsel %vm4216, %v6322, -inf
        %6970 = vmax.xlane.f32.xlu0 %v6969
        %v6971 = vpop.xlane.xlu0 %6970
        %v6972 = vsel %vm4216, %v6384, -inf
        %6973 = vmax.xlane.f32.xlu0 %v6972
        %v6974 = vpop.xlane.xlu0 %6973
        %v6975 = vsel %vm4216, %v6387, -inf
        %6976 = vmax.xlane.f32.xlu0 %v6975
        %v6977 = vpop.xlane.xlu0 %6976
        %v6978 = vsel %vm4216, %v6392, -inf
        %6979 = vmax.xlane.f32.xlu0 %v6978
        %v6980 = vpop.xlane.xlu0 %6979
        %v6981 = vsel %vm4216, %v6395, -inf
        %6982 = vmax.xlane.f32.xlu0 %v6981
        %v6983 = vpop.xlane.xlu0 %6982
        %v6984 = vsel %vm4216, %v6400, -inf
        %6985 = vmax.xlane.f32.xlu0 %v6984
        %v6986 = vpop.xlane.xlu0 %6985
        %v6987 = vsel %vm4216, %v6403, -inf
        %6988 = vmax.xlane.f32.xlu0 %v6987
        %v6989 = vpop.xlane.xlu0 %6988
        %v6990 = vsel %vm4216, %v6408, -inf
        %6991 = vmax.xlane.f32.xlu0 %v6990
        %v6992 = vpop.xlane.xlu0 %6991
        %v6993 = vsel %vm4216, %v6411, -inf
        %6994 = vmax.xlane.f32.xlu0 %v6993
        %v6995 = vpop.xlane.xlu0 %6994
        %v6996 = vsel %vm4216, %v6473, -inf
        %6997 = vmax.xlane.f32.xlu0 %v6996
        %v6998 = vpop.xlane.xlu0 %6997
        %v6999 = vsel %vm4216, %v6476, -inf
        %7000 = vmax.xlane.f32.xlu0 %v6999
        %v7001 = vpop.xlane.xlu0 %7000
        %v7002 = vsel %vm4216, %v6481, -inf
        %7003 = vmax.xlane.f32.xlu0 %v7002
        %v7004 = vpop.xlane.xlu0 %7003
        %v7005 = vsel %vm4216, %v6484, -inf
        %7006 = vmax.xlane.f32.xlu0 %v7005
        %v7007 = vpop.xlane.xlu0 %7006
        %v7008 = vsel %vm4216, %v6489, -inf
        %7009 = vmax.xlane.f32.xlu0 %v7008
        %v7010 = vpop.xlane.xlu0 %7009
        %v7011 = vsel %vm4216, %v6492, -inf
        %7012 = vmax.xlane.f32.xlu0 %v7011
        %v7013 = vpop.xlane.xlu0 %7012
        %v7014 = vsel %vm4216, %v6497, -inf
        %7015 = vmax.xlane.f32.xlu0 %v7014
        %v7016 = vpop.xlane.xlu0 %7015
        %v7017 = vsel %vm4216, %v6500, -inf
        %7018 = vmax.xlane.f32.xlu0 %v7017
        %v7019 = vpop.xlane.xlu0 %7018
        %v7020 = vsel %vm4216, %v6562, -inf
        %7021 = vmax.xlane.f32.xlu0 %v7020
        %v7022 = vpop.xlane.xlu0 %7021
        %v7023 = vsel %vm4216, %v6565, -inf
        %7024 = vmax.xlane.f32.xlu0 %v7023
        %v7025 = vpop.xlane.xlu0 %7024
        %v7026 = vsel %vm4216, %v6570, -inf
        %7027 = vmax.xlane.f32.xlu0 %v7026
        %v7028 = vpop.xlane.xlu0 %7027
        %v7029 = vsel %vm4216, %v6573, -inf
        %7030 = vmax.xlane.f32.xlu0 %v7029
        %v7031 = vpop.xlane.xlu0 %7030
        %v7032 = vsel %vm4216, %v6578, -inf
        %7033 = vmax.xlane.f32.xlu0 %v7032
        %v7034 = vpop.xlane.xlu0 %7033
        %v7035 = vsel %vm4216, %v6581, -inf
        %7036 = vmax.xlane.f32.xlu0 %v7035
        %v7037 = vpop.xlane.xlu0 %7036
        %v7038 = vsel %vm4216, %v6586, -inf
        %7039 = vmax.xlane.f32.xlu0 %v7038
        %v7040 = vpop.xlane.xlu0 %7039
        %v7041 = vsel %vm4216, %v6589, -inf
        %7042 = vmax.xlane.f32.xlu0 %v7041
        %v7043 = vpop.xlane.xlu0 %7042
        %v7044 = vsel %vm4216, %v6651, -inf
        %7045 = vmax.xlane.f32.xlu0 %v7044
        %v7046 = vpop.xlane.xlu0 %7045
        %v7047 = vsel %vm4216, %v6654, -inf
        %7048 = vmax.xlane.f32.xlu0 %v7047
        %v7049 = vpop.xlane.xlu0 %7048
        %v7050 = vsel %vm4216, %v6659, -inf
        %7051 = vmax.xlane.f32.xlu0 %v7050
        %v7052 = vpop.xlane.xlu0 %7051
        %v7053 = vsel %vm4216, %v6662, -inf
        %7054 = vmax.xlane.f32.xlu0 %v7053
        %v7055 = vpop.xlane.xlu0 %7054
        %v7056 = vsel %vm4216, %v6667, -inf
        %7057 = vmax.xlane.f32.xlu0 %v7056
        %v7058 = vpop.xlane.xlu0 %7057
        %v7059 = vsel %vm4216, %v6670, -inf
        %7060 = vmax.xlane.f32.xlu0 %v7059
        %v7061 = vpop.xlane.xlu0 %7060
        %v7062 = vsel %vm4216, %v6675, -inf
        %7063 = vmax.xlane.f32.xlu0 %v7062
        %v7064 = vpop.xlane.xlu0 %7063
        %v7065 = vsel %vm4216, %v6678, -inf
        %7066 = vmax.xlane.f32.xlu0 %v7065
        %v7067 = vpop.xlane.xlu0 %7066
        %v7068 = vsel %vm4216, %v6740, -inf
        %7069 = vmax.xlane.f32.xlu0 %v7068
        %v7070 = vpop.xlane.xlu0 %7069
        %v7071 = vsel %vm4216, %v6743, -inf
        %7072 = vmax.xlane.f32.xlu0 %v7071
        %v7073 = vpop.xlane.xlu0 %7072
        %v7074 = vsel %vm4216, %v6748, -inf
        %7075 = vmax.xlane.f32.xlu0 %v7074
        %v7076 = vpop.xlane.xlu0 %7075
        %v7077 = vsel %vm4216, %v6751, -inf
        %7078 = vmax.xlane.f32.xlu0 %v7077
        %v7079 = vpop.xlane.xlu0 %7078
        %v7080 = vsel %vm4216, %v6756, -inf
        %7081 = vmax.xlane.f32.xlu0 %v7080
        %v7082 = vpop.xlane.xlu0 %7081
        %v7083 = vsel %vm4216, %v6759, -inf
        %7084 = vmax.xlane.f32.xlu0 %v7083
        %v7085 = vpop.xlane.xlu0 %7084
        %v7086 = vsel %vm4216, %v6764, -inf
        %7087 = vmax.xlane.f32.xlu0 %v7086
        %v7088 = vpop.xlane.xlu0 %7087
        %v7089 = vsel %vm4216, %v6767, -inf
        %7090 = vmax.xlane.f32.xlu0 %v7089
        %v7091 = vpop.xlane.xlu0 %7090
        %v7092 = vsel %vm4216, %v6829, -inf
        %7093 = vmax.xlane.f32.xlu0 %v7092
        %v7094 = vpop.xlane.xlu0 %7093
        %v7095 = vsel %vm4216, %v6832, -inf
        %7096 = vmax.xlane.f32.xlu0 %v7095
        %v7097 = vpop.xlane.xlu0 %7096
        %v7098 = vsel %vm4216, %v6837, -inf
        %7099 = vmax.xlane.f32.xlu0 %v7098
        %v7100 = vpop.xlane.xlu0 %7099
        %v7101 = vsel %vm4216, %v6840, -inf
        %7102 = vmax.xlane.f32.xlu0 %v7101
        %v7103 = vpop.xlane.xlu0 %7102
        %v7104 = vsel %vm4216, %v6845, -inf
        %7105 = vmax.xlane.f32.xlu0 %v7104
        %v7106 = vpop.xlane.xlu0 %7105
        %v7107 = vsel %vm4216, %v6848, -inf
        %7108 = vmax.xlane.f32.xlu0 %v7107
        %v7109 = vpop.xlane.xlu0 %7108
        %v7110 = vsel %vm4216, %v6853, -inf
        %7111 = vmax.xlane.f32.xlu0 %v7110
        %v7112 = vpop.xlane.xlu0 %7111
        %v7113 = vsel %vm4216, %v6856, -inf
        %7114 = vmax.xlane.f32.xlu0 %v7113
        %v7115 = vpop.xlane.xlu0 %7114
        %v7116 = vsel %vm4216, %v6918, -inf
        %7117 = vmax.xlane.f32.xlu0 %v7116
        %v7118 = vpop.xlane.xlu0 %7117
        %v7119 = vsel %vm4216, %v6921, -inf
        %7120 = vmax.xlane.f32.xlu0 %v7119
        %v7121 = vpop.xlane.xlu0 %7120
        %v7122 = vsel %vm4216, %v6926, -inf
        %7123 = vmax.xlane.f32.xlu0 %v7122
        %v7124 = vpop.xlane.xlu0 %7123
        %v7125 = vsel %vm4216, %v6929, -inf
        %7126 = vmax.xlane.f32.xlu0 %v7125
        %v7127 = vpop.xlane.xlu0 %7126
        %v7128 = vsel %vm4216, %v6934, -inf
        %7129 = vmax.xlane.f32.xlu0 %v7128
        %v7130 = vpop.xlane.xlu0 %7129
        %v7131 = vsel %vm4216, %v6937, -inf
        %7132 = vmax.xlane.f32.xlu0 %v7131
        %v7133 = vpop.xlane.xlu0 %7132
        %v7134 = vsel %vm4216, %v6942, -inf
        %7135 = vmax.xlane.f32.xlu0 %v7134
        %v7136 = vpop.xlane.xlu0 %7135
        %v7137 = vsel %vm4216, %v6945, -inf
        %7138 = vmax.xlane.f32.xlu0 %v7137
        %v7139 = vpop.xlane.xlu0 %7138
        %v7140 = vsub.f32 %v6295, %v6950
        %v7141 = vsub.f32 %v6298, %v6953
        %v7142 = vsub.f32 %v6303, %v6956
        %v7143 = vsub.f32 %v6306, %v6959
        %v7144 = vsub.f32 %v6311, %v6962
        %v7145 = vsub.f32 %v6314, %v6965
        %v7146 = vsub.f32 %v6319, %v6968
        %v7147 = vsub.f32 %v6322, %v6971
        %v7148 = vsub.f32 %v6384, %v6974
        %v7149 = vsub.f32 %v6387, %v6977
        %v7150 = vsub.f32 %v6392, %v6980
        %v7151 = vsub.f32 %v6395, %v6983
        %v7152 = vsub.f32 %v6400, %v6986
        %v7153 = vsub.f32 %v6403, %v6989
        %v7154 = vsub.f32 %v6408, %v6992
        %v7155 = vsub.f32 %v6411, %v6995
        %v7156 = vsub.f32 %v6473, %v6998
        %v7157 = vsub.f32 %v6476, %v7001
        %v7158 = vsub.f32 %v6481, %v7004
        %v7159 = vsub.f32 %v6484, %v7007
        %v7160 = vsub.f32 %v6489, %v7010
        %v7161 = vsub.f32 %v6492, %v7013
        %v7162 = vsub.f32 %v6497, %v7016
        %v7163 = vsub.f32 %v6500, %v7019
        %v7164 = vsub.f32 %v6562, %v7022
        %v7165 = vsub.f32 %v6565, %v7025
        %v7166 = vsub.f32 %v6570, %v7028
        %v7167 = vsub.f32 %v6573, %v7031
        %v7168 = vsub.f32 %v6578, %v7034
        %v7169 = vsub.f32 %v6581, %v7037
        %v7170 = vsub.f32 %v6586, %v7040
        %v7171 = vsub.f32 %v6589, %v7043
        %v7172 = vsub.f32 %v6651, %v7046
        %v7173 = vsub.f32 %v6654, %v7049
        %v7174 = vsub.f32 %v6659, %v7052
        %v7175 = vsub.f32 %v6662, %v7055
        %v7176 = vsub.f32 %v6667, %v7058
        %v7177 = vsub.f32 %v6670, %v7061
        %v7178 = vsub.f32 %v6675, %v7064
        %v7179 = vsub.f32 %v6678, %v7067
        %v7180 = vsub.f32 %v6740, %v7070
        %v7181 = vsub.f32 %v6743, %v7073
        %v7182 = vsub.f32 %v6748, %v7076
        %v7183 = vsub.f32 %v6751, %v7079
        %v7184 = vsub.f32 %v6756, %v7082
        %v7185 = vsub.f32 %v6759, %v7085
        %v7186 = vsub.f32 %v6764, %v7088
        %v7187 = vsub.f32 %v6767, %v7091
        %v7188 = vsub.f32 %v6829, %v7094
        %v7189 = vsub.f32 %v6832, %v7097
        %v7190 = vsub.f32 %v6837, %v7100
        %v7191 = vsub.f32 %v6840, %v7103
        %v7192 = vsub.f32 %v6845, %v7106
        %v7193 = vsub.f32 %v6848, %v7109
        %v7194 = vsub.f32 %v6853, %v7112
        %v7195 = vsub.f32 %v6856, %v7115
        %v7196 = vsub.f32 %v6918, %v7118
        %v7197 = vsub.f32 %v6921, %v7121
        %v7198 = vsub.f32 %v6926, %v7124
        %v7199 = vsub.f32 %v6929, %v7127
        %v7200 = vsub.f32 %v6934, %v7130
        %v7201 = vsub.f32 %v6937, %v7133
        %v7202 = vsub.f32 %v6942, %v7136
        %v7203 = vsub.f32 %v6945, %v7139
        %v7204 = vmul.f32 %v7140, 1.442695
        %v7205 = vpow.pop %v7204
        %v7206 = vmul.f32 %v7141, 1.442695
        %v7207 = vpow.pop %v7206
        %v7208 = vmul.f32 %v7142, 1.442695
        %v7209 = vpow.pop %v7208
        %v7210 = vmul.f32 %v7143, 1.442695
        %v7211 = vpow.pop %v7210
        %v7212 = vmul.f32 %v7144, 1.442695
        %v7213 = vpow.pop %v7212
        %v7214 = vmul.f32 %v7145, 1.442695
        %v7215 = vpow.pop %v7214
        %v7216 = vmul.f32 %v7146, 1.442695
        %v7217 = vpow.pop %v7216
        %v7218 = vmul.f32 %v7147, 1.442695
        %v7219 = vpow.pop %v7218
        %v7220 = vmul.f32 %v7148, 1.442695
        %v7221 = vpow.pop %v7220
        %v7222 = vmul.f32 %v7149, 1.442695
        %v7223 = vpow.pop %v7222
        %v7224 = vmul.f32 %v7150, 1.442695
        %v7225 = vpow.pop %v7224
        %v7226 = vmul.f32 %v7151, 1.442695
        %v7227 = vpow.pop %v7226
        %v7228 = vmul.f32 %v7152, 1.442695
        %v7229 = vpow.pop %v7228
        %v7230 = vmul.f32 %v7153, 1.442695
        %v7231 = vpow.pop %v7230
        %v7232 = vmul.f32 %v7154, 1.442695
        %v7233 = vpow.pop %v7232
        %v7234 = vmul.f32 %v7155, 1.442695
        %v7235 = vpow.pop %v7234
        %v7236 = vmul.f32 %v7156, 1.442695
        %v7237 = vpow.pop %v7236
        %v7238 = vmul.f32 %v7157, 1.442695
        %v7239 = vpow.pop %v7238
        %v7240 = vmul.f32 %v7158, 1.442695
        %v7241 = vpow.pop %v7240
        %v7242 = vmul.f32 %v7159, 1.442695
        %v7243 = vpow.pop %v7242
        %v7244 = vmul.f32 %v7160, 1.442695
        %v7245 = vpow.pop %v7244
        %v7246 = vmul.f32 %v7161, 1.442695
        %v7247 = vpow.pop %v7246
        %v7248 = vmul.f32 %v7162, 1.442695
        %v7249 = vpow.pop %v7248
        %v7250 = vmul.f32 %v7163, 1.442695
        %v7251 = vpow.pop %v7250
        %v7252 = vmul.f32 %v7164, 1.442695
        %v7253 = vpow.pop %v7252
        %v7254 = vmul.f32 %v7165, 1.442695
        %v7255 = vpow.pop %v7254
        %v7256 = vmul.f32 %v7166, 1.442695
        %v7257 = vpow.pop %v7256
        %v7258 = vmul.f32 %v7167, 1.442695
        %v7259 = vpow.pop %v7258
        %v7260 = vmul.f32 %v7168, 1.442695
        %v7261 = vpow.pop %v7260
        %v7262 = vmul.f32 %v7169, 1.442695
        %v7263 = vpow.pop %v7262
        %v7264 = vmul.f32 %v7170, 1.442695
        %v7265 = vpow.pop %v7264
        %v7266 = vmul.f32 %v7171, 1.442695
        %v7267 = vpow.pop %v7266
        %v7268 = vmul.f32 %v7172, 1.442695
        %v7269 = vpow.pop %v7268
        %v7270 = vmul.f32 %v7173, 1.442695
        %v7271 = vpow.pop %v7270
        %v7272 = vmul.f32 %v7174, 1.442695
        %v7273 = vpow.pop %v7272
        %v7274 = vmul.f32 %v7175, 1.442695
        %v7275 = vpow.pop %v7274
        %v7276 = vmul.f32 %v7176, 1.442695
        %v7277 = vpow.pop %v7276
        %v7278 = vmul.f32 %v7177, 1.442695
        %v7279 = vpow.pop %v7278
        %v7280 = vmul.f32 %v7178, 1.442695
        %v7281 = vpow.pop %v7280
        %v7282 = vmul.f32 %v7179, 1.442695
        %v7283 = vpow.pop %v7282
        %v7284 = vmul.f32 %v7180, 1.442695
        %v7285 = vpow.pop %v7284
        %v7286 = vmul.f32 %v7181, 1.442695
        %v7287 = vpow.pop %v7286
        %v7288 = vmul.f32 %v7182, 1.442695
        %v7289 = vpow.pop %v7288
        %v7290 = vmul.f32 %v7183, 1.442695
        %v7291 = vpow.pop %v7290
        %v7292 = vmul.f32 %v7184, 1.442695
        %v7293 = vpow.pop %v7292
        %v7294 = vmul.f32 %v7185, 1.442695
        %v7295 = vpow.pop %v7294
        %v7296 = vmul.f32 %v7186, 1.442695
        %v7297 = vpow.pop %v7296
        %v7298 = vmul.f32 %v7187, 1.442695
        %v7299 = vpow.pop %v7298
        %v7300 = vmul.f32 %v7188, 1.442695
        %v7301 = vpow.pop %v7300
        %v7302 = vmul.f32 %v7189, 1.442695
        %v7303 = vpow.pop %v7302
        %v7304 = vmul.f32 %v7190, 1.442695
        %v7305 = vpow.pop %v7304
        %v7306 = vmul.f32 %v7191, 1.442695
        %v7307 = vpow.pop %v7306
        %v7308 = vmul.f32 %v7192, 1.442695
        %v7309 = vpow.pop %v7308
        %v7310 = vmul.f32 %v7193, 1.442695
        %v7311 = vpow.pop %v7310
        %v7312 = vmul.f32 %v7194, 1.442695
        %v7313 = vpow.pop %v7312
        %v7314 = vmul.f32 %v7195, 1.442695
        %v7315 = vpow.pop %v7314
        %v7316 = vmul.f32 %v7196, 1.442695
        %v7317 = vpow.pop %v7316
        %v7318 = vmul.f32 %v7197, 1.442695
        %v7319 = vpow.pop %v7318
        %v7320 = vmul.f32 %v7198, 1.442695
        %v7321 = vpow.pop %v7320
        %v7322 = vmul.f32 %v7199, 1.442695
        %v7323 = vpow.pop %v7322
        %v7324 = vmul.f32 %v7200, 1.442695
        %v7325 = vpow.pop %v7324
        %v7326 = vmul.f32 %v7201, 1.442695
        %v7327 = vpow.pop %v7326
        %v7328 = vmul.f32 %v7202, 1.442695
        %v7329 = vpow.pop %v7328
        %v7330 = vmul.f32 %v7203, 1.442695
        %v7331 = vpow.pop %v7330
        %v7332 = vsel %vm4216, %v7205, 0.0
        %7333 = vadd.xlane.f32.xlu0 %v7332
        %v7334 = vpop.xlane.xlu0 %7333
        %v7335 = vsel %vm4216, %v7207, 0.0
        %7336 = vadd.xlane.f32.xlu0 %v7335
        %v7337 = vpop.xlane.xlu0 %7336
        %v7338 = vsel %vm4216, %v7209, 0.0
        %7339 = vadd.xlane.f32.xlu0 %v7338
        %v7340 = vpop.xlane.xlu0 %7339
        %v7341 = vsel %vm4216, %v7211, 0.0
        %7342 = vadd.xlane.f32.xlu0 %v7341
        %v7343 = vpop.xlane.xlu0 %7342
        %v7344 = vsel %vm4216, %v7213, 0.0
        %7345 = vadd.xlane.f32.xlu0 %v7344
        %v7346 = vpop.xlane.xlu0 %7345
        %v7347 = vsel %vm4216, %v7215, 0.0
        %7348 = vadd.xlane.f32.xlu0 %v7347
        %v7349 = vpop.xlane.xlu0 %7348
        %v7350 = vsel %vm4216, %v7217, 0.0
        %7351 = vadd.xlane.f32.xlu0 %v7350
        %v7352 = vpop.xlane.xlu0 %7351
        %v7353 = vsel %vm4216, %v7219, 0.0
        %7354 = vadd.xlane.f32.xlu0 %v7353
        %v7355 = vpop.xlane.xlu0 %7354
        %v7356 = vsel %vm4216, %v7221, 0.0
        %7357 = vadd.xlane.f32.xlu0 %v7356
        %v7358 = vpop.xlane.xlu0 %7357
        %v7359 = vsel %vm4216, %v7223, 0.0
        %7360 = vadd.xlane.f32.xlu0 %v7359
        %v7361 = vpop.xlane.xlu0 %7360
        %v7362 = vsel %vm4216, %v7225, 0.0
        %7363 = vadd.xlane.f32.xlu0 %v7362
        %v7364 = vpop.xlane.xlu0 %7363
        %v7365 = vsel %vm4216, %v7227, 0.0
        %7366 = vadd.xlane.f32.xlu0 %v7365
        %v7367 = vpop.xlane.xlu0 %7366
        %v7368 = vsel %vm4216, %v7229, 0.0
        %7369 = vadd.xlane.f32.xlu0 %v7368
        %v7370 = vpop.xlane.xlu0 %7369
        %v7371 = vsel %vm4216, %v7231, 0.0
        %7372 = vadd.xlane.f32.xlu0 %v7371
        %v7373 = vpop.xlane.xlu0 %7372
        %v7374 = vsel %vm4216, %v7233, 0.0
        %7375 = vadd.xlane.f32.xlu0 %v7374
        %v7376 = vpop.xlane.xlu0 %7375
        %v7377 = vsel %vm4216, %v7235, 0.0
        %7378 = vadd.xlane.f32.xlu0 %v7377
        %v7379 = vpop.xlane.xlu0 %7378
        %v7380 = vsel %vm4216, %v7237, 0.0
        %7381 = vadd.xlane.f32.xlu0 %v7380
        %v7382 = vpop.xlane.xlu0 %7381
        %v7383 = vsel %vm4216, %v7239, 0.0
        %7384 = vadd.xlane.f32.xlu0 %v7383
        %v7385 = vpop.xlane.xlu0 %7384
        %v7386 = vsel %vm4216, %v7241, 0.0
        %7387 = vadd.xlane.f32.xlu0 %v7386
        %v7388 = vpop.xlane.xlu0 %7387
        %v7389 = vsel %vm4216, %v7243, 0.0
        %7390 = vadd.xlane.f32.xlu0 %v7389
        %v7391 = vpop.xlane.xlu0 %7390
        %v7392 = vsel %vm4216, %v7245, 0.0
        %7393 = vadd.xlane.f32.xlu0 %v7392
        %v7394 = vpop.xlane.xlu0 %7393
        %v7395 = vsel %vm4216, %v7247, 0.0
        %7396 = vadd.xlane.f32.xlu0 %v7395
        %v7397 = vpop.xlane.xlu0 %7396
        %v7398 = vsel %vm4216, %v7249, 0.0
        %7399 = vadd.xlane.f32.xlu0 %v7398
        %v7400 = vpop.xlane.xlu0 %7399
        %v7401 = vsel %vm4216, %v7251, 0.0
        %7402 = vadd.xlane.f32.xlu0 %v7401
        %v7403 = vpop.xlane.xlu0 %7402
        %v7404 = vsel %vm4216, %v7253, 0.0
        %7405 = vadd.xlane.f32.xlu0 %v7404
        %v7406 = vpop.xlane.xlu0 %7405
        %v7407 = vsel %vm4216, %v7255, 0.0
        %7408 = vadd.xlane.f32.xlu0 %v7407
        %v7409 = vpop.xlane.xlu0 %7408
        %v7410 = vsel %vm4216, %v7257, 0.0
        %7411 = vadd.xlane.f32.xlu0 %v7410
        %v7412 = vpop.xlane.xlu0 %7411
        %v7413 = vsel %vm4216, %v7259, 0.0
        %7414 = vadd.xlane.f32.xlu0 %v7413
        %v7415 = vpop.xlane.xlu0 %7414
        %v7416 = vsel %vm4216, %v7261, 0.0
        %7417 = vadd.xlane.f32.xlu0 %v7416
        %v7418 = vpop.xlane.xlu0 %7417
        %v7419 = vsel %vm4216, %v7263, 0.0
        %7420 = vadd.xlane.f32.xlu0 %v7419
        %v7421 = vpop.xlane.xlu0 %7420
        %v7422 = vsel %vm4216, %v7265, 0.0
        %7423 = vadd.xlane.f32.xlu0 %v7422
        %v7424 = vpop.xlane.xlu0 %7423
        %v7425 = vsel %vm4216, %v7267, 0.0
        %7426 = vadd.xlane.f32.xlu0 %v7425
        %v7427 = vpop.xlane.xlu0 %7426
        %v7428 = vsel %vm4216, %v7269, 0.0
        %7429 = vadd.xlane.f32.xlu0 %v7428
        %v7430 = vpop.xlane.xlu0 %7429
        %v7431 = vsel %vm4216, %v7271, 0.0
        %7432 = vadd.xlane.f32.xlu0 %v7431
        %v7433 = vpop.xlane.xlu0 %7432
        %v7434 = vsel %vm4216, %v7273, 0.0
        %7435 = vadd.xlane.f32.xlu0 %v7434
        %v7436 = vpop.xlane.xlu0 %7435
        %v7437 = vsel %vm4216, %v7275, 0.0
        %7438 = vadd.xlane.f32.xlu0 %v7437
        %v7439 = vpop.xlane.xlu0 %7438
        %v7440 = vsel %vm4216, %v7277, 0.0
        %7441 = vadd.xlane.f32.xlu0 %v7440
        %v7442 = vpop.xlane.xlu0 %7441
        %v7443 = vsel %vm4216, %v7279, 0.0
        %7444 = vadd.xlane.f32.xlu0 %v7443
        %v7445 = vpop.xlane.xlu0 %7444
        %v7446 = vsel %vm4216, %v7281, 0.0
        %7447 = vadd.xlane.f32.xlu0 %v7446
        %v7448 = vpop.xlane.xlu0 %7447
        %v7449 = vsel %vm4216, %v7283, 0.0
        %7450 = vadd.xlane.f32.xlu0 %v7449
        %v7451 = vpop.xlane.xlu0 %7450
        %v7452 = vsel %vm4216, %v7285, 0.0
        %7453 = vadd.xlane.f32.xlu0 %v7452
        %v7454 = vpop.xlane.xlu0 %7453
        %v7455 = vsel %vm4216, %v7287, 0.0
        %7456 = vadd.xlane.f32.xlu0 %v7455
        %v7457 = vpop.xlane.xlu0 %7456
        %v7458 = vsel %vm4216, %v7289, 0.0
        %7459 = vadd.xlane.f32.xlu0 %v7458
        %v7460 = vpop.xlane.xlu0 %7459
        %v7461 = vsel %vm4216, %v7291, 0.0
        %7462 = vadd.xlane.f32.xlu0 %v7461
        %v7463 = vpop.xlane.xlu0 %7462
        %v7464 = vsel %vm4216, %v7293, 0.0
        %7465 = vadd.xlane.f32.xlu0 %v7464
        %v7466 = vpop.xlane.xlu0 %7465
        %v7467 = vsel %vm4216, %v7295, 0.0
        %7468 = vadd.xlane.f32.xlu0 %v7467
        %v7469 = vpop.xlane.xlu0 %7468
        %v7470 = vsel %vm4216, %v7297, 0.0
        %7471 = vadd.xlane.f32.xlu0 %v7470
        %v7472 = vpop.xlane.xlu0 %7471
        %v7473 = vsel %vm4216, %v7299, 0.0
        %7474 = vadd.xlane.f32.xlu0 %v7473
        %v7475 = vpop.xlane.xlu0 %7474
        %v7476 = vsel %vm4216, %v7301, 0.0
        %7477 = vadd.xlane.f32.xlu0 %v7476
        %v7478 = vpop.xlane.xlu0 %7477
        %v7479 = vsel %vm4216, %v7303, 0.0
        %7480 = vadd.xlane.f32.xlu0 %v7479
        %v7481 = vpop.xlane.xlu0 %7480
        %v7482 = vsel %vm4216, %v7305, 0.0
        %7483 = vadd.xlane.f32.xlu0 %v7482
        %v7484 = vpop.xlane.xlu0 %7483
        %v7485 = vsel %vm4216, %v7307, 0.0
        %7486 = vadd.xlane.f32.xlu0 %v7485
        %v7487 = vpop.xlane.xlu0 %7486
        %v7488 = vsel %vm4216, %v7309, 0.0
        %7489 = vadd.xlane.f32.xlu0 %v7488
        %v7490 = vpop.xlane.xlu0 %7489
        %v7491 = vsel %vm4216, %v7311, 0.0
        %7492 = vadd.xlane.f32.xlu0 %v7491
        %v7493 = vpop.xlane.xlu0 %7492
        %v7494 = vsel %vm4216, %v7313, 0.0
        %7495 = vadd.xlane.f32.xlu0 %v7494
        %v7496 = vpop.xlane.xlu0 %7495
        %v7497 = vsel %vm4216, %v7315, 0.0
        %7498 = vadd.xlane.f32.xlu0 %v7497
        %v7499 = vpop.xlane.xlu0 %7498
        %v7500 = vsel %vm4216, %v7317, 0.0
        %7501 = vadd.xlane.f32.xlu0 %v7500
        %v7502 = vpop.xlane.xlu0 %7501
        %v7503 = vsel %vm4216, %v7319, 0.0
        %7504 = vadd.xlane.f32.xlu0 %v7503
        %v7505 = vpop.xlane.xlu0 %7504
        %v7506 = vsel %vm4216, %v7321, 0.0
        %7507 = vadd.xlane.f32.xlu0 %v7506
        %v7508 = vpop.xlane.xlu0 %7507
        %v7509 = vsel %vm4216, %v7323, 0.0
        %7510 = vadd.xlane.f32.xlu0 %v7509
        %v7511 = vpop.xlane.xlu0 %7510
        %v7512 = vsel %vm4216, %v7325, 0.0
        %7513 = vadd.xlane.f32.xlu0 %v7512
        %v7514 = vpop.xlane.xlu0 %7513
        %v7515 = vsel %vm4216, %v7327, 0.0
        %7516 = vadd.xlane.f32.xlu0 %v7515
        %v7517 = vpop.xlane.xlu0 %7516
        %v7518 = vsel %vm4216, %v7329, 0.0
        %7519 = vadd.xlane.f32.xlu0 %v7518
        %v7520 = vpop.xlane.xlu0 %7519
        %v7521 = vsel %vm4216, %v7331, 0.0
        %7522 = vadd.xlane.f32.xlu0 %v7521
        %v7523 = vpop.xlane.xlu0 %7522
        %v7524 = vrcp.pop %v7334
        %v7525 = vrcp.pop %v7337
        %v7526 = vrcp.pop %v7340
        %v7527 = vrcp.pop %v7343
        %v7528 = vrcp.pop %v7346
        %v7529 = vrcp.pop %v7349
        %v7530 = vrcp.pop %v7352
        %v7531 = vrcp.pop %v7355
        %v7532 = vrcp.pop %v7358
        %v7533 = vrcp.pop %v7361
        %v7534 = vrcp.pop %v7364
        %v7535 = vrcp.pop %v7367
        %v7536 = vrcp.pop %v7370
        %v7537 = vrcp.pop %v7373
        %v7538 = vrcp.pop %v7376
        %v7539 = vrcp.pop %v7379
        %v7540 = vrcp.pop %v7382
        %v7541 = vrcp.pop %v7385
        %v7542 = vrcp.pop %v7388
        %v7543 = vrcp.pop %v7391
        %v7544 = vrcp.pop %v7394
        %v7545 = vrcp.pop %v7397
        %v7546 = vrcp.pop %v7400
        %v7547 = vrcp.pop %v7403
        %v7548 = vrcp.pop %v7406
        %v7549 = vrcp.pop %v7409
        %v7550 = vrcp.pop %v7412
        %v7551 = vrcp.pop %v7415
        %v7552 = vrcp.pop %v7418
        %v7553 = vrcp.pop %v7421
        %v7554 = vrcp.pop %v7424
        %v7555 = vrcp.pop %v7427
        %v7556 = vrcp.pop %v7430
        %v7557 = vrcp.pop %v7433
        %v7558 = vrcp.pop %v7436
        %v7559 = vrcp.pop %v7439
        %v7560 = vrcp.pop %v7442
        %v7561 = vrcp.pop %v7445
        %v7562 = vrcp.pop %v7448
        %v7563 = vrcp.pop %v7451
        %v7564 = vrcp.pop %v7454
        %v7565 = vrcp.pop %v7457
        %v7566 = vrcp.pop %v7460
        %v7567 = vrcp.pop %v7463
        %v7568 = vrcp.pop %v7466
        %v7569 = vrcp.pop %v7469
        %v7570 = vrcp.pop %v7472
        %v7571 = vrcp.pop %v7475
        %v7572 = vrcp.pop %v7478
        %v7573 = vrcp.pop %v7481
        %v7574 = vrcp.pop %v7484
        %v7575 = vrcp.pop %v7487
        %v7576 = vrcp.pop %v7490
        %v7577 = vrcp.pop %v7493
        %v7578 = vrcp.pop %v7496
        %v7579 = vrcp.pop %v7499
        %v7580 = vrcp.pop %v7502
        %v7581 = vrcp.pop %v7505
        %v7582 = vrcp.pop %v7508
        %v7583 = vrcp.pop %v7511
        %v7584 = vrcp.pop %v7514
        %v7585 = vrcp.pop %v7517
        %v7586 = vrcp.pop %v7520
        %v7587 = vrcp.pop %v7523
        %v7588 = vmul.f32 %v7205, %v7524
        %v7589 = vmul.f32 %v7207, %v7525
        %v7590 = vmul.f32 %v7209, %v7526
        %v7591 = vmul.f32 %v7211, %v7527
        %v7592 = vmul.f32 %v7213, %v7528
        %v7593 = vmul.f32 %v7215, %v7529
        %v7594 = vmul.f32 %v7217, %v7530
        %v7595 = vmul.f32 %v7219, %v7531
        %v7596 = vmul.f32 %v7221, %v7532
        %v7597 = vmul.f32 %v7223, %v7533
        %v7598 = vmul.f32 %v7225, %v7534
        %v7599 = vmul.f32 %v7227, %v7535
        %v7600 = vmul.f32 %v7229, %v7536
        %v7601 = vmul.f32 %v7231, %v7537
        %v7602 = vmul.f32 %v7233, %v7538
        %v7603 = vmul.f32 %v7235, %v7539
        %v7604 = vmul.f32 %v7237, %v7540
        %v7605 = vmul.f32 %v7239, %v7541
        %v7606 = vmul.f32 %v7241, %v7542
        %v7607 = vmul.f32 %v7243, %v7543
        %v7608 = vmul.f32 %v7245, %v7544
        %v7609 = vmul.f32 %v7247, %v7545
        %v7610 = vmul.f32 %v7249, %v7546
        %v7611 = vmul.f32 %v7251, %v7547
        %v7612 = vmul.f32 %v7253, %v7548
        %v7613 = vmul.f32 %v7255, %v7549
        %v7614 = vmul.f32 %v7257, %v7550
        %v7615 = vmul.f32 %v7259, %v7551
        %v7616 = vmul.f32 %v7261, %v7552
        %v7617 = vmul.f32 %v7263, %v7553
        %v7618 = vmul.f32 %v7265, %v7554
        %v7619 = vmul.f32 %v7267, %v7555
        %v7620 = vmul.f32 %v7269, %v7556
        %v7621 = vmul.f32 %v7271, %v7557
        %v7622 = vmul.f32 %v7273, %v7558
        %v7623 = vmul.f32 %v7275, %v7559
        %v7624 = vmul.f32 %v7277, %v7560
        %v7625 = vmul.f32 %v7279, %v7561
        %v7626 = vmul.f32 %v7281, %v7562
        %v7627 = vmul.f32 %v7283, %v7563
        %v7628 = vmul.f32 %v7285, %v7564
        %v7629 = vmul.f32 %v7287, %v7565
        %v7630 = vmul.f32 %v7289, %v7566
        %v7631 = vmul.f32 %v7291, %v7567
        %v7632 = vmul.f32 %v7293, %v7568
        %v7633 = vmul.f32 %v7295, %v7569
        %v7634 = vmul.f32 %v7297, %v7570
        %v7635 = vmul.f32 %v7299, %v7571
        %v7636 = vmul.f32 %v7301, %v7572
        %v7637 = vmul.f32 %v7303, %v7573
        %v7638 = vmul.f32 %v7305, %v7574
        %v7639 = vmul.f32 %v7307, %v7575
        %v7640 = vmul.f32 %v7309, %v7576
        %v7641 = vmul.f32 %v7311, %v7577
        %v7642 = vmul.f32 %v7313, %v7578
        %v7643 = vmul.f32 %v7315, %v7579
        %v7644 = vmul.f32 %v7317, %v7580
        %v7645 = vmul.f32 %v7319, %v7581
        %v7646 = vmul.f32 %v7321, %v7582
        %v7647 = vmul.f32 %v7323, %v7583
        %v7648 = vmul.f32 %v7325, %v7584
        %v7649 = vmul.f32 %v7327, %v7585
        %v7650 = vmul.f32 %v7329, %v7586
        %v7651 = vmul.f32 %v7331, %v7587
        %v7652 = vpack.c.bf16 %v7589, %v7588
        %v7653 = vpack.c.bf16 %v7591, %v7590
        %v7654 = vpack.c.bf16 %v7593, %v7592
        %v7655 = vpack.c.bf16 %v7595, %v7594
        %v7656 = vpack.c.bf16 %v7597, %v7596
        %v7657 = vpack.c.bf16 %v7599, %v7598
        %v7658 = vpack.c.bf16 %v7601, %v7600
        %v7659 = vpack.c.bf16 %v7603, %v7602
        %v7660 = vpack.c.bf16 %v7605, %v7604
        %v7661 = vpack.c.bf16 %v7607, %v7606
        %v7662 = vpack.c.bf16 %v7609, %v7608
        %v7663 = vpack.c.bf16 %v7611, %v7610
        %v7664 = vpack.c.bf16 %v7613, %v7612
        %v7665 = vpack.c.bf16 %v7615, %v7614
        %v7666 = vpack.c.bf16 %v7617, %v7616
        %v7667 = vpack.c.bf16 %v7619, %v7618
        %v7668 = vpack.c.bf16 %v7621, %v7620
        %v7669 = vpack.c.bf16 %v7623, %v7622
        %v7670 = vpack.c.bf16 %v7625, %v7624
        %v7671 = vpack.c.bf16 %v7627, %v7626
        %v7672 = vpack.c.bf16 %v7629, %v7628
        %v7673 = vpack.c.bf16 %v7631, %v7630
        %v7674 = vpack.c.bf16 %v7633, %v7632
        %v7675 = vpack.c.bf16 %v7635, %v7634
        %v7676 = vpack.c.bf16 %v7637, %v7636
        %v7677 = vpack.c.bf16 %v7639, %v7638
        %v7678 = vpack.c.bf16 %v7641, %v7640
        %v7679 = vpack.c.bf16 %v7643, %v7642
        %v7680 = vpack.c.bf16 %v7645, %v7644
        %v7681 = vpack.c.bf16 %v7647, %v7646
        %v7682 = vpack.c.bf16 %v7649, %v7648
        %v7683 = vpack.c.bf16 %v7651, %v7650
        %v7685 = vsel %vm4216, %v7652, 0
        %v7688 = vsel %vm4216, %v7653, 0
        %v7691 = vsel %vm4216, %v7654, 0
        %v7694 = vsel %vm4216, %v7655, 0
        %7696 = vmatprep.subr.bf16.mxu0 0
        %7697 = vmatpush1.bf16.msra.mxu0 %v1969
        %7698 = vmatprep.subr.bf16.mxu0 0
        %7699 = vmatpush1.bf16.msra.mxu0 %v1970
        %7700 = vmatprep.subr.bf16.mxu0 0
        %7701 = vmatpush1.bf16.msra.mxu0 %v1971
        %7702 = vmatprep.subr.bf16.mxu0 0
        %7703 = vmatpush1.bf16.msra.mxu0 %v1972
        %7704 = vmatprep.subr.bf16.mxu0 0
        %7705 = vmatpush1.bf16.msra.mxu0 0
        %7706 = vmatprep.subr.bf16.mxu0 0
        %7707 = vmatpush1.bf16.msra.mxu0 0
        %7708 = vmatprep.subr.bf16.mxu0 0
        %7709 = vmatpush1.bf16.msra.mxu0 0
        %7710 = vmatprep.subr.bf16.mxu0 0
        %7711 = vmatpush1.bf16.msra.mxu0 0
        %7712 = vmatprep.subr.bf16.mxu0 0
        %7713 = vmatpush1.bf16.msra.mxu0 0
        %7714 = vmatprep.subr.bf16.mxu0 0
        %7715 = vmatpush1.bf16.msra.mxu0 0
        %7716 = vmatprep.subr.bf16.mxu0 0
        %7717 = vmatpush1.bf16.msra.mxu0 0
        %7718 = vmatprep.subr.bf16.mxu0 0
        %7719 = vmatpush1.bf16.msra.mxu0 0
        %7720 = vmatprep.subr.bf16.mxu0 0
        %7721 = vmatpush1.bf16.msra.mxu0 0
        %7722 = vmatprep.subr.bf16.mxu0 0
        %7723 = vmatpush1.bf16.msra.mxu0 0
        %7724 = vmatprep.subr.bf16.mxu0 0
        %7725 = vmatpush1.bf16.msra.mxu0 0
        %7726 = vmatprep.subr.bf16.mxu0 0
        %7727 = vmatpush1.bf16.msra.mxu0 0
        %7728 = vmatprep.mubr.bf16.mxu0 0
        %7729 = vmatmul.mubr.bf16.gmra.mrb[0].mxu0 %v7685
        %v7730 = vpop.f32.mrb[0].mxu0
        %v7731 = vadd.f32 0.0, %v7730
        %v7732 = vpop.f32.mrb[0].mxu0
        %v7733 = vpop.f32.mrb[0].mxu0
        %v7734 = vadd.f32 0.0, %v7733
        %v7735 = vpop.f32.mrb[0].mxu0
        %7736 = vmatprep.mubr.bf16.mxu0 0
        %7737 = vmatmul.mubr.bf16.gmra.mrb[0].mxu0 %v7688
        %v7738 = vpop.f32.mrb[0].mxu0
        %v7739 = vadd.f32 0.0, %v7738
        %v7740 = vpop.f32.mrb[0].mxu0
        %v7741 = vpop.f32.mrb[0].mxu0
        %v7742 = vadd.f32 0.0, %v7741
        %v7743 = vpop.f32.mrb[0].mxu0
        %7744 = vmatprep.mubr.bf16.mxu0 0
        %7745 = vmatmul.mubr.bf16.gmra.mrb[0].mxu0 %v7691
        %v7746 = vpop.f32.mrb[0].mxu0
        %v7747 = vadd.f32 0.0, %v7746
        %v7748 = vpop.f32.mrb[0].mxu0
        %v7749 = vpop.f32.mrb[0].mxu0
        %v7750 = vadd.f32 0.0, %v7749
        %v7751 = vpop.f32.mrb[0].mxu0
        %7752 = vmatprep.mubr.bf16.mxu0 0
        %7753 = vmatmul.mubr.bf16.gmra.mrb[0].mxu0 %v7694
        %v7754 = vpop.f32.mrb[0].mxu0
        %v7755 = vadd.f32 0.0, %v7754
        %v7756 = vpop.f32.mrb[0].mxu0
        %v7757 = vpop.f32.mrb[0].mxu0
        %v7758 = vadd.f32 0.0, %v7757
        %v7759 = vpop.f32.mrb[0].mxu0
        %7760 = vdwg.mxu0
        %v7762 = vsel %vm4216, %v7656, 0
        %v7765 = vsel %vm4216, %v7657, 0
        %v7768 = vsel %vm4216, %v7658, 0
        %v7771 = vsel %vm4216, %v7659, 0
        %7773 = vmatprep.subr.bf16.mxu0 0
        %7774 = vmatpush1.bf16.msra.mxu0 %v1973
        %7775 = vmatprep.subr.bf16.mxu0 0
        %7776 = vmatpush1.bf16.msra.mxu0 %v1974
        %7777 = vmatprep.subr.bf16.mxu0 0
        %7778 = vmatpush1.bf16.msra.mxu0 %v1975
        %7779 = vmatprep.subr.bf16.mxu0 0
        %7780 = vmatpush1.bf16.msra.mxu0 %v1976
        %7781 = vmatprep.subr.bf16.mxu0 0
        %7782 = vmatpush1.bf16.msra.mxu0 0
        %7783 = vmatprep.subr.bf16.mxu0 0
        %7784 = vmatpush1.bf16.msra.mxu0 0
        %7785 = vmatprep.subr.bf16.mxu0 0
        %7786 = vmatpush1.bf16.msra.mxu0 0
        %7787 = vmatprep.subr.bf16.mxu0 0
        %7788 = vmatpush1.bf16.msra.mxu0 0
        %7789 = vmatprep.subr.bf16.mxu0 0
        %7790 = vmatpush1.bf16.msra.mxu0 0
        %7791 = vmatprep.subr.bf16.mxu0 0
        %7792 = vmatpush1.bf16.msra.mxu0 0
        %7793 = vmatprep.subr.bf16.mxu0 0
        %7794 = vmatpush1.bf16.msra.mxu0 0
        %7795 = vmatprep.subr.bf16.mxu0 0
        %7796 = vmatpush1.bf16.msra.mxu0 0
        %7797 = vmatprep.subr.bf16.mxu0 0
        %7798 = vmatpush1.bf16.msra.mxu0 0
        %7799 = vmatprep.subr.bf16.mxu0 0
        %7800 = vmatpush1.bf16.msra.mxu0 0
        %7801 = vmatprep.subr.bf16.mxu0 0
        %7802 = vmatpush1.bf16.msra.mxu0 0
        %7803 = vmatprep.subr.bf16.mxu0 0
        %7804 = vmatpush1.bf16.msra.mxu0 0
        %7805 = vmatprep.mubr.bf16.mxu0 0
        %7806 = vmatmul.mubr.bf16.gmra.mrb[0].mxu0 %v7762
        %v7807 = vpop.f32.mrb[0].mxu0
        %v7808 = vadd.f32 0.0, %v7807
        %v7809 = vpop.f32.mrb[0].mxu0
        %v7810 = vpop.f32.mrb[0].mxu0
        %v7811 = vadd.f32 0.0, %v7810
        %v7812 = vpop.f32.mrb[0].mxu0
        %7813 = vmatprep.mubr.bf16.mxu0 0
        %7814 = vmatmul.mubr.bf16.gmra.mrb[0].mxu0 %v7765
        %v7815 = vpop.f32.mrb[0].mxu0
        %v7816 = vadd.f32 0.0, %v7815
        %v7817 = vpop.f32.mrb[0].mxu0
        %v7818 = vpop.f32.mrb[0].mxu0
        %v7819 = vadd.f32 0.0, %v7818
        %v7820 = vpop.f32.mrb[0].mxu0
        %7821 = vmatprep.mubr.bf16.mxu0 0
        %7822 = vmatmul.mubr.bf16.gmra.mrb[0].mxu0 %v7768
        %v7823 = vpop.f32.mrb[0].mxu0
        %v7824 = vadd.f32 0.0, %v7823
        %v7825 = vpop.f32.mrb[0].mxu0
        %v7826 = vpop.f32.mrb[0].mxu0
        %v7827 = vadd.f32 0.0, %v7826
        %v7828 = vpop.f32.mrb[0].mxu0
        %7829 = vmatprep.mubr.bf16.mxu0 0
        %7830 = vmatmul.mubr.bf16.gmra.mrb[0].mxu0 %v7771
        %v7831 = vpop.f32.mrb[0].mxu0
        %v7832 = vadd.f32 0.0, %v7831
        %v7833 = vpop.f32.mrb[0].mxu0
        %v7834 = vpop.f32.mrb[0].mxu0
        %v7835 = vadd.f32 0.0, %v7834
        %v7836 = vpop.f32.mrb[0].mxu0
        %7837 = vdwg.mxu0
        %v7839 = vsel %vm4216, %v7660, 0
        %v7842 = vsel %vm4216, %v7661, 0
        %v7845 = vsel %vm4216, %v7662, 0
        %v7848 = vsel %vm4216, %v7663, 0
        %7850 = vmatprep.subr.bf16.mxu0 0
        %7851 = vmatpush1.bf16.msra.mxu0 %v1977
        %7852 = vmatprep.subr.bf16.mxu0 0
        %7853 = vmatpush1.bf16.msra.mxu0 %v1978
        %7854 = vmatprep.subr.bf16.mxu0 0
        %7855 = vmatpush1.bf16.msra.mxu0 %v1979
        %7856 = vmatprep.subr.bf16.mxu0 0
        %7857 = vmatpush1.bf16.msra.mxu0 %v1980
        %7858 = vmatprep.subr.bf16.mxu0 0
        %7859 = vmatpush1.bf16.msra.mxu0 0
        %7860 = vmatprep.subr.bf16.mxu0 0
        %7861 = vmatpush1.bf16.msra.mxu0 0
        %7862 = vmatprep.subr.bf16.mxu0 0
        %7863 = vmatpush1.bf16.msra.mxu0 0
        %7864 = vmatprep.subr.bf16.mxu0 0
        %7865 = vmatpush1.bf16.msra.mxu0 0
        %7866 = vmatprep.subr.bf16.mxu0 0
        %7867 = vmatpush1.bf16.msra.mxu0 0
        %7868 = vmatprep.subr.bf16.mxu0 0
        %7869 = vmatpush1.bf16.msra.mxu0 0
        %7870 = vmatprep.subr.bf16.mxu0 0
        %7871 = vmatpush1.bf16.msra.mxu0 0
        %7872 = vmatprep.subr.bf16.mxu0 0
        %7873 = vmatpush1.bf16.msra.mxu0 0
        %7874 = vmatprep.subr.bf16.mxu0 0
        %7875 = vmatpush1.bf16.msra.mxu0 0
        %7876 = vmatprep.subr.bf16.mxu0 0
        %7877 = vmatpush1.bf16.msra.mxu0 0
        %7878 = vmatprep.subr.bf16.mxu0 0
        %7879 = vmatpush1.bf16.msra.mxu0 0
        %7880 = vmatprep.subr.bf16.mxu0 0
        %7881 = vmatpush1.bf16.msra.mxu0 0
        %7882 = vmatprep.mubr.bf16.mxu0 0
        %7883 = vmatmul.mubr.bf16.gmra.mrb[0].mxu0 %v7839
        %v7884 = vpop.f32.mrb[0].mxu0
        %v7885 = vadd.f32 0.0, %v7884
        %v7886 = vpop.f32.mrb[0].mxu0
        %v7887 = vpop.f32.mrb[0].mxu0
        %v7888 = vadd.f32 0.0, %v7887
        %v7889 = vpop.f32.mrb[0].mxu0
        %7890 = vmatprep.mubr.bf16.mxu0 0
        %7891 = vmatmul.mubr.bf16.gmra.mrb[0].mxu0 %v7842
        %v7892 = vpop.f32.mrb[0].mxu0
        %v7893 = vadd.f32 0.0, %v7892
        %v7894 = vpop.f32.mrb[0].mxu0
        %v7895 = vpop.f32.mrb[0].mxu0
        %v7896 = vadd.f32 0.0, %v7895
        %v7897 = vpop.f32.mrb[0].mxu0
        %7898 = vmatprep.mubr.bf16.mxu0 0
        %7899 = vmatmul.mubr.bf16.gmra.mrb[0].mxu0 %v7845
        %v7900 = vpop.f32.mrb[0].mxu0
        %v7901 = vadd.f32 0.0, %v7900
        %v7902 = vpop.f32.mrb[0].mxu0
        %v7903 = vpop.f32.mrb[0].mxu0
        %v7904 = vadd.f32 0.0, %v7903
        %v7905 = vpop.f32.mrb[0].mxu0
        %7906 = vmatprep.mubr.bf16.mxu0 0
        %7907 = vmatmul.mubr.bf16.gmra.mrb[0].mxu0 %v7848
        %v7908 = vpop.f32.mrb[0].mxu0
        %v7909 = vadd.f32 0.0, %v7908
        %v7910 = vpop.f32.mrb[0].mxu0
        %v7911 = vpop.f32.mrb[0].mxu0
        %v7912 = vadd.f32 0.0, %v7911
        %v7913 = vpop.f32.mrb[0].mxu0
        %7914 = vdwg.mxu0
        %v7916 = vsel %vm4216, %v7664, 0
        %v7919 = vsel %vm4216, %v7665, 0
        %v7922 = vsel %vm4216, %v7666, 0
        %v7925 = vsel %vm4216, %v7667, 0
        %7927 = vmatprep.subr.bf16.mxu0 0
        %7928 = vmatpush1.bf16.msra.mxu0 %v1981
        %7929 = vmatprep.subr.bf16.mxu0 0
        %7930 = vmatpush1.bf16.msra.mxu0 %v1982
        %7931 = vmatprep.subr.bf16.mxu0 0
        %7932 = vmatpush1.bf16.msra.mxu0 %v1983
        %7933 = vmatprep.subr.bf16.mxu0 0
        %7934 = vmatpush1.bf16.msra.mxu0 %v1984
        %7935 = vmatprep.subr.bf16.mxu0 0
        %7936 = vmatpush1.bf16.msra.mxu0 0
        %7937 = vmatprep.subr.bf16.mxu0 0
        %7938 = vmatpush1.bf16.msra.mxu0 0
        %7939 = vmatprep.subr.bf16.mxu0 0
        %7940 = vmatpush1.bf16.msra.mxu0 0
        %7941 = vmatprep.subr.bf16.mxu0 0
        %7942 = vmatpush1.bf16.msra.mxu0 0
        %7943 = vmatprep.subr.bf16.mxu0 0
        %7944 = vmatpush1.bf16.msra.mxu0 0
        %7945 = vmatprep.subr.bf16.mxu0 0
        %7946 = vmatpush1.bf16.msra.mxu0 0
        %7947 = vmatprep.subr.bf16.mxu0 0
        %7948 = vmatpush1.bf16.msra.mxu0 0
        %7949 = vmatprep.subr.bf16.mxu0 0
        %7950 = vmatpush1.bf16.msra.mxu0 0
        %7951 = vmatprep.subr.bf16.mxu0 0
        %7952 = vmatpush1.bf16.msra.mxu0 0
        %7953 = vmatprep.subr.bf16.mxu0 0
        %7954 = vmatpush1.bf16.msra.mxu0 0
        %7955 = vmatprep.subr.bf16.mxu0 0
        %7956 = vmatpush1.bf16.msra.mxu0 0
        %7957 = vmatprep.subr.bf16.mxu0 0
        %7958 = vmatpush1.bf16.msra.mxu0 0
        %7959 = vmatprep.mubr.bf16.mxu0 0
        %7960 = vmatmul.mubr.bf16.gmra.mrb[0].mxu0 %v7916
        %v7961 = vpop.f32.mrb[0].mxu0
        %v7962 = vadd.f32 0.0, %v7961
        %v7963 = vpop.f32.mrb[0].mxu0
        %v7964 = vpop.f32.mrb[0].mxu0
        %v7965 = vadd.f32 0.0, %v7964
        %v7966 = vpop.f32.mrb[0].mxu0
        %7967 = vmatprep.mubr.bf16.mxu0 0
        %7968 = vmatmul.mubr.bf16.gmra.mrb[0].mxu0 %v7919
        %v7969 = vpop.f32.mrb[0].mxu0
        %v7970 = vadd.f32 0.0, %v7969
        %v7971 = vpop.f32.mrb[0].mxu0
        %v7972 = vpop.f32.mrb[0].mxu0
        %v7973 = vadd.f32 0.0, %v7972
        %v7974 = vpop.f32.mrb[0].mxu0
        %7975 = vmatprep.mubr.bf16.mxu0 0
        %7976 = vmatmul.mubr.bf16.gmra.mrb[0].mxu0 %v7922
        %v7977 = vpop.f32.mrb[0].mxu0
        %v7978 = vadd.f32 0.0, %v7977
        %v7979 = vpop.f32.mrb[0].mxu0
        %v7980 = vpop.f32.mrb[0].mxu0
        %v7981 = vadd.f32 0.0, %v7980
        %v7982 = vpop.f32.mrb[0].mxu0
        %7983 = vmatprep.mubr.bf16.mxu0 0
        %7984 = vmatmul.mubr.bf16.gmra.mrb[0].mxu0 %v7925
        %v7985 = vpop.f32.mrb[0].mxu0
        %v7986 = vadd.f32 0.0, %v7985
        %v7987 = vpop.f32.mrb[0].mxu0
        %v7988 = vpop.f32.mrb[0].mxu0
        %v7989 = vadd.f32 0.0, %v7988
        %v7990 = vpop.f32.mrb[0].mxu0
        %7991 = vdwg.mxu0
        %v7993 = vsel %vm4216, %v7668, 0
        %v7996 = vsel %vm4216, %v7669, 0
        %v7999 = vsel %vm4216, %v7670, 0
        %v8002 = vsel %vm4216, %v7671, 0
        %8004 = vmatprep.subr.bf16.mxu0 0
        %8005 = vmatpush1.bf16.msra.mxu0 %v1985
        %8006 = vmatprep.subr.bf16.mxu0 0
        %8007 = vmatpush1.bf16.msra.mxu0 %v1986
        %8008 = vmatprep.subr.bf16.mxu0 0
        %8009 = vmatpush1.bf16.msra.mxu0 %v1987
        %8010 = vmatprep.subr.bf16.mxu0 0
        %8011 = vmatpush1.bf16.msra.mxu0 %v1988
        %8012 = vmatprep.subr.bf16.mxu0 0
        %8013 = vmatpush1.bf16.msra.mxu0 0
        %8014 = vmatprep.subr.bf16.mxu0 0
        %8015 = vmatpush1.bf16.msra.mxu0 0
        %8016 = vmatprep.subr.bf16.mxu0 0
        %8017 = vmatpush1.bf16.msra.mxu0 0
        %8018 = vmatprep.subr.bf16.mxu0 0
        %8019 = vmatpush1.bf16.msra.mxu0 0
        %8020 = vmatprep.subr.bf16.mxu0 0
        %8021 = vmatpush1.bf16.msra.mxu0 0
        %8022 = vmatprep.subr.bf16.mxu0 0
        %8023 = vmatpush1.bf16.msra.mxu0 0
        %8024 = vmatprep.subr.bf16.mxu0 0
        %8025 = vmatpush1.bf16.msra.mxu0 0
        %8026 = vmatprep.subr.bf16.mxu0 0
        %8027 = vmatpush1.bf16.msra.mxu0 0
        %8028 = vmatprep.subr.bf16.mxu0 0
        %8029 = vmatpush1.bf16.msra.mxu0 0
        %8030 = vmatprep.subr.bf16.mxu0 0
        %8031 = vmatpush1.bf16.msra.mxu0 0
        %8032 = vmatprep.subr.bf16.mxu0 0
        %8033 = vmatpush1.bf16.msra.mxu0 0
        %8034 = vmatprep.subr.bf16.mxu0 0
        %8035 = vmatpush1.bf16.msra.mxu0 0
        %8036 = vmatprep.mubr.bf16.mxu0 0
        %8037 = vmatmul.mubr.bf16.gmra.mrb[0].mxu0 %v7993
        %v8038 = vpop.f32.mrb[0].mxu0
        %v8039 = vadd.f32 0.0, %v8038
        %v8040 = vpop.f32.mrb[0].mxu0
        %v8041 = vpop.f32.mrb[0].mxu0
        %v8042 = vadd.f32 0.0, %v8041
        %v8043 = vpop.f32.mrb[0].mxu0
        %8044 = vmatprep.mubr.bf16.mxu0 0
        %8045 = vmatmul.mubr.bf16.gmra.mrb[0].mxu0 %v7996
        %v8046 = vpop.f32.mrb[0].mxu0
        %v8047 = vadd.f32 0.0, %v8046
        %v8048 = vpop.f32.mrb[0].mxu0
        %v8049 = vpop.f32.mrb[0].mxu0
        %v8050 = vadd.f32 0.0, %v8049
        %v8051 = vpop.f32.mrb[0].mxu0
        %8052 = vmatprep.mubr.bf16.mxu0 0
        %8053 = vmatmul.mubr.bf16.gmra.mrb[0].mxu0 %v7999
        %v8054 = vpop.f32.mrb[0].mxu0
        %v8055 = vadd.f32 0.0, %v8054
        %v8056 = vpop.f32.mrb[0].mxu0
        %v8057 = vpop.f32.mrb[0].mxu0
        %v8058 = vadd.f32 0.0, %v8057
        %v8059 = vpop.f32.mrb[0].mxu0
        %8060 = vmatprep.mubr.bf16.mxu0 0
        %8061 = vmatmul.mubr.bf16.gmra.mrb[0].mxu0 %v8002
        %v8062 = vpop.f32.mrb[0].mxu0
        %v8063 = vadd.f32 0.0, %v8062
        %v8064 = vpop.f32.mrb[0].mxu0
        %v8065 = vpop.f32.mrb[0].mxu0
        %v8066 = vadd.f32 0.0, %v8065
        %v8067 = vpop.f32.mrb[0].mxu0
        %8068 = vdwg.mxu0
        %v8070 = vsel %vm4216, %v7672, 0
        %v8073 = vsel %vm4216, %v7673, 0
        %v8076 = vsel %vm4216, %v7674, 0
        %v8079 = vsel %vm4216, %v7675, 0
        %8081 = vmatprep.subr.bf16.mxu0 0
        %8082 = vmatpush1.bf16.msra.mxu0 %v1989
        %8083 = vmatprep.subr.bf16.mxu0 0
        %8084 = vmatpush1.bf16.msra.mxu0 %v1990
        %8085 = vmatprep.subr.bf16.mxu0 0
        %8086 = vmatpush1.bf16.msra.mxu0 %v1991
        %8087 = vmatprep.subr.bf16.mxu0 0
        %8088 = vmatpush1.bf16.msra.mxu0 %v1992
        %8089 = vmatprep.subr.bf16.mxu0 0
        %8090 = vmatpush1.bf16.msra.mxu0 0
        %8091 = vmatprep.subr.bf16.mxu0 0
        %8092 = vmatpush1.bf16.msra.mxu0 0
        %8093 = vmatprep.subr.bf16.mxu0 0
        %8094 = vmatpush1.bf16.msra.mxu0 0
        %8095 = vmatprep.subr.bf16.mxu0 0
        %8096 = vmatpush1.bf16.msra.mxu0 0
        %8097 = vmatprep.subr.bf16.mxu0 0
        %8098 = vmatpush1.bf16.msra.mxu0 0
        %8099 = vmatprep.subr.bf16.mxu0 0
        %8100 = vmatpush1.bf16.msra.mxu0 0
        %8101 = vmatprep.subr.bf16.mxu0 0
        %8102 = vmatpush1.bf16.msra.mxu0 0
        %8103 = vmatprep.subr.bf16.mxu0 0
        %8104 = vmatpush1.bf16.msra.mxu0 0
        %8105 = vmatprep.subr.bf16.mxu0 0
        %8106 = vmatpush1.bf16.msra.mxu0 0
        %8107 = vmatprep.subr.bf16.mxu0 0
        %8108 = vmatpush1.bf16.msra.mxu0 0
        %8109 = vmatprep.subr.bf16.mxu0 0
        %8110 = vmatpush1.bf16.msra.mxu0 0
        %8111 = vmatprep.subr.bf16.mxu0 0
        %8112 = vmatpush1.bf16.msra.mxu0 0
        %8113 = vmatprep.mubr.bf16.mxu0 0
        %8114 = vmatmul.mubr.bf16.gmra.mrb[0].mxu0 %v8070
        %v8115 = vpop.f32.mrb[0].mxu0
        %v8116 = vadd.f32 0.0, %v8115
        %v8117 = vpop.f32.mrb[0].mxu0
        %v8118 = vpop.f32.mrb[0].mxu0
        %v8119 = vadd.f32 0.0, %v8118
        %v8120 = vpop.f32.mrb[0].mxu0
        %8121 = vmatprep.mubr.bf16.mxu0 0
        %8122 = vmatmul.mubr.bf16.gmra.mrb[0].mxu0 %v8073
        %v8123 = vpop.f32.mrb[0].mxu0
        %v8124 = vadd.f32 0.0, %v8123
        %v8125 = vpop.f32.mrb[0].mxu0
        %v8126 = vpop.f32.mrb[0].mxu0
        %v8127 = vadd.f32 0.0, %v8126
        %v8128 = vpop.f32.mrb[0].mxu0
        %8129 = vmatprep.mubr.bf16.mxu0 0
        %8130 = vmatmul.mubr.bf16.gmra.mrb[0].mxu0 %v8076
        %v8131 = vpop.f32.mrb[0].mxu0
        %v8132 = vadd.f32 0.0, %v8131
        %v8133 = vpop.f32.mrb[0].mxu0
        %v8134 = vpop.f32.mrb[0].mxu0
        %v8135 = vadd.f32 0.0, %v8134
        %v8136 = vpop.f32.mrb[0].mxu0
        %8137 = vmatprep.mubr.bf16.mxu0 0
        %8138 = vmatmul.mubr.bf16.gmra.mrb[0].mxu0 %v8079
        %v8139 = vpop.f32.mrb[0].mxu0
        %v8140 = vadd.f32 0.0, %v8139
        %v8141 = vpop.f32.mrb[0].mxu0
        %v8142 = vpop.f32.mrb[0].mxu0
        %v8143 = vadd.f32 0.0, %v8142
        %v8144 = vpop.f32.mrb[0].mxu0
        %8145 = vdwg.mxu0
        %v8147 = vsel %vm4216, %v7676, 0
        %v8150 = vsel %vm4216, %v7677, 0
        %v8153 = vsel %vm4216, %v7678, 0
        %v8156 = vsel %vm4216, %v7679, 0
        %8158 = vmatprep.subr.bf16.mxu0 0
        %8159 = vmatpush1.bf16.msra.mxu0 %v1993
        %8160 = vmatprep.subr.bf16.mxu0 0
        %8161 = vmatpush1.bf16.msra.mxu0 %v1994
        %8162 = vmatprep.subr.bf16.mxu0 0
        %8163 = vmatpush1.bf16.msra.mxu0 %v1995
        %8164 = vmatprep.subr.bf16.mxu0 0
        %8165 = vmatpush1.bf16.msra.mxu0 %v1996
        %8166 = vmatprep.subr.bf16.mxu0 0
        %8167 = vmatpush1.bf16.msra.mxu0 0
        %8168 = vmatprep.subr.bf16.mxu0 0
        %8169 = vmatpush1.bf16.msra.mxu0 0
        %8170 = vmatprep.subr.bf16.mxu0 0
        %8171 = vmatpush1.bf16.msra.mxu0 0
        %8172 = vmatprep.subr.bf16.mxu0 0
        %8173 = vmatpush1.bf16.msra.mxu0 0
        %8174 = vmatprep.subr.bf16.mxu0 0
        %8175 = vmatpush1.bf16.msra.mxu0 0
        %8176 = vmatprep.subr.bf16.mxu0 0
        %8177 = vmatpush1.bf16.msra.mxu0 0
        %8178 = vmatprep.subr.bf16.mxu0 0
        %8179 = vmatpush1.bf16.msra.mxu0 0
        %8180 = vmatprep.subr.bf16.mxu0 0
        %8181 = vmatpush1.bf16.msra.mxu0 0
        %8182 = vmatprep.subr.bf16.mxu0 0
        %8183 = vmatpush1.bf16.msra.mxu0 0
        %8184 = vmatprep.subr.bf16.mxu0 0
        %8185 = vmatpush1.bf16.msra.mxu0 0
        %8186 = vmatprep.subr.bf16.mxu0 0
        %8187 = vmatpush1.bf16.msra.mxu0 0
        %8188 = vmatprep.subr.bf16.mxu0 0
        %8189 = vmatpush1.bf16.msra.mxu0 0
        %8190 = vmatprep.mubr.bf16.mxu0 0
        %8191 = vmatmul.mubr.bf16.gmra.mrb[0].mxu0 %v8147
        %v8192 = vpop.f32.mrb[0].mxu0
        %v8193 = vadd.f32 0.0, %v8192
        %v8194 = vpop.f32.mrb[0].mxu0
        %v8195 = vpop.f32.mrb[0].mxu0
        %v8196 = vadd.f32 0.0, %v8195
        %v8197 = vpop.f32.mrb[0].mxu0
        %8198 = vmatprep.mubr.bf16.mxu0 0
        %8199 = vmatmul.mubr.bf16.gmra.mrb[0].mxu0 %v8150
        %v8200 = vpop.f32.mrb[0].mxu0
        %v8201 = vadd.f32 0.0, %v8200
        %v8202 = vpop.f32.mrb[0].mxu0
        %v8203 = vpop.f32.mrb[0].mxu0
        %v8204 = vadd.f32 0.0, %v8203
        %v8205 = vpop.f32.mrb[0].mxu0
        %8206 = vmatprep.mubr.bf16.mxu0 0
        %8207 = vmatmul.mubr.bf16.gmra.mrb[0].mxu0 %v8153
        %v8208 = vpop.f32.mrb[0].mxu0
        %v8209 = vadd.f32 0.0, %v8208
        %v8210 = vpop.f32.mrb[0].mxu0
        %v8211 = vpop.f32.mrb[0].mxu0
        %v8212 = vadd.f32 0.0, %v8211
        %v8213 = vpop.f32.mrb[0].mxu0
        %8214 = vmatprep.mubr.bf16.mxu0 0
        %8215 = vmatmul.mubr.bf16.gmra.mrb[0].mxu0 %v8156
        %v8216 = vpop.f32.mrb[0].mxu0
        %v8217 = vadd.f32 0.0, %v8216
        %v8218 = vpop.f32.mrb[0].mxu0
        %v8219 = vpop.f32.mrb[0].mxu0
        %v8220 = vadd.f32 0.0, %v8219
        %v8221 = vpop.f32.mrb[0].mxu0
        %8222 = vdwg.mxu0
        %v8224 = vsel %vm4216, %v7680, 0
        %v8227 = vsel %vm4216, %v7681, 0
        %v8230 = vsel %vm4216, %v7682, 0
        %v8233 = vsel %vm4216, %v7683, 0
        %8235 = vmatprep.subr.bf16.mxu0 0
        %8236 = vmatpush1.bf16.msra.mxu0 %v1997
        %8237 = vmatprep.subr.bf16.mxu0 0
        %8238 = vmatpush1.bf16.msra.mxu0 %v1998
        %8239 = vmatprep.subr.bf16.mxu0 0
        %8240 = vmatpush1.bf16.msra.mxu0 %v1999
        %8241 = vmatprep.subr.bf16.mxu0 0
        %8242 = vmatpush1.bf16.msra.mxu0 %v2000
        %8243 = vmatprep.subr.bf16.mxu0 0
        %8244 = vmatpush1.bf16.msra.mxu0 0
        %8245 = vmatprep.subr.bf16.mxu0 0
        %8246 = vmatpush1.bf16.msra.mxu0 0
        %8247 = vmatprep.subr.bf16.mxu0 0
        %8248 = vmatpush1.bf16.msra.mxu0 0
        %8249 = vmatprep.subr.bf16.mxu0 0
        %8250 = vmatpush1.bf16.msra.mxu0 0
        %8251 = vmatprep.subr.bf16.mxu0 0
        %8252 = vmatpush1.bf16.msra.mxu0 0
        %8253 = vmatprep.subr.bf16.mxu0 0
        %8254 = vmatpush1.bf16.msra.mxu0 0
        %8255 = vmatprep.subr.bf16.mxu0 0
        %8256 = vmatpush1.bf16.msra.mxu0 0
        %8257 = vmatprep.subr.bf16.mxu0 0
        %8258 = vmatpush1.bf16.msra.mxu0 0
        %8259 = vmatprep.subr.bf16.mxu0 0
        %8260 = vmatpush1.bf16.msra.mxu0 0
        %8261 = vmatprep.subr.bf16.mxu0 0
        %8262 = vmatpush1.bf16.msra.mxu0 0
        %8263 = vmatprep.subr.bf16.mxu0 0
        %8264 = vmatpush1.bf16.msra.mxu0 0
        %8265 = vmatprep.subr.bf16.mxu0 0
        %8266 = vmatpush1.bf16.msra.mxu0 0
        %8267 = vmatprep.mubr.bf16.mxu0 0
        %8268 = vmatmul.mubr.bf16.gmra.mrb[0].mxu0 %v8224
        %v8269 = vpop.f32.mrb[0].mxu0
        %v8270 = vadd.f32 0.0, %v8269
        %v8271 = vpop.f32.mrb[0].mxu0
        %v8272 = vpop.f32.mrb[0].mxu0
        %v8273 = vadd.f32 0.0, %v8272
        %v8274 = vpop.f32.mrb[0].mxu0
        %8275 = vmatprep.mubr.bf16.mxu0 0
        %8276 = vmatmul.mubr.bf16.gmra.mrb[0].mxu0 %v8227
        %v8277 = vpop.f32.mrb[0].mxu0
        %v8278 = vadd.f32 0.0, %v8277
        %v8279 = vpop.f32.mrb[0].mxu0
        %v8280 = vpop.f32.mrb[0].mxu0
        %v8281 = vadd.f32 0.0, %v8280
        %v8282 = vpop.f32.mrb[0].mxu0
        %8283 = vmatprep.mubr.bf16.mxu0 0
        %8284 = vmatmul.mubr.bf16.gmra.mrb[0].mxu0 %v8230
        %v8285 = vpop.f32.mrb[0].mxu0
        %v8286 = vadd.f32 0.0, %v8285
        %v8287 = vpop.f32.mrb[0].mxu0
        %v8288 = vpop.f32.mrb[0].mxu0
        %v8289 = vadd.f32 0.0, %v8288
        %v8290 = vpop.f32.mrb[0].mxu0
        %8291 = vmatprep.mubr.bf16.mxu0 0
        %8292 = vmatmul.mubr.bf16.gmra.mrb[0].mxu0 %v8233
        %v8293 = vpop.f32.mrb[0].mxu0
        %v8294 = vadd.f32 0.0, %v8293
        %v8295 = vpop.f32.mrb[0].mxu0
        %v8296 = vpop.f32.mrb[0].mxu0
        %v8297 = vadd.f32 0.0, %v8296
        %v8298 = vpop.f32.mrb[0].mxu0
        %8299 = vdwg.mxu0
        %v8300 = vpack.c.bf16 %v7734, %v7731
        %v8301 = vpack.c.bf16 %v7742, %v7739
        %v8302 = vpack.c.bf16 %v7750, %v7747
        %v8303 = vpack.c.bf16 %v7758, %v7755
        %v8304 = vpack.c.bf16 %v7811, %v7808
        %v8305 = vpack.c.bf16 %v7819, %v7816
        %v8306 = vpack.c.bf16 %v7827, %v7824
        %v8307 = vpack.c.bf16 %v7835, %v7832
        %v8308 = vpack.c.bf16 %v7888, %v7885
        %v8309 = vpack.c.bf16 %v7896, %v7893
        %v8310 = vpack.c.bf16 %v7904, %v7901
        %v8311 = vpack.c.bf16 %v7912, %v7909
        %v8312 = vpack.c.bf16 %v7965, %v7962
        %v8313 = vpack.c.bf16 %v7973, %v7970
        %v8314 = vpack.c.bf16 %v7981, %v7978
        %v8315 = vpack.c.bf16 %v7989, %v7986
        %v8316 = vpack.c.bf16 %v8042, %v8039
        %v8317 = vpack.c.bf16 %v8050, %v8047
        %v8318 = vpack.c.bf16 %v8058, %v8055
        %v8319 = vpack.c.bf16 %v8066, %v8063
        %v8320 = vpack.c.bf16 %v8119, %v8116
        %v8321 = vpack.c.bf16 %v8127, %v8124
        %v8322 = vpack.c.bf16 %v8135, %v8132
        %v8323 = vpack.c.bf16 %v8143, %v8140
        %v8324 = vpack.c.bf16 %v8196, %v8193
        %v8325 = vpack.c.bf16 %v8204, %v8201
        %v8326 = vpack.c.bf16 %v8212, %v8209
        %v8327 = vpack.c.bf16 %v8220, %v8217
        %v8328 = vpack.c.bf16 %v8273, %v8270
        %v8329 = vpack.c.bf16 %v8281, %v8278
        %v8330 = vpack.c.bf16 %v8289, %v8286
        %v8331 = vpack.c.bf16 %v8297, %v8294
        %v8332 = vld [vmem:[#allocation11] sm:$0xf]
        %v8333 = vld [vmem:[#allocation11 + $0x4] sm:$0xf]
        %v8334 = vld [vmem:[#allocation11 + $0x8] sm:$0xf]
        %v8335 = vld [vmem:[#allocation11 + $0xc] sm:$0xf]
        %v8336 = vld [vmem:[#allocation11 + $0x10] sm:$0xf]
        %v8337 = vld [vmem:[#allocation11 + $0x14] sm:$0xf]
        %v8338 = vld [vmem:[#allocation11 + $0x18] sm:$0xf]
        %v8339 = vld [vmem:[#allocation11 + $0x1c] sm:$0xf]
        %v8340 = vld [vmem:[#allocation11 + $0x20] sm:$0xf]
        %v8341 = vld [vmem:[#allocation11 + $0x24] sm:$0xf]
        %v8342 = vld [vmem:[#allocation11 + $0x28] sm:$0xf]
        %v8343 = vld [vmem:[#allocation11 + $0x2c] sm:$0xf]
        %v8344 = vld [vmem:[#allocation11 + $0x30] sm:$0xf]
        %v8345 = vld [vmem:[#allocation11 + $0x34] sm:$0xf]
        %v8346 = vld [vmem:[#allocation11 + $0x38] sm:$0xf]
        %v8347 = vld [vmem:[#allocation11 + $0x3c] sm:$0xf]
        %v8352 = vunpack.c.l.b16 %v8332
        %v8353 = vunpack.c.l.b16 %v8333
        %v8354 = vunpack.c.l.b16 %v8334
        %v8355 = vunpack.c.l.b16 %v8335
        %v8356 = vpack.c.b16 %v8353, %v8352
        %v8357 = vpack.c.b16 %v8355, %v8354
        %v8361 = vsel %vm3503, %v8300, 0
        %v8364 = vsel %vm3503, %v8301, 0
        %v8367 = vsel %vm3503, %v8302, 0
        %v8370 = vsel %vm3503, %v8303, 0
        %v8373 = vsel %vm3503, %v8304, 0
        %v8376 = vsel %vm3503, %v8305, 0
        %v8379 = vsel %vm3503, %v8306, 0
        %v8382 = vsel %vm3503, %v8307, 0
        %8384 = vmatprep.subr.bf16.mxu0 0
        %8385 = vmatpush1.bf16.msra.mxu0 %v8356
        %8386 = vmatprep.subr.bf16.mxu0 0
        %8387 = vmatpush1.bf16.msra.mxu0 %v8357
        %8388 = vmatprep.subr.bf16.mxu0 0
        %8389 = vmatpush1.bf16.msra.mxu0 0
        %8390 = vmatprep.subr.bf16.mxu0 0
        %8391 = vmatpush1.bf16.msra.mxu0 0
        %8392 = vmatprep.subr.bf16.mxu0 0
        %8393 = vmatpush1.bf16.msra.mxu0 0
        %8394 = vmatprep.subr.bf16.mxu0 0
        %8395 = vmatpush1.bf16.msra.mxu0 0
        %8396 = vmatprep.subr.bf16.mxu0 0
        %8397 = vmatpush1.bf16.msra.mxu0 0
        %8398 = vmatprep.subr.bf16.mxu0 0
        %8399 = vmatpush1.bf16.msra.mxu0 0
        %8400 = vmatprep.subr.bf16.mxu0 0
        %8401 = vmatpush1.bf16.msra.mxu0 0
        %8402 = vmatprep.subr.bf16.mxu0 0
        %8403 = vmatpush1.bf16.msra.mxu0 0
        %8404 = vmatprep.subr.bf16.mxu0 0
        %8405 = vmatpush1.bf16.msra.mxu0 0
        %8406 = vmatprep.subr.bf16.mxu0 0
        %8407 = vmatpush1.bf16.msra.mxu0 0
        %8408 = vmatprep.subr.bf16.mxu0 0
        %8409 = vmatpush1.bf16.msra.mxu0 0
        %8410 = vmatprep.subr.bf16.mxu0 0
        %8411 = vmatpush1.bf16.msra.mxu0 0
        %8412 = vmatprep.subr.bf16.mxu0 0
        %8413 = vmatpush1.bf16.msra.mxu0 0
        %8414 = vmatprep.subr.bf16.mxu0 0
        %8415 = vmatpush1.bf16.msra.mxu0 0
        %8416 = vmatprep.mubr.bf16.mxu0 0
        %8417 = vmatmul.mubr.bf16.gmra.mrb[0].mxu0 %v8361
        %v8418 = vpop.f32.mrb[0].mxu0
        %v8419 = vadd.f32 0.0, %v8418
        %v8420 = vpop.f32.mrb[0].mxu0
        %v8421 = vpop.f32.mrb[0].mxu0
        %v8422 = vadd.f32 0.0, %v8421
        %v8423 = vpop.f32.mrb[0].mxu0
        %8424 = vmatprep.mubr.bf16.mxu0 0
        %8425 = vmatmul.mubr.bf16.gmra.mrb[0].mxu0 %v8364
        %v8426 = vpop.f32.mrb[0].mxu0
        %v8427 = vadd.f32 0.0, %v8426
        %v8428 = vpop.f32.mrb[0].mxu0
        %v8429 = vpop.f32.mrb[0].mxu0
        %v8430 = vadd.f32 0.0, %v8429
        %v8431 = vpop.f32.mrb[0].mxu0
        %8432 = vmatprep.mubr.bf16.mxu0 0
        %8433 = vmatmul.mubr.bf16.gmra.mrb[0].mxu0 %v8367
        %v8434 = vpop.f32.mrb[0].mxu0
        %v8435 = vadd.f32 0.0, %v8434
        %v8436 = vpop.f32.mrb[0].mxu0
        %v8437 = vpop.f32.mrb[0].mxu0
        %v8438 = vadd.f32 0.0, %v8437
        %v8439 = vpop.f32.mrb[0].mxu0
        %8440 = vmatprep.mubr.bf16.mxu0 0
        %8441 = vmatmul.mubr.bf16.gmra.mrb[0].mxu0 %v8370
        %v8442 = vpop.f32.mrb[0].mxu0
        %v8443 = vadd.f32 0.0, %v8442
        %v8444 = vpop.f32.mrb[0].mxu0
        %v8445 = vpop.f32.mrb[0].mxu0
        %v8446 = vadd.f32 0.0, %v8445
        %v8447 = vpop.f32.mrb[0].mxu0
        %8448 = vmatprep.mubr.bf16.mxu0 0
        %8449 = vmatmul.mubr.bf16.gmra.mrb[0].mxu0 %v8373
        %v8450 = vpop.f32.mrb[0].mxu0
        %v8451 = vadd.f32 0.0, %v8450
        %v8452 = vpop.f32.mrb[0].mxu0
        %v8453 = vpop.f32.mrb[0].mxu0
        %v8454 = vadd.f32 0.0, %v8453
        %v8455 = vpop.f32.mrb[0].mxu0
        %8456 = vmatprep.mubr.bf16.mxu0 0
        %8457 = vmatmul.mubr.bf16.gmra.mrb[0].mxu0 %v8376
        %v8458 = vpop.f32.mrb[0].mxu0
        %v8459 = vadd.f32 0.0, %v8458
        %v8460 = vpop.f32.mrb[0].mxu0
        %v8461 = vpop.f32.mrb[0].mxu0
        %v8462 = vadd.f32 0.0, %v8461
        %v8463 = vpop.f32.mrb[0].mxu0
        %8464 = vmatprep.mubr.bf16.mxu0 0
        %8465 = vmatmul.mubr.bf16.gmra.mrb[0].mxu0 %v8379
        %v8466 = vpop.f32.mrb[0].mxu0
        %v8467 = vadd.f32 0.0, %v8466
        %v8468 = vpop.f32.mrb[0].mxu0
        %v8469 = vpop.f32.mrb[0].mxu0
        %v8470 = vadd.f32 0.0, %v8469
        %v8471 = vpop.f32.mrb[0].mxu0
        %8472 = vmatprep.mubr.bf16.mxu0 0
        %8473 = vmatmul.mubr.bf16.gmra.mrb[0].mxu0 %v8382
        %v8474 = vpop.f32.mrb[0].mxu0
        %v8475 = vadd.f32 0.0, %v8474
        %v8476 = vpop.f32.mrb[0].mxu0
        %v8477 = vpop.f32.mrb[0].mxu0
        %v8478 = vadd.f32 0.0, %v8477
        %v8479 = vpop.f32.mrb[0].mxu0
        %8480 = vdwg.mxu0
        %v8485 = vunpack.c.l.b16 %v8336
        %v8486 = vunpack.c.l.b16 %v8337
        %v8487 = vunpack.c.l.b16 %v8338
        %v8488 = vunpack.c.l.b16 %v8339
        %v8489 = vpack.c.b16 %v8486, %v8485
        %v8490 = vpack.c.b16 %v8488, %v8487
        %v8494 = vsel %vm3503, %v8308, 0
        %v8497 = vsel %vm3503, %v8309, 0
        %v8500 = vsel %vm3503, %v8310, 0
        %v8503 = vsel %vm3503, %v8311, 0
        %v8506 = vsel %vm3503, %v8312, 0
        %v8509 = vsel %vm3503, %v8313, 0
        %v8512 = vsel %vm3503, %v8314, 0
        %v8515 = vsel %vm3503, %v8315, 0
        %8517 = vmatprep.subr.bf16.mxu0 0
        %8518 = vmatpush1.bf16.msra.mxu0 %v8489
        %8519 = vmatprep.subr.bf16.mxu0 0
        %8520 = vmatpush1.bf16.msra.mxu0 %v8490
        %8521 = vmatprep.subr.bf16.mxu0 0
        %8522 = vmatpush1.bf16.msra.mxu0 0
        %8523 = vmatprep.subr.bf16.mxu0 0
        %8524 = vmatpush1.bf16.msra.mxu0 0
        %8525 = vmatprep.subr.bf16.mxu0 0
        %8526 = vmatpush1.bf16.msra.mxu0 0
        %8527 = vmatprep.subr.bf16.mxu0 0
        %8528 = vmatpush1.bf16.msra.mxu0 0
        %8529 = vmatprep.subr.bf16.mxu0 0
        %8530 = vmatpush1.bf16.msra.mxu0 0
        %8531 = vmatprep.subr.bf16.mxu0 0
        %8532 = vmatpush1.bf16.msra.mxu0 0
        %8533 = vmatprep.subr.bf16.mxu0 0
        %8534 = vmatpush1.bf16.msra.mxu0 0
        %8535 = vmatprep.subr.bf16.mxu0 0
        %8536 = vmatpush1.bf16.msra.mxu0 0
        %8537 = vmatprep.subr.bf16.mxu0 0
        %8538 = vmatpush1.bf16.msra.mxu0 0
        %8539 = vmatprep.subr.bf16.mxu0 0
        %8540 = vmatpush1.bf16.msra.mxu0 0
        %8541 = vmatprep.subr.bf16.mxu0 0
        %8542 = vmatpush1.bf16.msra.mxu0 0
        %8543 = vmatprep.subr.bf16.mxu0 0
        %8544 = vmatpush1.bf16.msra.mxu0 0
        %8545 = vmatprep.subr.bf16.mxu0 0
        %8546 = vmatpush1.bf16.msra.mxu0 0
        %8547 = vmatprep.subr.bf16.mxu0 0
        %8548 = vmatpush1.bf16.msra.mxu0 0
        %8549 = vmatprep.mubr.bf16.mxu0 0
        %8550 = vmatmul.mubr.bf16.gmra.mrb[0].mxu0 %v8494
        %v8551 = vpop.f32.mrb[0].mxu0
        %v8552 = vadd.f32 0.0, %v8551
        %v8553 = vpop.f32.mrb[0].mxu0
        %v8554 = vpop.f32.mrb[0].mxu0
        %v8555 = vadd.f32 0.0, %v8554
        %v8556 = vpop.f32.mrb[0].mxu0
        %8557 = vmatprep.mubr.bf16.mxu0 0
        %8558 = vmatmul.mubr.bf16.gmra.mrb[0].mxu0 %v8497
        %v8559 = vpop.f32.mrb[0].mxu0
        %v8560 = vadd.f32 0.0, %v8559
        %v8561 = vpop.f32.mrb[0].mxu0
        %v8562 = vpop.f32.mrb[0].mxu0
        %v8563 = vadd.f32 0.0, %v8562
        %v8564 = vpop.f32.mrb[0].mxu0
        %8565 = vmatprep.mubr.bf16.mxu0 0
        %8566 = vmatmul.mubr.bf16.gmra.mrb[0].mxu0 %v8500
        %v8567 = vpop.f32.mrb[0].mxu0
        %v8568 = vadd.f32 0.0, %v8567
        %v8569 = vpop.f32.mrb[0].mxu0
        %v8570 = vpop.f32.mrb[0].mxu0
        %v8571 = vadd.f32 0.0, %v8570
        %v8572 = vpop.f32.mrb[0].mxu0
        %8573 = vmatprep.mubr.bf16.mxu0 0
        %8574 = vmatmul.mubr.bf16.gmra.mrb[0].mxu0 %v8503
        %v8575 = vpop.f32.mrb[0].mxu0
        %v8576 = vadd.f32 0.0, %v8575
        %v8577 = vpop.f32.mrb[0].mxu0
        %v8578 = vpop.f32.mrb[0].mxu0
        %v8579 = vadd.f32 0.0, %v8578
        %v8580 = vpop.f32.mrb[0].mxu0
        %8581 = vmatprep.mubr.bf16.mxu0 0
        %8582 = vmatmul.mubr.bf16.gmra.mrb[0].mxu0 %v8506
        %v8583 = vpop.f32.mrb[0].mxu0
        %v8584 = vadd.f32 0.0, %v8583
        %v8585 = vpop.f32.mrb[0].mxu0
        %v8586 = vpop.f32.mrb[0].mxu0
        %v8587 = vadd.f32 0.0, %v8586
        %v8588 = vpop.f32.mrb[0].mxu0
        %8589 = vmatprep.mubr.bf16.mxu0 0
        %8590 = vmatmul.mubr.bf16.gmra.mrb[0].mxu0 %v8509
        %v8591 = vpop.f32.mrb[0].mxu0
        %v8592 = vadd.f32 0.0, %v8591
        %v8593 = vpop.f32.mrb[0].mxu0
        %v8594 = vpop.f32.mrb[0].mxu0
        %v8595 = vadd.f32 0.0, %v8594
        %v8596 = vpop.f32.mrb[0].mxu0
        %8597 = vmatprep.mubr.bf16.mxu0 0
        %8598 = vmatmul.mubr.bf16.gmra.mrb[0].mxu0 %v8512
        %v8599 = vpop.f32.mrb[0].mxu0
        %v8600 = vadd.f32 0.0, %v8599
        %v8601 = vpop.f32.mrb[0].mxu0
        %v8602 = vpop.f32.mrb[0].mxu0
        %v8603 = vadd.f32 0.0, %v8602
        %v8604 = vpop.f32.mrb[0].mxu0
        %8605 = vmatprep.mubr.bf16.mxu0 0
        %8606 = vmatmul.mubr.bf16.gmra.mrb[0].mxu0 %v8515
        %v8607 = vpop.f32.mrb[0].mxu0
        %v8608 = vadd.f32 0.0, %v8607
        %v8609 = vpop.f32.mrb[0].mxu0
        %v8610 = vpop.f32.mrb[0].mxu0
        %v8611 = vadd.f32 0.0, %v8610
        %v8612 = vpop.f32.mrb[0].mxu0
        %8613 = vdwg.mxu0
        %v8618 = vunpack.c.l.b16 %v8340
        %v8619 = vunpack.c.l.b16 %v8341
        %v8620 = vunpack.c.l.b16 %v8342
        %v8621 = vunpack.c.l.b16 %v8343
        %v8622 = vpack.c.b16 %v8619, %v8618
        %v8623 = vpack.c.b16 %v8621, %v8620
        %v8627 = vsel %vm3503, %v8316, 0
        %v8630 = vsel %vm3503, %v8317, 0
        %v8633 = vsel %vm3503, %v8318, 0
        %v8636 = vsel %vm3503, %v8319, 0
        %v8639 = vsel %vm3503, %v8320, 0
        %v8642 = vsel %vm3503, %v8321, 0
        %v8645 = vsel %vm3503, %v8322, 0
        %v8648 = vsel %vm3503, %v8323, 0
        %8650 = vmatprep.subr.bf16.mxu0 0
        %8651 = vmatpush1.bf16.msra.mxu0 %v8622
        %8652 = vmatprep.subr.bf16.mxu0 0
        %8653 = vmatpush1.bf16.msra.mxu0 %v8623
        %8654 = vmatprep.subr.bf16.mxu0 0
        %8655 = vmatpush1.bf16.msra.mxu0 0
        %8656 = vmatprep.subr.bf16.mxu0 0
        %8657 = vmatpush1.bf16.msra.mxu0 0
        %8658 = vmatprep.subr.bf16.mxu0 0
        %8659 = vmatpush1.bf16.msra.mxu0 0
        %8660 = vmatprep.subr.bf16.mxu0 0
        %8661 = vmatpush1.bf16.msra.mxu0 0
        %8662 = vmatprep.subr.bf16.mxu0 0
        %8663 = vmatpush1.bf16.msra.mxu0 0
        %8664 = vmatprep.subr.bf16.mxu0 0
        %8665 = vmatpush1.bf16.msra.mxu0 0
        %8666 = vmatprep.subr.bf16.mxu0 0
        %8667 = vmatpush1.bf16.msra.mxu0 0
        %8668 = vmatprep.subr.bf16.mxu0 0
        %8669 = vmatpush1.bf16.msra.mxu0 0
        %8670 = vmatprep.subr.bf16.mxu0 0
        %8671 = vmatpush1.bf16.msra.mxu0 0
        %8672 = vmatprep.subr.bf16.mxu0 0
        %8673 = vmatpush1.bf16.msra.mxu0 0
        %8674 = vmatprep.subr.bf16.mxu0 0
        %8675 = vmatpush1.bf16.msra.mxu0 0
        %8676 = vmatprep.subr.bf16.mxu0 0
        %8677 = vmatpush1.bf16.msra.mxu0 0
        %8678 = vmatprep.subr.bf16.mxu0 0
        %8679 = vmatpush1.bf16.msra.mxu0 0
        %8680 = vmatprep.subr.bf16.mxu0 0
        %8681 = vmatpush1.bf16.msra.mxu0 0
        %8682 = vmatprep.mubr.bf16.mxu0 0
        %8683 = vmatmul.mubr.bf16.gmra.mrb[0].mxu0 %v8627
        %v8684 = vpop.f32.mrb[0].mxu0
        %v8685 = vadd.f32 0.0, %v8684
        %v8686 = vpop.f32.mrb[0].mxu0
        %v8687 = vpop.f32.mrb[0].mxu0
        %v8688 = vadd.f32 0.0, %v8687
        %v8689 = vpop.f32.mrb[0].mxu0
        %8690 = vmatprep.mubr.bf16.mxu0 0
        %8691 = vmatmul.mubr.bf16.gmra.mrb[0].mxu0 %v8630
        %v8692 = vpop.f32.mrb[0].mxu0
        %v8693 = vadd.f32 0.0, %v8692
        %v8694 = vpop.f32.mrb[0].mxu0
        %v8695 = vpop.f32.mrb[0].mxu0
        %v8696 = vadd.f32 0.0, %v8695
        %v8697 = vpop.f32.mrb[0].mxu0
        %8698 = vmatprep.mubr.bf16.mxu0 0
        %8699 = vmatmul.mubr.bf16.gmra.mrb[0].mxu0 %v8633
        %v8700 = vpop.f32.mrb[0].mxu0
        %v8701 = vadd.f32 0.0, %v8700
        %v8702 = vpop.f32.mrb[0].mxu0
        %v8703 = vpop.f32.mrb[0].mxu0
        %v8704 = vadd.f32 0.0, %v8703
        %v8705 = vpop.f32.mrb[0].mxu0
        %8706 = vmatprep.mubr.bf16.mxu0 0
        %8707 = vmatmul.mubr.bf16.gmra.mrb[0].mxu0 %v8636
        %v8708 = vpop.f32.mrb[0].mxu0
        %v8709 = vadd.f32 0.0, %v8708
        %v8710 = vpop.f32.mrb[0].mxu0
        %v8711 = vpop.f32.mrb[0].mxu0
        %v8712 = vadd.f32 0.0, %v8711
        %v8713 = vpop.f32.mrb[0].mxu0
        %8714 = vmatprep.mubr.bf16.mxu0 0
        %8715 = vmatmul.mubr.bf16.gmra.mrb[0].mxu0 %v8639
        %v8716 = vpop.f32.mrb[0].mxu0
        %v8717 = vadd.f32 0.0, %v8716
        %v8718 = vpop.f32.mrb[0].mxu0
        %v8719 = vpop.f32.mrb[0].mxu0
        %v8720 = vadd.f32 0.0, %v8719
        %v8721 = vpop.f32.mrb[0].mxu0
        %8722 = vmatprep.mubr.bf16.mxu0 0
        %8723 = vmatmul.mubr.bf16.gmra.mrb[0].mxu0 %v8642
        %v8724 = vpop.f32.mrb[0].mxu0
        %v8725 = vadd.f32 0.0, %v8724
        %v8726 = vpop.f32.mrb[0].mxu0
        %v8727 = vpop.f32.mrb[0].mxu0
        %v8728 = vadd.f32 0.0, %v8727
        %v8729 = vpop.f32.mrb[0].mxu0
        %8730 = vmatprep.mubr.bf16.mxu0 0
        %8731 = vmatmul.mubr.bf16.gmra.mrb[0].mxu0 %v8645
        %v8732 = vpop.f32.mrb[0].mxu0
        %v8733 = vadd.f32 0.0, %v8732
        %v8734 = vpop.f32.mrb[0].mxu0
        %v8735 = vpop.f32.mrb[0].mxu0
        %v8736 = vadd.f32 0.0, %v8735
        %v8737 = vpop.f32.mrb[0].mxu0
        %8738 = vmatprep.mubr.bf16.mxu0 0
        %8739 = vmatmul.mubr.bf16.gmra.mrb[0].mxu0 %v8648
        %v8740 = vpop.f32.mrb[0].mxu0
        %v8741 = vadd.f32 0.0, %v8740
        %v8742 = vpop.f32.mrb[0].mxu0
        %v8743 = vpop.f32.mrb[0].mxu0
        %v8744 = vadd.f32 0.0, %v8743
        %v8745 = vpop.f32.mrb[0].mxu0
        %8746 = vdwg.mxu0
        %v8751 = vunpack.c.l.b16 %v8344
        %v8752 = vunpack.c.l.b16 %v8345
        %v8753 = vunpack.c.l.b16 %v8346
        %v8754 = vunpack.c.l.b16 %v8347
        %v8755 = vpack.c.b16 %v8752, %v8751
        %v8756 = vpack.c.b16 %v8754, %v8753
        %v8760 = vsel %vm3503, %v8324, 0
        %v8763 = vsel %vm3503, %v8325, 0
        %v8766 = vsel %vm3503, %v8326, 0
        %v8769 = vsel %vm3503, %v8327, 0
        %v8772 = vsel %vm3503, %v8328, 0
        %v8775 = vsel %vm3503, %v8329, 0
        %v8778 = vsel %vm3503, %v8330, 0
        %v8781 = vsel %vm3503, %v8331, 0
        %8783 = vmatprep.subr.bf16.mxu0 0
        %8784 = vmatpush1.bf16.msra.mxu0 %v8755
        %8785 = vmatprep.subr.bf16.mxu0 0
        %8786 = vmatpush1.bf16.msra.mxu0 %v8756
        %8787 = vmatprep.subr.bf16.mxu0 0
        %8788 = vmatpush1.bf16.msra.mxu0 0
        %8789 = vmatprep.subr.bf16.mxu0 0
        %8790 = vmatpush1.bf16.msra.mxu0 0
        %8791 = vmatprep.subr.bf16.mxu0 0
        %8792 = vmatpush1.bf16.msra.mxu0 0
        %8793 = vmatprep.subr.bf16.mxu0 0
        %8794 = vmatpush1.bf16.msra.mxu0 0
        %8795 = vmatprep.subr.bf16.mxu0 0
        %8796 = vmatpush1.bf16.msra.mxu0 0
        %8797 = vmatprep.subr.bf16.mxu0 0
        %8798 = vmatpush1.bf16.msra.mxu0 0
        %8799 = vmatprep.subr.bf16.mxu0 0
        %8800 = vmatpush1.bf16.msra.mxu0 0
        %8801 = vmatprep.subr.bf16.mxu0 0
        %8802 = vmatpush1.bf16.msra.mxu0 0
        %8803 = vmatprep.subr.bf16.mxu0 0
        %8804 = vmatpush1.bf16.msra.mxu0 0
        %8805 = vmatprep.subr.bf16.mxu0 0
        %8806 = vmatpush1.bf16.msra.mxu0 0
        %8807 = vmatprep.subr.bf16.mxu0 0
        %8808 = vmatpush1.bf16.msra.mxu0 0
        %8809 = vmatprep.subr.bf16.mxu0 0
        %8810 = vmatpush1.bf16.msra.mxu0 0
        %8811 = vmatprep.subr.bf16.mxu0 0
        %8812 = vmatpush1.bf16.msra.mxu0 0
        %8813 = vmatprep.subr.bf16.mxu0 0
        %8814 = vmatpush1.bf16.msra.mxu0 0
        %8815 = vmatprep.mubr.bf16.mxu0 0
        %8816 = vmatmul.mubr.bf16.gmra.mrb[0].mxu0 %v8760
        %v8817 = vpop.f32.mrb[0].mxu0
        %v8818 = vadd.f32 0.0, %v8817
        %v8819 = vpop.f32.mrb[0].mxu0
        %v8820 = vpop.f32.mrb[0].mxu0
        %v8821 = vadd.f32 0.0, %v8820
        %v8822 = vpop.f32.mrb[0].mxu0
        %8823 = vmatprep.mubr.bf16.mxu0 0
        %8824 = vmatmul.mubr.bf16.gmra.mrb[0].mxu0 %v8763
        %v8825 = vpop.f32.mrb[0].mxu0
        %v8826 = vadd.f32 0.0, %v8825
        %v8827 = vpop.f32.mrb[0].mxu0
        %v8828 = vpop.f32.mrb[0].mxu0
        %v8829 = vadd.f32 0.0, %v8828
        %v8830 = vpop.f32.mrb[0].mxu0
        %8831 = vmatprep.mubr.bf16.mxu0 0
        %8832 = vmatmul.mubr.bf16.gmra.mrb[0].mxu0 %v8766
        %v8833 = vpop.f32.mrb[0].mxu0
        %v8834 = vadd.f32 0.0, %v8833
        %v8835 = vpop.f32.mrb[0].mxu0
        %v8836 = vpop.f32.mrb[0].mxu0
        %v8837 = vadd.f32 0.0, %v8836
        %v8838 = vpop.f32.mrb[0].mxu0
        %8839 = vmatprep.mubr.bf16.mxu0 0
        %8840 = vmatmul.mubr.bf16.gmra.mrb[0].mxu0 %v8769
        %v8841 = vpop.f32.mrb[0].mxu0
        %v8842 = vadd.f32 0.0, %v8841
        %v8843 = vpop.f32.mrb[0].mxu0
        %v8844 = vpop.f32.mrb[0].mxu0
        %v8845 = vadd.f32 0.0, %v8844
        %v8846 = vpop.f32.mrb[0].mxu0
        %8847 = vmatprep.mubr.bf16.mxu0 0
        %8848 = vmatmul.mubr.bf16.gmra.mrb[0].mxu0 %v8772
        %v8849 = vpop.f32.mrb[0].mxu0
        %v8850 = vadd.f32 0.0, %v8849
        %v8851 = vpop.f32.mrb[0].mxu0
        %v8852 = vpop.f32.mrb[0].mxu0
        %v8853 = vadd.f32 0.0, %v8852
        %v8854 = vpop.f32.mrb[0].mxu0
        %8855 = vmatprep.mubr.bf16.mxu0 0
        %8856 = vmatmul.mubr.bf16.gmra.mrb[0].mxu0 %v8775
        %v8857 = vpop.f32.mrb[0].mxu0
        %v8858 = vadd.f32 0.0, %v8857
        %v8859 = vpop.f32.mrb[0].mxu0
        %v8860 = vpop.f32.mrb[0].mxu0
        %v8861 = vadd.f32 0.0, %v8860
        %v8862 = vpop.f32.mrb[0].mxu0
        %8863 = vmatprep.mubr.bf16.mxu0 0
        %8864 = vmatmul.mubr.bf16.gmra.mrb[0].mxu0 %v8778
        %v8865 = vpop.f32.mrb[0].mxu0
        %v8866 = vadd.f32 0.0, %v8865
        %v8867 = vpop.f32.mrb[0].mxu0
        %v8868 = vpop.f32.mrb[0].mxu0
        %v8869 = vadd.f32 0.0, %v8868
        %v8870 = vpop.f32.mrb[0].mxu0
        %8871 = vmatprep.mubr.bf16.mxu0 0
        %8872 = vmatmul.mubr.bf16.gmra.mrb[0].mxu0 %v8781
        %v8873 = vpop.f32.mrb[0].mxu0
        %v8874 = vadd.f32 0.0, %v8873
        %v8875 = vpop.f32.mrb[0].mxu0
        %v8876 = vpop.f32.mrb[0].mxu0
        %v8877 = vadd.f32 0.0, %v8876
        %v8878 = vpop.f32.mrb[0].mxu0
        %8879 = vdwg.mxu0
        %v8880 = vadd.f32 %v8419, %v8552
        %v8881 = vadd.f32 %v8880, %v8685
        %v8882 = vadd.f32 %v8881, %v8818
        %v8883 = vadd.f32 %v8422, %v8555
        %v8884 = vadd.f32 %v8883, %v8688
        %v8885 = vadd.f32 %v8884, %v8821
        %v8886 = vadd.f32 %v8427, %v8560
        %v8887 = vadd.f32 %v8886, %v8693
        %v8888 = vadd.f32 %v8887, %v8826
        %v8889 = vadd.f32 %v8430, %v8563
        %v8890 = vadd.f32 %v8889, %v8696
        %v8891 = vadd.f32 %v8890, %v8829
        %v8892 = vadd.f32 %v8435, %v8568
        %v8893 = vadd.f32 %v8892, %v8701
        %v8894 = vadd.f32 %v8893, %v8834
        %v8895 = vadd.f32 %v8438, %v8571
        %v8896 = vadd.f32 %v8895, %v8704
        %v8897 = vadd.f32 %v8896, %v8837
        %v8898 = vadd.f32 %v8443, %v8576
        %v8899 = vadd.f32 %v8898, %v8709
        %v8900 = vadd.f32 %v8899, %v8842
        %v8901 = vadd.f32 %v8446, %v8579
        %v8902 = vadd.f32 %v8901, %v8712
        %v8903 = vadd.f32 %v8902, %v8845
        %v8904 = vadd.f32 %v8451, %v8584
        %v8905 = vadd.f32 %v8904, %v8717
        %v8906 = vadd.f32 %v8905, %v8850
        %v8907 = vadd.f32 %v8454, %v8587
        %v8908 = vadd.f32 %v8907, %v8720
        %v8909 = vadd.f32 %v8908, %v8853
        %v8910 = vadd.f32 %v8459, %v8592
        %v8911 = vadd.f32 %v8910, %v8725
        %v8912 = vadd.f32 %v8911, %v8858
        %v8913 = vadd.f32 %v8462, %v8595
        %v8914 = vadd.f32 %v8913, %v8728
        %v8915 = vadd.f32 %v8914, %v8861
        %v8916 = vadd.f32 %v8467, %v8600
        %v8917 = vadd.f32 %v8916, %v8733
        %v8918 = vadd.f32 %v8917, %v8866
        %v8919 = vadd.f32 %v8470, %v8603
        %v8920 = vadd.f32 %v8919, %v8736
        %v8921 = vadd.f32 %v8920, %v8869
        %v8922 = vadd.f32 %v8475, %v8608
        %v8923 = vadd.f32 %v8922, %v8741
        %v8924 = vadd.f32 %v8923, %v8874
        %v8925 = vadd.f32 %v8478, %v8611
        %v8926 = vadd.f32 %v8925, %v8744
        %v8927 = vadd.f32 %v8926, %v8877
        %v8928 = vld [vmem:[%s7] sm:$0x1]
        %v8930 = vlaneseq
        %v8931 = vshrl.u32 %v8930, 7
        %v8932 = vsub.s32 0, %v8931
        %v8933 = vrot.slane %v8928, %v8932
        %v8935 = vadd.f32 %v8882, %v8933
        %v8936 = vadd.f32 %v8885, %v8933
        %v8937 = vadd.f32 %v8888, %v8933
        %v8938 = vadd.f32 %v8891, %v8933
        %v8939 = vadd.f32 %v8894, %v8933
        %v8940 = vadd.f32 %v8897, %v8933
        %v8941 = vadd.f32 %v8900, %v8933
        %v8942 = vadd.f32 %v8903, %v8933
        %v8943 = vadd.f32 %v8906, %v8933
        %v8944 = vadd.f32 %v8909, %v8933
        %v8945 = vadd.f32 %v8912, %v8933
        %v8946 = vadd.f32 %v8915, %v8933
        %v8947 = vadd.f32 %v8918, %v8933
        %v8948 = vadd.f32 %v8921, %v8933
        %v8949 = vadd.f32 %v8924, %v8933
        %v8950 = vadd.f32 %v8927, %v8933
        %8951 = vst [vmem:[%s461] sm:$0xff] %v8935
        %8952 = vst [vmem:[%s461 + $0x8] sm:$0xff] %v8936
        %8953 = vst [vmem:[%s461 + $0x10] sm:$0xff] %v8937
        %8954 = vst [vmem:[%s461 + $0x18] sm:$0xff] %v8938
        %8955 = vst [vmem:[%s461 + $0x20] sm:$0xff] %v8939
        %8956 = vst [vmem:[%s461 + $0x28] sm:$0xff] %v8940
        %8957 = vst [vmem:[%s461 + $0x30] sm:$0xff] %v8941
        %8958 = vst [vmem:[%s461 + $0x38] sm:$0xff] %v8942
        %8959 = vst [vmem:[%s461 + $0x40] sm:$0xff] %v8943
        %8960 = vst [vmem:[%s461 + $0x48] sm:$0xff] %v8944
        %8961 = vst [vmem:[%s461 + $0x50] sm:$0xff] %v8945
        %8962 = vst [vmem:[%s461 + $0x58] sm:$0xff] %v8946
        %8963 = vst [vmem:[%s461 + $0x60] sm:$0xff] %v8947
        %8964 = vst [vmem:[%s461 + $0x68] sm:$0xff] %v8948
        %8965 = vst [vmem:[%s461 + $0x70] sm:$0xff] %v8949
        %8966 = vst [vmem:[%s461 + $0x78] sm:$0xff] %v8950
        %s8967 = sand.u32 %s221, 1
        %s8968 = scalar_lea.sflag [#allocation4], %s8967
        %s8969 = sand.u32 %s221, 1
        %s8970 = smul.addr %s8969, 128
        %s8971 = scalar_lea.vmem [#allocation13], %s8970
        %s8972 = sand.u32 %s247, 1
        %s8973 = scalar_lea.sflag [#allocation15], %s8972
        %s8974 = sand.u32 %s247, 1
        %s8975 = smul.addr %s8974, 128
        %s8976 = scalar_lea.vmem [#allocation14], %s8975
        // Predicated region
        $region77: #{tpu_custom_call.1} parent=51 // pred_check
          %p8977 = pneg %p231
        $region78: #{tpu_custom_call.1} parent=51 // pred_check_branch
          %8979 = sbr.rel (%p8977) target = $region80
        $region79: #{tpu_custom_call.1} parent=51 // pred_region
          %s8980 = smul.u32 2, %s35
          %s8982 = ssub.s32 2048, 2048
          %8983 = vsyncadd %s8968, %s8982
          %s8984 = smul.addr %s8980, 8
          %s8985 = smul.addr %s8984, 128
          %s8986 = scalar_lea.hbm %s8, %s8985
          %s8987 = sshll.u32 %s8971, 4
          %s8988 = int_to_ptr.vmem [resolvable:$true] %s8987
          %8993 = dma.vmem_to_hbm [thread:$0]  %s8988, 2048, %s8986, %s8968, 128, 128, 8
        $region80: #{tpu_custom_call.1} parent=51 // pred_fallthru
          _
        // Predicated region
        $region81: #{tpu_custom_call.1} parent=51 // pred_check
          %p8994 = pneg %p257
        $region82: #{tpu_custom_call.1} parent=51 // pred_check_branch
          %8996 = sbr.rel (%p8994) target = $region84
        $region83: #{tpu_custom_call.1} parent=51 // pred_region
          %s8997 = smul.u32 2, %s35
          %s8999 = ssub.s32 2048, 2048
          %9000 = vsyncadd %s8973, %s8999
          %s9001 = smul.addr %s8997, 8
          %s9002 = smul.addr %s9001, 128
          %s9003 = scalar_lea.hbm %s9, %s9002
          %s9004 = sshll.u32 %s8976, 4
          %s9005 = int_to_ptr.vmem [resolvable:$true] %s9004
          %9010 = dma.vmem_to_hbm [thread:$0]  %s9005, 2048, %s9003, %s8973, 128, 128, 8
        $region84: #{tpu_custom_call.1} parent=51 // pred_fallthru
          _
      $region52: #{tpu_custom_call.1} parent=5 // pred_fallthru
        _
      %p9011 = scmp.le.s32.totalorder 2, %s30
      // Predicated region
      $region85: #{tpu_custom_call.1} parent=5 // pred_check
        %p9012 = pneg %p9011
      $region86: #{tpu_custom_call.1} parent=5 // pred_check_branch
        %9014 = sbr.rel (%p9012) target = $region88
      $region87: #{tpu_custom_call.1} parent=5 // pred_region
        %s9015 = ssub.s32 %s30, 2
        // Predicated region
        $region89: #{tpu_custom_call.1} parent=87 // pred_check
          %p9016 = pneg %p237
        $region90: #{tpu_custom_call.1} parent=87 // pred_check_branch
          %9018 = sbr.rel (%p9016) target = $region92
        $region91: #{tpu_custom_call.1} parent=87 // pred_region
          %s9019 = sand.u32 %s222, 1
          %s9020 = scalar_lea.sflag [#allocation4], %s9019
          %s9021 = sand.u32 %s222, 1
          %s9022 = smul.addr %s9021, 128
          %s9023 = scalar_lea.vmem [#allocation13], %s9022
          %9024 = dma.done %s9020, 2048
        $region92: #{tpu_custom_call.1} parent=87 // pred_fallthru
          _
        // Predicated region
        $region93: #{tpu_custom_call.1} parent=87 // pred_check
          %p9025 = pneg %p263
        $region94: #{tpu_custom_call.1} parent=87 // pred_check_branch
          %9027 = sbr.rel (%p9025) target = $region96
        $region95: #{tpu_custom_call.1} parent=87 // pred_region
          %s9028 = sand.u32 %s248, 1
          %s9029 = scalar_lea.sflag [#allocation15], %s9028
          %s9030 = sand.u32 %s248, 1
          %s9031 = smul.addr %s9030, 128
          %s9032 = scalar_lea.vmem [#allocation14], %s9031
          %9033 = dma.done %s9029, 2048
        $region96: #{tpu_custom_call.1} parent=87 // pred_fallthru
          _
      $region88: #{tpu_custom_call.1} parent=5 // pred_fallthru
        _
    $region6: #{tpu_custom_call.1} parent=1 // loop_footer
      %s34 = sadd.s32 1, %s30
    $region7: #{tpu_custom_call.1} parent=1 // loop_footer_branch
      %29 = sbr.rel target = $region3
    $region8: #{tpu_custom_call.1} parent=1 // loop_exit
      _
    %9034 = vsyncpa [#allocation3], 1
    %s9035 = scalar_lea.sflag [#allocation3], 1
    %9036 = vsyncpa %s9035, 1
    %9037 = vsyncpa [#allocation6], 1
    %s9038 = scalar_lea.sflag [#allocation6], 1
    %9039 = vsyncpa %s9038, 1
    %9040 = vsyncpa [#allocation9], 1
    %9041 = vsyncpa [#allocation12], 1
    %9042 = vsyncpa [#allocation4], 1
    %s9043 = scalar_lea.sflag [#allocation4], 1
    %9044 = vsyncpa %s9043, 1
    %9045 = vsyncpa [#allocation15], 1
    %s9046 = scalar_lea.sflag [#allocation15], 1
    %9047 = vsyncpa %s9046, 1

</llo_original>
